<compile_context>
chip_gen: v6e
topology: v6e:2x2x1
jax: 0.10.0
libtpu: 0.0.40
codegen_flags: <defaults>
</compile_context>

<pallas_src>
import functools

import numpy as np

import jax
import jax.numpy as jnp
from jax.experimental import pallas as pl
from jax.experimental.pallas import tpu as pltpu


_VMEM_LIMIT = 32 * 1024 * 1024


# --------------------------------------------------------------------------- #
# In-kernel building blocks (traced inside the Pallas kernel body).
# --------------------------------------------------------------------------- #

def _silu(x):
    return x * jax.nn.sigmoid(x)


def _matmul_bias_silu(x_bf16, w_ref, b_ref):
    """y = SiLU(x @ W + b): bf16 MXU operands, f32 accumulate, f32 epilogue."""
    y = jnp.dot(x_bf16, w_ref[...], preferred_element_type=jnp.float32)
    return _silu(y + b_ref[...])


def _taps3x3(xf, h, w):
    """Build (h*w, 9*C) bf16 im2col patches for a 3x3 / stride-1 / pad-1 conv.

    xf: (h*w, C) bf16 activation, rows ordered (y, x).  Each tap is a sublane
    shift of xf (zero-filled) with an iota-based border mask — no pad scratch,
    no strided slices.  Column order is (dy, dx, cin), matching the flattened
    weights.  Assumes w is a power of two (x-coordinate via bitwise AND).
    """
    m, c = xf.shape
    ids = jax.lax.broadcasted_iota(jnp.int32, (m, c), 0)       # flat row index
    xq = jnp.bitwise_and(ids, w - 1)                           # x coordinate
    zrows = jnp.zeros((w + 1, c), xf.dtype)
    zero = jnp.zeros_like(xf)
    cols = []
    for dy in range(3):
        for dx in range(3):
            s = (dy - 1) * w + (dx - 1)                        # flat-index shift
            if s > 0:
                t = jnp.concatenate([xf[s:], zrows[:s]], axis=0)
            elif s < 0:
                t = jnp.concatenate([zrows[:-s], xf[:m + s]], axis=0)
            else:
                t = xf
            conds = []
            if dy == 0:
                conds.append(ids >= w)                         # y - 1 >= 0
            if dy == 2:
                conds.append(ids < (h - 1) * w)                # y + 1 <= h-1
            if dx == 0:
                conds.append(xq > 0)                           # x - 1 >= 0
            if dx == 2:
                conds.append(xq < (w - 1))                     # x + 1 <= w-1
            if conds:
                valid = conds[0]
                for cnd in conds[1:]:
                    valid = jnp.logical_and(valid, cnd)
                t = jnp.where(valid, t, zero)
            cols.append(t)
    return jnp.concatenate(cols, axis=1)


def _conv3x3_s1(x_bf16, h, w, w_ref, b_ref):
    """3x3 / stride-1 / pad-1 Conv(+folded BN)+SiLU, one fused-tap MXU matmul."""
    return _matmul_bias_silu(_taps3x3(x_bf16, h, w), w_ref, b_ref)


def _conv3x3_s2(x_f32, h, w, g_ref, w_ref, b_ref):
    """3x3 / stride-2 / pad-1 Conv+BN+SiLU.

    Full-resolution patches built in VMEM, then subsampled with the 0/1
    selection matrix g (exact in bf16), then one fused-tap MXU matmul.
    """
    patches = _taps3x3(x_f32.astype(jnp.bfloat16), h, w)            # (h*w, 9C)
    patches = jnp.dot(g_ref[...], patches,
                      preferred_element_type=jnp.float32).astype(jnp.bfloat16)
    return _matmul_bias_silu(patches, w_ref, b_ref)                 # (h*w/4, Cout)


def _bottleneck(b_f32, h, w, wa, ba, wb, bb):
    """YOLOv8 Bottleneck(c, c, shortcut=True): x + cv2(cv1(x)), shortcut in f32."""
    t = _conv3x3_s1(b_f32.astype(jnp.bfloat16), h, w, wa, ba)
    t = _conv3x3_s1(t.astype(jnp.bfloat16), h, w, wb, bb)
    return b_f32 + t


def _c2f(x_f32, h, w, cv1w, cv1b, m_params, cv2w, cv2b):
    """YOLOv8 C2f block, fully VMEM resident."""
    y = _matmul_bias_silu(x_f32.astype(jnp.bfloat16), cv1w, cv1b)
    c = y.shape[-1] // 2
    parts = [y[:, :c], y[:, c:]]
    for (wa, ba, wb, bb) in m_params:
        parts.append(_bottleneck(parts[-1], h, w, wa, ba, wb, bb))
    cat = jnp.concatenate([p.astype(jnp.bfloat16) for p in parts], axis=1)
    return _matmul_bias_silu(cat, cv2w, cv2b)


# --------------------------------------------------------------------------- #
# The single fused Pallas kernel (one sample per grid program).
# --------------------------------------------------------------------------- #

def _fused_kernel(*refs, hw1, hw2, hw3):
    (p0_ref, g1_ref, g3_ref, g5_ref,
     l0w, l0b, l1w, l1b,
     c2c1w, c2c1b, c2m1aw, c2m1ab, c2m1bw, c2m1bb, c2c2w, c2c2b,
     l3w, l3b,
     c4c1w, c4c1b, c4m1aw, c4m1ab, c4m1bw, c4m1bb,
     c4m2aw, c4m2ab, c4m2bw, c4m2bb, c4c2w, c4c2b,
     l5w, l5b, fcw, fcb, o_ref) = refs

    h1, w1 = hw1
    h2, w2 = hw2
    h3, w3 = hw3

    # Layer 0: stride-2 Conv 3->16 on wrapper-built patches (one MXU matmul).
    x0 = _matmul_bias_silu(p0_ref[0], l0w, l0b)                       # (h1*w1, 16)

    # Layer 1: stride-2 Conv 16->32 (in-kernel patches + MXU subsample).
    x1 = _conv3x3_s2(x0, h1, w1, g1_ref, l1w, l1b)                    # (h2*w2, 32)

    # Layer 2: C2f(32, 32, n=1).
    x2 = _c2f(x1, h2, w2, c2c1w, c2c1b,
              ((c2m1aw, c2m1ab, c2m1bw, c2m1bb),), c2c2w, c2c2b)      # (h2*w2, 32)

    # Layer 3: stride-2 Conv 32->64.
    x3 = _conv3x3_s2(x2, h2, w2, g3_ref, l3w, l3b)                    # (h3*w3, 64)

    # Layer 4: C2f(64, 64, n=2).
    x4 = _c2f(x3, h3, w3, c4c1w, c4c1b,
              ((c4m1aw, c4m1ab, c4m1bw, c4m1bb),
               (c4m2aw, c4m2ab, c4m2bw, c4m2bb)), c4c2w, c4c2b)       # (h3*w3, 64)

    # Layer 5: stride-2 Conv 64->128.
    x5 = _conv3x3_s2(x4, h3, w3, g5_ref, l5w, l5b)                    # (h3*w3/4, 128)

    # Head: AdaptiveAvgPool2d(1) + Linear(128, 1) + Sigmoid (f32 epilogue).
    pooled = jnp.mean(x5, axis=0, keepdims=True)                      # (1, 128)
    logit = jnp.sum(pooled * fcw[...], axis=-1, keepdims=True) + fcb[...]
    prob = jax.nn.sigmoid(logit)                                      # (1, 1)

    # Lane-dense (8, 128) store of the per-sample probability.
    o_ref[...] = jnp.broadcast_to(prob.reshape(1, 1, 1), o_ref.shape)


# --------------------------------------------------------------------------- #
# Host-side wrapper.
# --------------------------------------------------------------------------- #

def _im2col_s2(x, k=3, stride=2):
    """Layer-0 only: NHWC input image -> (N, Ho*Wo, k*k*C) bf16 patch tensor."""
    n, h, w, c = x.shape
    p = k // 2
    ho = (h + 2 * p - k) // stride + 1
    wo = (w + 2 * p - k) // stride + 1
    xp = jnp.pad(x, ((0, 0), (p, p), (p, p), (0, 0)))
    cols = []
    for dy in range(k):
        for dx in range(k):
            cols.append(xp[:, dy:dy + (ho - 1) * stride + 1:stride,
                           dx:dx + (wo - 1) * stride + 1:stride, :])
    pm = jnp.concatenate(cols, axis=-1).reshape(n, ho * wo, k * k * c)
    return pm.astype(jnp.bfloat16), (ho, wo)


def _subsample_matrix(h, w):
    """0/1 selection matrix (h/2*w/2, h*w) picking even-(y,x) rows (stride-2)."""
    ho, wo = h // 2, w // 2
    rows = np.arange(ho * wo)
    cols = (rows // wo) * 2 * w + (rows % wo) * 2
    g = (np.arange(h * w)[None, :] == cols[:, None]).astype(np.float32)
    return jnp.asarray(g, dtype=jnp.bfloat16)


def _flat_weights(prep):
    """Flatten the prepared params in the exact order of the kernel signature."""
    l2, l4 = prep["l2"], prep["l4"]
    pairs = [prep["l0"], prep["l1"],
             l2["cv1"], l2["m"][0]["cv1"], l2["m"][0]["cv2"], l2["cv2"],
             prep["l3"],
             l4["cv1"], l4["m"][0]["cv1"], l4["m"][0]["cv2"],
             l4["m"][1]["cv1"], l4["m"][1]["cv2"], l4["cv2"],
             prep["l5"]]
    flat = []
    for w, b in pairs:
        flat += [w, b]
    flat += [prep["fc_w"], prep["fc_b"]]
    return flat


def yolov8n_backbone_classifier(x_nchw, prep):
    """Forward pass (NCHW input, PyTorch convention).  Exactly ONE pallas_call."""
    n, _, h, w = x_nchw.shape
    x = jnp.transpose(x_nchw, (0, 2, 3, 1)).astype(jnp.float32)      # NCHW -> NHWC

    p0, (h1, w1) = _im2col_s2(x)                                     # layer-0 patches
    h2, w2 = h1 // 2, w1 // 2
    h3, w3 = h2 // 2, w2 // 2
    for ww in (w1, w2, w3):
        assert ww >= 2 and (ww & (ww - 1)) == 0, (
            "in-kernel patch builder assumes power-of-two feature-map widths")

    g1 = _subsample_matrix(h1, w1)
    g3 = _subsample_matrix(h2, w2)
    g5 = _subsample_matrix(h3, w3)

    args = [p0, g1, g3, g5] + _flat_weights(prep)
    in_specs = ([pl.BlockSpec((1, h1 * w1, p0.shape[-1]), lambda b: (b, 0, 0))] +
                [pl.BlockSpec(a.shape, lambda b: (0, 0)) for a in args[1:]])

    out = pl.pallas_call(
        functools.partial(_fused_kernel,
                          hw1=(h1, w1), hw2=(h2, w2), hw3=(h3, w3)),
        out_shape=jax.ShapeDtypeStruct((n, 8, 128), jnp.float32),
        grid=(n,),
        in_specs=in_specs,
        out_specs=pl.BlockSpec((1, 8, 128), lambda b: (b, 0, 0)),
        compiler_params=pltpu.CompilerParams(
            dimension_semantics=("parallel",),
            vmem_limit_bytes=_VMEM_LIMIT),
    )(*args)
    return out[:, 0, :1]                                             # (N, 1)


# --------------------------------------------------------------------------- #
# Parameters.
# --------------------------------------------------------------------------- #

def init_params(key):
    """Deterministic synthetic parameters with YOLOv8n layer shapes.

    BatchNorm (eval mode) is folded into each conv.  Here running_mean = 0, so
    the folded bias is just beta.  NOTE: for real checkpoints the folded bias
    must be beta - running_mean * gamma / sqrt(running_var + eps).
    """
    keys = iter(jax.random.split(key, 64))

    def conv(k, cin, cout):
        w = jax.random.normal(next(keys), (k, k, cin, cout), jnp.float32)
        w = w * (2.0 / (k * k * cin)) ** 0.5
        beta = jax.random.normal(next(keys), (cout,), jnp.float32) * 0.01
        scale = 1.0 / jnp.sqrt(1.0 + 1e-3)            # gamma / sqrt(var + eps)
        return (w * scale).astype(jnp.float32), beta.astype(jnp.float32)

    p = {}
    p["l0"] = conv(3, 3, 16)
    p["l1"] = conv(3, 16, 32)
    p["l2"] = {
        "cv1": conv(1, 32, 32),
        "m": [{"cv1": conv(3, 16, 16), "cv2": conv(3, 16, 16)}],
        "cv2": conv(1, 48, 32),
    }
    p["l3"] = conv(3, 32, 64)
    p["l4"] = {
        "cv1": conv(1, 64, 64),
        "m": [
            {"cv1": conv(3, 32, 32), "cv2": conv(3, 32, 32)},
            {"cv1": conv(3, 32, 32), "cv2": conv(3, 32, 32)},
        ],
        "cv2": conv(1, 128, 64),
    }
    p["l5"] = conv(3, 64, 128)
    p["fc_w"] = jax.random.normal(next(keys), (128, 1), jnp.float32) * (1.0 / 128.0) ** 0.5
    p["fc_b"] = jnp.zeros((1,), jnp.float32)
    return p


def prepare_params(params):
    """Kernel-ready params: conv weights flattened to (k*k*Cin, Cout) bf16 with
    rows ordered (dy, dx, cin) to match the patch layout; biases (1, Cout) f32."""
    def cw(wb):
        w, b = wb
        k, _, cin, cout = w.shape
        return (w.reshape(k * k * cin, cout).astype(jnp.bfloat16),
                b.reshape(1, cout).astype(jnp.float32))

    def c2f(cp):
        return {"cv1": cw(cp["cv1"]),
                "m": [{"cv1": cw(m["cv1"]), "cv2": cw(m["cv2"])} for m in cp["m"]],
                "cv2": cw(cp["cv2"])}

    return {
        "l0": cw(params["l0"]), "l1": cw(params["l1"]), "l2": c2f(params["l2"]),
        "l3": cw(params["l3"]), "l4": c2f(params["l4"]), "l5": cw(params["l5"]),
        "fc_w": params["fc_w"].reshape(1, -1).astype(jnp.float32),   # (1, 128)
        "fc_b": params["fc_b"].reshape(1, 1).astype(jnp.float32),
    }


# --------------------------------------------------------------------------- #
# Pure-XLA f32 reference (validation only).
# --------------------------------------------------------------------------- #

def _ref_conv(x, w, b, stride):
    k = w.shape[0]
    p = k // 2
    y = jax.lax.conv_general_dilated(
        x, w, window_strides=(stride, stride), padding=((p, p), (p, p)),
        dimension_numbers=("NHWC", "HWIO", "NHWC"))
    y = y + b
    return y * jax.nn.sigmoid(y)


def _ref_c2f(x, cp):
    y = _ref_conv(x, cp["cv1"][0], cp["cv1"][1], 1)
    c = y.shape[-1] // 2
    ys = [y[..., :c], y[..., c:]]
    for bp in cp["m"]:
        t = _ref_conv(ys[-1], bp["cv1"][0], bp["cv1"][1], 1)
        t = _ref_conv(t, bp["cv2"][0], bp["cv2"][1], 1)
        ys.append(ys[-1] + t)
    return _ref_conv(jnp.concatenate(ys, axis=-1), cp["cv2"][0], cp["cv2"][1], 1)


def reference_forward(x_nchw, params):
    x = jnp.transpose(x_nchw, (0, 2, 3, 1)).astype(jnp.float32)
    x = _ref_conv(x, *params["l0"], 2)
    x = _ref_conv(x, *params["l1"], 2)
    x = _ref_c2f(x, params["l2"])
    x = _ref_conv(x, *params["l3"], 2)
    x = _ref_c2f(x, params["l4"])
    x = _ref_conv(x, *params["l5"], 2)
    pooled = jnp.mean(x, axis=(1, 2))
    return jax.nn.sigmoid(pooled @ params["fc_w"] + params["fc_b"])


# --------------------------------------------------------------------------- #
# Main.
# --------------------------------------------------------------------------- #

if __name__ == "__main__":
    key = jax.random.PRNGKey(0)
    k_param, k_input = jax.random.split(key)

    params = init_params(k_param)
    prep = prepare_params(params)

    # NCHW input, 3 channels, 32x32 spatial (four stride-2 convs -> 2x2x128 map).
    x = jax.random.normal(k_input, (2, 3, 32, 32), jnp.float32)

    fwd = jax.jit(yolov8n_backbone_classifier)
    out = jax.block_until_ready(fwd(x, prep))

    assert out.shape == (2, 1), out.shape
    assert bool(jnp.all(jnp.isfinite(out)))
    assert bool(jnp.all((out > 0.0) & (out < 1.0)))   # sigmoid output range

    # Cross-check against a pure-XLA f32 reference (bf16 MXU operands -> loose tol).
    ref = reference_forward(x, params)
    err = float(jnp.max(jnp.abs(out - ref)))
    assert err < 5e-2, f"max |pallas - reference| = {err}"

    print("KERNEL_OK")
</pallas_src>

<mosaic_0001>
module attributes {stable_mosaic.version = 11 : i64} {
  func.func @_fused_kernel(%arg0: i32, %arg1: memref<1x256x27xbf16, #tpu.memory_space<vmem>>, %arg2: memref<64x256xbf16, #tpu.memory_space<vmem>>, %arg3: memref<16x64xbf16, #tpu.memory_space<vmem>>, %arg4: memref<4x16xbf16, #tpu.memory_space<vmem>>, %arg5: memref<27x16xbf16, #tpu.memory_space<vmem>>, %arg6: memref<1x16xf32, #tpu.memory_space<vmem>>, %arg7: memref<144x32xbf16, #tpu.memory_space<vmem>>, %arg8: memref<1x32xf32, #tpu.memory_space<vmem>>, %arg9: memref<32x32xbf16, #tpu.memory_space<vmem>>, %arg10: memref<1x32xf32, #tpu.memory_space<vmem>>, %arg11: memref<144x16xbf16, #tpu.memory_space<vmem>>, %arg12: memref<1x16xf32, #tpu.memory_space<vmem>>, %arg13: memref<144x16xbf16, #tpu.memory_space<vmem>>, %arg14: memref<1x16xf32, #tpu.memory_space<vmem>>, %arg15: memref<48x32xbf16, #tpu.memory_space<vmem>>, %arg16: memref<1x32xf32, #tpu.memory_space<vmem>>, %arg17: memref<288x64xbf16, #tpu.memory_space<vmem>>, %arg18: memref<1x64xf32, #tpu.memory_space<vmem>>, %arg19: memref<64x64xbf16, #tpu.memory_space<vmem>>, %arg20: memref<1x64xf32, #tpu.memory_space<vmem>>, %arg21: memref<288x32xbf16, #tpu.memory_space<vmem>>, %arg22: memref<1x32xf32, #tpu.memory_space<vmem>>, %arg23: memref<288x32xbf16, #tpu.memory_space<vmem>>, %arg24: memref<1x32xf32, #tpu.memory_space<vmem>>, %arg25: memref<288x32xbf16, #tpu.memory_space<vmem>>, %arg26: memref<1x32xf32, #tpu.memory_space<vmem>>, %arg27: memref<288x32xbf16, #tpu.memory_space<vmem>>, %arg28: memref<1x32xf32, #tpu.memory_space<vmem>>, %arg29: memref<128x64xbf16, #tpu.memory_space<vmem>>, %arg30: memref<1x64xf32, #tpu.memory_space<vmem>>, %arg31: memref<576x128xbf16, #tpu.memory_space<vmem>>, %arg32: memref<1x128xf32, #tpu.memory_space<vmem>>, %arg33: memref<1x128xf32, #tpu.memory_space<vmem>>, %arg34: memref<1x1xf32, #tpu.memory_space<vmem>>, %arg35: memref<1x8x128xf32, #tpu.memory_space<vmem>>) attributes {dimension_semantics = [#tpu.dimension_semantics<parallel>], iteration_bounds = array<i64: 2>, scalar_prefetch = 0 : i64, scratch_operands = 0 : i64, tpu.core_type = #tpu.core_type<tc>, window_params = [{transform_indices = @transform_0, window_bounds = array<i64: 1, 256, 27>}, {pipeline_mode = #tpu.pipeline_mode<synchronous>, transform_indices = @transform_1, window_bounds = array<i64: 64, 256>}, {pipeline_mode = #tpu.pipeline_mode<synchronous>, transform_indices = @transform_2, window_bounds = array<i64: 16, 64>}, {pipeline_mode = #tpu.pipeline_mode<synchronous>, transform_indices = @transform_3, window_bounds = array<i64: 4, 16>}, {pipeline_mode = #tpu.pipeline_mode<synchronous>, transform_indices = @transform_4, window_bounds = array<i64: 27, 16>}, {pipeline_mode = #tpu.pipeline_mode<synchronous>, transform_indices = @transform_5, window_bounds = array<i64: 1, 16>}, {pipeline_mode = #tpu.pipeline_mode<synchronous>, transform_indices = @transform_6, window_bounds = array<i64: 144, 32>}, {pipeline_mode = #tpu.pipeline_mode<synchronous>, transform_indices = @transform_7, window_bounds = array<i64: 1, 32>}, {pipeline_mode = #tpu.pipeline_mode<synchronous>, transform_indices = @transform_8, window_bounds = array<i64: 32, 32>}, {pipeline_mode = #tpu.pipeline_mode<synchronous>, transform_indices = @transform_9, window_bounds = array<i64: 1, 32>}, {pipeline_mode = #tpu.pipeline_mode<synchronous>, transform_indices = @transform_10, window_bounds = array<i64: 144, 16>}, {pipeline_mode = #tpu.pipeline_mode<synchronous>, transform_indices = @transform_11, window_bounds = array<i64: 1, 16>}, {pipeline_mode = #tpu.pipeline_mode<synchronous>, transform_indices = @transform_12, window_bounds = array<i64: 144, 16>}, {pipeline_mode = #tpu.pipeline_mode<synchronous>, transform_indices = @transform_13, window_bounds = array<i64: 1, 16>}, {pipeline_mode = #tpu.pipeline_mode<synchronous>, transform_indices = @transform_14, window_bounds = array<i64: 48, 32>}, {pipeline_mode = #tpu.pipeline_mode<synchronous>, transform_indices = @transform_15, window_bounds = array<i64: 1, 32>}, {pipeline_mode = #tpu.pipeline_mode<synchronous>, transform_indices = @transform_16, window_bounds = array<i64: 288, 64>}, {pipeline_mode = #tpu.pipeline_mode<synchronous>, transform_indices = @transform_17, window_bounds = array<i64: 1, 64>}, {pipeline_mode = #tpu.pipeline_mode<synchronous>, transform_indices = @transform_18, window_bounds = array<i64: 64, 64>}, {pipeline_mode = #tpu.pipeline_mode<synchronous>, transform_indices = @transform_19, window_bounds = array<i64: 1, 64>}, {pipeline_mode = #tpu.pipeline_mode<synchronous>, transform_indices = @transform_20, window_bounds = array<i64: 288, 32>}, {pipeline_mode = #tpu.pipeline_mode<synchronous>, transform_indices = @transform_21, window_bounds = array<i64: 1, 32>}, {pipeline_mode = #tpu.pipeline_mode<synchronous>, transform_indices = @transform_22, window_bounds = array<i64: 288, 32>}, {pipeline_mode = #tpu.pipeline_mode<synchronous>, transform_indices = @transform_23, window_bounds = array<i64: 1, 32>}, {pipeline_mode = #tpu.pipeline_mode<synchronous>, transform_indices = @transform_24, window_bounds = array<i64: 288, 32>}, {pipeline_mode = #tpu.pipeline_mode<synchronous>, transform_indices = @transform_25, window_bounds = array<i64: 1, 32>}, {pipeline_mode = #tpu.pipeline_mode<synchronous>, transform_indices = @transform_26, window_bounds = array<i64: 288, 32>}, {pipeline_mode = #tpu.pipeline_mode<synchronous>, transform_indices = @transform_27, window_bounds = array<i64: 1, 32>}, {pipeline_mode = #tpu.pipeline_mode<synchronous>, transform_indices = @transform_28, window_bounds = array<i64: 128, 64>}, {pipeline_mode = #tpu.pipeline_mode<synchronous>, transform_indices = @transform_29, window_bounds = array<i64: 1, 64>}, {pipeline_mode = #tpu.pipeline_mode<synchronous>, transform_indices = @transform_30, window_bounds = array<i64: 576, 128>}, {pipeline_mode = #tpu.pipeline_mode<synchronous>, transform_indices = @transform_31, window_bounds = array<i64: 1, 128>}, {pipeline_mode = #tpu.pipeline_mode<synchronous>, transform_indices = @transform_32, window_bounds = array<i64: 1, 128>}, {pipeline_mode = #tpu.pipeline_mode<synchronous>, transform_indices = @transform_33, window_bounds = array<i64: 1, 1>}, {transform_indices = @transform_34, window_bounds = array<i64: 1, 8, 128>}]} {
    %c0 = arith.constant 0 : index
    %c0_0 = arith.constant 0 : index
    %c0_1 = arith.constant 0 : index
    %0 = vector.load %arg1[%c0, %c0_0, %c0_1] : memref<1x256x27xbf16, #tpu.memory_space<vmem>>, vector<1x256x27xbf16>
    %1 = vector.shape_cast %0 : vector<1x256x27xbf16> to vector<256x27xbf16>
    %c0_2 = arith.constant 0 : index
    %c0_3 = arith.constant 0 : index
    %2 = vector.load %arg5[%c0_2, %c0_3] : memref<27x16xbf16, #tpu.memory_space<vmem>>, vector<27x16xbf16>
    %cst = arith.constant dense<0.000000e+00> : vector<256x16xf32>
    %3 = tpu.matmul %1, %2, %cst {dimension_numbers = #tpu.dot_dimension_numbers<[1], [0], [0], [1], [0, 0, 1, 1], [], []>} : vector<256x27xbf16>, vector<27x16xbf16>, vector<256x16xf32> -> vector<256x16xf32>
    %c0_4 = arith.constant 0 : index
    %c0_5 = arith.constant 0 : index
    %4 = vector.load %arg6[%c0_4, %c0_5] : memref<1x16xf32, #tpu.memory_space<vmem>>, vector<1x16xf32>
    %5 = vector.broadcast %4 : vector<1x16xf32> to vector<256x16xf32>
    %6 = arith.addf %3, %5 : vector<256x16xf32>
    %7 = arith.negf %6 : vector<256x16xf32>
    %8 = math.exp %7 : vector<256x16xf32>
    %cst_6 = arith.constant 1.000000e+00 : f32
    %9 = vector.broadcast %cst_6 : f32 to vector<256x16xf32>
    %10 = arith.addf %9, %8 : vector<256x16xf32>
    %11 = arith.divf %9, %10 : vector<256x16xf32>
    %12 = arith.mulf %6, %11 : vector<256x16xf32>
    %13 = arith.truncf %12 : vector<256x16xf32> to vector<256x16xbf16>
    %14 = tpu.iota {dimensions = array<i32: 0>} : vector<256x16xi32>
    %c15_i32 = arith.constant 15 : i32
    %15 = vector.broadcast %c15_i32 : i32 to vector<256x16xi32>
    %16 = arith.andi %14, %15 : vector<256x16xi32>
    %cst_7 = arith.constant 0.000000e+00 : bf16
    %17 = vector.broadcast %cst_7 : bf16 to vector<17x16xbf16>
    %cst_8 = arith.constant 0.000000e+00 : bf16
    %18 = vector.broadcast %cst_8 : bf16 to vector<256x16xbf16>
    %19 = vector.extract_strided_slice %13 {offsets = [0, 0], sizes = [239, 16], strides = [1, 1]} : vector<256x16xbf16> to vector<239x16xbf16>
    %20 = tpu.concatenate %17, %19 in 0 : vector<17x16xbf16>, vector<239x16xbf16> -> vector<256x16xbf16>
    %c16_i32 = arith.constant 16 : i32
    %21 = vector.broadcast %c16_i32 : i32 to vector<256x16xi32>
    %22 = arith.cmpi sge, %14, %21 : vector<256x16xi32>
    %c0_i32 = arith.constant 0 : i32
    %23 = vector.broadcast %c0_i32 : i32 to vector<256x16xi32>
    %24 = arith.cmpi sgt, %16, %23 : vector<256x16xi32>
    %25 = arith.andi %22, %24 : vector<256x16xi1>
    %26 = arith.select %25, %20, %18 : vector<256x16xi1>, vector<256x16xbf16>
    %27 = vector.extract_strided_slice %17 {offsets = [0, 0], sizes = [16, 16], strides = [1, 1]} : vector<17x16xbf16> to vector<16x16xbf16>
    %28 = vector.extract_strided_slice %13 {offsets = [0, 0], sizes = [240, 16], strides = [1, 1]} : vector<256x16xbf16> to vector<240x16xbf16>
    %29 = tpu.concatenate %27, %28 in 0 : vector<16x16xbf16>, vector<240x16xbf16> -> vector<256x16xbf16>
    %c16_i32_9 = arith.constant 16 : i32
    %30 = vector.broadcast %c16_i32_9 : i32 to vector<256x16xi32>
    %31 = arith.cmpi sge, %14, %30 : vector<256x16xi32>
    %32 = arith.select %31, %29, %18 : vector<256x16xi1>, vector<256x16xbf16>
    %33 = vector.extract_strided_slice %17 {offsets = [0, 0], sizes = [15, 16], strides = [1, 1]} : vector<17x16xbf16> to vector<15x16xbf16>
    %34 = vector.extract_strided_slice %13 {offsets = [0, 0], sizes = [241, 16], strides = [1, 1]} : vector<256x16xbf16> to vector<241x16xbf16>
    %35 = tpu.concatenate %33, %34 in 0 : vector<15x16xbf16>, vector<241x16xbf16> -> vector<256x16xbf16>
    %c16_i32_10 = arith.constant 16 : i32
    %36 = vector.broadcast %c16_i32_10 : i32 to vector<256x16xi32>
    %37 = arith.cmpi sge, %14, %36 : vector<256x16xi32>
    %c15_i32_11 = arith.constant 15 : i32
    %38 = vector.broadcast %c15_i32_11 : i32 to vector<256x16xi32>
    %39 = arith.cmpi slt, %16, %38 : vector<256x16xi32>
    %40 = arith.andi %37, %39 : vector<256x16xi1>
    %41 = arith.select %40, %35, %18 : vector<256x16xi1>, vector<256x16xbf16>
    %42 = vector.extract_strided_slice %17 {offsets = [0, 0], sizes = [1, 16], strides = [1, 1]} : vector<17x16xbf16> to vector<1x16xbf16>
    %43 = vector.extract_strided_slice %13 {offsets = [0, 0], sizes = [255, 16], strides = [1, 1]} : vector<256x16xbf16> to vector<255x16xbf16>
    %44 = tpu.concatenate %42, %43 in 0 : vector<1x16xbf16>, vector<255x16xbf16> -> vector<256x16xbf16>
    %c0_i32_12 = arith.constant 0 : i32
    %45 = vector.broadcast %c0_i32_12 : i32 to vector<256x16xi32>
    %46 = arith.cmpi sgt, %16, %45 : vector<256x16xi32>
    %47 = arith.select %46, %44, %18 : vector<256x16xi1>, vector<256x16xbf16>
    %48 = vector.extract_strided_slice %13 {offsets = [1, 0], sizes = [255, 16], strides = [1, 1]} : vector<256x16xbf16> to vector<255x16xbf16>
    %49 = vector.extract_strided_slice %17 {offsets = [0, 0], sizes = [1, 16], strides = [1, 1]} : vector<17x16xbf16> to vector<1x16xbf16>
    %50 = tpu.concatenate %48, %49 in 0 : vector<255x16xbf16>, vector<1x16xbf16> -> vector<256x16xbf16>
    %c15_i32_13 = arith.constant 15 : i32
    %51 = vector.broadcast %c15_i32_13 : i32 to vector<256x16xi32>
    %52 = arith.cmpi slt, %16, %51 : vector<256x16xi32>
    %53 = arith.select %52, %50, %18 : vector<256x16xi1>, vector<256x16xbf16>
    %54 = vector.extract_strided_slice %13 {offsets = [15, 0], sizes = [241, 16], strides = [1, 1]} : vector<256x16xbf16> to vector<241x16xbf16>
    %55 = vector.extract_strided_slice %17 {offsets = [0, 0], sizes = [15, 16], strides = [1, 1]} : vector<17x16xbf16> to vector<15x16xbf16>
    %56 = tpu.concatenate %54, %55 in 0 : vector<241x16xbf16>, vector<15x16xbf16> -> vector<256x16xbf16>
    %c240_i32 = arith.constant 240 : i32
    %57 = vector.broadcast %c240_i32 : i32 to vector<256x16xi32>
    %58 = arith.cmpi slt, %14, %57 : vector<256x16xi32>
    %c0_i32_14 = arith.constant 0 : i32
    %59 = vector.broadcast %c0_i32_14 : i32 to vector<256x16xi32>
    %60 = arith.cmpi sgt, %16, %59 : vector<256x16xi32>
    %61 = arith.andi %58, %60 : vector<256x16xi1>
    %62 = arith.select %61, %56, %18 : vector<256x16xi1>, vector<256x16xbf16>
    %63 = vector.extract_strided_slice %13 {offsets = [16, 0], sizes = [240, 16], strides = [1, 1]} : vector<256x16xbf16> to vector<240x16xbf16>
    %64 = vector.extract_strided_slice %17 {offsets = [0, 0], sizes = [16, 16], strides = [1, 1]} : vector<17x16xbf16> to vector<16x16xbf16>
    %65 = tpu.concatenate %63, %64 in 0 : vector<240x16xbf16>, vector<16x16xbf16> -> vector<256x16xbf16>
    %c240_i32_15 = arith.constant 240 : i32
    %66 = vector.broadcast %c240_i32_15 : i32 to vector<256x16xi32>
    %67 = arith.cmpi slt, %14, %66 : vector<256x16xi32>
    %68 = arith.select %67, %65, %18 : vector<256x16xi1>, vector<256x16xbf16>
    %69 = vector.extract_strided_slice %13 {offsets = [17, 0], sizes = [239, 16], strides = [1, 1]} : vector<256x16xbf16> to vector<239x16xbf16>
    %70 = tpu.concatenate %69, %17 in 0 : vector<239x16xbf16>, vector<17x16xbf16> -> vector<256x16xbf16>
    %c240_i32_16 = arith.constant 240 : i32
    %71 = vector.broadcast %c240_i32_16 : i32 to vector<256x16xi32>
    %72 = arith.cmpi slt, %14, %71 : vector<256x16xi32>
    %c15_i32_17 = arith.constant 15 : i32
    %73 = vector.broadcast %c15_i32_17 : i32 to vector<256x16xi32>
    %74 = arith.cmpi slt, %16, %73 : vector<256x16xi32>
    %75 = arith.andi %72, %74 : vector<256x16xi1>
    %76 = arith.select %75, %70, %18 : vector<256x16xi1>, vector<256x16xbf16>
    %77 = tpu.concatenate %26, %32, %41, %47, %13, %53, %62, %68, %76 in 1 : vector<256x16xbf16>, vector<256x16xbf16>, vector<256x16xbf16>, vector<256x16xbf16>, vector<256x16xbf16>, vector<256x16xbf16>, vector<256x16xbf16>, vector<256x16xbf16>, vector<256x16xbf16> -> vector<256x144xbf16>
    %c0_18 = arith.constant 0 : index
    %c0_19 = arith.constant 0 : index
    %78 = vector.load %arg2[%c0_18, %c0_19] : memref<64x256xbf16, #tpu.memory_space<vmem>>, vector<64x256xbf16>
    %cst_20 = arith.constant dense<0.000000e+00> : vector<64x144xf32>
    %79 = tpu.matmul %78, %77, %cst_20 {dimension_numbers = #tpu.dot_dimension_numbers<[1], [0], [0], [1], [0, 0, 1, 1], [], []>} : vector<64x256xbf16>, vector<256x144xbf16>, vector<64x144xf32> -> vector<64x144xf32>
    %80 = arith.truncf %79 : vector<64x144xf32> to vector<64x144xbf16>
    %c0_21 = arith.constant 0 : index
    %c0_22 = arith.constant 0 : index
    %81 = vector.load %arg7[%c0_21, %c0_22] : memref<144x32xbf16, #tpu.memory_space<vmem>>, vector<144x32xbf16>
    %cst_23 = arith.constant dense<0.000000e+00> : vector<64x32xf32>
    %82 = tpu.matmul %80, %81, %cst_23 {dimension_numbers = #tpu.dot_dimension_numbers<[1], [0], [0], [1], [0, 0, 1, 1], [], []>} : vector<64x144xbf16>, vector<144x32xbf16>, vector<64x32xf32> -> vector<64x32xf32>
    %c0_24 = arith.constant 0 : index
    %c0_25 = arith.constant 0 : index
    %83 = vector.load %arg8[%c0_24, %c0_25] : memref<1x32xf32, #tpu.memory_space<vmem>>, vector<1x32xf32>
    %84 = vector.broadcast %83 : vector<1x32xf32> to vector<64x32xf32>
    %85 = arith.addf %82, %84 : vector<64x32xf32>
    %86 = arith.negf %85 : vector<64x32xf32>
    %87 = math.exp %86 : vector<64x32xf32>
    %cst_26 = arith.constant 1.000000e+00 : f32
    %88 = vector.broadcast %cst_26 : f32 to vector<64x32xf32>
    %89 = arith.addf %88, %87 : vector<64x32xf32>
    %90 = arith.divf %88, %89 : vector<64x32xf32>
    %91 = arith.mulf %85, %90 : vector<64x32xf32>
    %92 = arith.truncf %91 : vector<64x32xf32> to vector<64x32xbf16>
    %c0_27 = arith.constant 0 : index
    %c0_28 = arith.constant 0 : index
    %93 = vector.load %arg9[%c0_27, %c0_28] : memref<32x32xbf16, #tpu.memory_space<vmem>>, vector<32x32xbf16>
    %cst_29 = arith.constant dense<0.000000e+00> : vector<64x32xf32>
    %94 = tpu.matmul %92, %93, %cst_29 {dimension_numbers = #tpu.dot_dimension_numbers<[1], [0], [0], [1], [0, 0, 1, 1], [], []>} : vector<64x32xbf16>, vector<32x32xbf16>, vector<64x32xf32> -> vector<64x32xf32>
    %c0_30 = arith.constant 0 : index
    %c0_31 = arith.constant 0 : index
    %95 = vector.load %arg10[%c0_30, %c0_31] : memref<1x32xf32, #tpu.memory_space<vmem>>, vector<1x32xf32>
    %96 = vector.broadcast %95 : vector<1x32xf32> to vector<64x32xf32>
    %97 = arith.addf %94, %96 : vector<64x32xf32>
    %98 = arith.negf %97 : vector<64x32xf32>
    %99 = math.exp %98 : vector<64x32xf32>
    %cst_32 = arith.constant 1.000000e+00 : f32
    %100 = vector.broadcast %cst_32 : f32 to vector<64x32xf32>
    %101 = arith.addf %100, %99 : vector<64x32xf32>
    %102 = arith.divf %100, %101 : vector<64x32xf32>
    %103 = arith.mulf %97, %102 : vector<64x32xf32>
    %104 = vector.extract_strided_slice %103 {offsets = [0, 0], sizes = [64, 16], strides = [1, 1]} : vector<64x32xf32> to vector<64x16xf32>
    %105 = vector.extract_strided_slice %103 {offsets = [0, 16], sizes = [64, 16], strides = [1, 1]} : vector<64x32xf32> to vector<64x16xf32>
    %106 = arith.truncf %105 : vector<64x16xf32> to vector<64x16xbf16>
    %107 = tpu.iota {dimensions = array<i32: 0>} : vector<64x16xi32>
    %c7_i32 = arith.constant 7 : i32
    %108 = vector.broadcast %c7_i32 : i32 to vector<64x16xi32>
    %109 = arith.andi %107, %108 : vector<64x16xi32>
    %cst_33 = arith.constant 0.000000e+00 : bf16
    %110 = vector.broadcast %cst_33 : bf16 to vector<9x16xbf16>
    %cst_34 = arith.constant 0.000000e+00 : bf16
    %111 = vector.broadcast %cst_34 : bf16 to vector<64x16xbf16>
    %112 = vector.extract_strided_slice %106 {offsets = [0, 0], sizes = [55, 16], strides = [1, 1]} : vector<64x16xbf16> to vector<55x16xbf16>
    %113 = tpu.concatenate %110, %112 in 0 : vector<9x16xbf16>, vector<55x16xbf16> -> vector<64x16xbf16>
    %c8_i32 = arith.constant 8 : i32
    %114 = vector.broadcast %c8_i32 : i32 to vector<64x16xi32>
    %115 = arith.cmpi sge, %107, %114 : vector<64x16xi32>
    %c0_i32_35 = arith.constant 0 : i32
    %116 = vector.broadcast %c0_i32_35 : i32 to vector<64x16xi32>
    %117 = arith.cmpi sgt, %109, %116 : vector<64x16xi32>
    %118 = arith.andi %115, %117 : vector<64x16xi1>
    %119 = arith.select %118, %113, %111 : vector<64x16xi1>, vector<64x16xbf16>
    %120 = vector.extract_strided_slice %110 {offsets = [0, 0], sizes = [8, 16], strides = [1, 1]} : vector<9x16xbf16> to vector<8x16xbf16>
    %121 = vector.extract_strided_slice %106 {offsets = [0, 0], sizes = [56, 16], strides = [1, 1]} : vector<64x16xbf16> to vector<56x16xbf16>
    %122 = tpu.concatenate %120, %121 in 0 : vector<8x16xbf16>, vector<56x16xbf16> -> vector<64x16xbf16>
    %c8_i32_36 = arith.constant 8 : i32
    %123 = vector.broadcast %c8_i32_36 : i32 to vector<64x16xi32>
    %124 = arith.cmpi sge, %107, %123 : vector<64x16xi32>
    %125 = arith.select %124, %122, %111 : vector<64x16xi1>, vector<64x16xbf16>
    %126 = vector.extract_strided_slice %110 {offsets = [0, 0], sizes = [7, 16], strides = [1, 1]} : vector<9x16xbf16> to vector<7x16xbf16>
    %127 = vector.extract_strided_slice %106 {offsets = [0, 0], sizes = [57, 16], strides = [1, 1]} : vector<64x16xbf16> to vector<57x16xbf16>
    %128 = tpu.concatenate %126, %127 in 0 : vector<7x16xbf16>, vector<57x16xbf16> -> vector<64x16xbf16>
    %c8_i32_37 = arith.constant 8 : i32
    %129 = vector.broadcast %c8_i32_37 : i32 to vector<64x16xi32>
    %130 = arith.cmpi sge, %107, %129 : vector<64x16xi32>
    %c7_i32_38 = arith.constant 7 : i32
    %131 = vector.broadcast %c7_i32_38 : i32 to vector<64x16xi32>
    %132 = arith.cmpi slt, %109, %131 : vector<64x16xi32>
    %133 = arith.andi %130, %132 : vector<64x16xi1>
    %134 = arith.select %133, %128, %111 : vector<64x16xi1>, vector<64x16xbf16>
    %135 = vector.extract_strided_slice %110 {offsets = [0, 0], sizes = [1, 16], strides = [1, 1]} : vector<9x16xbf16> to vector<1x16xbf16>
    %136 = vector.extract_strided_slice %106 {offsets = [0, 0], sizes = [63, 16], strides = [1, 1]} : vector<64x16xbf16> to vector<63x16xbf16>
    %137 = tpu.concatenate %135, %136 in 0 : vector<1x16xbf16>, vector<63x16xbf16> -> vector<64x16xbf16>
    %c0_i32_39 = arith.constant 0 : i32
    %138 = vector.broadcast %c0_i32_39 : i32 to vector<64x16xi32>
    %139 = arith.cmpi sgt, %109, %138 : vector<64x16xi32>
    %140 = arith.select %139, %137, %111 : vector<64x16xi1>, vector<64x16xbf16>
    %141 = vector.extract_strided_slice %106 {offsets = [1, 0], sizes = [63, 16], strides = [1, 1]} : vector<64x16xbf16> to vector<63x16xbf16>
    %142 = vector.extract_strided_slice %110 {offsets = [0, 0], sizes = [1, 16], strides = [1, 1]} : vector<9x16xbf16> to vector<1x16xbf16>
    %143 = tpu.concatenate %141, %142 in 0 : vector<63x16xbf16>, vector<1x16xbf16> -> vector<64x16xbf16>
    %c7_i32_40 = arith.constant 7 : i32
    %144 = vector.broadcast %c7_i32_40 : i32 to vector<64x16xi32>
    %145 = arith.cmpi slt, %109, %144 : vector<64x16xi32>
    %146 = arith.select %145, %143, %111 : vector<64x16xi1>, vector<64x16xbf16>
    %147 = vector.extract_strided_slice %106 {offsets = [7, 0], sizes = [57, 16], strides = [1, 1]} : vector<64x16xbf16> to vector<57x16xbf16>
    %148 = vector.extract_strided_slice %110 {offsets = [0, 0], sizes = [7, 16], strides = [1, 1]} : vector<9x16xbf16> to vector<7x16xbf16>
    %149 = tpu.concatenate %147, %148 in 0 : vector<57x16xbf16>, vector<7x16xbf16> -> vector<64x16xbf16>
    %c56_i32 = arith.constant 56 : i32
    %150 = vector.broadcast %c56_i32 : i32 to vector<64x16xi32>
    %151 = arith.cmpi slt, %107, %150 : vector<64x16xi32>
    %c0_i32_41 = arith.constant 0 : i32
    %152 = vector.broadcast %c0_i32_41 : i32 to vector<64x16xi32>
    %153 = arith.cmpi sgt, %109, %152 : vector<64x16xi32>
    %154 = arith.andi %151, %153 : vector<64x16xi1>
    %155 = arith.select %154, %149, %111 : vector<64x16xi1>, vector<64x16xbf16>
    %156 = vector.extract_strided_slice %106 {offsets = [8, 0], sizes = [56, 16], strides = [1, 1]} : vector<64x16xbf16> to vector<56x16xbf16>
    %157 = vector.extract_strided_slice %110 {offsets = [0, 0], sizes = [8, 16], strides = [1, 1]} : vector<9x16xbf16> to vector<8x16xbf16>
    %158 = tpu.concatenate %156, %157 in 0 : vector<56x16xbf16>, vector<8x16xbf16> -> vector<64x16xbf16>
    %c56_i32_42 = arith.constant 56 : i32
    %159 = vector.broadcast %c56_i32_42 : i32 to vector<64x16xi32>
    %160 = arith.cmpi slt, %107, %159 : vector<64x16xi32>
    %161 = arith.select %160, %158, %111 : vector<64x16xi1>, vector<64x16xbf16>
    %162 = vector.extract_strided_slice %106 {offsets = [9, 0], sizes = [55, 16], strides = [1, 1]} : vector<64x16xbf16> to vector<55x16xbf16>
    %163 = tpu.concatenate %162, %110 in 0 : vector<55x16xbf16>, vector<9x16xbf16> -> vector<64x16xbf16>
    %c56_i32_43 = arith.constant 56 : i32
    %164 = vector.broadcast %c56_i32_43 : i32 to vector<64x16xi32>
    %165 = arith.cmpi slt, %107, %164 : vector<64x16xi32>
    %c7_i32_44 = arith.constant 7 : i32
    %166 = vector.broadcast %c7_i32_44 : i32 to vector<64x16xi32>
    %167 = arith.cmpi slt, %109, %166 : vector<64x16xi32>
    %168 = arith.andi %165, %167 : vector<64x16xi1>
    %169 = arith.select %168, %163, %111 : vector<64x16xi1>, vector<64x16xbf16>
    %170 = tpu.concatenate %119, %125, %134, %140, %106, %146, %155, %161, %169 in 1 : vector<64x16xbf16>, vector<64x16xbf16>, vector<64x16xbf16>, vector<64x16xbf16>, vector<64x16xbf16>, vector<64x16xbf16>, vector<64x16xbf16>, vector<64x16xbf16>, vector<64x16xbf16> -> vector<64x144xbf16>
    %c0_45 = arith.constant 0 : index
    %c0_46 = arith.constant 0 : index
    %171 = vector.load %arg11[%c0_45, %c0_46] : memref<144x16xbf16, #tpu.memory_space<vmem>>, vector<144x16xbf16>
    %cst_47 = arith.constant dense<0.000000e+00> : vector<64x16xf32>
    %172 = tpu.matmul %170, %171, %cst_47 {dimension_numbers = #tpu.dot_dimension_numbers<[1], [0], [0], [1], [0, 0, 1, 1], [], []>} : vector<64x144xbf16>, vector<144x16xbf16>, vector<64x16xf32> -> vector<64x16xf32>
    %c0_48 = arith.constant 0 : index
    %c0_49 = arith.constant 0 : index
    %173 = vector.load %arg12[%c0_48, %c0_49] : memref<1x16xf32, #tpu.memory_space<vmem>>, vector<1x16xf32>
    %174 = vector.broadcast %173 : vector<1x16xf32> to vector<64x16xf32>
    %175 = arith.addf %172, %174 : vector<64x16xf32>
    %176 = arith.negf %175 : vector<64x16xf32>
    %177 = math.exp %176 : vector<64x16xf32>
    %cst_50 = arith.constant 1.000000e+00 : f32
    %178 = vector.broadcast %cst_50 : f32 to vector<64x16xf32>
    %179 = arith.addf %178, %177 : vector<64x16xf32>
    %180 = arith.divf %178, %179 : vector<64x16xf32>
    %181 = arith.mulf %175, %180 : vector<64x16xf32>
    %182 = arith.truncf %181 : vector<64x16xf32> to vector<64x16xbf16>
    %183 = tpu.iota {dimensions = array<i32: 0>} : vector<64x16xi32>
    %c7_i32_51 = arith.constant 7 : i32
    %184 = vector.broadcast %c7_i32_51 : i32 to vector<64x16xi32>
    %185 = arith.andi %183, %184 : vector<64x16xi32>
    %cst_52 = arith.constant 0.000000e+00 : bf16
    %186 = vector.broadcast %cst_52 : bf16 to vector<9x16xbf16>
    %cst_53 = arith.constant 0.000000e+00 : bf16
    %187 = vector.broadcast %cst_53 : bf16 to vector<64x16xbf16>
    %188 = vector.extract_strided_slice %182 {offsets = [0, 0], sizes = [55, 16], strides = [1, 1]} : vector<64x16xbf16> to vector<55x16xbf16>
    %189 = tpu.concatenate %186, %188 in 0 : vector<9x16xbf16>, vector<55x16xbf16> -> vector<64x16xbf16>
    %c8_i32_54 = arith.constant 8 : i32
    %190 = vector.broadcast %c8_i32_54 : i32 to vector<64x16xi32>
    %191 = arith.cmpi sge, %183, %190 : vector<64x16xi32>
    %c0_i32_55 = arith.constant 0 : i32
    %192 = vector.broadcast %c0_i32_55 : i32 to vector<64x16xi32>
    %193 = arith.cmpi sgt, %185, %192 : vector<64x16xi32>
    %194 = arith.andi %191, %193 : vector<64x16xi1>
    %195 = arith.select %194, %189, %187 : vector<64x16xi1>, vector<64x16xbf16>
    %196 = vector.extract_strided_slice %186 {offsets = [0, 0], sizes = [8, 16], strides = [1, 1]} : vector<9x16xbf16> to vector<8x16xbf16>
    %197 = vector.extract_strided_slice %182 {offsets = [0, 0], sizes = [56, 16], strides = [1, 1]} : vector<64x16xbf16> to vector<56x16xbf16>
    %198 = tpu.concatenate %196, %197 in 0 : vector<8x16xbf16>, vector<56x16xbf16> -> vector<64x16xbf16>
    %c8_i32_56 = arith.constant 8 : i32
    %199 = vector.broadcast %c8_i32_56 : i32 to vector<64x16xi32>
    %200 = arith.cmpi sge, %183, %199 : vector<64x16xi32>
    %201 = arith.select %200, %198, %187 : vector<64x16xi1>, vector<64x16xbf16>
    %202 = vector.extract_strided_slice %186 {offsets = [0, 0], sizes = [7, 16], strides = [1, 1]} : vector<9x16xbf16> to vector<7x16xbf16>
    %203 = vector.extract_strided_slice %182 {offsets = [0, 0], sizes = [57, 16], strides = [1, 1]} : vector<64x16xbf16> to vector<57x16xbf16>
    %204 = tpu.concatenate %202, %203 in 0 : vector<7x16xbf16>, vector<57x16xbf16> -> vector<64x16xbf16>
    %c8_i32_57 = arith.constant 8 : i32
    %205 = vector.broadcast %c8_i32_57 : i32 to vector<64x16xi32>
    %206 = arith.cmpi sge, %183, %205 : vector<64x16xi32>
    %c7_i32_58 = arith.constant 7 : i32
    %207 = vector.broadcast %c7_i32_58 : i32 to vector<64x16xi32>
    %208 = arith.cmpi slt, %185, %207 : vector<64x16xi32>
    %209 = arith.andi %206, %208 : vector<64x16xi1>
    %210 = arith.select %209, %204, %187 : vector<64x16xi1>, vector<64x16xbf16>
    %211 = vector.extract_strided_slice %186 {offsets = [0, 0], sizes = [1, 16], strides = [1, 1]} : vector<9x16xbf16> to vector<1x16xbf16>
    %212 = vector.extract_strided_slice %182 {offsets = [0, 0], sizes = [63, 16], strides = [1, 1]} : vector<64x16xbf16> to vector<63x16xbf16>
    %213 = tpu.concatenate %211, %212 in 0 : vector<1x16xbf16>, vector<63x16xbf16> -> vector<64x16xbf16>
    %c0_i32_59 = arith.constant 0 : i32
    %214 = vector.broadcast %c0_i32_59 : i32 to vector<64x16xi32>
    %215 = arith.cmpi sgt, %185, %214 : vector<64x16xi32>
    %216 = arith.select %215, %213, %187 : vector<64x16xi1>, vector<64x16xbf16>
    %217 = vector.extract_strided_slice %182 {offsets = [1, 0], sizes = [63, 16], strides = [1, 1]} : vector<64x16xbf16> to vector<63x16xbf16>
    %218 = vector.extract_strided_slice %186 {offsets = [0, 0], sizes = [1, 16], strides = [1, 1]} : vector<9x16xbf16> to vector<1x16xbf16>
    %219 = tpu.concatenate %217, %218 in 0 : vector<63x16xbf16>, vector<1x16xbf16> -> vector<64x16xbf16>
    %c7_i32_60 = arith.constant 7 : i32
    %220 = vector.broadcast %c7_i32_60 : i32 to vector<64x16xi32>
    %221 = arith.cmpi slt, %185, %220 : vector<64x16xi32>
    %222 = arith.select %221, %219, %187 : vector<64x16xi1>, vector<64x16xbf16>
    %223 = vector.extract_strided_slice %182 {offsets = [7, 0], sizes = [57, 16], strides = [1, 1]} : vector<64x16xbf16> to vector<57x16xbf16>
    %224 = vector.extract_strided_slice %186 {offsets = [0, 0], sizes = [7, 16], strides = [1, 1]} : vector<9x16xbf16> to vector<7x16xbf16>
    %225 = tpu.concatenate %223, %224 in 0 : vector<57x16xbf16>, vector<7x16xbf16> -> vector<64x16xbf16>
    %c56_i32_61 = arith.constant 56 : i32
    %226 = vector.broadcast %c56_i32_61 : i32 to vector<64x16xi32>
    %227 = arith.cmpi slt, %183, %226 : vector<64x16xi32>
    %c0_i32_62 = arith.constant 0 : i32
    %228 = vector.broadcast %c0_i32_62 : i32 to vector<64x16xi32>
    %229 = arith.cmpi sgt, %185, %228 : vector<64x16xi32>
    %230 = arith.andi %227, %229 : vector<64x16xi1>
    %231 = arith.select %230, %225, %187 : vector<64x16xi1>, vector<64x16xbf16>
    %232 = vector.extract_strided_slice %182 {offsets = [8, 0], sizes = [56, 16], strides = [1, 1]} : vector<64x16xbf16> to vector<56x16xbf16>
    %233 = vector.extract_strided_slice %186 {offsets = [0, 0], sizes = [8, 16], strides = [1, 1]} : vector<9x16xbf16> to vector<8x16xbf16>
    %234 = tpu.concatenate %232, %233 in 0 : vector<56x16xbf16>, vector<8x16xbf16> -> vector<64x16xbf16>
    %c56_i32_63 = arith.constant 56 : i32
    %235 = vector.broadcast %c56_i32_63 : i32 to vector<64x16xi32>
    %236 = arith.cmpi slt, %183, %235 : vector<64x16xi32>
    %237 = arith.select %236, %234, %187 : vector<64x16xi1>, vector<64x16xbf16>
    %238 = vector.extract_strided_slice %182 {offsets = [9, 0], sizes = [55, 16], strides = [1, 1]} : vector<64x16xbf16> to vector<55x16xbf16>
    %239 = tpu.concatenate %238, %186 in 0 : vector<55x16xbf16>, vector<9x16xbf16> -> vector<64x16xbf16>
    %c56_i32_64 = arith.constant 56 : i32
    %240 = vector.broadcast %c56_i32_64 : i32 to vector<64x16xi32>
    %241 = arith.cmpi slt, %183, %240 : vector<64x16xi32>
    %c7_i32_65 = arith.constant 7 : i32
    %242 = vector.broadcast %c7_i32_65 : i32 to vector<64x16xi32>
    %243 = arith.cmpi slt, %185, %242 : vector<64x16xi32>
    %244 = arith.andi %241, %243 : vector<64x16xi1>
    %245 = arith.select %244, %239, %187 : vector<64x16xi1>, vector<64x16xbf16>
    %246 = tpu.concatenate %195, %201, %210, %216, %182, %222, %231, %237, %245 in 1 : vector<64x16xbf16>, vector<64x16xbf16>, vector<64x16xbf16>, vector<64x16xbf16>, vector<64x16xbf16>, vector<64x16xbf16>, vector<64x16xbf16>, vector<64x16xbf16>, vector<64x16xbf16> -> vector<64x144xbf16>
    %c0_66 = arith.constant 0 : index
    %c0_67 = arith.constant 0 : index
    %247 = vector.load %arg13[%c0_66, %c0_67] : memref<144x16xbf16, #tpu.memory_space<vmem>>, vector<144x16xbf16>
    %cst_68 = arith.constant dense<0.000000e+00> : vector<64x16xf32>
    %248 = tpu.matmul %246, %247, %cst_68 {dimension_numbers = #tpu.dot_dimension_numbers<[1], [0], [0], [1], [0, 0, 1, 1], [], []>} : vector<64x144xbf16>, vector<144x16xbf16>, vector<64x16xf32> -> vector<64x16xf32>
    %c0_69 = arith.constant 0 : index
    %c0_70 = arith.constant 0 : index
    %249 = vector.load %arg14[%c0_69, %c0_70] : memref<1x16xf32, #tpu.memory_space<vmem>>, vector<1x16xf32>
    %250 = vector.broadcast %249 : vector<1x16xf32> to vector<64x16xf32>
    %251 = arith.addf %248, %250 : vector<64x16xf32>
    %252 = arith.negf %251 : vector<64x16xf32>
    %253 = math.exp %252 : vector<64x16xf32>
    %cst_71 = arith.constant 1.000000e+00 : f32
    %254 = vector.broadcast %cst_71 : f32 to vector<64x16xf32>
    %255 = arith.addf %254, %253 : vector<64x16xf32>
    %256 = arith.divf %254, %255 : vector<64x16xf32>
    %257 = arith.mulf %251, %256 : vector<64x16xf32>
    %258 = arith.addf %105, %257 : vector<64x16xf32>
    %259 = arith.truncf %104 : vector<64x16xf32> to vector<64x16xbf16>
    %260 = arith.truncf %105 : vector<64x16xf32> to vector<64x16xbf16>
    %261 = arith.truncf %258 : vector<64x16xf32> to vector<64x16xbf16>
    %262 = tpu.concatenate %259, %260, %261 in 1 : vector<64x16xbf16>, vector<64x16xbf16>, vector<64x16xbf16> -> vector<64x48xbf16>
    %c0_72 = arith.constant 0 : index
    %c0_73 = arith.constant 0 : index
    %263 = vector.load %arg15[%c0_72, %c0_73] : memref<48x32xbf16, #tpu.memory_space<vmem>>, vector<48x32xbf16>
    %cst_74 = arith.constant dense<0.000000e+00> : vector<64x32xf32>
    %264 = tpu.matmul %262, %263, %cst_74 {dimension_numbers = #tpu.dot_dimension_numbers<[1], [0], [0], [1], [0, 0, 1, 1], [], []>} : vector<64x48xbf16>, vector<48x32xbf16>, vector<64x32xf32> -> vector<64x32xf32>
    %c0_75 = arith.constant 0 : index
    %c0_76 = arith.constant 0 : index
    %265 = vector.load %arg16[%c0_75, %c0_76] : memref<1x32xf32, #tpu.memory_space<vmem>>, vector<1x32xf32>
    %266 = vector.broadcast %265 : vector<1x32xf32> to vector<64x32xf32>
    %267 = arith.addf %264, %266 : vector<64x32xf32>
    %268 = arith.negf %267 : vector<64x32xf32>
    %269 = math.exp %268 : vector<64x32xf32>
    %cst_77 = arith.constant 1.000000e+00 : f32
    %270 = vector.broadcast %cst_77 : f32 to vector<64x32xf32>
    %271 = arith.addf %270, %269 : vector<64x32xf32>
    %272 = arith.divf %270, %271 : vector<64x32xf32>
    %273 = arith.mulf %267, %272 : vector<64x32xf32>
    %274 = arith.truncf %273 : vector<64x32xf32> to vector<64x32xbf16>
    %275 = tpu.iota {dimensions = array<i32: 0>} : vector<64x32xi32>
    %c7_i32_78 = arith.constant 7 : i32
    %276 = vector.broadcast %c7_i32_78 : i32 to vector<64x32xi32>
    %277 = arith.andi %275, %276 : vector<64x32xi32>
    %cst_79 = arith.constant 0.000000e+00 : bf16
    %278 = vector.broadcast %cst_79 : bf16 to vector<9x32xbf16>
    %cst_80 = arith.constant 0.000000e+00 : bf16
    %279 = vector.broadcast %cst_80 : bf16 to vector<64x32xbf16>
    %280 = vector.extract_strided_slice %274 {offsets = [0, 0], sizes = [55, 32], strides = [1, 1]} : vector<64x32xbf16> to vector<55x32xbf16>
    %281 = tpu.concatenate %278, %280 in 0 : vector<9x32xbf16>, vector<55x32xbf16> -> vector<64x32xbf16>
    %c8_i32_81 = arith.constant 8 : i32
    %282 = vector.broadcast %c8_i32_81 : i32 to vector<64x32xi32>
    %283 = arith.cmpi sge, %275, %282 : vector<64x32xi32>
    %c0_i32_82 = arith.constant 0 : i32
    %284 = vector.broadcast %c0_i32_82 : i32 to vector<64x32xi32>
    %285 = arith.cmpi sgt, %277, %284 : vector<64x32xi32>
    %286 = arith.andi %283, %285 : vector<64x32xi1>
    %287 = arith.select %286, %281, %279 : vector<64x32xi1>, vector<64x32xbf16>
    %288 = vector.extract_strided_slice %278 {offsets = [0, 0], sizes = [8, 32], strides = [1, 1]} : vector<9x32xbf16> to vector<8x32xbf16>
    %289 = vector.extract_strided_slice %274 {offsets = [0, 0], sizes = [56, 32], strides = [1, 1]} : vector<64x32xbf16> to vector<56x32xbf16>
    %290 = tpu.concatenate %288, %289 in 0 : vector<8x32xbf16>, vector<56x32xbf16> -> vector<64x32xbf16>
    %c8_i32_83 = arith.constant 8 : i32
    %291 = vector.broadcast %c8_i32_83 : i32 to vector<64x32xi32>
    %292 = arith.cmpi sge, %275, %291 : vector<64x32xi32>
    %293 = arith.select %292, %290, %279 : vector<64x32xi1>, vector<64x32xbf16>
    %294 = vector.extract_strided_slice %278 {offsets = [0, 0], sizes = [7, 32], strides = [1, 1]} : vector<9x32xbf16> to vector<7x32xbf16>
    %295 = vector.extract_strided_slice %274 {offsets = [0, 0], sizes = [57, 32], strides = [1, 1]} : vector<64x32xbf16> to vector<57x32xbf16>
    %296 = tpu.concatenate %294, %295 in 0 : vector<7x32xbf16>, vector<57x32xbf16> -> vector<64x32xbf16>
    %c8_i32_84 = arith.constant 8 : i32
    %297 = vector.broadcast %c8_i32_84 : i32 to vector<64x32xi32>
    %298 = arith.cmpi sge, %275, %297 : vector<64x32xi32>
    %c7_i32_85 = arith.constant 7 : i32
    %299 = vector.broadcast %c7_i32_85 : i32 to vector<64x32xi32>
    %300 = arith.cmpi slt, %277, %299 : vector<64x32xi32>
    %301 = arith.andi %298, %300 : vector<64x32xi1>
    %302 = arith.select %301, %296, %279 : vector<64x32xi1>, vector<64x32xbf16>
    %303 = vector.extract_strided_slice %278 {offsets = [0, 0], sizes = [1, 32], strides = [1, 1]} : vector<9x32xbf16> to vector<1x32xbf16>
    %304 = vector.extract_strided_slice %274 {offsets = [0, 0], sizes = [63, 32], strides = [1, 1]} : vector<64x32xbf16> to vector<63x32xbf16>
    %305 = tpu.concatenate %303, %304 in 0 : vector<1x32xbf16>, vector<63x32xbf16> -> vector<64x32xbf16>
    %c0_i32_86 = arith.constant 0 : i32
    %306 = vector.broadcast %c0_i32_86 : i32 to vector<64x32xi32>
    %307 = arith.cmpi sgt, %277, %306 : vector<64x32xi32>
    %308 = arith.select %307, %305, %279 : vector<64x32xi1>, vector<64x32xbf16>
    %309 = vector.extract_strided_slice %274 {offsets = [1, 0], sizes = [63, 32], strides = [1, 1]} : vector<64x32xbf16> to vector<63x32xbf16>
    %310 = vector.extract_strided_slice %278 {offsets = [0, 0], sizes = [1, 32], strides = [1, 1]} : vector<9x32xbf16> to vector<1x32xbf16>
    %311 = tpu.concatenate %309, %310 in 0 : vector<63x32xbf16>, vector<1x32xbf16> -> vector<64x32xbf16>
    %c7_i32_87 = arith.constant 7 : i32
    %312 = vector.broadcast %c7_i32_87 : i32 to vector<64x32xi32>
    %313 = arith.cmpi slt, %277, %312 : vector<64x32xi32>
    %314 = arith.select %313, %311, %279 : vector<64x32xi1>, vector<64x32xbf16>
    %315 = vector.extract_strided_slice %274 {offsets = [7, 0], sizes = [57, 32], strides = [1, 1]} : vector<64x32xbf16> to vector<57x32xbf16>
    %316 = vector.extract_strided_slice %278 {offsets = [0, 0], sizes = [7, 32], strides = [1, 1]} : vector<9x32xbf16> to vector<7x32xbf16>
    %317 = tpu.concatenate %315, %316 in 0 : vector<57x32xbf16>, vector<7x32xbf16> -> vector<64x32xbf16>
    %c56_i32_88 = arith.constant 56 : i32
    %318 = vector.broadcast %c56_i32_88 : i32 to vector<64x32xi32>
    %319 = arith.cmpi slt, %275, %318 : vector<64x32xi32>
    %c0_i32_89 = arith.constant 0 : i32
    %320 = vector.broadcast %c0_i32_89 : i32 to vector<64x32xi32>
    %321 = arith.cmpi sgt, %277, %320 : vector<64x32xi32>
    %322 = arith.andi %319, %321 : vector<64x32xi1>
    %323 = arith.select %322, %317, %279 : vector<64x32xi1>, vector<64x32xbf16>
    %324 = vector.extract_strided_slice %274 {offsets = [8, 0], sizes = [56, 32], strides = [1, 1]} : vector<64x32xbf16> to vector<56x32xbf16>
    %325 = vector.extract_strided_slice %278 {offsets = [0, 0], sizes = [8, 32], strides = [1, 1]} : vector<9x32xbf16> to vector<8x32xbf16>
    %326 = tpu.concatenate %324, %325 in 0 : vector<56x32xbf16>, vector<8x32xbf16> -> vector<64x32xbf16>
    %c56_i32_90 = arith.constant 56 : i32
    %327 = vector.broadcast %c56_i32_90 : i32 to vector<64x32xi32>
    %328 = arith.cmpi slt, %275, %327 : vector<64x32xi32>
    %329 = arith.select %328, %326, %279 : vector<64x32xi1>, vector<64x32xbf16>
    %330 = vector.extract_strided_slice %274 {offsets = [9, 0], sizes = [55, 32], strides = [1, 1]} : vector<64x32xbf16> to vector<55x32xbf16>
    %331 = tpu.concatenate %330, %278 in 0 : vector<55x32xbf16>, vector<9x32xbf16> -> vector<64x32xbf16>
    %c56_i32_91 = arith.constant 56 : i32
    %332 = vector.broadcast %c56_i32_91 : i32 to vector<64x32xi32>
    %333 = arith.cmpi slt, %275, %332 : vector<64x32xi32>
    %c7_i32_92 = arith.constant 7 : i32
    %334 = vector.broadcast %c7_i32_92 : i32 to vector<64x32xi32>
    %335 = arith.cmpi slt, %277, %334 : vector<64x32xi32>
    %336 = arith.andi %333, %335 : vector<64x32xi1>
    %337 = arith.select %336, %331, %279 : vector<64x32xi1>, vector<64x32xbf16>
    %338 = tpu.concatenate %287, %293, %302, %308, %274, %314, %323, %329, %337 in 1 : vector<64x32xbf16>, vector<64x32xbf16>, vector<64x32xbf16>, vector<64x32xbf16>, vector<64x32xbf16>, vector<64x32xbf16>, vector<64x32xbf16>, vector<64x32xbf16>, vector<64x32xbf16> -> vector<64x288xbf16>
    %c0_93 = arith.constant 0 : index
    %c0_94 = arith.constant 0 : index
    %339 = vector.load %arg3[%c0_93, %c0_94] : memref<16x64xbf16, #tpu.memory_space<vmem>>, vector<16x64xbf16>
    %cst_95 = arith.constant dense<0.000000e+00> : vector<16x288xf32>
    %340 = tpu.matmul %339, %338, %cst_95 {dimension_numbers = #tpu.dot_dimension_numbers<[1], [0], [0], [1], [0, 0, 1, 1], [], []>} : vector<16x64xbf16>, vector<64x288xbf16>, vector<16x288xf32> -> vector<16x288xf32>
    %341 = arith.truncf %340 : vector<16x288xf32> to vector<16x288xbf16>
    %c0_96 = arith.constant 0 : index
    %c0_97 = arith.constant 0 : index
    %342 = vector.load %arg17[%c0_96, %c0_97] : memref<288x64xbf16, #tpu.memory_space<vmem>>, vector<288x64xbf16>
    %cst_98 = arith.constant dense<0.000000e+00> : vector<16x64xf32>
    %343 = tpu.matmul %341, %342, %cst_98 {dimension_numbers = #tpu.dot_dimension_numbers<[1], [0], [0], [1], [0, 0, 1, 1], [], []>} : vector<16x288xbf16>, vector<288x64xbf16>, vector<16x64xf32> -> vector<16x64xf32>
    %c0_99 = arith.constant 0 : index
    %c0_100 = arith.constant 0 : index
    %344 = vector.load %arg18[%c0_99, %c0_100] : memref<1x64xf32, #tpu.memory_space<vmem>>, vector<1x64xf32>
    %345 = vector.broadcast %344 : vector<1x64xf32> to vector<16x64xf32>
    %346 = arith.addf %343, %345 : vector<16x64xf32>
    %347 = arith.negf %346 : vector<16x64xf32>
    %348 = math.exp %347 : vector<16x64xf32>
    %cst_101 = arith.constant 1.000000e+00 : f32
    %349 = vector.broadcast %cst_101 : f32 to vector<16x64xf32>
    %350 = arith.addf %349, %348 : vector<16x64xf32>
    %351 = arith.divf %349, %350 : vector<16x64xf32>
    %352 = arith.mulf %346, %351 : vector<16x64xf32>
    %353 = arith.truncf %352 : vector<16x64xf32> to vector<16x64xbf16>
    %c0_102 = arith.constant 0 : index
    %c0_103 = arith.constant 0 : index
    %354 = vector.load %arg19[%c0_102, %c0_103] : memref<64x64xbf16, #tpu.memory_space<vmem>>, vector<64x64xbf16>
    %cst_104 = arith.constant dense<0.000000e+00> : vector<16x64xf32>
    %355 = tpu.matmul %353, %354, %cst_104 {dimension_numbers = #tpu.dot_dimension_numbers<[1], [0], [0], [1], [0, 0, 1, 1], [], []>} : vector<16x64xbf16>, vector<64x64xbf16>, vector<16x64xf32> -> vector<16x64xf32>
    %c0_105 = arith.constant 0 : index
    %c0_106 = arith.constant 0 : index
    %356 = vector.load %arg20[%c0_105, %c0_106] : memref<1x64xf32, #tpu.memory_space<vmem>>, vector<1x64xf32>
    %357 = vector.broadcast %356 : vector<1x64xf32> to vector<16x64xf32>
    %358 = arith.addf %355, %357 : vector<16x64xf32>
    %359 = arith.negf %358 : vector<16x64xf32>
    %360 = math.exp %359 : vector<16x64xf32>
    %cst_107 = arith.constant 1.000000e+00 : f32
    %361 = vector.broadcast %cst_107 : f32 to vector<16x64xf32>
    %362 = arith.addf %361, %360 : vector<16x64xf32>
    %363 = arith.divf %361, %362 : vector<16x64xf32>
    %364 = arith.mulf %358, %363 : vector<16x64xf32>
    %365 = vector.extract_strided_slice %364 {offsets = [0, 0], sizes = [16, 32], strides = [1, 1]} : vector<16x64xf32> to vector<16x32xf32>
    %366 = vector.extract_strided_slice %364 {offsets = [0, 32], sizes = [16, 32], strides = [1, 1]} : vector<16x64xf32> to vector<16x32xf32>
    %367 = arith.truncf %366 : vector<16x32xf32> to vector<16x32xbf16>
    %368 = tpu.iota {dimensions = array<i32: 0>} : vector<16x32xi32>
    %c3_i32 = arith.constant 3 : i32
    %369 = vector.broadcast %c3_i32 : i32 to vector<16x32xi32>
    %370 = arith.andi %368, %369 : vector<16x32xi32>
    %cst_108 = arith.constant 0.000000e+00 : bf16
    %371 = vector.broadcast %cst_108 : bf16 to vector<5x32xbf16>
    %cst_109 = arith.constant 0.000000e+00 : bf16
    %372 = vector.broadcast %cst_109 : bf16 to vector<16x32xbf16>
    %373 = vector.extract_strided_slice %367 {offsets = [0, 0], sizes = [11, 32], strides = [1, 1]} : vector<16x32xbf16> to vector<11x32xbf16>
    %374 = tpu.concatenate %371, %373 in 0 : vector<5x32xbf16>, vector<11x32xbf16> -> vector<16x32xbf16>
    %c4_i32 = arith.constant 4 : i32
    %375 = vector.broadcast %c4_i32 : i32 to vector<16x32xi32>
    %376 = arith.cmpi sge, %368, %375 : vector<16x32xi32>
    %c0_i32_110 = arith.constant 0 : i32
    %377 = vector.broadcast %c0_i32_110 : i32 to vector<16x32xi32>
    %378 = arith.cmpi sgt, %370, %377 : vector<16x32xi32>
    %379 = arith.andi %376, %378 : vector<16x32xi1>
    %380 = arith.select %379, %374, %372 : vector<16x32xi1>, vector<16x32xbf16>
    %381 = vector.extract_strided_slice %371 {offsets = [0, 0], sizes = [4, 32], strides = [1, 1]} : vector<5x32xbf16> to vector<4x32xbf16>
    %382 = vector.extract_strided_slice %367 {offsets = [0, 0], sizes = [12, 32], strides = [1, 1]} : vector<16x32xbf16> to vector<12x32xbf16>
    %383 = tpu.concatenate %381, %382 in 0 : vector<4x32xbf16>, vector<12x32xbf16> -> vector<16x32xbf16>
    %c4_i32_111 = arith.constant 4 : i32
    %384 = vector.broadcast %c4_i32_111 : i32 to vector<16x32xi32>
    %385 = arith.cmpi sge, %368, %384 : vector<16x32xi32>
    %386 = arith.select %385, %383, %372 : vector<16x32xi1>, vector<16x32xbf16>
    %387 = vector.extract_strided_slice %371 {offsets = [0, 0], sizes = [3, 32], strides = [1, 1]} : vector<5x32xbf16> to vector<3x32xbf16>
    %388 = vector.extract_strided_slice %367 {offsets = [0, 0], sizes = [13, 32], strides = [1, 1]} : vector<16x32xbf16> to vector<13x32xbf16>
    %389 = tpu.concatenate %387, %388 in 0 : vector<3x32xbf16>, vector<13x32xbf16> -> vector<16x32xbf16>
    %c4_i32_112 = arith.constant 4 : i32
    %390 = vector.broadcast %c4_i32_112 : i32 to vector<16x32xi32>
    %391 = arith.cmpi sge, %368, %390 : vector<16x32xi32>
    %c3_i32_113 = arith.constant 3 : i32
    %392 = vector.broadcast %c3_i32_113 : i32 to vector<16x32xi32>
    %393 = arith.cmpi slt, %370, %392 : vector<16x32xi32>
    %394 = arith.andi %391, %393 : vector<16x32xi1>
    %395 = arith.select %394, %389, %372 : vector<16x32xi1>, vector<16x32xbf16>
    %396 = vector.extract_strided_slice %371 {offsets = [0, 0], sizes = [1, 32], strides = [1, 1]} : vector<5x32xbf16> to vector<1x32xbf16>
    %397 = vector.extract_strided_slice %367 {offsets = [0, 0], sizes = [15, 32], strides = [1, 1]} : vector<16x32xbf16> to vector<15x32xbf16>
    %398 = tpu.concatenate %396, %397 in 0 : vector<1x32xbf16>, vector<15x32xbf16> -> vector<16x32xbf16>
    %c0_i32_114 = arith.constant 0 : i32
    %399 = vector.broadcast %c0_i32_114 : i32 to vector<16x32xi32>
    %400 = arith.cmpi sgt, %370, %399 : vector<16x32xi32>
    %401 = arith.select %400, %398, %372 : vector<16x32xi1>, vector<16x32xbf16>
    %402 = vector.extract_strided_slice %367 {offsets = [1, 0], sizes = [15, 32], strides = [1, 1]} : vector<16x32xbf16> to vector<15x32xbf16>
    %403 = vector.extract_strided_slice %371 {offsets = [0, 0], sizes = [1, 32], strides = [1, 1]} : vector<5x32xbf16> to vector<1x32xbf16>
    %404 = tpu.concatenate %402, %403 in 0 : vector<15x32xbf16>, vector<1x32xbf16> -> vector<16x32xbf16>
    %c3_i32_115 = arith.constant 3 : i32
    %405 = vector.broadcast %c3_i32_115 : i32 to vector<16x32xi32>
    %406 = arith.cmpi slt, %370, %405 : vector<16x32xi32>
    %407 = arith.select %406, %404, %372 : vector<16x32xi1>, vector<16x32xbf16>
    %408 = vector.extract_strided_slice %367 {offsets = [3, 0], sizes = [13, 32], strides = [1, 1]} : vector<16x32xbf16> to vector<13x32xbf16>
    %409 = vector.extract_strided_slice %371 {offsets = [0, 0], sizes = [3, 32], strides = [1, 1]} : vector<5x32xbf16> to vector<3x32xbf16>
    %410 = tpu.concatenate %408, %409 in 0 : vector<13x32xbf16>, vector<3x32xbf16> -> vector<16x32xbf16>
    %c12_i32 = arith.constant 12 : i32
    %411 = vector.broadcast %c12_i32 : i32 to vector<16x32xi32>
    %412 = arith.cmpi slt, %368, %411 : vector<16x32xi32>
    %c0_i32_116 = arith.constant 0 : i32
    %413 = vector.broadcast %c0_i32_116 : i32 to vector<16x32xi32>
    %414 = arith.cmpi sgt, %370, %413 : vector<16x32xi32>
    %415 = arith.andi %412, %414 : vector<16x32xi1>
    %416 = arith.select %415, %410, %372 : vector<16x32xi1>, vector<16x32xbf16>
    %417 = vector.extract_strided_slice %367 {offsets = [4, 0], sizes = [12, 32], strides = [1, 1]} : vector<16x32xbf16> to vector<12x32xbf16>
    %418 = vector.extract_strided_slice %371 {offsets = [0, 0], sizes = [4, 32], strides = [1, 1]} : vector<5x32xbf16> to vector<4x32xbf16>
    %419 = tpu.concatenate %417, %418 in 0 : vector<12x32xbf16>, vector<4x32xbf16> -> vector<16x32xbf16>
    %c12_i32_117 = arith.constant 12 : i32
    %420 = vector.broadcast %c12_i32_117 : i32 to vector<16x32xi32>
    %421 = arith.cmpi slt, %368, %420 : vector<16x32xi32>
    %422 = arith.select %421, %419, %372 : vector<16x32xi1>, vector<16x32xbf16>
    %423 = vector.extract_strided_slice %367 {offsets = [5, 0], sizes = [11, 32], strides = [1, 1]} : vector<16x32xbf16> to vector<11x32xbf16>
    %424 = tpu.concatenate %423, %371 in 0 : vector<11x32xbf16>, vector<5x32xbf16> -> vector<16x32xbf16>
    %c12_i32_118 = arith.constant 12 : i32
    %425 = vector.broadcast %c12_i32_118 : i32 to vector<16x32xi32>
    %426 = arith.cmpi slt, %368, %425 : vector<16x32xi32>
    %c3_i32_119 = arith.constant 3 : i32
    %427 = vector.broadcast %c3_i32_119 : i32 to vector<16x32xi32>
    %428 = arith.cmpi slt, %370, %427 : vector<16x32xi32>
    %429 = arith.andi %426, %428 : vector<16x32xi1>
    %430 = arith.select %429, %424, %372 : vector<16x32xi1>, vector<16x32xbf16>
    %431 = tpu.concatenate %380, %386, %395, %401, %367, %407, %416, %422, %430 in 1 : vector<16x32xbf16>, vector<16x32xbf16>, vector<16x32xbf16>, vector<16x32xbf16>, vector<16x32xbf16>, vector<16x32xbf16>, vector<16x32xbf16>, vector<16x32xbf16>, vector<16x32xbf16> -> vector<16x288xbf16>
    %c0_120 = arith.constant 0 : index
    %c0_121 = arith.constant 0 : index
    %432 = vector.load %arg21[%c0_120, %c0_121] : memref<288x32xbf16, #tpu.memory_space<vmem>>, vector<288x32xbf16>
    %cst_122 = arith.constant dense<0.000000e+00> : vector<16x32xf32>
    %433 = tpu.matmul %431, %432, %cst_122 {dimension_numbers = #tpu.dot_dimension_numbers<[1], [0], [0], [1], [0, 0, 1, 1], [], []>} : vector<16x288xbf16>, vector<288x32xbf16>, vector<16x32xf32> -> vector<16x32xf32>
    %c0_123 = arith.constant 0 : index
    %c0_124 = arith.constant 0 : index
    %434 = vector.load %arg22[%c0_123, %c0_124] : memref<1x32xf32, #tpu.memory_space<vmem>>, vector<1x32xf32>
    %435 = vector.broadcast %434 : vector<1x32xf32> to vector<16x32xf32>
    %436 = arith.addf %433, %435 : vector<16x32xf32>
    %437 = arith.negf %436 : vector<16x32xf32>
    %438 = math.exp %437 : vector<16x32xf32>
    %cst_125 = arith.constant 1.000000e+00 : f32
    %439 = vector.broadcast %cst_125 : f32 to vector<16x32xf32>
    %440 = arith.addf %439, %438 : vector<16x32xf32>
    %441 = arith.divf %439, %440 : vector<16x32xf32>
    %442 = arith.mulf %436, %441 : vector<16x32xf32>
    %443 = arith.truncf %442 : vector<16x32xf32> to vector<16x32xbf16>
    %444 = tpu.iota {dimensions = array<i32: 0>} : vector<16x32xi32>
    %c3_i32_126 = arith.constant 3 : i32
    %445 = vector.broadcast %c3_i32_126 : i32 to vector<16x32xi32>
    %446 = arith.andi %444, %445 : vector<16x32xi32>
    %cst_127 = arith.constant 0.000000e+00 : bf16
    %447 = vector.broadcast %cst_127 : bf16 to vector<5x32xbf16>
    %cst_128 = arith.constant 0.000000e+00 : bf16
    %448 = vector.broadcast %cst_128 : bf16 to vector<16x32xbf16>
    %449 = vector.extract_strided_slice %443 {offsets = [0, 0], sizes = [11, 32], strides = [1, 1]} : vector<16x32xbf16> to vector<11x32xbf16>
    %450 = tpu.concatenate %447, %449 in 0 : vector<5x32xbf16>, vector<11x32xbf16> -> vector<16x32xbf16>
    %c4_i32_129 = arith.constant 4 : i32
    %451 = vector.broadcast %c4_i32_129 : i32 to vector<16x32xi32>
    %452 = arith.cmpi sge, %444, %451 : vector<16x32xi32>
    %c0_i32_130 = arith.constant 0 : i32
    %453 = vector.broadcast %c0_i32_130 : i32 to vector<16x32xi32>
    %454 = arith.cmpi sgt, %446, %453 : vector<16x32xi32>
    %455 = arith.andi %452, %454 : vector<16x32xi1>
    %456 = arith.select %455, %450, %448 : vector<16x32xi1>, vector<16x32xbf16>
    %457 = vector.extract_strided_slice %447 {offsets = [0, 0], sizes = [4, 32], strides = [1, 1]} : vector<5x32xbf16> to vector<4x32xbf16>
    %458 = vector.extract_strided_slice %443 {offsets = [0, 0], sizes = [12, 32], strides = [1, 1]} : vector<16x32xbf16> to vector<12x32xbf16>
    %459 = tpu.concatenate %457, %458 in 0 : vector<4x32xbf16>, vector<12x32xbf16> -> vector<16x32xbf16>
    %c4_i32_131 = arith.constant 4 : i32
    %460 = vector.broadcast %c4_i32_131 : i32 to vector<16x32xi32>
    %461 = arith.cmpi sge, %444, %460 : vector<16x32xi32>
    %462 = arith.select %461, %459, %448 : vector<16x32xi1>, vector<16x32xbf16>
    %463 = vector.extract_strided_slice %447 {offsets = [0, 0], sizes = [3, 32], strides = [1, 1]} : vector<5x32xbf16> to vector<3x32xbf16>
    %464 = vector.extract_strided_slice %443 {offsets = [0, 0], sizes = [13, 32], strides = [1, 1]} : vector<16x32xbf16> to vector<13x32xbf16>
    %465 = tpu.concatenate %463, %464 in 0 : vector<3x32xbf16>, vector<13x32xbf16> -> vector<16x32xbf16>
    %c4_i32_132 = arith.constant 4 : i32
    %466 = vector.broadcast %c4_i32_132 : i32 to vector<16x32xi32>
    %467 = arith.cmpi sge, %444, %466 : vector<16x32xi32>
    %c3_i32_133 = arith.constant 3 : i32
    %468 = vector.broadcast %c3_i32_133 : i32 to vector<16x32xi32>
    %469 = arith.cmpi slt, %446, %468 : vector<16x32xi32>
    %470 = arith.andi %467, %469 : vector<16x32xi1>
    %471 = arith.select %470, %465, %448 : vector<16x32xi1>, vector<16x32xbf16>
    %472 = vector.extract_strided_slice %447 {offsets = [0, 0], sizes = [1, 32], strides = [1, 1]} : vector<5x32xbf16> to vector<1x32xbf16>
    %473 = vector.extract_strided_slice %443 {offsets = [0, 0], sizes = [15, 32], strides = [1, 1]} : vector<16x32xbf16> to vector<15x32xbf16>
    %474 = tpu.concatenate %472, %473 in 0 : vector<1x32xbf16>, vector<15x32xbf16> -> vector<16x32xbf16>
    %c0_i32_134 = arith.constant 0 : i32
    %475 = vector.broadcast %c0_i32_134 : i32 to vector<16x32xi32>
    %476 = arith.cmpi sgt, %446, %475 : vector<16x32xi32>
    %477 = arith.select %476, %474, %448 : vector<16x32xi1>, vector<16x32xbf16>
    %478 = vector.extract_strided_slice %443 {offsets = [1, 0], sizes = [15, 32], strides = [1, 1]} : vector<16x32xbf16> to vector<15x32xbf16>
    %479 = vector.extract_strided_slice %447 {offsets = [0, 0], sizes = [1, 32], strides = [1, 1]} : vector<5x32xbf16> to vector<1x32xbf16>
    %480 = tpu.concatenate %478, %479 in 0 : vector<15x32xbf16>, vector<1x32xbf16> -> vector<16x32xbf16>
    %c3_i32_135 = arith.constant 3 : i32
    %481 = vector.broadcast %c3_i32_135 : i32 to vector<16x32xi32>
    %482 = arith.cmpi slt, %446, %481 : vector<16x32xi32>
    %483 = arith.select %482, %480, %448 : vector<16x32xi1>, vector<16x32xbf16>
    %484 = vector.extract_strided_slice %443 {offsets = [3, 0], sizes = [13, 32], strides = [1, 1]} : vector<16x32xbf16> to vector<13x32xbf16>
    %485 = vector.extract_strided_slice %447 {offsets = [0, 0], sizes = [3, 32], strides = [1, 1]} : vector<5x32xbf16> to vector<3x32xbf16>
    %486 = tpu.concatenate %484, %485 in 0 : vector<13x32xbf16>, vector<3x32xbf16> -> vector<16x32xbf16>
    %c12_i32_136 = arith.constant 12 : i32
    %487 = vector.broadcast %c12_i32_136 : i32 to vector<16x32xi32>
    %488 = arith.cmpi slt, %444, %487 : vector<16x32xi32>
    %c0_i32_137 = arith.constant 0 : i32
    %489 = vector.broadcast %c0_i32_137 : i32 to vector<16x32xi32>
    %490 = arith.cmpi sgt, %446, %489 : vector<16x32xi32>
    %491 = arith.andi %488, %490 : vector<16x32xi1>
    %492 = arith.select %491, %486, %448 : vector<16x32xi1>, vector<16x32xbf16>
    %493 = vector.extract_strided_slice %443 {offsets = [4, 0], sizes = [12, 32], strides = [1, 1]} : vector<16x32xbf16> to vector<12x32xbf16>
    %494 = vector.extract_strided_slice %447 {offsets = [0, 0], sizes = [4, 32], strides = [1, 1]} : vector<5x32xbf16> to vector<4x32xbf16>
    %495 = tpu.concatenate %493, %494 in 0 : vector<12x32xbf16>, vector<4x32xbf16> -> vector<16x32xbf16>
    %c12_i32_138 = arith.constant 12 : i32
    %496 = vector.broadcast %c12_i32_138 : i32 to vector<16x32xi32>
    %497 = arith.cmpi slt, %444, %496 : vector<16x32xi32>
    %498 = arith.select %497, %495, %448 : vector<16x32xi1>, vector<16x32xbf16>
    %499 = vector.extract_strided_slice %443 {offsets = [5, 0], sizes = [11, 32], strides = [1, 1]} : vector<16x32xbf16> to vector<11x32xbf16>
    %500 = tpu.concatenate %499, %447 in 0 : vector<11x32xbf16>, vector<5x32xbf16> -> vector<16x32xbf16>
    %c12_i32_139 = arith.constant 12 : i32
    %501 = vector.broadcast %c12_i32_139 : i32 to vector<16x32xi32>
    %502 = arith.cmpi slt, %444, %501 : vector<16x32xi32>
    %c3_i32_140 = arith.constant 3 : i32
    %503 = vector.broadcast %c3_i32_140 : i32 to vector<16x32xi32>
    %504 = arith.cmpi slt, %446, %503 : vector<16x32xi32>
    %505 = arith.andi %502, %504 : vector<16x32xi1>
    %506 = arith.select %505, %500, %448 : vector<16x32xi1>, vector<16x32xbf16>
    %507 = tpu.concatenate %456, %462, %471, %477, %443, %483, %492, %498, %506 in 1 : vector<16x32xbf16>, vector<16x32xbf16>, vector<16x32xbf16>, vector<16x32xbf16>, vector<16x32xbf16>, vector<16x32xbf16>, vector<16x32xbf16>, vector<16x32xbf16>, vector<16x32xbf16> -> vector<16x288xbf16>
    %c0_141 = arith.constant 0 : index
    %c0_142 = arith.constant 0 : index
    %508 = vector.load %arg23[%c0_141, %c0_142] : memref<288x32xbf16, #tpu.memory_space<vmem>>, vector<288x32xbf16>
    %cst_143 = arith.constant dense<0.000000e+00> : vector<16x32xf32>
    %509 = tpu.matmul %507, %508, %cst_143 {dimension_numbers = #tpu.dot_dimension_numbers<[1], [0], [0], [1], [0, 0, 1, 1], [], []>} : vector<16x288xbf16>, vector<288x32xbf16>, vector<16x32xf32> -> vector<16x32xf32>
    %c0_144 = arith.constant 0 : index
    %c0_145 = arith.constant 0 : index
    %510 = vector.load %arg24[%c0_144, %c0_145] : memref<1x32xf32, #tpu.memory_space<vmem>>, vector<1x32xf32>
    %511 = vector.broadcast %510 : vector<1x32xf32> to vector<16x32xf32>
    %512 = arith.addf %509, %511 : vector<16x32xf32>
    %513 = arith.negf %512 : vector<16x32xf32>
    %514 = math.exp %513 : vector<16x32xf32>
    %cst_146 = arith.constant 1.000000e+00 : f32
    %515 = vector.broadcast %cst_146 : f32 to vector<16x32xf32>
    %516 = arith.addf %515, %514 : vector<16x32xf32>
    %517 = arith.divf %515, %516 : vector<16x32xf32>
    %518 = arith.mulf %512, %517 : vector<16x32xf32>
    %519 = arith.addf %366, %518 : vector<16x32xf32>
    %520 = arith.truncf %519 : vector<16x32xf32> to vector<16x32xbf16>
    %521 = tpu.iota {dimensions = array<i32: 0>} : vector<16x32xi32>
    %c3_i32_147 = arith.constant 3 : i32
    %522 = vector.broadcast %c3_i32_147 : i32 to vector<16x32xi32>
    %523 = arith.andi %521, %522 : vector<16x32xi32>
    %cst_148 = arith.constant 0.000000e+00 : bf16
    %524 = vector.broadcast %cst_148 : bf16 to vector<5x32xbf16>
    %cst_149 = arith.constant 0.000000e+00 : bf16
    %525 = vector.broadcast %cst_149 : bf16 to vector<16x32xbf16>
    %526 = vector.extract_strided_slice %520 {offsets = [0, 0], sizes = [11, 32], strides = [1, 1]} : vector<16x32xbf16> to vector<11x32xbf16>
    %527 = tpu.concatenate %524, %526 in 0 : vector<5x32xbf16>, vector<11x32xbf16> -> vector<16x32xbf16>
    %c4_i32_150 = arith.constant 4 : i32
    %528 = vector.broadcast %c4_i32_150 : i32 to vector<16x32xi32>
    %529 = arith.cmpi sge, %521, %528 : vector<16x32xi32>
    %c0_i32_151 = arith.constant 0 : i32
    %530 = vector.broadcast %c0_i32_151 : i32 to vector<16x32xi32>
    %531 = arith.cmpi sgt, %523, %530 : vector<16x32xi32>
    %532 = arith.andi %529, %531 : vector<16x32xi1>
    %533 = arith.select %532, %527, %525 : vector<16x32xi1>, vector<16x32xbf16>
    %534 = vector.extract_strided_slice %524 {offsets = [0, 0], sizes = [4, 32], strides = [1, 1]} : vector<5x32xbf16> to vector<4x32xbf16>
    %535 = vector.extract_strided_slice %520 {offsets = [0, 0], sizes = [12, 32], strides = [1, 1]} : vector<16x32xbf16> to vector<12x32xbf16>
    %536 = tpu.concatenate %534, %535 in 0 : vector<4x32xbf16>, vector<12x32xbf16> -> vector<16x32xbf16>
    %c4_i32_152 = arith.constant 4 : i32
    %537 = vector.broadcast %c4_i32_152 : i32 to vector<16x32xi32>
    %538 = arith.cmpi sge, %521, %537 : vector<16x32xi32>
    %539 = arith.select %538, %536, %525 : vector<16x32xi1>, vector<16x32xbf16>
    %540 = vector.extract_strided_slice %524 {offsets = [0, 0], sizes = [3, 32], strides = [1, 1]} : vector<5x32xbf16> to vector<3x32xbf16>
    %541 = vector.extract_strided_slice %520 {offsets = [0, 0], sizes = [13, 32], strides = [1, 1]} : vector<16x32xbf16> to vector<13x32xbf16>
    %542 = tpu.concatenate %540, %541 in 0 : vector<3x32xbf16>, vector<13x32xbf16> -> vector<16x32xbf16>
    %c4_i32_153 = arith.constant 4 : i32
    %543 = vector.broadcast %c4_i32_153 : i32 to vector<16x32xi32>
    %544 = arith.cmpi sge, %521, %543 : vector<16x32xi32>
    %c3_i32_154 = arith.constant 3 : i32
    %545 = vector.broadcast %c3_i32_154 : i32 to vector<16x32xi32>
    %546 = arith.cmpi slt, %523, %545 : vector<16x32xi32>
    %547 = arith.andi %544, %546 : vector<16x32xi1>
    %548 = arith.select %547, %542, %525 : vector<16x32xi1>, vector<16x32xbf16>
    %549 = vector.extract_strided_slice %524 {offsets = [0, 0], sizes = [1, 32], strides = [1, 1]} : vector<5x32xbf16> to vector<1x32xbf16>
    %550 = vector.extract_strided_slice %520 {offsets = [0, 0], sizes = [15, 32], strides = [1, 1]} : vector<16x32xbf16> to vector<15x32xbf16>
    %551 = tpu.concatenate %549, %550 in 0 : vector<1x32xbf16>, vector<15x32xbf16> -> vector<16x32xbf16>
    %c0_i32_155 = arith.constant 0 : i32
    %552 = vector.broadcast %c0_i32_155 : i32 to vector<16x32xi32>
    %553 = arith.cmpi sgt, %523, %552 : vector<16x32xi32>
    %554 = arith.select %553, %551, %525 : vector<16x32xi1>, vector<16x32xbf16>
    %555 = vector.extract_strided_slice %520 {offsets = [1, 0], sizes = [15, 32], strides = [1, 1]} : vector<16x32xbf16> to vector<15x32xbf16>
    %556 = vector.extract_strided_slice %524 {offsets = [0, 0], sizes = [1, 32], strides = [1, 1]} : vector<5x32xbf16> to vector<1x32xbf16>
    %557 = tpu.concatenate %555, %556 in 0 : vector<15x32xbf16>, vector<1x32xbf16> -> vector<16x32xbf16>
    %c3_i32_156 = arith.constant 3 : i32
    %558 = vector.broadcast %c3_i32_156 : i32 to vector<16x32xi32>
    %559 = arith.cmpi slt, %523, %558 : vector<16x32xi32>
    %560 = arith.select %559, %557, %525 : vector<16x32xi1>, vector<16x32xbf16>
    %561 = vector.extract_strided_slice %520 {offsets = [3, 0], sizes = [13, 32], strides = [1, 1]} : vector<16x32xbf16> to vector<13x32xbf16>
    %562 = vector.extract_strided_slice %524 {offsets = [0, 0], sizes = [3, 32], strides = [1, 1]} : vector<5x32xbf16> to vector<3x32xbf16>
    %563 = tpu.concatenate %561, %562 in 0 : vector<13x32xbf16>, vector<3x32xbf16> -> vector<16x32xbf16>
    %c12_i32_157 = arith.constant 12 : i32
    %564 = vector.broadcast %c12_i32_157 : i32 to vector<16x32xi32>
    %565 = arith.cmpi slt, %521, %564 : vector<16x32xi32>
    %c0_i32_158 = arith.constant 0 : i32
    %566 = vector.broadcast %c0_i32_158 : i32 to vector<16x32xi32>
    %567 = arith.cmpi sgt, %523, %566 : vector<16x32xi32>
    %568 = arith.andi %565, %567 : vector<16x32xi1>
    %569 = arith.select %568, %563, %525 : vector<16x32xi1>, vector<16x32xbf16>
    %570 = vector.extract_strided_slice %520 {offsets = [4, 0], sizes = [12, 32], strides = [1, 1]} : vector<16x32xbf16> to vector<12x32xbf16>
    %571 = vector.extract_strided_slice %524 {offsets = [0, 0], sizes = [4, 32], strides = [1, 1]} : vector<5x32xbf16> to vector<4x32xbf16>
    %572 = tpu.concatenate %570, %571 in 0 : vector<12x32xbf16>, vector<4x32xbf16> -> vector<16x32xbf16>
    %c12_i32_159 = arith.constant 12 : i32
    %573 = vector.broadcast %c12_i32_159 : i32 to vector<16x32xi32>
    %574 = arith.cmpi slt, %521, %573 : vector<16x32xi32>
    %575 = arith.select %574, %572, %525 : vector<16x32xi1>, vector<16x32xbf16>
    %576 = vector.extract_strided_slice %520 {offsets = [5, 0], sizes = [11, 32], strides = [1, 1]} : vector<16x32xbf16> to vector<11x32xbf16>
    %577 = tpu.concatenate %576, %524 in 0 : vector<11x32xbf16>, vector<5x32xbf16> -> vector<16x32xbf16>
    %c12_i32_160 = arith.constant 12 : i32
    %578 = vector.broadcast %c12_i32_160 : i32 to vector<16x32xi32>
    %579 = arith.cmpi slt, %521, %578 : vector<16x32xi32>
    %c3_i32_161 = arith.constant 3 : i32
    %580 = vector.broadcast %c3_i32_161 : i32 to vector<16x32xi32>
    %581 = arith.cmpi slt, %523, %580 : vector<16x32xi32>
    %582 = arith.andi %579, %581 : vector<16x32xi1>
    %583 = arith.select %582, %577, %525 : vector<16x32xi1>, vector<16x32xbf16>
    %584 = tpu.concatenate %533, %539, %548, %554, %520, %560, %569, %575, %583 in 1 : vector<16x32xbf16>, vector<16x32xbf16>, vector<16x32xbf16>, vector<16x32xbf16>, vector<16x32xbf16>, vector<16x32xbf16>, vector<16x32xbf16>, vector<16x32xbf16>, vector<16x32xbf16> -> vector<16x288xbf16>
    %c0_162 = arith.constant 0 : index
    %c0_163 = arith.constant 0 : index
    %585 = vector.load %arg25[%c0_162, %c0_163] : memref<288x32xbf16, #tpu.memory_space<vmem>>, vector<288x32xbf16>
    %cst_164 = arith.constant dense<0.000000e+00> : vector<16x32xf32>
    %586 = tpu.matmul %584, %585, %cst_164 {dimension_numbers = #tpu.dot_dimension_numbers<[1], [0], [0], [1], [0, 0, 1, 1], [], []>} : vector<16x288xbf16>, vector<288x32xbf16>, vector<16x32xf32> -> vector<16x32xf32>
    %c0_165 = arith.constant 0 : index
    %c0_166 = arith.constant 0 : index
    %587 = vector.load %arg26[%c0_165, %c0_166] : memref<1x32xf32, #tpu.memory_space<vmem>>, vector<1x32xf32>
    %588 = vector.broadcast %587 : vector<1x32xf32> to vector<16x32xf32>
    %589 = arith.addf %586, %588 : vector<16x32xf32>
    %590 = arith.negf %589 : vector<16x32xf32>
    %591 = math.exp %590 : vector<16x32xf32>
    %cst_167 = arith.constant 1.000000e+00 : f32
    %592 = vector.broadcast %cst_167 : f32 to vector<16x32xf32>
    %593 = arith.addf %592, %591 : vector<16x32xf32>
    %594 = arith.divf %592, %593 : vector<16x32xf32>
    %595 = arith.mulf %589, %594 : vector<16x32xf32>
    %596 = arith.truncf %595 : vector<16x32xf32> to vector<16x32xbf16>
    %597 = tpu.iota {dimensions = array<i32: 0>} : vector<16x32xi32>
    %c3_i32_168 = arith.constant 3 : i32
    %598 = vector.broadcast %c3_i32_168 : i32 to vector<16x32xi32>
    %599 = arith.andi %597, %598 : vector<16x32xi32>
    %cst_169 = arith.constant 0.000000e+00 : bf16
    %600 = vector.broadcast %cst_169 : bf16 to vector<5x32xbf16>
    %cst_170 = arith.constant 0.000000e+00 : bf16
    %601 = vector.broadcast %cst_170 : bf16 to vector<16x32xbf16>
    %602 = vector.extract_strided_slice %596 {offsets = [0, 0], sizes = [11, 32], strides = [1, 1]} : vector<16x32xbf16> to vector<11x32xbf16>
    %603 = tpu.concatenate %600, %602 in 0 : vector<5x32xbf16>, vector<11x32xbf16> -> vector<16x32xbf16>
    %c4_i32_171 = arith.constant 4 : i32
    %604 = vector.broadcast %c4_i32_171 : i32 to vector<16x32xi32>
    %605 = arith.cmpi sge, %597, %604 : vector<16x32xi32>
    %c0_i32_172 = arith.constant 0 : i32
    %606 = vector.broadcast %c0_i32_172 : i32 to vector<16x32xi32>
    %607 = arith.cmpi sgt, %599, %606 : vector<16x32xi32>
    %608 = arith.andi %605, %607 : vector<16x32xi1>
    %609 = arith.select %608, %603, %601 : vector<16x32xi1>, vector<16x32xbf16>
    %610 = vector.extract_strided_slice %600 {offsets = [0, 0], sizes = [4, 32], strides = [1, 1]} : vector<5x32xbf16> to vector<4x32xbf16>
    %611 = vector.extract_strided_slice %596 {offsets = [0, 0], sizes = [12, 32], strides = [1, 1]} : vector<16x32xbf16> to vector<12x32xbf16>
    %612 = tpu.concatenate %610, %611 in 0 : vector<4x32xbf16>, vector<12x32xbf16> -> vector<16x32xbf16>
    %c4_i32_173 = arith.constant 4 : i32
    %613 = vector.broadcast %c4_i32_173 : i32 to vector<16x32xi32>
    %614 = arith.cmpi sge, %597, %613 : vector<16x32xi32>
    %615 = arith.select %614, %612, %601 : vector<16x32xi1>, vector<16x32xbf16>
    %616 = vector.extract_strided_slice %600 {offsets = [0, 0], sizes = [3, 32], strides = [1, 1]} : vector<5x32xbf16> to vector<3x32xbf16>
    %617 = vector.extract_strided_slice %596 {offsets = [0, 0], sizes = [13, 32], strides = [1, 1]} : vector<16x32xbf16> to vector<13x32xbf16>
    %618 = tpu.concatenate %616, %617 in 0 : vector<3x32xbf16>, vector<13x32xbf16> -> vector<16x32xbf16>
    %c4_i32_174 = arith.constant 4 : i32
    %619 = vector.broadcast %c4_i32_174 : i32 to vector<16x32xi32>
    %620 = arith.cmpi sge, %597, %619 : vector<16x32xi32>
    %c3_i32_175 = arith.constant 3 : i32
    %621 = vector.broadcast %c3_i32_175 : i32 to vector<16x32xi32>
    %622 = arith.cmpi slt, %599, %621 : vector<16x32xi32>
    %623 = arith.andi %620, %622 : vector<16x32xi1>
    %624 = arith.select %623, %618, %601 : vector<16x32xi1>, vector<16x32xbf16>
    %625 = vector.extract_strided_slice %600 {offsets = [0, 0], sizes = [1, 32], strides = [1, 1]} : vector<5x32xbf16> to vector<1x32xbf16>
    %626 = vector.extract_strided_slice %596 {offsets = [0, 0], sizes = [15, 32], strides = [1, 1]} : vector<16x32xbf16> to vector<15x32xbf16>
    %627 = tpu.concatenate %625, %626 in 0 : vector<1x32xbf16>, vector<15x32xbf16> -> vector<16x32xbf16>
    %c0_i32_176 = arith.constant 0 : i32
    %628 = vector.broadcast %c0_i32_176 : i32 to vector<16x32xi32>
    %629 = arith.cmpi sgt, %599, %628 : vector<16x32xi32>
    %630 = arith.select %629, %627, %601 : vector<16x32xi1>, vector<16x32xbf16>
    %631 = vector.extract_strided_slice %596 {offsets = [1, 0], sizes = [15, 32], strides = [1, 1]} : vector<16x32xbf16> to vector<15x32xbf16>
    %632 = vector.extract_strided_slice %600 {offsets = [0, 0], sizes = [1, 32], strides = [1, 1]} : vector<5x32xbf16> to vector<1x32xbf16>
    %633 = tpu.concatenate %631, %632 in 0 : vector<15x32xbf16>, vector<1x32xbf16> -> vector<16x32xbf16>
    %c3_i32_177 = arith.constant 3 : i32
    %634 = vector.broadcast %c3_i32_177 : i32 to vector<16x32xi32>
    %635 = arith.cmpi slt, %599, %634 : vector<16x32xi32>
    %636 = arith.select %635, %633, %601 : vector<16x32xi1>, vector<16x32xbf16>
    %637 = vector.extract_strided_slice %596 {offsets = [3, 0], sizes = [13, 32], strides = [1, 1]} : vector<16x32xbf16> to vector<13x32xbf16>
    %638 = vector.extract_strided_slice %600 {offsets = [0, 0], sizes = [3, 32], strides = [1, 1]} : vector<5x32xbf16> to vector<3x32xbf16>
    %639 = tpu.concatenate %637, %638 in 0 : vector<13x32xbf16>, vector<3x32xbf16> -> vector<16x32xbf16>
    %c12_i32_178 = arith.constant 12 : i32
    %640 = vector.broadcast %c12_i32_178 : i32 to vector<16x32xi32>
    %641 = arith.cmpi slt, %597, %640 : vector<16x32xi32>
    %c0_i32_179 = arith.constant 0 : i32
    %642 = vector.broadcast %c0_i32_179 : i32 to vector<16x32xi32>
    %643 = arith.cmpi sgt, %599, %642 : vector<16x32xi32>
    %644 = arith.andi %641, %643 : vector<16x32xi1>
    %645 = arith.select %644, %639, %601 : vector<16x32xi1>, vector<16x32xbf16>
    %646 = vector.extract_strided_slice %596 {offsets = [4, 0], sizes = [12, 32], strides = [1, 1]} : vector<16x32xbf16> to vector<12x32xbf16>
    %647 = vector.extract_strided_slice %600 {offsets = [0, 0], sizes = [4, 32], strides = [1, 1]} : vector<5x32xbf16> to vector<4x32xbf16>
    %648 = tpu.concatenate %646, %647 in 0 : vector<12x32xbf16>, vector<4x32xbf16> -> vector<16x32xbf16>
    %c12_i32_180 = arith.constant 12 : i32
    %649 = vector.broadcast %c12_i32_180 : i32 to vector<16x32xi32>
    %650 = arith.cmpi slt, %597, %649 : vector<16x32xi32>
    %651 = arith.select %650, %648, %601 : vector<16x32xi1>, vector<16x32xbf16>
    %652 = vector.extract_strided_slice %596 {offsets = [5, 0], sizes = [11, 32], strides = [1, 1]} : vector<16x32xbf16> to vector<11x32xbf16>
    %653 = tpu.concatenate %652, %600 in 0 : vector<11x32xbf16>, vector<5x32xbf16> -> vector<16x32xbf16>
    %c12_i32_181 = arith.constant 12 : i32
    %654 = vector.broadcast %c12_i32_181 : i32 to vector<16x32xi32>
    %655 = arith.cmpi slt, %597, %654 : vector<16x32xi32>
    %c3_i32_182 = arith.constant 3 : i32
    %656 = vector.broadcast %c3_i32_182 : i32 to vector<16x32xi32>
    %657 = arith.cmpi slt, %599, %656 : vector<16x32xi32>
    %658 = arith.andi %655, %657 : vector<16x32xi1>
    %659 = arith.select %658, %653, %601 : vector<16x32xi1>, vector<16x32xbf16>
    %660 = tpu.concatenate %609, %615, %624, %630, %596, %636, %645, %651, %659 in 1 : vector<16x32xbf16>, vector<16x32xbf16>, vector<16x32xbf16>, vector<16x32xbf16>, vector<16x32xbf16>, vector<16x32xbf16>, vector<16x32xbf16>, vector<16x32xbf16>, vector<16x32xbf16> -> vector<16x288xbf16>
    %c0_183 = arith.constant 0 : index
    %c0_184 = arith.constant 0 : index
    %661 = vector.load %arg27[%c0_183, %c0_184] : memref<288x32xbf16, #tpu.memory_space<vmem>>, vector<288x32xbf16>
    %cst_185 = arith.constant dense<0.000000e+00> : vector<16x32xf32>
    %662 = tpu.matmul %660, %661, %cst_185 {dimension_numbers = #tpu.dot_dimension_numbers<[1], [0], [0], [1], [0, 0, 1, 1], [], []>} : vector<16x288xbf16>, vector<288x32xbf16>, vector<16x32xf32> -> vector<16x32xf32>
    %c0_186 = arith.constant 0 : index
    %c0_187 = arith.constant 0 : index
    %663 = vector.load %arg28[%c0_186, %c0_187] : memref<1x32xf32, #tpu.memory_space<vmem>>, vector<1x32xf32>
    %664 = vector.broadcast %663 : vector<1x32xf32> to vector<16x32xf32>
    %665 = arith.addf %662, %664 : vector<16x32xf32>
    %666 = arith.negf %665 : vector<16x32xf32>
    %667 = math.exp %666 : vector<16x32xf32>
    %cst_188 = arith.constant 1.000000e+00 : f32
    %668 = vector.broadcast %cst_188 : f32 to vector<16x32xf32>
    %669 = arith.addf %668, %667 : vector<16x32xf32>
    %670 = arith.divf %668, %669 : vector<16x32xf32>
    %671 = arith.mulf %665, %670 : vector<16x32xf32>
    %672 = arith.addf %519, %671 : vector<16x32xf32>
    %673 = arith.truncf %365 : vector<16x32xf32> to vector<16x32xbf16>
    %674 = arith.truncf %366 : vector<16x32xf32> to vector<16x32xbf16>
    %675 = arith.truncf %519 : vector<16x32xf32> to vector<16x32xbf16>
    %676 = arith.truncf %672 : vector<16x32xf32> to vector<16x32xbf16>
    %677 = tpu.concatenate %673, %674, %675, %676 in 1 : vector<16x32xbf16>, vector<16x32xbf16>, vector<16x32xbf16>, vector<16x32xbf16> -> vector<16x128xbf16>
    %c0_189 = arith.constant 0 : index
    %c0_190 = arith.constant 0 : index
    %678 = vector.load %arg29[%c0_189, %c0_190] : memref<128x64xbf16, #tpu.memory_space<vmem>>, vector<128x64xbf16>
    %cst_191 = arith.constant dense<0.000000e+00> : vector<16x64xf32>
    %679 = tpu.matmul %677, %678, %cst_191 {dimension_numbers = #tpu.dot_dimension_numbers<[1], [0], [0], [1], [0, 0, 1, 1], [], []>} : vector<16x128xbf16>, vector<128x64xbf16>, vector<16x64xf32> -> vector<16x64xf32>
    %c0_192 = arith.constant 0 : index
    %c0_193 = arith.constant 0 : index
    %680 = vector.load %arg30[%c0_192, %c0_193] : memref<1x64xf32, #tpu.memory_space<vmem>>, vector<1x64xf32>
    %681 = vector.broadcast %680 : vector<1x64xf32> to vector<16x64xf32>
    %682 = arith.addf %679, %681 : vector<16x64xf32>
    %683 = arith.negf %682 : vector<16x64xf32>
    %684 = math.exp %683 : vector<16x64xf32>
    %cst_194 = arith.constant 1.000000e+00 : f32
    %685 = vector.broadcast %cst_194 : f32 to vector<16x64xf32>
    %686 = arith.addf %685, %684 : vector<16x64xf32>
    %687 = arith.divf %685, %686 : vector<16x64xf32>
    %688 = arith.mulf %682, %687 : vector<16x64xf32>
    %689 = arith.truncf %688 : vector<16x64xf32> to vector<16x64xbf16>
    %690 = tpu.iota {dimensions = array<i32: 0>} : vector<16x64xi32>
    %c3_i32_195 = arith.constant 3 : i32
    %691 = vector.broadcast %c3_i32_195 : i32 to vector<16x64xi32>
    %692 = arith.andi %690, %691 : vector<16x64xi32>
    %cst_196 = arith.constant 0.000000e+00 : bf16
    %693 = vector.broadcast %cst_196 : bf16 to vector<5x64xbf16>
    %cst_197 = arith.constant 0.000000e+00 : bf16
    %694 = vector.broadcast %cst_197 : bf16 to vector<16x64xbf16>
    %695 = vector.extract_strided_slice %689 {offsets = [0, 0], sizes = [11, 64], strides = [1, 1]} : vector<16x64xbf16> to vector<11x64xbf16>
    %696 = tpu.concatenate %693, %695 in 0 : vector<5x64xbf16>, vector<11x64xbf16> -> vector<16x64xbf16>
    %c4_i32_198 = arith.constant 4 : i32
    %697 = vector.broadcast %c4_i32_198 : i32 to vector<16x64xi32>
    %698 = arith.cmpi sge, %690, %697 : vector<16x64xi32>
    %c0_i32_199 = arith.constant 0 : i32
    %699 = vector.broadcast %c0_i32_199 : i32 to vector<16x64xi32>
    %700 = arith.cmpi sgt, %692, %699 : vector<16x64xi32>
    %701 = arith.andi %698, %700 : vector<16x64xi1>
    %702 = arith.select %701, %696, %694 : vector<16x64xi1>, vector<16x64xbf16>
    %703 = vector.extract_strided_slice %693 {offsets = [0, 0], sizes = [4, 64], strides = [1, 1]} : vector<5x64xbf16> to vector<4x64xbf16>
    %704 = vector.extract_strided_slice %689 {offsets = [0, 0], sizes = [12, 64], strides = [1, 1]} : vector<16x64xbf16> to vector<12x64xbf16>
    %705 = tpu.concatenate %703, %704 in 0 : vector<4x64xbf16>, vector<12x64xbf16> -> vector<16x64xbf16>
    %c4_i32_200 = arith.constant 4 : i32
    %706 = vector.broadcast %c4_i32_200 : i32 to vector<16x64xi32>
    %707 = arith.cmpi sge, %690, %706 : vector<16x64xi32>
    %708 = arith.select %707, %705, %694 : vector<16x64xi1>, vector<16x64xbf16>
    %709 = vector.extract_strided_slice %693 {offsets = [0, 0], sizes = [3, 64], strides = [1, 1]} : vector<5x64xbf16> to vector<3x64xbf16>
    %710 = vector.extract_strided_slice %689 {offsets = [0, 0], sizes = [13, 64], strides = [1, 1]} : vector<16x64xbf16> to vector<13x64xbf16>
    %711 = tpu.concatenate %709, %710 in 0 : vector<3x64xbf16>, vector<13x64xbf16> -> vector<16x64xbf16>
    %c4_i32_201 = arith.constant 4 : i32
    %712 = vector.broadcast %c4_i32_201 : i32 to vector<16x64xi32>
    %713 = arith.cmpi sge, %690, %712 : vector<16x64xi32>
    %c3_i32_202 = arith.constant 3 : i32
    %714 = vector.broadcast %c3_i32_202 : i32 to vector<16x64xi32>
    %715 = arith.cmpi slt, %692, %714 : vector<16x64xi32>
    %716 = arith.andi %713, %715 : vector<16x64xi1>
    %717 = arith.select %716, %711, %694 : vector<16x64xi1>, vector<16x64xbf16>
    %718 = vector.extract_strided_slice %693 {offsets = [0, 0], sizes = [1, 64], strides = [1, 1]} : vector<5x64xbf16> to vector<1x64xbf16>
    %719 = vector.extract_strided_slice %689 {offsets = [0, 0], sizes = [15, 64], strides = [1, 1]} : vector<16x64xbf16> to vector<15x64xbf16>
    %720 = tpu.concatenate %718, %719 in 0 : vector<1x64xbf16>, vector<15x64xbf16> -> vector<16x64xbf16>
    %c0_i32_203 = arith.constant 0 : i32
    %721 = vector.broadcast %c0_i32_203 : i32 to vector<16x64xi32>
    %722 = arith.cmpi sgt, %692, %721 : vector<16x64xi32>
    %723 = arith.select %722, %720, %694 : vector<16x64xi1>, vector<16x64xbf16>
    %724 = vector.extract_strided_slice %689 {offsets = [1, 0], sizes = [15, 64], strides = [1, 1]} : vector<16x64xbf16> to vector<15x64xbf16>
    %725 = vector.extract_strided_slice %693 {offsets = [0, 0], sizes = [1, 64], strides = [1, 1]} : vector<5x64xbf16> to vector<1x64xbf16>
    %726 = tpu.concatenate %724, %725 in 0 : vector<15x64xbf16>, vector<1x64xbf16> -> vector<16x64xbf16>
    %c3_i32_204 = arith.constant 3 : i32
    %727 = vector.broadcast %c3_i32_204 : i32 to vector<16x64xi32>
    %728 = arith.cmpi slt, %692, %727 : vector<16x64xi32>
    %729 = arith.select %728, %726, %694 : vector<16x64xi1>, vector<16x64xbf16>
    %730 = vector.extract_strided_slice %689 {offsets = [3, 0], sizes = [13, 64], strides = [1, 1]} : vector<16x64xbf16> to vector<13x64xbf16>
    %731 = vector.extract_strided_slice %693 {offsets = [0, 0], sizes = [3, 64], strides = [1, 1]} : vector<5x64xbf16> to vector<3x64xbf16>
    %732 = tpu.concatenate %730, %731 in 0 : vector<13x64xbf16>, vector<3x64xbf16> -> vector<16x64xbf16>
    %c12_i32_205 = arith.constant 12 : i32
    %733 = vector.broadcast %c12_i32_205 : i32 to vector<16x64xi32>
    %734 = arith.cmpi slt, %690, %733 : vector<16x64xi32>
    %c0_i32_206 = arith.constant 0 : i32
    %735 = vector.broadcast %c0_i32_206 : i32 to vector<16x64xi32>
    %736 = arith.cmpi sgt, %692, %735 : vector<16x64xi32>
    %737 = arith.andi %734, %736 : vector<16x64xi1>
    %738 = arith.select %737, %732, %694 : vector<16x64xi1>, vector<16x64xbf16>
    %739 = vector.extract_strided_slice %689 {offsets = [4, 0], sizes = [12, 64], strides = [1, 1]} : vector<16x64xbf16> to vector<12x64xbf16>
    %740 = vector.extract_strided_slice %693 {offsets = [0, 0], sizes = [4, 64], strides = [1, 1]} : vector<5x64xbf16> to vector<4x64xbf16>
    %741 = tpu.concatenate %739, %740 in 0 : vector<12x64xbf16>, vector<4x64xbf16> -> vector<16x64xbf16>
    %c12_i32_207 = arith.constant 12 : i32
    %742 = vector.broadcast %c12_i32_207 : i32 to vector<16x64xi32>
    %743 = arith.cmpi slt, %690, %742 : vector<16x64xi32>
    %744 = arith.select %743, %741, %694 : vector<16x64xi1>, vector<16x64xbf16>
    %745 = vector.extract_strided_slice %689 {offsets = [5, 0], sizes = [11, 64], strides = [1, 1]} : vector<16x64xbf16> to vector<11x64xbf16>
    %746 = tpu.concatenate %745, %693 in 0 : vector<11x64xbf16>, vector<5x64xbf16> -> vector<16x64xbf16>
    %c12_i32_208 = arith.constant 12 : i32
    %747 = vector.broadcast %c12_i32_208 : i32 to vector<16x64xi32>
    %748 = arith.cmpi slt, %690, %747 : vector<16x64xi32>
    %c3_i32_209 = arith.constant 3 : i32
    %749 = vector.broadcast %c3_i32_209 : i32 to vector<16x64xi32>
    %750 = arith.cmpi slt, %692, %749 : vector<16x64xi32>
    %751 = arith.andi %748, %750 : vector<16x64xi1>
    %752 = arith.select %751, %746, %694 : vector<16x64xi1>, vector<16x64xbf16>
    %753 = tpu.concatenate %702, %708, %717, %723, %689, %729, %738, %744, %752 in 1 : vector<16x64xbf16>, vector<16x64xbf16>, vector<16x64xbf16>, vector<16x64xbf16>, vector<16x64xbf16>, vector<16x64xbf16>, vector<16x64xbf16>, vector<16x64xbf16>, vector<16x64xbf16> -> vector<16x576xbf16>
    %c0_210 = arith.constant 0 : index
    %c0_211 = arith.constant 0 : index
    %754 = vector.load %arg4[%c0_210, %c0_211] : memref<4x16xbf16, #tpu.memory_space<vmem>>, vector<4x16xbf16>
    %cst_212 = arith.constant dense<0.000000e+00> : vector<4x576xf32>
    %755 = tpu.matmul %754, %753, %cst_212 {dimension_numbers = #tpu.dot_dimension_numbers<[1], [0], [0], [1], [0, 0, 1, 1], [], []>} : vector<4x16xbf16>, vector<16x576xbf16>, vector<4x576xf32> -> vector<4x576xf32>
    %756 = arith.truncf %755 : vector<4x576xf32> to vector<4x576xbf16>
    %c0_213 = arith.constant 0 : index
    %c0_214 = arith.constant 0 : index
    %757 = vector.load %arg31[%c0_213, %c0_214] : memref<576x128xbf16, #tpu.memory_space<vmem>>, vector<576x128xbf16>
    %cst_215 = arith.constant dense<0.000000e+00> : vector<4x128xf32>
    %758 = tpu.matmul %756, %757, %cst_215 {dimension_numbers = #tpu.dot_dimension_numbers<[1], [0], [0], [1], [0, 0, 1, 1], [], []>} : vector<4x576xbf16>, vector<576x128xbf16>, vector<4x128xf32> -> vector<4x128xf32>
    %c0_216 = arith.constant 0 : index
    %c0_217 = arith.constant 0 : index
    %759 = vector.load %arg32[%c0_216, %c0_217] : memref<1x128xf32, #tpu.memory_space<vmem>>, vector<1x128xf32>
    %760 = vector.broadcast %759 : vector<1x128xf32> to vector<4x128xf32>
    %761 = arith.addf %758, %760 : vector<4x128xf32>
    %762 = arith.negf %761 : vector<4x128xf32>
    %763 = math.exp %762 : vector<4x128xf32>
    %cst_218 = arith.constant 1.000000e+00 : f32
    %764 = vector.broadcast %cst_218 : f32 to vector<4x128xf32>
    %765 = arith.addf %764, %763 : vector<4x128xf32>
    %766 = arith.divf %764, %765 : vector<4x128xf32>
    %767 = arith.mulf %761, %766 : vector<4x128xf32>
    %cst_219 = arith.constant dense<0.000000e+00> : vector<128xf32>
    %768 = vector.multi_reduction <add>, %767, %cst_219 [0] : vector<4x128xf32> to vector<128xf32>
    %769 = vector.shape_cast %768 : vector<128xf32> to vector<1x128xf32>
    %cst_220 = arith.constant 4.000000e+00 : f32
    %770 = vector.broadcast %cst_220 : f32 to vector<1x128xf32>
    %771 = arith.divf %769, %770 : vector<1x128xf32>
    %c0_221 = arith.constant 0 : index
    %c0_222 = arith.constant 0 : index
    %772 = vector.load %arg33[%c0_221, %c0_222] : memref<1x128xf32, #tpu.memory_space<vmem>>, vector<1x128xf32>
    %773 = arith.mulf %771, %772 : vector<1x128xf32>
    %cst_223 = arith.constant dense<0.000000e+00> : vector<1xf32>
    %774 = vector.multi_reduction <add>, %773, %cst_223 [1] : vector<1x128xf32> to vector<1xf32>
    %775 = vector.shape_cast %774 : vector<1xf32> to vector<1x1xf32>
    %c0_224 = arith.constant 0 : index
    %c0_225 = arith.constant 0 : index
    %776 = vector.load %arg34[%c0_224, %c0_225] : memref<1x1xf32, #tpu.memory_space<vmem>>, vector<1x1xf32>
    %777 = arith.addf %775, %776 : vector<1x1xf32>
    %778 = arith.negf %777 : vector<1x1xf32>
    %779 = math.exp %778 : vector<1x1xf32>
    %cst_226 = arith.constant 1.000000e+00 : f32
    %780 = vector.broadcast %cst_226 : f32 to vector<1x1xf32>
    %781 = arith.addf %780, %779 : vector<1x1xf32>
    %782 = arith.divf %780, %781 : vector<1x1xf32>
    %783 = vector.shape_cast %782 : vector<1x1xf32> to vector<1x1x1xf32>
    %784 = vector.shape_cast %783 : vector<1x1x1xf32> to vector<1x1x1xf32>
    %785 = vector.broadcast %784 : vector<1x1x1xf32> to vector<1x8x128xf32>
    %c0_227 = arith.constant 0 : index
    %c0_228 = arith.constant 0 : index
    %c0_229 = arith.constant 0 : index
    %786 = vector.load %arg35[%c0_227, %c0_228, %c0_229] : memref<1x8x128xf32, #tpu.memory_space<vmem>>, vector<1x8x128xf32>
    tpu.vector_store %arg35[%c0_227, %c0_228, %c0_229], %785 {strides = array<i32>} : memref<1x8x128xf32, #tpu.memory_space<vmem>>, vector<1x8x128xf32>,
    return
  }
  func.func @transform_0(%arg0: i32) -> (i32, i32, i32) {
    %c0_i32 = arith.constant 0 : i32
    %c0_i32_0 = arith.constant 0 : i32
    %c0_i32_1 = arith.constant 0 : i32
    return %arg0, %c0_i32, %c0_i32_0 : i32, i32, i32
  }
  func.func @transform_1(%arg0: i32) -> (i32, i32) {
    %c0_i32 = arith.constant 0 : i32
    %c0_i32_0 = arith.constant 0 : i32
    %c0_i32_1 = arith.constant 0 : i32
    return %c0_i32, %c0_i32_0 : i32, i32
  }
  func.func @transform_2(%arg0: i32) -> (i32, i32) {
    %c0_i32 = arith.constant 0 : i32
    %c0_i32_0 = arith.constant 0 : i32
    %c0_i32_1 = arith.constant 0 : i32
    return %c0_i32, %c0_i32_0 : i32, i32
  }
  func.func @transform_3(%arg0: i32) -> (i32, i32) {
    %c0_i32 = arith.constant 0 : i32
    %c0_i32_0 = arith.constant 0 : i32
    %c0_i32_1 = arith.constant 0 : i32
    return %c0_i32, %c0_i32_0 : i32, i32
  }
  func.func @transform_4(%arg0: i32) -> (i32, i32) {
    %c0_i32 = arith.constant 0 : i32
    %c0_i32_0 = arith.constant 0 : i32
    %c0_i32_1 = arith.constant 0 : i32
    return %c0_i32, %c0_i32_0 : i32, i32
  }
  func.func @transform_5(%arg0: i32) -> (i32, i32) {
    %c0_i32 = arith.constant 0 : i32
    %c0_i32_0 = arith.constant 0 : i32
    %c0_i32_1 = arith.constant 0 : i32
    return %c0_i32, %c0_i32_0 : i32, i32
  }
  func.func @transform_6(%arg0: i32) -> (i32, i32) {
    %c0_i32 = arith.constant 0 : i32
    %c0_i32_0 = arith.constant 0 : i32
    %c0_i32_1 = arith.constant 0 : i32
    return %c0_i32, %c0_i32_0 : i32, i32
  }
  func.func @transform_7(%arg0: i32) -> (i32, i32) {
    %c0_i32 = arith.constant 0 : i32
    %c0_i32_0 = arith.constant 0 : i32
    %c0_i32_1 = arith.constant 0 : i32
    return %c0_i32, %c0_i32_0 : i32, i32
  }
  func.func @transform_8(%arg0: i32) -> (i32, i32) {
    %c0_i32 = arith.constant 0 : i32
    %c0_i32_0 = arith.constant 0 : i32
    %c0_i32_1 = arith.constant 0 : i32
    return %c0_i32, %c0_i32_0 : i32, i32
  }
  func.func @transform_9(%arg0: i32) -> (i32, i32) {
    %c0_i32 = arith.constant 0 : i32
    %c0_i32_0 = arith.constant 0 : i32
    %c0_i32_1 = arith.constant 0 : i32
    return %c0_i32, %c0_i32_0 : i32, i32
  }
  func.func @transform_10(%arg0: i32) -> (i32, i32) {
    %c0_i32 = arith.constant 0 : i32
    %c0_i32_0 = arith.constant 0 : i32
    %c0_i32_1 = arith.constant 0 : i32
    return %c0_i32, %c0_i32_0 : i32, i32
  }
  func.func @transform_11(%arg0: i32) -> (i32, i32) {
    %c0_i32 = arith.constant 0 : i32
    %c0_i32_0 = arith.constant 0 : i32
    %c0_i32_1 = arith.constant 0 : i32
    return %c0_i32, %c0_i32_0 : i32, i32
  }
  func.func @transform_12(%arg0: i32) -> (i32, i32) {
    %c0_i32 = arith.constant 0 : i32
    %c0_i32_0 = arith.constant 0 : i32
    %c0_i32_1 = arith.constant 0 : i32
    return %c0_i32, %c0_i32_0 : i32, i32
  }
  func.func @transform_13(%arg0: i32) -> (i32, i32) {
    %c0_i32 = arith.constant 0 : i32
    %c0_i32_0 = arith.constant 0 : i32
    %c0_i32_1 = arith.constant 0 : i32
    return %c0_i32, %c0_i32_0 : i32, i32
  }
  func.func @transform_14(%arg0: i32) -> (i32, i32) {
    %c0_i32 = arith.constant 0 : i32
    %c0_i32_0 = arith.constant 0 : i32
    %c0_i32_1 = arith.constant 0 : i32
    return %c0_i32, %c0_i32_0 : i32, i32
  }
  func.func @transform_15(%arg0: i32) -> (i32, i32) {
    %c0_i32 = arith.constant 0 : i32
    %c0_i32_0 = arith.constant 0 : i32
    %c0_i32_1 = arith.constant 0 : i32
    return %c0_i32, %c0_i32_0 : i32, i32
  }
  func.func @transform_16(%arg0: i32) -> (i32, i32) {
    %c0_i32 = arith.constant 0 : i32
    %c0_i32_0 = arith.constant 0 : i32
    %c0_i32_1 = arith.constant 0 : i32
    return %c0_i32, %c0_i32_0 : i32, i32
  }
  func.func @transform_17(%arg0: i32) -> (i32, i32) {
    %c0_i32 = arith.constant 0 : i32
    %c0_i32_0 = arith.constant 0 : i32
    %c0_i32_1 = arith.constant 0 : i32
    return %c0_i32, %c0_i32_0 : i32, i32
  }
  func.func @transform_18(%arg0: i32) -> (i32, i32) {
    %c0_i32 = arith.constant 0 : i32
    %c0_i32_0 = arith.constant 0 : i32
    %c0_i32_1 = arith.constant 0 : i32
    return %c0_i32, %c0_i32_0 : i32, i32
  }
  func.func @transform_19(%arg0: i32) -> (i32, i32) {
    %c0_i32 = arith.constant 0 : i32
    %c0_i32_0 = arith.constant 0 : i32
    %c0_i32_1 = arith.constant 0 : i32
    return %c0_i32, %c0_i32_0 : i32, i32
  }
  func.func @transform_20(%arg0: i32) -> (i32, i32) {
    %c0_i32 = arith.constant 0 : i32
    %c0_i32_0 = arith.constant 0 : i32
    %c0_i32_1 = arith.constant 0 : i32
    return %c0_i32, %c0_i32_0 : i32, i32
  }
  func.func @transform_21(%arg0: i32) -> (i32, i32) {
    %c0_i32 = arith.constant 0 : i32
    %c0_i32_0 = arith.constant 0 : i32
    %c0_i32_1 = arith.constant 0 : i32
    return %c0_i32, %c0_i32_0 : i32, i32
  }
  func.func @transform_22(%arg0: i32) -> (i32, i32) {
    %c0_i32 = arith.constant 0 : i32
    %c0_i32_0 = arith.constant 0 : i32
    %c0_i32_1 = arith.constant 0 : i32
    return %c0_i32, %c0_i32_0 : i32, i32
  }
  func.func @transform_23(%arg0: i32) -> (i32, i32) {
    %c0_i32 = arith.constant 0 : i32
    %c0_i32_0 = arith.constant 0 : i32
    %c0_i32_1 = arith.constant 0 : i32
    return %c0_i32, %c0_i32_0 : i32, i32
  }
  func.func @transform_24(%arg0: i32) -> (i32, i32) {
    %c0_i32 = arith.constant 0 : i32
    %c0_i32_0 = arith.constant 0 : i32
    %c0_i32_1 = arith.constant 0 : i32
    return %c0_i32, %c0_i32_0 : i32, i32
  }
  func.func @transform_25(%arg0: i32) -> (i32, i32) {
    %c0_i32 = arith.constant 0 : i32
    %c0_i32_0 = arith.constant 0 : i32
    %c0_i32_1 = arith.constant 0 : i32
    return %c0_i32, %c0_i32_0 : i32, i32
  }
  func.func @transform_26(%arg0: i32) -> (i32, i32) {
    %c0_i32 = arith.constant 0 : i32
    %c0_i32_0 = arith.constant 0 : i32
    %c0_i32_1 = arith.constant 0 : i32
    return %c0_i32, %c0_i32_0 : i32, i32
  }
  func.func @transform_27(%arg0: i32) -> (i32, i32) {
    %c0_i32 = arith.constant 0 : i32
    %c0_i32_0 = arith.constant 0 : i32
    %c0_i32_1 = arith.constant 0 : i32
    return %c0_i32, %c0_i32_0 : i32, i32
  }
  func.func @transform_28(%arg0: i32) -> (i32, i32) {
    %c0_i32 = arith.constant 0 : i32
    %c0_i32_0 = arith.constant 0 : i32
    %c0_i32_1 = arith.constant 0 : i32
    return %c0_i32, %c0_i32_0 : i32, i32
  }
  func.func @transform_29(%arg0: i32) -> (i32, i32) {
    %c0_i32 = arith.constant 0 : i32
    %c0_i32_0 = arith.constant 0 : i32
    %c0_i32_1 = arith.constant 0 : i32
    return %c0_i32, %c0_i32_0 : i32, i32
  }
  func.func @transform_30(%arg0: i32) -> (i32, i32) {
    %c0_i32 = arith.constant 0 : i32
    %c0_i32_0 = arith.constant 0 : i32
    %c0_i32_1 = arith.constant 0 : i32
    return %c0_i32, %c0_i32_0 : i32, i32
  }
  func.func @transform_31(%arg0: i32) -> (i32, i32) {
    %c0_i32 = arith.constant 0 : i32
    %c0_i32_0 = arith.constant 0 : i32
    %c0_i32_1 = arith.constant 0 : i32
    return %c0_i32, %c0_i32_0 : i32, i32
  }
  func.func @transform_32(%arg0: i32) -> (i32, i32) {
    %c0_i32 = arith.constant 0 : i32
    %c0_i32_0 = arith.constant 0 : i32
    %c0_i32_1 = arith.constant 0 : i32
    return %c0_i32, %c0_i32_0 : i32, i32
  }
  func.func @transform_33(%arg0: i32) -> (i32, i32) {
    %c0_i32 = arith.constant 0 : i32
    %c0_i32_0 = arith.constant 0 : i32
    %c0_i32_1 = arith.constant 0 : i32
    return %c0_i32, %c0_i32_0 : i32, i32
  }
  func.func @transform_34(%arg0: i32) -> (i32, i32, i32) {
    %c0_i32 = arith.constant 0 : i32
    %c0_i32_0 = arith.constant 0 : i32
    %c0_i32_1 = arith.constant 0 : i32
    return %arg0, %c0_i32, %c0_i32_0 : i32, i32, i32
  }
}

</mosaic_0001>

<llo_original>
// kernel: yolov8n_backbone_classifier.1
$region0: #{yolov8n_backbone_classifier.1}
  #allocation0 [shape = 'u32[]', space=smem, size = 0x4, offset = 0x4, fixed_abs, tag = 'smem constant byte address 0x4 - core index']
  #allocation1 [shape = 'u32[144,128]{1,0:T(1,128)}', space=vmem, size = 0x12000, scoped, tag = 'internal scratch']
  #allocation2 [shape = 'f32[1,1]{1,0:T(1,128)S(1)}', space=vmem, size = 0x200, scoped, tag = 'scoped memory for yolov8n_backbone_classifier.1']
  %s0 = inlined_call_operand.smem [shape: u32[35], index: -1, kind: input, shape index: {}]
  %s1 = sld [smem:[%s0]]
  %s2 = scalar_lea.smem %s0, 1
  %s3 = sld [smem:[%s2]]
  %s4 = scalar_lea.smem %s0, 2
  %s5 = sld [smem:[%s4]]
  %s6 = scalar_lea.smem %s0, 3
  %s7 = sld [smem:[%s6]]
  %s8 = scalar_lea.smem %s0, 4
  %s9 = sld [smem:[%s8]]
  %s10 = scalar_lea.smem %s0, 5
  %s11 = sld [smem:[%s10]]
  %s12 = scalar_lea.smem %s0, 6
  %s13 = sld [smem:[%s12]]
  %s14 = scalar_lea.smem %s0, 7
  %s15 = sld [smem:[%s14]]
  %s16 = scalar_lea.smem %s0, 8
  %s17 = sld [smem:[%s16]]
  %s18 = scalar_lea.smem %s0, 9
  %s19 = sld [smem:[%s18]]
  %s20 = scalar_lea.smem %s0, 10
  %s21 = sld [smem:[%s20]]
  %s22 = scalar_lea.smem %s0, 11
  %s23 = sld [smem:[%s22]]
  %s24 = scalar_lea.smem %s0, 12
  %s25 = sld [smem:[%s24]]
  %s26 = scalar_lea.smem %s0, 13
  %s27 = sld [smem:[%s26]]
  %s28 = scalar_lea.smem %s0, 14
  %s29 = sld [smem:[%s28]]
  %s30 = scalar_lea.smem %s0, 15
  %s31 = sld [smem:[%s30]]
  %s32 = scalar_lea.smem %s0, 16
  %s33 = sld [smem:[%s32]]
  %s34 = scalar_lea.smem %s0, 17
  %s35 = sld [smem:[%s34]]
  %s36 = scalar_lea.smem %s0, 18
  %s37 = sld [smem:[%s36]]
  %s38 = scalar_lea.smem %s0, 19
  %s39 = sld [smem:[%s38]]
  %s40 = scalar_lea.smem %s0, 20
  %s41 = sld [smem:[%s40]]
  %s42 = scalar_lea.smem %s0, 21
  %s43 = sld [smem:[%s42]]
  %s44 = scalar_lea.smem %s0, 22
  %s45 = sld [smem:[%s44]]
  %s46 = scalar_lea.smem %s0, 23
  %s47 = sld [smem:[%s46]]
  %s48 = scalar_lea.smem %s0, 24
  %s49 = sld [smem:[%s48]]
  %s50 = scalar_lea.smem %s0, 25
  %s51 = sld [smem:[%s50]]
  %s52 = scalar_lea.smem %s0, 26
  %s53 = sld [smem:[%s52]]
  %s54 = scalar_lea.smem %s0, 27
  %s55 = sld [smem:[%s54]]
  %s56 = scalar_lea.smem %s0, 28
  %s57 = sld [smem:[%s56]]
  %s58 = scalar_lea.smem %s0, 29
  %s59 = sld [smem:[%s58]]
  %s60 = scalar_lea.smem %s0, 30
  %s61 = sld [smem:[%s60]]
  %s62 = scalar_lea.smem %s0, 31
  %s63 = sld [smem:[%s62]]
  %s64 = scalar_lea.smem %s0, 32
  %s65 = sld [smem:[%s64]]
  %s66 = scalar_lea.smem %s0, 33
  %s67 = sld [smem:[%s66]]
  %s68 = scalar_lea.smem %s0, 34
  %s69 = sld [smem:[%s68]]
  %s70 = sld [smem:[#allocation0]]
  $region169: #{yolov8n_backbone_classifier.1} parent=0
    _
  %s72 = ssub.s32 1, %s70
  %s73 = scalar_select 0, %s72, %s70
  %v74 = vstv %s67
  %75 = vst [vmem:[#allocation2] sm:$0x1] %v74
  loop: start=0, step=1, limit=4
  $region2: #{yolov8n_backbone_classifier.1} parent=0 // loop_pre_header
    _
  $region3: #{yolov8n_backbone_classifier.1} parent=0 // loop_header
    %s77 = sphi 0, %s81
    %p78 = scmp.ge.s32.totalorder %s77, 4
    %s87 = sphi 0, %s89
    %s90 = sphi 0, %s87
    %s91 = sphi 0, %s90
    %s107 = sphi 0, %s91
    %s111 = sphi 0, %s111
    %s113 = sphi 0, %s111
    %s114 = sphi 0, %s113
    %s128 = sphi 0, %s114
    %s132 = sphi 0, %s132
    %s134 = sphi 0, %s132
    %s135 = sphi 0, %s134
    %s149 = sphi 0, %s135
    %s153 = sphi 0, %s153
    %s155 = sphi 0, %s153
    %s156 = sphi 0, %s155
    %s170 = sphi 0, %s156
    %s174 = sphi 0, %s174
    %s176 = sphi 0, %s174
    %s177 = sphi 0, %s176
    %s191 = sphi 0, %s177
    %s195 = sphi 0, %s195
    %s197 = sphi 0, %s195
    %s198 = sphi 0, %s197
    %s212 = sphi 0, %s198
    %s216 = sphi 0, %s216
    %s218 = sphi 0, %s216
    %s219 = sphi 0, %s218
    %s233 = sphi 0, %s219
    %s237 = sphi 0, %s237
    %s239 = sphi 0, %s237
    %s240 = sphi 0, %s239
    %s254 = sphi 0, %s240
    %s258 = sphi 0, %s258
    %s260 = sphi 0, %s258
    %s261 = sphi 0, %s260
    %s275 = sphi 0, %s261
    %s279 = sphi 0, %s279
    %s281 = sphi 0, %s279
    %s282 = sphi 0, %s281
    %s296 = sphi 0, %s282
    %s300 = sphi 0, %s300
    %s302 = sphi 0, %s300
    %s303 = sphi 0, %s302
    %s317 = sphi 0, %s303
    %s321 = sphi 0, %s321
    %s323 = sphi 0, %s321
    %s324 = sphi 0, %s323
    %s338 = sphi 0, %s324
    %s342 = sphi 0, %s342
    %s344 = sphi 0, %s342
    %s345 = sphi 0, %s344
    %s359 = sphi 0, %s345
    %s363 = sphi 0, %s363
    %s365 = sphi 0, %s363
    %s366 = sphi 0, %s365
    %s380 = sphi 0, %s366
    %s384 = sphi 0, %s384
    %s386 = sphi 0, %s384
    %s387 = sphi 0, %s386
    %s401 = sphi 0, %s387
    %s405 = sphi 0, %s405
    %s407 = sphi 0, %s405
    %s408 = sphi 0, %s407
    %s422 = sphi 0, %s408
    %s426 = sphi 0, %s426
    %s428 = sphi 0, %s426
    %s429 = sphi 0, %s428
    %s443 = sphi 0, %s429
    %s447 = sphi 0, %s447
    %s449 = sphi 0, %s447
    %s450 = sphi 0, %s449
    %s464 = sphi 0, %s450
    %s468 = sphi 0, %s468
    %s470 = sphi 0, %s468
    %s471 = sphi 0, %s470
    %s485 = sphi 0, %s471
    %s489 = sphi 0, %s489
    %s491 = sphi 0, %s489
    %s492 = sphi 0, %s491
    %s506 = sphi 0, %s492
    %s510 = sphi 0, %s510
    %s512 = sphi 0, %s510
    %s513 = sphi 0, %s512
    %s527 = sphi 0, %s513
    %s531 = sphi 0, %s531
    %s533 = sphi 0, %s531
    %s534 = sphi 0, %s533
    %s548 = sphi 0, %s534
    %s552 = sphi 0, %s552
    %s554 = sphi 0, %s552
    %s555 = sphi 0, %s554
    %s569 = sphi 0, %s555
    %s573 = sphi 0, %s573
    %s575 = sphi 0, %s573
    %s576 = sphi 0, %s575
    %s590 = sphi 0, %s576
    %s594 = sphi 0, %s594
    %s596 = sphi 0, %s594
    %s597 = sphi 0, %s596
    %s611 = sphi 0, %s597
    %s615 = sphi 0, %s615
    %s617 = sphi 0, %s615
    %s618 = sphi 0, %s617
    %s632 = sphi 0, %s618
    %s636 = sphi 0, %s636
    %s638 = sphi 0, %s636
    %s639 = sphi 0, %s638
    %s653 = sphi 0, %s639
    %s657 = sphi 0, %s657
    %s659 = sphi 0, %s657
    %s660 = sphi 0, %s659
    %s674 = sphi 0, %s660
    %s678 = sphi 0, %s678
    %s680 = sphi 0, %s678
    %s681 = sphi 0, %s680
    %s695 = sphi 0, %s681
    %s699 = sphi 0, %s699
    %s701 = sphi 0, %s699
    %s702 = sphi 0, %s701
    %s716 = sphi 0, %s702
    %s720 = sphi 0, %s720
    %s722 = sphi 0, %s720
    %s723 = sphi 0, %s722
    %s737 = sphi 0, %s723
    %s741 = sphi 0, %s741
    %s743 = sphi 0, %s741
    %s744 = sphi 0, %s743
    %s758 = sphi 0, %s744
    %s762 = sphi 0, %s762
    %s764 = sphi 0, %s762
    %s765 = sphi 0, %s764
    %s779 = sphi 0, %s765
    %s783 = sphi 0, %s783
    %s785 = sphi 0, %s783
    %s786 = sphi 0, %s785
    %s800 = sphi 0, %s786
    %s806 = sphi 0, %s808
    %s809 = sphi 0, %s806
    %s810 = sphi 0, %s809
    %s826 = sphi 0, %s810
  $region4: #{yolov8n_backbone_classifier.1} parent=0 // loop_header_branch
    %80 = sbr.rel (%p78) target = $region8
  $region5: #{yolov8n_backbone_classifier.1} parent=0 // loop_body
    %s82 = ssub.s32 %s77, 1
    %s83 = ssub.s32 %s77, 2
    %s84 = sadd.s32 %s77, 1
    %s85 = ssub.s32 %s77, %s84
    %p86 = scmp.eq.s32.totalorder %s85, 0
    %s88 = sadd.s32 %s87, 1
    %s89 = scalar_select %p86, %s87, %s88
    %p92 = pneg %p86
    %p93 = scmp.eq.s32.totalorder %s77, 1
    %p94 = por %p92, %p93
    %p95 = scmp.ne.s32.totalorder %s87, %s90
    %p96 = scmp.eq.s32.totalorder %s77, 0
    %p97 = por %p95, %p96
    %p98 = scmp.ne.s32.totalorder %s87, %s90
    %p99 = scmp.eq.s32.totalorder %s82, 1
    %p100 = por %p98, %p99
    %p101 = scmp.ne.s32.totalorder %s90, %s91
    %p102 = scmp.eq.s32.totalorder %s82, 0
    %p103 = por %p101, %p102
    %p104 = scmp.ne.s32.totalorder %s90, %s91
    %p105 = scmp.eq.s32.totalorder %s83, 1
    %p106 = por %p104, %p105
    %p108 = scmp.ne.s32.totalorder %s91, %s107
    %p109 = scmp.eq.s32.totalorder %s83, 0
    %p110 = por %p108, %p109
    %s112 = sadd.s32 %s111, 1
    %p115 = scmp.eq.s32.totalorder %s77, 1
    %p116 = scmp.ne.s32.totalorder %s111, %s113
    %p117 = scmp.eq.s32.totalorder %s77, 0
    %p118 = por %p116, %p117
    %p119 = scmp.ne.s32.totalorder %s111, %s113
    %p120 = scmp.eq.s32.totalorder %s82, 1
    %p121 = por %p119, %p120
    %p122 = scmp.ne.s32.totalorder %s113, %s114
    %p123 = scmp.eq.s32.totalorder %s82, 0
    %p124 = por %p122, %p123
    %p125 = scmp.ne.s32.totalorder %s113, %s114
    %p126 = scmp.eq.s32.totalorder %s83, 1
    %p127 = por %p125, %p126
    %p129 = scmp.ne.s32.totalorder %s114, %s128
    %p130 = scmp.eq.s32.totalorder %s83, 0
    %p131 = por %p129, %p130
    %s133 = sadd.s32 %s132, 1
    %p136 = scmp.eq.s32.totalorder %s77, 1
    %p137 = scmp.ne.s32.totalorder %s132, %s134
    %p138 = scmp.eq.s32.totalorder %s77, 0
    %p139 = por %p137, %p138
    %p140 = scmp.ne.s32.totalorder %s132, %s134
    %p141 = scmp.eq.s32.totalorder %s82, 1
    %p142 = por %p140, %p141
    %p143 = scmp.ne.s32.totalorder %s134, %s135
    %p144 = scmp.eq.s32.totalorder %s82, 0
    %p145 = por %p143, %p144
    %p146 = scmp.ne.s32.totalorder %s134, %s135
    %p147 = scmp.eq.s32.totalorder %s83, 1
    %p148 = por %p146, %p147
    %p150 = scmp.ne.s32.totalorder %s135, %s149
    %p151 = scmp.eq.s32.totalorder %s83, 0
    %p152 = por %p150, %p151
    %s154 = sadd.s32 %s153, 1
    %p157 = scmp.eq.s32.totalorder %s77, 1
    %p158 = scmp.ne.s32.totalorder %s153, %s155
    %p159 = scmp.eq.s32.totalorder %s77, 0
    %p160 = por %p158, %p159
    %p161 = scmp.ne.s32.totalorder %s153, %s155
    %p162 = scmp.eq.s32.totalorder %s82, 1
    %p163 = por %p161, %p162
    %p164 = scmp.ne.s32.totalorder %s155, %s156
    %p165 = scmp.eq.s32.totalorder %s82, 0
    %p166 = por %p164, %p165
    %p167 = scmp.ne.s32.totalorder %s155, %s156
    %p168 = scmp.eq.s32.totalorder %s83, 1
    %p169 = por %p167, %p168
    %p171 = scmp.ne.s32.totalorder %s156, %s170
    %p172 = scmp.eq.s32.totalorder %s83, 0
    %p173 = por %p171, %p172
    %s175 = sadd.s32 %s174, 1
    %p178 = scmp.eq.s32.totalorder %s77, 1
    %p179 = scmp.ne.s32.totalorder %s174, %s176
    %p180 = scmp.eq.s32.totalorder %s77, 0
    %p181 = por %p179, %p180
    %p182 = scmp.ne.s32.totalorder %s174, %s176
    %p183 = scmp.eq.s32.totalorder %s82, 1
    %p184 = por %p182, %p183
    %p185 = scmp.ne.s32.totalorder %s176, %s177
    %p186 = scmp.eq.s32.totalorder %s82, 0
    %p187 = por %p185, %p186
    %p188 = scmp.ne.s32.totalorder %s176, %s177
    %p189 = scmp.eq.s32.totalorder %s83, 1
    %p190 = por %p188, %p189
    %p192 = scmp.ne.s32.totalorder %s177, %s191
    %p193 = scmp.eq.s32.totalorder %s83, 0
    %p194 = por %p192, %p193
    %s196 = sadd.s32 %s195, 1
    %p199 = scmp.eq.s32.totalorder %s77, 1
    %p200 = scmp.ne.s32.totalorder %s195, %s197
    %p201 = scmp.eq.s32.totalorder %s77, 0
    %p202 = por %p200, %p201
    %p203 = scmp.ne.s32.totalorder %s195, %s197
    %p204 = scmp.eq.s32.totalorder %s82, 1
    %p205 = por %p203, %p204
    %p206 = scmp.ne.s32.totalorder %s197, %s198
    %p207 = scmp.eq.s32.totalorder %s82, 0
    %p208 = por %p206, %p207
    %p209 = scmp.ne.s32.totalorder %s197, %s198
    %p210 = scmp.eq.s32.totalorder %s83, 1
    %p211 = por %p209, %p210
    %p213 = scmp.ne.s32.totalorder %s198, %s212
    %p214 = scmp.eq.s32.totalorder %s83, 0
    %p215 = por %p213, %p214
    %s217 = sadd.s32 %s216, 1
    %p220 = scmp.eq.s32.totalorder %s77, 1
    %p221 = scmp.ne.s32.totalorder %s216, %s218
    %p222 = scmp.eq.s32.totalorder %s77, 0
    %p223 = por %p221, %p222
    %p224 = scmp.ne.s32.totalorder %s216, %s218
    %p225 = scmp.eq.s32.totalorder %s82, 1
    %p226 = por %p224, %p225
    %p227 = scmp.ne.s32.totalorder %s218, %s219
    %p228 = scmp.eq.s32.totalorder %s82, 0
    %p229 = por %p227, %p228
    %p230 = scmp.ne.s32.totalorder %s218, %s219
    %p231 = scmp.eq.s32.totalorder %s83, 1
    %p232 = por %p230, %p231
    %p234 = scmp.ne.s32.totalorder %s219, %s233
    %p235 = scmp.eq.s32.totalorder %s83, 0
    %p236 = por %p234, %p235
    %s238 = sadd.s32 %s237, 1
    %p241 = scmp.eq.s32.totalorder %s77, 1
    %p242 = scmp.ne.s32.totalorder %s237, %s239
    %p243 = scmp.eq.s32.totalorder %s77, 0
    %p244 = por %p242, %p243
    %p245 = scmp.ne.s32.totalorder %s237, %s239
    %p246 = scmp.eq.s32.totalorder %s82, 1
    %p247 = por %p245, %p246
    %p248 = scmp.ne.s32.totalorder %s239, %s240
    %p249 = scmp.eq.s32.totalorder %s82, 0
    %p250 = por %p248, %p249
    %p251 = scmp.ne.s32.totalorder %s239, %s240
    %p252 = scmp.eq.s32.totalorder %s83, 1
    %p253 = por %p251, %p252
    %p255 = scmp.ne.s32.totalorder %s240, %s254
    %p256 = scmp.eq.s32.totalorder %s83, 0
    %p257 = por %p255, %p256
    %s259 = sadd.s32 %s258, 1
    %p262 = scmp.eq.s32.totalorder %s77, 1
    %p263 = scmp.ne.s32.totalorder %s258, %s260
    %p264 = scmp.eq.s32.totalorder %s77, 0
    %p265 = por %p263, %p264
    %p266 = scmp.ne.s32.totalorder %s258, %s260
    %p267 = scmp.eq.s32.totalorder %s82, 1
    %p268 = por %p266, %p267
    %p269 = scmp.ne.s32.totalorder %s260, %s261
    %p270 = scmp.eq.s32.totalorder %s82, 0
    %p271 = por %p269, %p270
    %p272 = scmp.ne.s32.totalorder %s260, %s261
    %p273 = scmp.eq.s32.totalorder %s83, 1
    %p274 = por %p272, %p273
    %p276 = scmp.ne.s32.totalorder %s261, %s275
    %p277 = scmp.eq.s32.totalorder %s83, 0
    %p278 = por %p276, %p277
    %s280 = sadd.s32 %s279, 1
    %p283 = scmp.eq.s32.totalorder %s77, 1
    %p284 = scmp.ne.s32.totalorder %s279, %s281
    %p285 = scmp.eq.s32.totalorder %s77, 0
    %p286 = por %p284, %p285
    %p287 = scmp.ne.s32.totalorder %s279, %s281
    %p288 = scmp.eq.s32.totalorder %s82, 1
    %p289 = por %p287, %p288
    %p290 = scmp.ne.s32.totalorder %s281, %s282
    %p291 = scmp.eq.s32.totalorder %s82, 0
    %p292 = por %p290, %p291
    %p293 = scmp.ne.s32.totalorder %s281, %s282
    %p294 = scmp.eq.s32.totalorder %s83, 1
    %p295 = por %p293, %p294
    %p297 = scmp.ne.s32.totalorder %s282, %s296
    %p298 = scmp.eq.s32.totalorder %s83, 0
    %p299 = por %p297, %p298
    %s301 = sadd.s32 %s300, 1
    %p304 = scmp.eq.s32.totalorder %s77, 1
    %p305 = scmp.ne.s32.totalorder %s300, %s302
    %p306 = scmp.eq.s32.totalorder %s77, 0
    %p307 = por %p305, %p306
    %p308 = scmp.ne.s32.totalorder %s300, %s302
    %p309 = scmp.eq.s32.totalorder %s82, 1
    %p310 = por %p308, %p309
    %p311 = scmp.ne.s32.totalorder %s302, %s303
    %p312 = scmp.eq.s32.totalorder %s82, 0
    %p313 = por %p311, %p312
    %p314 = scmp.ne.s32.totalorder %s302, %s303
    %p315 = scmp.eq.s32.totalorder %s83, 1
    %p316 = por %p314, %p315
    %p318 = scmp.ne.s32.totalorder %s303, %s317
    %p319 = scmp.eq.s32.totalorder %s83, 0
    %p320 = por %p318, %p319
    %s322 = sadd.s32 %s321, 1
    %p325 = scmp.eq.s32.totalorder %s77, 1
    %p326 = scmp.ne.s32.totalorder %s321, %s323
    %p327 = scmp.eq.s32.totalorder %s77, 0
    %p328 = por %p326, %p327
    %p329 = scmp.ne.s32.totalorder %s321, %s323
    %p330 = scmp.eq.s32.totalorder %s82, 1
    %p331 = por %p329, %p330
    %p332 = scmp.ne.s32.totalorder %s323, %s324
    %p333 = scmp.eq.s32.totalorder %s82, 0
    %p334 = por %p332, %p333
    %p335 = scmp.ne.s32.totalorder %s323, %s324
    %p336 = scmp.eq.s32.totalorder %s83, 1
    %p337 = por %p335, %p336
    %p339 = scmp.ne.s32.totalorder %s324, %s338
    %p340 = scmp.eq.s32.totalorder %s83, 0
    %p341 = por %p339, %p340
    %s343 = sadd.s32 %s342, 1
    %p346 = scmp.eq.s32.totalorder %s77, 1
    %p347 = scmp.ne.s32.totalorder %s342, %s344
    %p348 = scmp.eq.s32.totalorder %s77, 0
    %p349 = por %p347, %p348
    %p350 = scmp.ne.s32.totalorder %s342, %s344
    %p351 = scmp.eq.s32.totalorder %s82, 1
    %p352 = por %p350, %p351
    %p353 = scmp.ne.s32.totalorder %s344, %s345
    %p354 = scmp.eq.s32.totalorder %s82, 0
    %p355 = por %p353, %p354
    %p356 = scmp.ne.s32.totalorder %s344, %s345
    %p357 = scmp.eq.s32.totalorder %s83, 1
    %p358 = por %p356, %p357
    %p360 = scmp.ne.s32.totalorder %s345, %s359
    %p361 = scmp.eq.s32.totalorder %s83, 0
    %p362 = por %p360, %p361
    %s364 = sadd.s32 %s363, 1
    %p367 = scmp.eq.s32.totalorder %s77, 1
    %p368 = scmp.ne.s32.totalorder %s363, %s365
    %p369 = scmp.eq.s32.totalorder %s77, 0
    %p370 = por %p368, %p369
    %p371 = scmp.ne.s32.totalorder %s363, %s365
    %p372 = scmp.eq.s32.totalorder %s82, 1
    %p373 = por %p371, %p372
    %p374 = scmp.ne.s32.totalorder %s365, %s366
    %p375 = scmp.eq.s32.totalorder %s82, 0
    %p376 = por %p374, %p375
    %p377 = scmp.ne.s32.totalorder %s365, %s366
    %p378 = scmp.eq.s32.totalorder %s83, 1
    %p379 = por %p377, %p378
    %p381 = scmp.ne.s32.totalorder %s366, %s380
    %p382 = scmp.eq.s32.totalorder %s83, 0
    %p383 = por %p381, %p382
    %s385 = sadd.s32 %s384, 1
    %p388 = scmp.eq.s32.totalorder %s77, 1
    %p389 = scmp.ne.s32.totalorder %s384, %s386
    %p390 = scmp.eq.s32.totalorder %s77, 0
    %p391 = por %p389, %p390
    %p392 = scmp.ne.s32.totalorder %s384, %s386
    %p393 = scmp.eq.s32.totalorder %s82, 1
    %p394 = por %p392, %p393
    %p395 = scmp.ne.s32.totalorder %s386, %s387
    %p396 = scmp.eq.s32.totalorder %s82, 0
    %p397 = por %p395, %p396
    %p398 = scmp.ne.s32.totalorder %s386, %s387
    %p399 = scmp.eq.s32.totalorder %s83, 1
    %p400 = por %p398, %p399
    %p402 = scmp.ne.s32.totalorder %s387, %s401
    %p403 = scmp.eq.s32.totalorder %s83, 0
    %p404 = por %p402, %p403
    %s406 = sadd.s32 %s405, 1
    %p409 = scmp.eq.s32.totalorder %s77, 1
    %p410 = scmp.ne.s32.totalorder %s405, %s407
    %p411 = scmp.eq.s32.totalorder %s77, 0
    %p412 = por %p410, %p411
    %p413 = scmp.ne.s32.totalorder %s405, %s407
    %p414 = scmp.eq.s32.totalorder %s82, 1
    %p415 = por %p413, %p414
    %p416 = scmp.ne.s32.totalorder %s407, %s408
    %p417 = scmp.eq.s32.totalorder %s82, 0
    %p418 = por %p416, %p417
    %p419 = scmp.ne.s32.totalorder %s407, %s408
    %p420 = scmp.eq.s32.totalorder %s83, 1
    %p421 = por %p419, %p420
    %p423 = scmp.ne.s32.totalorder %s408, %s422
    %p424 = scmp.eq.s32.totalorder %s83, 0
    %p425 = por %p423, %p424
    %s427 = sadd.s32 %s426, 1
    %p430 = scmp.eq.s32.totalorder %s77, 1
    %p431 = scmp.ne.s32.totalorder %s426, %s428
    %p432 = scmp.eq.s32.totalorder %s77, 0
    %p433 = por %p431, %p432
    %p434 = scmp.ne.s32.totalorder %s426, %s428
    %p435 = scmp.eq.s32.totalorder %s82, 1
    %p436 = por %p434, %p435
    %p437 = scmp.ne.s32.totalorder %s428, %s429
    %p438 = scmp.eq.s32.totalorder %s82, 0
    %p439 = por %p437, %p438
    %p440 = scmp.ne.s32.totalorder %s428, %s429
    %p441 = scmp.eq.s32.totalorder %s83, 1
    %p442 = por %p440, %p441
    %p444 = scmp.ne.s32.totalorder %s429, %s443
    %p445 = scmp.eq.s32.totalorder %s83, 0
    %p446 = por %p444, %p445
    %s448 = sadd.s32 %s447, 1
    %p451 = scmp.eq.s32.totalorder %s77, 1
    %p452 = scmp.ne.s32.totalorder %s447, %s449
    %p453 = scmp.eq.s32.totalorder %s77, 0
    %p454 = por %p452, %p453
    %p455 = scmp.ne.s32.totalorder %s447, %s449
    %p456 = scmp.eq.s32.totalorder %s82, 1
    %p457 = por %p455, %p456
    %p458 = scmp.ne.s32.totalorder %s449, %s450
    %p459 = scmp.eq.s32.totalorder %s82, 0
    %p460 = por %p458, %p459
    %p461 = scmp.ne.s32.totalorder %s449, %s450
    %p462 = scmp.eq.s32.totalorder %s83, 1
    %p463 = por %p461, %p462
    %p465 = scmp.ne.s32.totalorder %s450, %s464
    %p466 = scmp.eq.s32.totalorder %s83, 0
    %p467 = por %p465, %p466
    %s469 = sadd.s32 %s468, 1
    %p472 = scmp.eq.s32.totalorder %s77, 1
    %p473 = scmp.ne.s32.totalorder %s468, %s470
    %p474 = scmp.eq.s32.totalorder %s77, 0
    %p475 = por %p473, %p474
    %p476 = scmp.ne.s32.totalorder %s468, %s470
    %p477 = scmp.eq.s32.totalorder %s82, 1
    %p478 = por %p476, %p477
    %p479 = scmp.ne.s32.totalorder %s470, %s471
    %p480 = scmp.eq.s32.totalorder %s82, 0
    %p481 = por %p479, %p480
    %p482 = scmp.ne.s32.totalorder %s470, %s471
    %p483 = scmp.eq.s32.totalorder %s83, 1
    %p484 = por %p482, %p483
    %p486 = scmp.ne.s32.totalorder %s471, %s485
    %p487 = scmp.eq.s32.totalorder %s83, 0
    %p488 = por %p486, %p487
    %s490 = sadd.s32 %s489, 1
    %p493 = scmp.eq.s32.totalorder %s77, 1
    %p494 = scmp.ne.s32.totalorder %s489, %s491
    %p495 = scmp.eq.s32.totalorder %s77, 0
    %p496 = por %p494, %p495
    %p497 = scmp.ne.s32.totalorder %s489, %s491
    %p498 = scmp.eq.s32.totalorder %s82, 1
    %p499 = por %p497, %p498
    %p500 = scmp.ne.s32.totalorder %s491, %s492
    %p501 = scmp.eq.s32.totalorder %s82, 0
    %p502 = por %p500, %p501
    %p503 = scmp.ne.s32.totalorder %s491, %s492
    %p504 = scmp.eq.s32.totalorder %s83, 1
    %p505 = por %p503, %p504
    %p507 = scmp.ne.s32.totalorder %s492, %s506
    %p508 = scmp.eq.s32.totalorder %s83, 0
    %p509 = por %p507, %p508
    %s511 = sadd.s32 %s510, 1
    %p514 = scmp.eq.s32.totalorder %s77, 1
    %p515 = scmp.ne.s32.totalorder %s510, %s512
    %p516 = scmp.eq.s32.totalorder %s77, 0
    %p517 = por %p515, %p516
    %p518 = scmp.ne.s32.totalorder %s510, %s512
    %p519 = scmp.eq.s32.totalorder %s82, 1
    %p520 = por %p518, %p519
    %p521 = scmp.ne.s32.totalorder %s512, %s513
    %p522 = scmp.eq.s32.totalorder %s82, 0
    %p523 = por %p521, %p522
    %p524 = scmp.ne.s32.totalorder %s512, %s513
    %p525 = scmp.eq.s32.totalorder %s83, 1
    %p526 = por %p524, %p525
    %p528 = scmp.ne.s32.totalorder %s513, %s527
    %p529 = scmp.eq.s32.totalorder %s83, 0
    %p530 = por %p528, %p529
    %s532 = sadd.s32 %s531, 1
    %p535 = scmp.eq.s32.totalorder %s77, 1
    %p536 = scmp.ne.s32.totalorder %s531, %s533
    %p537 = scmp.eq.s32.totalorder %s77, 0
    %p538 = por %p536, %p537
    %p539 = scmp.ne.s32.totalorder %s531, %s533
    %p540 = scmp.eq.s32.totalorder %s82, 1
    %p541 = por %p539, %p540
    %p542 = scmp.ne.s32.totalorder %s533, %s534
    %p543 = scmp.eq.s32.totalorder %s82, 0
    %p544 = por %p542, %p543
    %p545 = scmp.ne.s32.totalorder %s533, %s534
    %p546 = scmp.eq.s32.totalorder %s83, 1
    %p547 = por %p545, %p546
    %p549 = scmp.ne.s32.totalorder %s534, %s548
    %p550 = scmp.eq.s32.totalorder %s83, 0
    %p551 = por %p549, %p550
    %s553 = sadd.s32 %s552, 1
    %p556 = scmp.eq.s32.totalorder %s77, 1
    %p557 = scmp.ne.s32.totalorder %s552, %s554
    %p558 = scmp.eq.s32.totalorder %s77, 0
    %p559 = por %p557, %p558
    %p560 = scmp.ne.s32.totalorder %s552, %s554
    %p561 = scmp.eq.s32.totalorder %s82, 1
    %p562 = por %p560, %p561
    %p563 = scmp.ne.s32.totalorder %s554, %s555
    %p564 = scmp.eq.s32.totalorder %s82, 0
    %p565 = por %p563, %p564
    %p566 = scmp.ne.s32.totalorder %s554, %s555
    %p567 = scmp.eq.s32.totalorder %s83, 1
    %p568 = por %p566, %p567
    %p570 = scmp.ne.s32.totalorder %s555, %s569
    %p571 = scmp.eq.s32.totalorder %s83, 0
    %p572 = por %p570, %p571
    %s574 = sadd.s32 %s573, 1
    %p577 = scmp.eq.s32.totalorder %s77, 1
    %p578 = scmp.ne.s32.totalorder %s573, %s575
    %p579 = scmp.eq.s32.totalorder %s77, 0
    %p580 = por %p578, %p579
    %p581 = scmp.ne.s32.totalorder %s573, %s575
    %p582 = scmp.eq.s32.totalorder %s82, 1
    %p583 = por %p581, %p582
    %p584 = scmp.ne.s32.totalorder %s575, %s576
    %p585 = scmp.eq.s32.totalorder %s82, 0
    %p586 = por %p584, %p585
    %p587 = scmp.ne.s32.totalorder %s575, %s576
    %p588 = scmp.eq.s32.totalorder %s83, 1
    %p589 = por %p587, %p588
    %p591 = scmp.ne.s32.totalorder %s576, %s590
    %p592 = scmp.eq.s32.totalorder %s83, 0
    %p593 = por %p591, %p592
    %s595 = sadd.s32 %s594, 1
    %p598 = scmp.eq.s32.totalorder %s77, 1
    %p599 = scmp.ne.s32.totalorder %s594, %s596
    %p600 = scmp.eq.s32.totalorder %s77, 0
    %p601 = por %p599, %p600
    %p602 = scmp.ne.s32.totalorder %s594, %s596
    %p603 = scmp.eq.s32.totalorder %s82, 1
    %p604 = por %p602, %p603
    %p605 = scmp.ne.s32.totalorder %s596, %s597
    %p606 = scmp.eq.s32.totalorder %s82, 0
    %p607 = por %p605, %p606
    %p608 = scmp.ne.s32.totalorder %s596, %s597
    %p609 = scmp.eq.s32.totalorder %s83, 1
    %p610 = por %p608, %p609
    %p612 = scmp.ne.s32.totalorder %s597, %s611
    %p613 = scmp.eq.s32.totalorder %s83, 0
    %p614 = por %p612, %p613
    %s616 = sadd.s32 %s615, 1
    %p619 = scmp.eq.s32.totalorder %s77, 1
    %p620 = scmp.ne.s32.totalorder %s615, %s617
    %p621 = scmp.eq.s32.totalorder %s77, 0
    %p622 = por %p620, %p621
    %p623 = scmp.ne.s32.totalorder %s615, %s617
    %p624 = scmp.eq.s32.totalorder %s82, 1
    %p625 = por %p623, %p624
    %p626 = scmp.ne.s32.totalorder %s617, %s618
    %p627 = scmp.eq.s32.totalorder %s82, 0
    %p628 = por %p626, %p627
    %p629 = scmp.ne.s32.totalorder %s617, %s618
    %p630 = scmp.eq.s32.totalorder %s83, 1
    %p631 = por %p629, %p630
    %p633 = scmp.ne.s32.totalorder %s618, %s632
    %p634 = scmp.eq.s32.totalorder %s83, 0
    %p635 = por %p633, %p634
    %s637 = sadd.s32 %s636, 1
    %p640 = scmp.eq.s32.totalorder %s77, 1
    %p641 = scmp.ne.s32.totalorder %s636, %s638
    %p642 = scmp.eq.s32.totalorder %s77, 0
    %p643 = por %p641, %p642
    %p644 = scmp.ne.s32.totalorder %s636, %s638
    %p645 = scmp.eq.s32.totalorder %s82, 1
    %p646 = por %p644, %p645
    %p647 = scmp.ne.s32.totalorder %s638, %s639
    %p648 = scmp.eq.s32.totalorder %s82, 0
    %p649 = por %p647, %p648
    %p650 = scmp.ne.s32.totalorder %s638, %s639
    %p651 = scmp.eq.s32.totalorder %s83, 1
    %p652 = por %p650, %p651
    %p654 = scmp.ne.s32.totalorder %s639, %s653
    %p655 = scmp.eq.s32.totalorder %s83, 0
    %p656 = por %p654, %p655
    %s658 = sadd.s32 %s657, 1
    %p661 = scmp.eq.s32.totalorder %s77, 1
    %p662 = scmp.ne.s32.totalorder %s657, %s659
    %p663 = scmp.eq.s32.totalorder %s77, 0
    %p664 = por %p662, %p663
    %p665 = scmp.ne.s32.totalorder %s657, %s659
    %p666 = scmp.eq.s32.totalorder %s82, 1
    %p667 = por %p665, %p666
    %p668 = scmp.ne.s32.totalorder %s659, %s660
    %p669 = scmp.eq.s32.totalorder %s82, 0
    %p670 = por %p668, %p669
    %p671 = scmp.ne.s32.totalorder %s659, %s660
    %p672 = scmp.eq.s32.totalorder %s83, 1
    %p673 = por %p671, %p672
    %p675 = scmp.ne.s32.totalorder %s660, %s674
    %p676 = scmp.eq.s32.totalorder %s83, 0
    %p677 = por %p675, %p676
    %s679 = sadd.s32 %s678, 1
    %p682 = scmp.eq.s32.totalorder %s77, 1
    %p683 = scmp.ne.s32.totalorder %s678, %s680
    %p684 = scmp.eq.s32.totalorder %s77, 0
    %p685 = por %p683, %p684
    %p686 = scmp.ne.s32.totalorder %s678, %s680
    %p687 = scmp.eq.s32.totalorder %s82, 1
    %p688 = por %p686, %p687
    %p689 = scmp.ne.s32.totalorder %s680, %s681
    %p690 = scmp.eq.s32.totalorder %s82, 0
    %p691 = por %p689, %p690
    %p692 = scmp.ne.s32.totalorder %s680, %s681
    %p693 = scmp.eq.s32.totalorder %s83, 1
    %p694 = por %p692, %p693
    %p696 = scmp.ne.s32.totalorder %s681, %s695
    %p697 = scmp.eq.s32.totalorder %s83, 0
    %p698 = por %p696, %p697
    %s700 = sadd.s32 %s699, 1
    %p703 = scmp.eq.s32.totalorder %s77, 1
    %p704 = scmp.ne.s32.totalorder %s699, %s701
    %p705 = scmp.eq.s32.totalorder %s77, 0
    %p706 = por %p704, %p705
    %p707 = scmp.ne.s32.totalorder %s699, %s701
    %p708 = scmp.eq.s32.totalorder %s82, 1
    %p709 = por %p707, %p708
    %p710 = scmp.ne.s32.totalorder %s701, %s702
    %p711 = scmp.eq.s32.totalorder %s82, 0
    %p712 = por %p710, %p711
    %p713 = scmp.ne.s32.totalorder %s701, %s702
    %p714 = scmp.eq.s32.totalorder %s83, 1
    %p715 = por %p713, %p714
    %p717 = scmp.ne.s32.totalorder %s702, %s716
    %p718 = scmp.eq.s32.totalorder %s83, 0
    %p719 = por %p717, %p718
    %s721 = sadd.s32 %s720, 1
    %p724 = scmp.eq.s32.totalorder %s77, 1
    %p725 = scmp.ne.s32.totalorder %s720, %s722
    %p726 = scmp.eq.s32.totalorder %s77, 0
    %p727 = por %p725, %p726
    %p728 = scmp.ne.s32.totalorder %s720, %s722
    %p729 = scmp.eq.s32.totalorder %s82, 1
    %p730 = por %p728, %p729
    %p731 = scmp.ne.s32.totalorder %s722, %s723
    %p732 = scmp.eq.s32.totalorder %s82, 0
    %p733 = por %p731, %p732
    %p734 = scmp.ne.s32.totalorder %s722, %s723
    %p735 = scmp.eq.s32.totalorder %s83, 1
    %p736 = por %p734, %p735
    %p738 = scmp.ne.s32.totalorder %s723, %s737
    %p739 = scmp.eq.s32.totalorder %s83, 0
    %p740 = por %p738, %p739
    %s742 = sadd.s32 %s741, 1
    %p745 = scmp.eq.s32.totalorder %s77, 1
    %p746 = scmp.ne.s32.totalorder %s741, %s743
    %p747 = scmp.eq.s32.totalorder %s77, 0
    %p748 = por %p746, %p747
    %p749 = scmp.ne.s32.totalorder %s741, %s743
    %p750 = scmp.eq.s32.totalorder %s82, 1
    %p751 = por %p749, %p750
    %p752 = scmp.ne.s32.totalorder %s743, %s744
    %p753 = scmp.eq.s32.totalorder %s82, 0
    %p754 = por %p752, %p753
    %p755 = scmp.ne.s32.totalorder %s743, %s744
    %p756 = scmp.eq.s32.totalorder %s83, 1
    %p757 = por %p755, %p756
    %p759 = scmp.ne.s32.totalorder %s744, %s758
    %p760 = scmp.eq.s32.totalorder %s83, 0
    %p761 = por %p759, %p760
    %s763 = sadd.s32 %s762, 1
    %p766 = scmp.eq.s32.totalorder %s77, 1
    %p767 = scmp.ne.s32.totalorder %s762, %s764
    %p768 = scmp.eq.s32.totalorder %s77, 0
    %p769 = por %p767, %p768
    %p770 = scmp.ne.s32.totalorder %s762, %s764
    %p771 = scmp.eq.s32.totalorder %s82, 1
    %p772 = por %p770, %p771
    %p773 = scmp.ne.s32.totalorder %s764, %s765
    %p774 = scmp.eq.s32.totalorder %s82, 0
    %p775 = por %p773, %p774
    %p776 = scmp.ne.s32.totalorder %s764, %s765
    %p777 = scmp.eq.s32.totalorder %s83, 1
    %p778 = por %p776, %p777
    %p780 = scmp.ne.s32.totalorder %s765, %s779
    %p781 = scmp.eq.s32.totalorder %s83, 0
    %p782 = por %p780, %p781
    %s784 = sadd.s32 %s783, 1
    %p787 = scmp.eq.s32.totalorder %s77, 1
    %p788 = scmp.ne.s32.totalorder %s783, %s785
    %p789 = scmp.eq.s32.totalorder %s77, 0
    %p790 = por %p788, %p789
    %p791 = scmp.ne.s32.totalorder %s783, %s785
    %p792 = scmp.eq.s32.totalorder %s82, 1
    %p793 = por %p791, %p792
    %p794 = scmp.ne.s32.totalorder %s785, %s786
    %p795 = scmp.eq.s32.totalorder %s82, 0
    %p796 = por %p794, %p795
    %p797 = scmp.ne.s32.totalorder %s785, %s786
    %p798 = scmp.eq.s32.totalorder %s83, 1
    %p799 = por %p797, %p798
    %p801 = scmp.ne.s32.totalorder %s786, %s800
    %p802 = scmp.eq.s32.totalorder %s83, 0
    %p803 = por %p801, %p802
    %s804 = ssub.s32 %s77, %s84
    %p805 = scmp.eq.s32.totalorder %s804, 0
    %s807 = sadd.s32 %s806, 1
    %s808 = scalar_select %p805, %s806, %s807
    %p811 = pneg %p805
    %p812 = scmp.eq.s32.totalorder %s77, 1
    %p813 = por %p811, %p812
    %p814 = scmp.ne.s32.totalorder %s806, %s809
    %p815 = scmp.eq.s32.totalorder %s77, 0
    %p816 = por %p814, %p815
    %p817 = scmp.ne.s32.totalorder %s806, %s809
    %p818 = scmp.eq.s32.totalorder %s82, 1
    %p819 = por %p817, %p818
    %p820 = scmp.ne.s32.totalorder %s809, %s810
    %p821 = scmp.eq.s32.totalorder %s82, 0
    %p822 = por %p820, %p821
    %p823 = scmp.ne.s32.totalorder %s809, %s810
    %p824 = scmp.eq.s32.totalorder %s83, 1
    %p825 = por %p823, %p824
    %p827 = scmp.ne.s32.totalorder %s810, %s826
    %p828 = scmp.eq.s32.totalorder %s83, 0
    %p829 = por %p827, %p828
    %p830 = scmp.le.s32.totalorder 1, %s77
    %p831 = scmp.lt.s32.totalorder %s77, 3
    %p832 = pnand %p830, %p831
    %p833 = pneg %p832
    // Predicated region
    $region9: #{yolov8n_backbone_classifier.1} parent=5 // pred_check
      _
    $region10: #{yolov8n_backbone_classifier.1} parent=5 // pred_check_branch
      %835 = sbr.rel (%p832) target = $region12
    $region11: #{yolov8n_backbone_classifier.1} parent=5 // pred_region
      %s836 = ssub.s32 %s77, 1
      // Predicated region
      $region13: #{yolov8n_backbone_classifier.1} parent=11 // pred_check
        %p837 = pneg %p124
      $region14: #{yolov8n_backbone_classifier.1} parent=11 // pred_check_branch
        %839 = sbr.rel (%p837) target = $region16
      $region15: #{yolov8n_backbone_classifier.1} parent=11 // pred_region
        _
      $region16: #{yolov8n_backbone_classifier.1} parent=11 // pred_fallthru
        _
      // Predicated region
      $region17: #{yolov8n_backbone_classifier.1} parent=11 // pred_check
        %p840 = pneg %p145
      $region18: #{yolov8n_backbone_classifier.1} parent=11 // pred_check_branch
        %842 = sbr.rel (%p840) target = $region20
      $region19: #{yolov8n_backbone_classifier.1} parent=11 // pred_region
        _
      $region20: #{yolov8n_backbone_classifier.1} parent=11 // pred_fallthru
        _
      // Predicated region
      $region21: #{yolov8n_backbone_classifier.1} parent=11 // pred_check
        %p843 = pneg %p166
      $region22: #{yolov8n_backbone_classifier.1} parent=11 // pred_check_branch
        %845 = sbr.rel (%p843) target = $region24
      $region23: #{yolov8n_backbone_classifier.1} parent=11 // pred_region
        _
      $region24: #{yolov8n_backbone_classifier.1} parent=11 // pred_fallthru
        _
      // Predicated region
      $region25: #{yolov8n_backbone_classifier.1} parent=11 // pred_check
        %p846 = pneg %p187
      $region26: #{yolov8n_backbone_classifier.1} parent=11 // pred_check_branch
        %848 = sbr.rel (%p846) target = $region28
      $region27: #{yolov8n_backbone_classifier.1} parent=11 // pred_region
        _
      $region28: #{yolov8n_backbone_classifier.1} parent=11 // pred_fallthru
        _
      // Predicated region
      $region29: #{yolov8n_backbone_classifier.1} parent=11 // pred_check
        %p849 = pneg %p208
      $region30: #{yolov8n_backbone_classifier.1} parent=11 // pred_check_branch
        %851 = sbr.rel (%p849) target = $region32
      $region31: #{yolov8n_backbone_classifier.1} parent=11 // pred_region
        _
      $region32: #{yolov8n_backbone_classifier.1} parent=11 // pred_fallthru
        _
      // Predicated region
      $region33: #{yolov8n_backbone_classifier.1} parent=11 // pred_check
        %p852 = pneg %p229
      $region34: #{yolov8n_backbone_classifier.1} parent=11 // pred_check_branch
        %854 = sbr.rel (%p852) target = $region36
      $region35: #{yolov8n_backbone_classifier.1} parent=11 // pred_region
        _
      $region36: #{yolov8n_backbone_classifier.1} parent=11 // pred_fallthru
        _
      // Predicated region
      $region37: #{yolov8n_backbone_classifier.1} parent=11 // pred_check
        %p855 = pneg %p250
      $region38: #{yolov8n_backbone_classifier.1} parent=11 // pred_check_branch
        %857 = sbr.rel (%p855) target = $region40
      $region39: #{yolov8n_backbone_classifier.1} parent=11 // pred_region
        _
      $region40: #{yolov8n_backbone_classifier.1} parent=11 // pred_fallthru
        _
      // Predicated region
      $region41: #{yolov8n_backbone_classifier.1} parent=11 // pred_check
        %p858 = pneg %p271
      $region42: #{yolov8n_backbone_classifier.1} parent=11 // pred_check_branch
        %860 = sbr.rel (%p858) target = $region44
      $region43: #{yolov8n_backbone_classifier.1} parent=11 // pred_region
        _
      $region44: #{yolov8n_backbone_classifier.1} parent=11 // pred_fallthru
        _
      // Predicated region
      $region45: #{yolov8n_backbone_classifier.1} parent=11 // pred_check
        %p861 = pneg %p292
      $region46: #{yolov8n_backbone_classifier.1} parent=11 // pred_check_branch
        %863 = sbr.rel (%p861) target = $region48
      $region47: #{yolov8n_backbone_classifier.1} parent=11 // pred_region
        _
      $region48: #{yolov8n_backbone_classifier.1} parent=11 // pred_fallthru
        _
      // Predicated region
      $region49: #{yolov8n_backbone_classifier.1} parent=11 // pred_check
        %p864 = pneg %p313
      $region50: #{yolov8n_backbone_classifier.1} parent=11 // pred_check_branch
        %866 = sbr.rel (%p864) target = $region52
      $region51: #{yolov8n_backbone_classifier.1} parent=11 // pred_region
        _
      $region52: #{yolov8n_backbone_classifier.1} parent=11 // pred_fallthru
        _
      // Predicated region
      $region53: #{yolov8n_backbone_classifier.1} parent=11 // pred_check
        %p867 = pneg %p334
      $region54: #{yolov8n_backbone_classifier.1} parent=11 // pred_check_branch
        %869 = sbr.rel (%p867) target = $region56
      $region55: #{yolov8n_backbone_classifier.1} parent=11 // pred_region
        _
      $region56: #{yolov8n_backbone_classifier.1} parent=11 // pred_fallthru
        _
      // Predicated region
      $region57: #{yolov8n_backbone_classifier.1} parent=11 // pred_check
        %p870 = pneg %p355
      $region58: #{yolov8n_backbone_classifier.1} parent=11 // pred_check_branch
        %872 = sbr.rel (%p870) target = $region60
      $region59: #{yolov8n_backbone_classifier.1} parent=11 // pred_region
        _
      $region60: #{yolov8n_backbone_classifier.1} parent=11 // pred_fallthru
        _
      // Predicated region
      $region61: #{yolov8n_backbone_classifier.1} parent=11 // pred_check
        %p873 = pneg %p376
      $region62: #{yolov8n_backbone_classifier.1} parent=11 // pred_check_branch
        %875 = sbr.rel (%p873) target = $region64
      $region63: #{yolov8n_backbone_classifier.1} parent=11 // pred_region
        _
      $region64: #{yolov8n_backbone_classifier.1} parent=11 // pred_fallthru
        _
      // Predicated region
      $region65: #{yolov8n_backbone_classifier.1} parent=11 // pred_check
        %p876 = pneg %p397
      $region66: #{yolov8n_backbone_classifier.1} parent=11 // pred_check_branch
        %878 = sbr.rel (%p876) target = $region68
      $region67: #{yolov8n_backbone_classifier.1} parent=11 // pred_region
        _
      $region68: #{yolov8n_backbone_classifier.1} parent=11 // pred_fallthru
        _
      // Predicated region
      $region69: #{yolov8n_backbone_classifier.1} parent=11 // pred_check
        %p879 = pneg %p418
      $region70: #{yolov8n_backbone_classifier.1} parent=11 // pred_check_branch
        %881 = sbr.rel (%p879) target = $region72
      $region71: #{yolov8n_backbone_classifier.1} parent=11 // pred_region
        _
      $region72: #{yolov8n_backbone_classifier.1} parent=11 // pred_fallthru
        _
      // Predicated region
      $region73: #{yolov8n_backbone_classifier.1} parent=11 // pred_check
        %p882 = pneg %p439
      $region74: #{yolov8n_backbone_classifier.1} parent=11 // pred_check_branch
        %884 = sbr.rel (%p882) target = $region76
      $region75: #{yolov8n_backbone_classifier.1} parent=11 // pred_region
        _
      $region76: #{yolov8n_backbone_classifier.1} parent=11 // pred_fallthru
        _
      // Predicated region
      $region77: #{yolov8n_backbone_classifier.1} parent=11 // pred_check
        %p885 = pneg %p460
      $region78: #{yolov8n_backbone_classifier.1} parent=11 // pred_check_branch
        %887 = sbr.rel (%p885) target = $region80
      $region79: #{yolov8n_backbone_classifier.1} parent=11 // pred_region
        _
      $region80: #{yolov8n_backbone_classifier.1} parent=11 // pred_fallthru
        _
      // Predicated region
      $region81: #{yolov8n_backbone_classifier.1} parent=11 // pred_check
        %p888 = pneg %p481
      $region82: #{yolov8n_backbone_classifier.1} parent=11 // pred_check_branch
        %890 = sbr.rel (%p888) target = $region84
      $region83: #{yolov8n_backbone_classifier.1} parent=11 // pred_region
        _
      $region84: #{yolov8n_backbone_classifier.1} parent=11 // pred_fallthru
        _
      // Predicated region
      $region85: #{yolov8n_backbone_classifier.1} parent=11 // pred_check
        %p891 = pneg %p502
      $region86: #{yolov8n_backbone_classifier.1} parent=11 // pred_check_branch
        %893 = sbr.rel (%p891) target = $region88
      $region87: #{yolov8n_backbone_classifier.1} parent=11 // pred_region
        _
      $region88: #{yolov8n_backbone_classifier.1} parent=11 // pred_fallthru
        _
      // Predicated region
      $region89: #{yolov8n_backbone_classifier.1} parent=11 // pred_check
        %p894 = pneg %p523
      $region90: #{yolov8n_backbone_classifier.1} parent=11 // pred_check_branch
        %896 = sbr.rel (%p894) target = $region92
      $region91: #{yolov8n_backbone_classifier.1} parent=11 // pred_region
        _
      $region92: #{yolov8n_backbone_classifier.1} parent=11 // pred_fallthru
        _
      // Predicated region
      $region93: #{yolov8n_backbone_classifier.1} parent=11 // pred_check
        %p897 = pneg %p544
      $region94: #{yolov8n_backbone_classifier.1} parent=11 // pred_check_branch
        %899 = sbr.rel (%p897) target = $region96
      $region95: #{yolov8n_backbone_classifier.1} parent=11 // pred_region
        _
      $region96: #{yolov8n_backbone_classifier.1} parent=11 // pred_fallthru
        _
      // Predicated region
      $region97: #{yolov8n_backbone_classifier.1} parent=11 // pred_check
        %p900 = pneg %p565
      $region98: #{yolov8n_backbone_classifier.1} parent=11 // pred_check_branch
        %902 = sbr.rel (%p900) target = $region100
      $region99: #{yolov8n_backbone_classifier.1} parent=11 // pred_region
        _
      $region100: #{yolov8n_backbone_classifier.1} parent=11 // pred_fallthru
        _
      // Predicated region
      $region101: #{yolov8n_backbone_classifier.1} parent=11 // pred_check
        %p903 = pneg %p586
      $region102: #{yolov8n_backbone_classifier.1} parent=11 // pred_check_branch
        %905 = sbr.rel (%p903) target = $region104
      $region103: #{yolov8n_backbone_classifier.1} parent=11 // pred_region
        _
      $region104: #{yolov8n_backbone_classifier.1} parent=11 // pred_fallthru
        _
      // Predicated region
      $region105: #{yolov8n_backbone_classifier.1} parent=11 // pred_check
        %p906 = pneg %p607
      $region106: #{yolov8n_backbone_classifier.1} parent=11 // pred_check_branch
        %908 = sbr.rel (%p906) target = $region108
      $region107: #{yolov8n_backbone_classifier.1} parent=11 // pred_region
        _
      $region108: #{yolov8n_backbone_classifier.1} parent=11 // pred_fallthru
        _
      // Predicated region
      $region109: #{yolov8n_backbone_classifier.1} parent=11 // pred_check
        %p909 = pneg %p628
      $region110: #{yolov8n_backbone_classifier.1} parent=11 // pred_check_branch
        %911 = sbr.rel (%p909) target = $region112
      $region111: #{yolov8n_backbone_classifier.1} parent=11 // pred_region
        _
      $region112: #{yolov8n_backbone_classifier.1} parent=11 // pred_fallthru
        _
      // Predicated region
      $region113: #{yolov8n_backbone_classifier.1} parent=11 // pred_check
        %p912 = pneg %p649
      $region114: #{yolov8n_backbone_classifier.1} parent=11 // pred_check_branch
        %914 = sbr.rel (%p912) target = $region116
      $region115: #{yolov8n_backbone_classifier.1} parent=11 // pred_region
        _
      $region116: #{yolov8n_backbone_classifier.1} parent=11 // pred_fallthru
        _
      // Predicated region
      $region117: #{yolov8n_backbone_classifier.1} parent=11 // pred_check
        %p915 = pneg %p670
      $region118: #{yolov8n_backbone_classifier.1} parent=11 // pred_check_branch
        %917 = sbr.rel (%p915) target = $region120
      $region119: #{yolov8n_backbone_classifier.1} parent=11 // pred_region
        _
      $region120: #{yolov8n_backbone_classifier.1} parent=11 // pred_fallthru
        _
      // Predicated region
      $region121: #{yolov8n_backbone_classifier.1} parent=11 // pred_check
        %p918 = pneg %p691
      $region122: #{yolov8n_backbone_classifier.1} parent=11 // pred_check_branch
        %920 = sbr.rel (%p918) target = $region124
      $region123: #{yolov8n_backbone_classifier.1} parent=11 // pred_region
        _
      $region124: #{yolov8n_backbone_classifier.1} parent=11 // pred_fallthru
        _
      // Predicated region
      $region125: #{yolov8n_backbone_classifier.1} parent=11 // pred_check
        %p921 = pneg %p712
      $region126: #{yolov8n_backbone_classifier.1} parent=11 // pred_check_branch
        %923 = sbr.rel (%p921) target = $region128
      $region127: #{yolov8n_backbone_classifier.1} parent=11 // pred_region
        _
      $region128: #{yolov8n_backbone_classifier.1} parent=11 // pred_fallthru
        _
      // Predicated region
      $region129: #{yolov8n_backbone_classifier.1} parent=11 // pred_check
        %p924 = pneg %p733
      $region130: #{yolov8n_backbone_classifier.1} parent=11 // pred_check_branch
        %926 = sbr.rel (%p924) target = $region132
      $region131: #{yolov8n_backbone_classifier.1} parent=11 // pred_region
        _
      $region132: #{yolov8n_backbone_classifier.1} parent=11 // pred_fallthru
        _
      // Predicated region
      $region133: #{yolov8n_backbone_classifier.1} parent=11 // pred_check
        %p927 = pneg %p754
      $region134: #{yolov8n_backbone_classifier.1} parent=11 // pred_check_branch
        %929 = sbr.rel (%p927) target = $region136
      $region135: #{yolov8n_backbone_classifier.1} parent=11 // pred_region
        _
      $region136: #{yolov8n_backbone_classifier.1} parent=11 // pred_fallthru
        _
      // Predicated region
      $region137: #{yolov8n_backbone_classifier.1} parent=11 // pred_check
        %p930 = pneg %p775
      $region138: #{yolov8n_backbone_classifier.1} parent=11 // pred_check_branch
        %932 = sbr.rel (%p930) target = $region140
      $region139: #{yolov8n_backbone_classifier.1} parent=11 // pred_region
        _
      $region140: #{yolov8n_backbone_classifier.1} parent=11 // pred_fallthru
        _
      // Predicated region
      $region141: #{yolov8n_backbone_classifier.1} parent=11 // pred_check
        %p933 = pneg %p796
      $region142: #{yolov8n_backbone_classifier.1} parent=11 // pred_check_branch
        %935 = sbr.rel (%p933) target = $region144
      $region143: #{yolov8n_backbone_classifier.1} parent=11 // pred_region
        _
      $region144: #{yolov8n_backbone_classifier.1} parent=11 // pred_fallthru
        _
    $region12: #{yolov8n_backbone_classifier.1} parent=5 // pred_fallthru
      _
    %p936 = scmp.lt.s32.totalorder %s77, 2
    // Predicated region
    $region145: #{yolov8n_backbone_classifier.1} parent=5 // pred_check
      %p937 = pneg %p936
    $region146: #{yolov8n_backbone_classifier.1} parent=5 // pred_check_branch
      %939 = sbr.rel (%p937) target = $region148
    $region147: #{yolov8n_backbone_classifier.1} parent=5 // pred_region
      // Predicated region
      $region149: #{yolov8n_backbone_classifier.1} parent=147 // pred_check
        %p940 = pneg %p97
      $region150: #{yolov8n_backbone_classifier.1} parent=147 // pred_check_branch
        %942 = sbr.rel (%p940) target = $region152
      $region151: #{yolov8n_backbone_classifier.1} parent=147 // pred_region
        %p943 = scmp.lt.s32.totalorder %s77, 1
        %s944 = scalar_select %p943, %s77, 1
        %s945 = smul.addr %s944, 32
        %s946 = smul.addr %s945, 4
        %s947 = scalar_lea.vmem %s1, %s946
      $region152: #{yolov8n_backbone_classifier.1} parent=147 // pred_fallthru
        _
    $region148: #{yolov8n_backbone_classifier.1} parent=5 // pred_fallthru
      _
    %p948 = scmp.le.s32.totalorder 1, %s77
    %p949 = scmp.lt.s32.totalorder %s77, 3
    %p950 = pnand %p948, %p949
    %p951 = pneg %p950
    // Predicated region
    $region153: #{yolov8n_backbone_classifier.1} parent=5 // pred_check
      _
    $region154: #{yolov8n_backbone_classifier.1} parent=5 // pred_check_branch
      %953 = sbr.rel (%p950) target = $region156
    $region155: #{yolov8n_backbone_classifier.1} parent=5 // pred_region
      %s954 = ssub.s32 %s77, 1
      %p955 = scmp.lt.s32.totalorder %s82, 1
      %s956 = scalar_select %p955, %s82, 1
      %s957 = smul.addr %s956, 32
      %s958 = smul.addr %s957, 4
      %s959 = scalar_lea.vmem %s1, %s958
      %p960 = pneg %p103
      %p961 = pneg %p100
      %p962 = pneg %p124
      %p963 = pneg %p121
      %p964 = pneg %p145
      %p965 = pneg %p142
      %p966 = pneg %p166
      %p967 = pneg %p163
      %p968 = pneg %p187
      %p969 = pneg %p184
      %p970 = pneg %p208
      %p971 = pneg %p205
      %p972 = pneg %p229
      %p973 = pneg %p226
      %p974 = pneg %p250
      %p975 = pneg %p247
      %p976 = pneg %p271
      %p977 = pneg %p268
      %p978 = pneg %p292
      %p979 = pneg %p289
      %p980 = pneg %p313
      %p981 = pneg %p310
      %p982 = pneg %p334
      %p983 = pneg %p331
      %p984 = pneg %p355
      %p985 = pneg %p352
      %p986 = pneg %p376
      %p987 = pneg %p373
      %p988 = pneg %p397
      %p989 = pneg %p394
      %p990 = pneg %p418
      %p991 = pneg %p415
      %p992 = pneg %p439
      %p993 = pneg %p436
      %p994 = pneg %p460
      %p995 = pneg %p457
      %p996 = pneg %p481
      %p997 = pneg %p478
      %p998 = pneg %p502
      %p999 = pneg %p499
      %p1000 = pneg %p523
      %p1001 = pneg %p520
      %p1002 = pneg %p544
      %p1003 = pneg %p541
      %p1004 = pneg %p565
      %p1005 = pneg %p562
      %p1006 = pneg %p586
      %p1007 = pneg %p583
      %p1008 = pneg %p607
      %p1009 = pneg %p604
      %p1010 = pneg %p628
      %p1011 = pneg %p625
      %p1012 = pneg %p649
      %p1013 = pneg %p646
      %p1014 = pneg %p670
      %p1015 = pneg %p667
      %p1016 = pneg %p691
      %p1017 = pneg %p688
      %p1018 = pneg %p712
      %p1019 = pneg %p709
      %p1020 = pneg %p733
      %p1021 = pneg %p730
      %p1022 = pneg %p754
      %p1023 = pneg %p751
      %p1024 = pneg %p775
      %p1025 = pneg %p772
      %p1026 = pneg %p796
      %p1027 = pneg %p793
      %p1028 = pneg %p822
      %p1029 = pneg %p819
      %p1030 = scmp.lt.s32.totalorder %s82, 1
      %s1031 = scalar_select %p1030, %s82, 1
      %s1032 = smul.addr %s1031, 8
      %s1033 = scalar_lea.vmem %s69, %s1032
      %p1034 = scmp.lt.s32.totalorder %s82, 1
      %s1035 = scalar_select %p1034, %s82, 1
      %s1036 = smul.addr %s1035, 32
      %s1037 = smul.addr %s1036, 4
      %s1038 = scalar_lea.vmem %s1, %s1037
      %p1039 = scmp.lt.s32.totalorder %s82, 1
      %s1040 = scalar_select %p1039, %s82, 1
      %s1041 = smul.addr %s1040, 8
      %s1042 = scalar_lea.vmem %s69, %s1041
      %v1046 = vld [vmem:[%s1038] sm:$0xf]
      %v1047 = vld [vmem:[%s1038 + $0x4] sm:$0xf]
      %v1048 = vld [vmem:[%s1038 + $0x8] sm:$0xf]
      %v1049 = vld [vmem:[%s1038 + $0xc] sm:$0xf]
      %v1050 = vld [vmem:[%s1038 + $0x10] sm:$0xf]
      %v1051 = vld [vmem:[%s1038 + $0x14] sm:$0xf]
      %v1052 = vld [vmem:[%s1038 + $0x18] sm:$0xf]
      %v1053 = vld [vmem:[%s1038 + $0x1c] sm:$0xf]
      %v1054 = vld [vmem:[%s1038 + $0x20] sm:$0xf]
      %v1055 = vld [vmem:[%s1038 + $0x24] sm:$0xf]
      %v1056 = vld [vmem:[%s1038 + $0x28] sm:$0xf]
      %v1057 = vld [vmem:[%s1038 + $0x2c] sm:$0xf]
      %v1058 = vld [vmem:[%s1038 + $0x30] sm:$0xf]
      %v1059 = vld [vmem:[%s1038 + $0x34] sm:$0xf]
      %v1060 = vld [vmem:[%s1038 + $0x38] sm:$0xf]
      %v1061 = vld [vmem:[%s1038 + $0x3c] sm:$0xf]
      %v1062 = vld [vmem:[%s1038 + $0x40] sm:$0xf]
      %v1063 = vld [vmem:[%s1038 + $0x44] sm:$0xf]
      %v1064 = vld [vmem:[%s1038 + $0x48] sm:$0xf]
      %v1065 = vld [vmem:[%s1038 + $0x4c] sm:$0xf]
      %v1066 = vld [vmem:[%s1038 + $0x50] sm:$0xf]
      %v1067 = vld [vmem:[%s1038 + $0x54] sm:$0xf]
      %v1068 = vld [vmem:[%s1038 + $0x58] sm:$0xf]
      %v1069 = vld [vmem:[%s1038 + $0x5c] sm:$0xf]
      %v1070 = vld [vmem:[%s1038 + $0x60] sm:$0xf]
      %v1071 = vld [vmem:[%s1038 + $0x64] sm:$0xf]
      %v1072 = vld [vmem:[%s1038 + $0x68] sm:$0xf]
      %v1073 = vld [vmem:[%s1038 + $0x6c] sm:$0xf]
      %v1074 = vld [vmem:[%s1038 + $0x70] sm:$0xf]
      %v1075 = vld [vmem:[%s1038 + $0x74] sm:$0xf]
      %v1076 = vld [vmem:[%s1038 + $0x78] sm:$0xf]
      %v1077 = vld [vmem:[%s1038 + $0x7c] sm:$0xf]
      %v1078 = vld [vmem:[%s9] sm:$0xf]
      %v1079 = vld [vmem:[%s9 + $0x4] sm:$0xf]
      %v1080 = vld [vmem:[%s9 + $0x8] sm:$0xf]
      %v1081 = vld [vmem:[%s9 + $0xc] sm:$0x3]
      %v1082 = vld [vmem:[%s11] sm:$0x1]
      %v1084 = vlaneseq
      %v1085 = vshrl.u32 %v1084, 7
      %v1086 = vsub.s32 0, %v1085
      %v1087 = vrot.slane %v1082, %v1086
      %v1121 = vunpack.c.l.b16 %v1046
      %v1122 = vunpack.c.l.b16 %v1047
      %v1123 = vunpack.c.l.b16 %v1048
      %v1124 = vunpack.c.l.b16 %v1049
      %v1125 = vunpack.c.l.b16 %v1050
      %v1126 = vunpack.c.l.b16 %v1051
      %v1127 = vunpack.c.l.b16 %v1052
      %v1128 = vunpack.c.l.b16 %v1053
      %v1129 = vunpack.c.l.b16 %v1054
      %v1130 = vunpack.c.l.b16 %v1055
      %v1131 = vunpack.c.l.b16 %v1056
      %v1132 = vunpack.c.l.b16 %v1057
      %v1133 = vunpack.c.l.b16 %v1058
      %v1134 = vunpack.c.l.b16 %v1059
      %v1135 = vunpack.c.l.b16 %v1060
      %v1136 = vunpack.c.l.b16 %v1061
      %v1137 = vunpack.c.l.b16 %v1062
      %v1138 = vunpack.c.l.b16 %v1063
      %v1139 = vunpack.c.l.b16 %v1064
      %v1140 = vunpack.c.l.b16 %v1065
      %v1141 = vunpack.c.l.b16 %v1066
      %v1142 = vunpack.c.l.b16 %v1067
      %v1143 = vunpack.c.l.b16 %v1068
      %v1144 = vunpack.c.l.b16 %v1069
      %v1145 = vunpack.c.l.b16 %v1070
      %v1146 = vunpack.c.l.b16 %v1071
      %v1147 = vunpack.c.l.b16 %v1072
      %v1148 = vunpack.c.l.b16 %v1073
      %v1149 = vunpack.c.l.b16 %v1074
      %v1150 = vunpack.c.l.b16 %v1075
      %v1151 = vunpack.c.l.b16 %v1076
      %v1152 = vunpack.c.l.b16 %v1077
      %v1153 = vpack.c.b16 %v1122, %v1121
      %v1154 = vpack.c.b16 %v1124, %v1123
      %v1155 = vpack.c.b16 %v1126, %v1125
      %v1156 = vpack.c.b16 %v1128, %v1127
      %v1157 = vpack.c.b16 %v1130, %v1129
      %v1158 = vpack.c.b16 %v1132, %v1131
      %v1159 = vpack.c.b16 %v1134, %v1133
      %v1160 = vpack.c.b16 %v1136, %v1135
      %v1161 = vpack.c.b16 %v1138, %v1137
      %v1162 = vpack.c.b16 %v1140, %v1139
      %v1163 = vpack.c.b16 %v1142, %v1141
      %v1164 = vpack.c.b16 %v1144, %v1143
      %v1165 = vpack.c.b16 %v1146, %v1145
      %v1166 = vpack.c.b16 %v1148, %v1147
      %v1167 = vpack.c.b16 %v1150, %v1149
      %v1168 = vpack.c.b16 %v1152, %v1151
      %v1173 = vunpack.c.l.b16 %v1078
      %v1174 = vunpack.c.l.b16 %v1079
      %v1175 = vunpack.c.l.b16 %v1080
      %v1176 = vunpack.c.l.b16 %v1081
      %v1177 = vpack.c.b16 %v1174, %v1173
      %v1178 = vpack.c.b16 %v1176, %v1175
      %vm1180 = vcmask 220160
      %v1182 = vsel %vm1180, %v1153, 0
      %v1185 = vsel %vm1180, %v1154, 0
      %v1188 = vsel %vm1180, %v1155, 0
      %v1191 = vsel %vm1180, %v1156, 0
      %v1194 = vsel %vm1180, %v1157, 0
      %v1197 = vsel %vm1180, %v1158, 0
      %v1200 = vsel %vm1180, %v1159, 0
      %v1203 = vsel %vm1180, %v1160, 0
      %v1206 = vsel %vm1180, %v1161, 0
      %v1209 = vsel %vm1180, %v1162, 0
      %v1212 = vsel %vm1180, %v1163, 0
      %v1215 = vsel %vm1180, %v1164, 0
      %v1218 = vsel %vm1180, %v1165, 0
      %v1221 = vsel %vm1180, %v1166, 0
      %v1224 = vsel %vm1180, %v1167, 0
      %v1227 = vsel %vm1180, %v1168, 0
      %vm1229 = vcmask 1044480
      %vm1230 = vcmask 1045504
      %v1231 = vsel %vm1229, 4294967295, 65535
      %v1232 = vsel %vm1230, %v1231, 0
      %v1234 = vand.u32 %v1178, %v1232
      %1236 = vmatprep.subr.bf16.mxu0 0
      %1237 = vmatpush1.bf16.msra.mxu0 0
      %1238 = vmatprep.subr.bf16.mxu0 0
      %1239 = vmatpush1.bf16.msra.mxu0 0
      %1240 = vmatprep.subr.bf16.mxu0 0
      %1241 = vmatpush1.bf16.msra.mxu0 0
      %1242 = vmatprep.subr.bf16.mxu0 0
      %1243 = vmatpush1.bf16.msra.mxu0 0
      %1244 = vmatprep.subr.bf16.mxu0 0
      %1245 = vmatpush1.bf16.msra.mxu0 0
      %1246 = vmatprep.subr.bf16.mxu0 0
      %1247 = vmatpush1.bf16.msra.mxu0 0
      %1248 = vmatprep.subr.bf16.mxu0 0
      %1249 = vmatpush1.bf16.msra.mxu0 %v1234
      %1250 = vmatprep.subr.bf16.mxu0 0
      %1251 = vmatpush1.bf16.msra.mxu0 %v1177
      %1252 = vmatprep.subr.bf16.mxu0 0
      %1253 = vmatpush2.bf16.msra.mxu0 0
      %1254 = vmatprep.subr.bf16.mxu0 0
      %1255 = vmatpush2.bf16.msra.mxu0 0
      %1256 = vmatprep.subr.bf16.mxu0 0
      %1257 = vmatpush2.bf16.msra.mxu0 0
      %1258 = vmatprep.subr.bf16.mxu0 0
      %1259 = vmatpush2.bf16.msra.mxu0 0
      %1260 = vmatprep.subr.bf16.mxu0 0
      %1261 = vmatpush2.bf16.msra.mxu0 0
      %1262 = vmatprep.subr.bf16.mxu0 0
      %1263 = vmatpush2.bf16.msra.mxu0 0
      %1264 = vmatprep.subr.bf16.mxu0 0
      %1265 = vmatpush2.bf16.msra.mxu0 0
      %1266 = vmatprep.subr.bf16.mxu0 0
      %1267 = vmatpush2.bf16.msra.mxu0 0
      %1268 = vmatprep.mubr.bf16.mxu0 0
      %1269 = vmatmul.mubr.bf16.gmra.mxu0 %v1182
      %v1270 = vpop.f32.mrf.mxu0
      %v1271 = vadd.f32 %v1087, %v1270
      %v1272 = vpop.f32.mrf.mxu0
      %v1273 = vpop.f32.mrf.mxu0
      %v1274 = vadd.f32 %v1087, %v1273
      %v1275 = vpop.f32.mrf.mxu0
      %1276 = vmatprep.mubr.bf16.mxu0 0
      %1277 = vmatmul.mubr.bf16.gmra.mxu0 %v1185
      %v1278 = vpop.f32.mrf.mxu0
      %v1279 = vadd.f32 %v1087, %v1278
      %v1280 = vpop.f32.mrf.mxu0
      %v1281 = vpop.f32.mrf.mxu0
      %v1282 = vadd.f32 %v1087, %v1281
      %v1283 = vpop.f32.mrf.mxu0
      %1284 = vmatprep.mubr.bf16.mxu0 0
      %1285 = vmatmul.mubr.bf16.gmra.mxu0 %v1188
      %v1286 = vpop.f32.mrf.mxu0
      %v1287 = vadd.f32 %v1087, %v1286
      %v1288 = vpop.f32.mrf.mxu0
      %v1289 = vpop.f32.mrf.mxu0
      %v1290 = vadd.f32 %v1087, %v1289
      %v1291 = vpop.f32.mrf.mxu0
      %1292 = vmatprep.mubr.bf16.mxu0 0
      %1293 = vmatmul.mubr.bf16.gmra.mxu0 %v1191
      %v1294 = vpop.f32.mrf.mxu0
      %v1295 = vadd.f32 %v1087, %v1294
      %v1296 = vpop.f32.mrf.mxu0
      %v1297 = vpop.f32.mrf.mxu0
      %v1298 = vadd.f32 %v1087, %v1297
      %v1299 = vpop.f32.mrf.mxu0
      %1300 = vmatprep.mubr.bf16.mxu0 0
      %1301 = vmatmul.mubr.bf16.gmra.mxu0 %v1194
      %v1302 = vpop.f32.mrf.mxu0
      %v1303 = vadd.f32 %v1087, %v1302
      %v1304 = vpop.f32.mrf.mxu0
      %v1305 = vpop.f32.mrf.mxu0
      %v1306 = vadd.f32 %v1087, %v1305
      %v1307 = vpop.f32.mrf.mxu0
      %1308 = vmatprep.mubr.bf16.mxu0 0
      %1309 = vmatmul.mubr.bf16.gmra.mxu0 %v1197
      %v1310 = vpop.f32.mrf.mxu0
      %v1311 = vadd.f32 %v1087, %v1310
      %v1312 = vpop.f32.mrf.mxu0
      %v1313 = vpop.f32.mrf.mxu0
      %v1314 = vadd.f32 %v1087, %v1313
      %v1315 = vpop.f32.mrf.mxu0
      %1316 = vmatprep.mubr.bf16.mxu0 0
      %1317 = vmatmul.mubr.bf16.gmra.mxu0 %v1200
      %v1318 = vpop.f32.mrf.mxu0
      %v1319 = vadd.f32 %v1087, %v1318
      %v1320 = vpop.f32.mrf.mxu0
      %v1321 = vpop.f32.mrf.mxu0
      %v1322 = vadd.f32 %v1087, %v1321
      %v1323 = vpop.f32.mrf.mxu0
      %1324 = vmatprep.mubr.bf16.mxu0 0
      %1325 = vmatmul.mubr.bf16.gmra.mxu0 %v1203
      %v1326 = vpop.f32.mrf.mxu0
      %v1327 = vadd.f32 %v1087, %v1326
      %v1328 = vpop.f32.mrf.mxu0
      %v1329 = vpop.f32.mrf.mxu0
      %v1330 = vadd.f32 %v1087, %v1329
      %v1331 = vpop.f32.mrf.mxu0
      %1332 = vmatprep.mubr.bf16.mxu0 0
      %1333 = vmatmul.mubr.bf16.gmra.mxu0 %v1206
      %v1334 = vpop.f32.mrf.mxu0
      %v1335 = vadd.f32 %v1087, %v1334
      %v1336 = vpop.f32.mrf.mxu0
      %v1337 = vpop.f32.mrf.mxu0
      %v1338 = vadd.f32 %v1087, %v1337
      %v1339 = vpop.f32.mrf.mxu0
      %1340 = vmatprep.mubr.bf16.mxu0 0
      %1341 = vmatmul.mubr.bf16.gmra.mxu0 %v1209
      %v1342 = vpop.f32.mrf.mxu0
      %v1343 = vadd.f32 %v1087, %v1342
      %v1344 = vpop.f32.mrf.mxu0
      %v1345 = vpop.f32.mrf.mxu0
      %v1346 = vadd.f32 %v1087, %v1345
      %v1347 = vpop.f32.mrf.mxu0
      %1348 = vmatprep.mubr.bf16.mxu0 0
      %1349 = vmatmul.mubr.bf16.gmra.mxu0 %v1212
      %v1350 = vpop.f32.mrf.mxu0
      %v1351 = vadd.f32 %v1087, %v1350
      %v1352 = vpop.f32.mrf.mxu0
      %v1353 = vpop.f32.mrf.mxu0
      %v1354 = vadd.f32 %v1087, %v1353
      %v1355 = vpop.f32.mrf.mxu0
      %1356 = vmatprep.mubr.bf16.mxu0 0
      %1357 = vmatmul.mubr.bf16.gmra.mxu0 %v1215
      %v1358 = vpop.f32.mrf.mxu0
      %v1359 = vadd.f32 %v1087, %v1358
      %v1360 = vpop.f32.mrf.mxu0
      %v1361 = vpop.f32.mrf.mxu0
      %v1362 = vadd.f32 %v1087, %v1361
      %v1363 = vpop.f32.mrf.mxu0
      %1364 = vmatprep.mubr.bf16.mxu0 0
      %1365 = vmatmul.mubr.bf16.gmra.mxu0 %v1218
      %v1366 = vpop.f32.mrf.mxu0
      %v1367 = vadd.f32 %v1087, %v1366
      %v1368 = vpop.f32.mrf.mxu0
      %v1369 = vpop.f32.mrf.mxu0
      %v1370 = vadd.f32 %v1087, %v1369
      %v1371 = vpop.f32.mrf.mxu0
      %1372 = vmatprep.mubr.bf16.mxu0 0
      %1373 = vmatmul.mubr.bf16.gmra.mxu0 %v1221
      %v1374 = vpop.f32.mrf.mxu0
      %v1375 = vadd.f32 %v1087, %v1374
      %v1376 = vpop.f32.mrf.mxu0
      %v1377 = vpop.f32.mrf.mxu0
      %v1378 = vadd.f32 %v1087, %v1377
      %v1379 = vpop.f32.mrf.mxu0
      %1380 = vmatprep.mubr.bf16.mxu0 0
      %1381 = vmatmul.mubr.bf16.gmra.mxu0 %v1224
      %v1382 = vpop.f32.mrf.mxu0
      %v1383 = vadd.f32 %v1087, %v1382
      %v1384 = vpop.f32.mrf.mxu0
      %v1385 = vpop.f32.mrf.mxu0
      %v1386 = vadd.f32 %v1087, %v1385
      %v1387 = vpop.f32.mrf.mxu0
      %1388 = vmatprep.mubr.bf16.mxu0 0
      %1389 = vmatmul.mubr.bf16.gmra.mxu0 %v1227
      %v1390 = vpop.f32.mrf.mxu0
      %v1391 = vadd.f32 %v1087, %v1390
      %v1392 = vpop.f32.mrf.mxu0
      %v1393 = vpop.f32.mrf.mxu0
      %v1394 = vadd.f32 %v1087, %v1393
      %v1395 = vpop.f32.mrf.mxu0
      %1396 = vdwg.mxu0
      %v1397 = vxor.u32 %v1271, 2147483648
      %v1398 = vxor.u32 %v1274, 2147483648
      %v1399 = vxor.u32 %v1279, 2147483648
      %v1400 = vxor.u32 %v1282, 2147483648
      %v1401 = vxor.u32 %v1287, 2147483648
      %v1402 = vxor.u32 %v1290, 2147483648
      %v1403 = vxor.u32 %v1295, 2147483648
      %v1404 = vxor.u32 %v1298, 2147483648
      %v1405 = vxor.u32 %v1303, 2147483648
      %v1406 = vxor.u32 %v1306, 2147483648
      %v1407 = vxor.u32 %v1311, 2147483648
      %v1408 = vxor.u32 %v1314, 2147483648
      %v1409 = vxor.u32 %v1319, 2147483648
      %v1410 = vxor.u32 %v1322, 2147483648
      %v1411 = vxor.u32 %v1327, 2147483648
      %v1412 = vxor.u32 %v1330, 2147483648
      %v1413 = vxor.u32 %v1335, 2147483648
      %v1414 = vxor.u32 %v1338, 2147483648
      %v1415 = vxor.u32 %v1343, 2147483648
      %v1416 = vxor.u32 %v1346, 2147483648
      %v1417 = vxor.u32 %v1351, 2147483648
      %v1418 = vxor.u32 %v1354, 2147483648
      %v1419 = vxor.u32 %v1359, 2147483648
      %v1420 = vxor.u32 %v1362, 2147483648
      %v1421 = vxor.u32 %v1367, 2147483648
      %v1422 = vxor.u32 %v1370, 2147483648
      %v1423 = vxor.u32 %v1375, 2147483648
      %v1424 = vxor.u32 %v1378, 2147483648
      %v1425 = vxor.u32 %v1383, 2147483648
      %v1426 = vxor.u32 %v1386, 2147483648
      %v1427 = vxor.u32 %v1391, 2147483648
      %v1428 = vxor.u32 %v1394, 2147483648
      %v1429 = vmul.f32 %v1397, 1.442695
      %v1430 = vpow.pop %v1429
      %v1431 = vmul.f32 %v1398, 1.442695
      %v1432 = vpow.pop %v1431
      %v1433 = vmul.f32 %v1399, 1.442695
      %v1434 = vpow.pop %v1433
      %v1435 = vmul.f32 %v1400, 1.442695
      %v1436 = vpow.pop %v1435
      %v1437 = vmul.f32 %v1401, 1.442695
      %v1438 = vpow.pop %v1437
      %v1439 = vmul.f32 %v1402, 1.442695
      %v1440 = vpow.pop %v1439
      %v1441 = vmul.f32 %v1403, 1.442695
      %v1442 = vpow.pop %v1441
      %v1443 = vmul.f32 %v1404, 1.442695
      %v1444 = vpow.pop %v1443
      %v1445 = vmul.f32 %v1405, 1.442695
      %v1446 = vpow.pop %v1445
      %v1447 = vmul.f32 %v1406, 1.442695
      %v1448 = vpow.pop %v1447
      %v1449 = vmul.f32 %v1407, 1.442695
      %v1450 = vpow.pop %v1449
      %v1451 = vmul.f32 %v1408, 1.442695
      %v1452 = vpow.pop %v1451
      %v1453 = vmul.f32 %v1409, 1.442695
      %v1454 = vpow.pop %v1453
      %v1455 = vmul.f32 %v1410, 1.442695
      %v1456 = vpow.pop %v1455
      %v1457 = vmul.f32 %v1411, 1.442695
      %v1458 = vpow.pop %v1457
      %v1459 = vmul.f32 %v1412, 1.442695
      %v1460 = vpow.pop %v1459
      %v1461 = vmul.f32 %v1413, 1.442695
      %v1462 = vpow.pop %v1461
      %v1463 = vmul.f32 %v1414, 1.442695
      %v1464 = vpow.pop %v1463
      %v1465 = vmul.f32 %v1415, 1.442695
      %v1466 = vpow.pop %v1465
      %v1467 = vmul.f32 %v1416, 1.442695
      %v1468 = vpow.pop %v1467
      %v1469 = vmul.f32 %v1417, 1.442695
      %v1470 = vpow.pop %v1469
      %v1471 = vmul.f32 %v1418, 1.442695
      %v1472 = vpow.pop %v1471
      %v1473 = vmul.f32 %v1419, 1.442695
      %v1474 = vpow.pop %v1473
      %v1475 = vmul.f32 %v1420, 1.442695
      %v1476 = vpow.pop %v1475
      %v1477 = vmul.f32 %v1421, 1.442695
      %v1478 = vpow.pop %v1477
      %v1479 = vmul.f32 %v1422, 1.442695
      %v1480 = vpow.pop %v1479
      %v1481 = vmul.f32 %v1423, 1.442695
      %v1482 = vpow.pop %v1481
      %v1483 = vmul.f32 %v1424, 1.442695
      %v1484 = vpow.pop %v1483
      %v1485 = vmul.f32 %v1425, 1.442695
      %v1486 = vpow.pop %v1485
      %v1487 = vmul.f32 %v1426, 1.442695
      %v1488 = vpow.pop %v1487
      %v1489 = vmul.f32 %v1427, 1.442695
      %v1490 = vpow.pop %v1489
      %v1491 = vmul.f32 %v1428, 1.442695
      %v1492 = vpow.pop %v1491
      %v1493 = vadd.f32 %v1430, 1.0
      %v1494 = vadd.f32 %v1432, 1.0
      %v1495 = vadd.f32 %v1434, 1.0
      %v1496 = vadd.f32 %v1436, 1.0
      %v1497 = vadd.f32 %v1438, 1.0
      %v1498 = vadd.f32 %v1440, 1.0
      %v1499 = vadd.f32 %v1442, 1.0
      %v1500 = vadd.f32 %v1444, 1.0
      %v1501 = vadd.f32 %v1446, 1.0
      %v1502 = vadd.f32 %v1448, 1.0
      %v1503 = vadd.f32 %v1450, 1.0
      %v1504 = vadd.f32 %v1452, 1.0
      %v1505 = vadd.f32 %v1454, 1.0
      %v1506 = vadd.f32 %v1456, 1.0
      %v1507 = vadd.f32 %v1458, 1.0
      %v1508 = vadd.f32 %v1460, 1.0
      %v1509 = vadd.f32 %v1462, 1.0
      %v1510 = vadd.f32 %v1464, 1.0
      %v1511 = vadd.f32 %v1466, 1.0
      %v1512 = vadd.f32 %v1468, 1.0
      %v1513 = vadd.f32 %v1470, 1.0
      %v1514 = vadd.f32 %v1472, 1.0
      %v1515 = vadd.f32 %v1474, 1.0
      %v1516 = vadd.f32 %v1476, 1.0
      %v1517 = vadd.f32 %v1478, 1.0
      %v1518 = vadd.f32 %v1480, 1.0
      %v1519 = vadd.f32 %v1482, 1.0
      %v1520 = vadd.f32 %v1484, 1.0
      %v1521 = vadd.f32 %v1486, 1.0
      %v1522 = vadd.f32 %v1488, 1.0
      %v1523 = vadd.f32 %v1490, 1.0
      %v1524 = vadd.f32 %v1492, 1.0
      %v1525 = vrcp.pop %v1493
      %v1526 = vmul.f32 1.0, %v1525
      %v1527 = vrcp.pop %v1494
      %v1528 = vmul.f32 1.0, %v1527
      %v1529 = vrcp.pop %v1495
      %v1530 = vmul.f32 1.0, %v1529
      %v1531 = vrcp.pop %v1496
      %v1532 = vmul.f32 1.0, %v1531
      %v1533 = vrcp.pop %v1497
      %v1534 = vmul.f32 1.0, %v1533
      %v1535 = vrcp.pop %v1498
      %v1536 = vmul.f32 1.0, %v1535
      %v1537 = vrcp.pop %v1499
      %v1538 = vmul.f32 1.0, %v1537
      %v1539 = vrcp.pop %v1500
      %v1540 = vmul.f32 1.0, %v1539
      %v1541 = vrcp.pop %v1501
      %v1542 = vmul.f32 1.0, %v1541
      %v1543 = vrcp.pop %v1502
      %v1544 = vmul.f32 1.0, %v1543
      %v1545 = vrcp.pop %v1503
      %v1546 = vmul.f32 1.0, %v1545
      %v1547 = vrcp.pop %v1504
      %v1548 = vmul.f32 1.0, %v1547
      %v1549 = vrcp.pop %v1505
      %v1550 = vmul.f32 1.0, %v1549
      %v1551 = vrcp.pop %v1506
      %v1552 = vmul.f32 1.0, %v1551
      %v1553 = vrcp.pop %v1507
      %v1554 = vmul.f32 1.0, %v1553
      %v1555 = vrcp.pop %v1508
      %v1556 = vmul.f32 1.0, %v1555
      %v1557 = vrcp.pop %v1509
      %v1558 = vmul.f32 1.0, %v1557
      %v1559 = vrcp.pop %v1510
      %v1560 = vmul.f32 1.0, %v1559
      %v1561 = vrcp.pop %v1511
      %v1562 = vmul.f32 1.0, %v1561
      %v1563 = vrcp.pop %v1512
      %v1564 = vmul.f32 1.0, %v1563
      %v1565 = vrcp.pop %v1513
      %v1566 = vmul.f32 1.0, %v1565
      %v1567 = vrcp.pop %v1514
      %v1568 = vmul.f32 1.0, %v1567
      %v1569 = vrcp.pop %v1515
      %v1570 = vmul.f32 1.0, %v1569
      %v1571 = vrcp.pop %v1516
      %v1572 = vmul.f32 1.0, %v1571
      %v1573 = vrcp.pop %v1517
      %v1574 = vmul.f32 1.0, %v1573
      %v1575 = vrcp.pop %v1518
      %v1576 = vmul.f32 1.0, %v1575
      %v1577 = vrcp.pop %v1519
      %v1578 = vmul.f32 1.0, %v1577
      %v1579 = vrcp.pop %v1520
      %v1580 = vmul.f32 1.0, %v1579
      %v1581 = vrcp.pop %v1521
      %v1582 = vmul.f32 1.0, %v1581
      %v1583 = vrcp.pop %v1522
      %v1584 = vmul.f32 1.0, %v1583
      %v1585 = vrcp.pop %v1523
      %v1586 = vmul.f32 1.0, %v1585
      %v1587 = vrcp.pop %v1524
      %v1588 = vmul.f32 1.0, %v1587
      %v1589 = vmul.f32 %v1271, %v1526
      %v1590 = vmul.f32 %v1274, %v1528
      %v1591 = vmul.f32 %v1279, %v1530
      %v1592 = vmul.f32 %v1282, %v1532
      %v1593 = vmul.f32 %v1287, %v1534
      %v1594 = vmul.f32 %v1290, %v1536
      %v1595 = vmul.f32 %v1295, %v1538
      %v1596 = vmul.f32 %v1298, %v1540
      %v1597 = vmul.f32 %v1303, %v1542
      %v1598 = vmul.f32 %v1306, %v1544
      %v1599 = vmul.f32 %v1311, %v1546
      %v1600 = vmul.f32 %v1314, %v1548
      %v1601 = vmul.f32 %v1319, %v1550
      %v1602 = vmul.f32 %v1322, %v1552
      %v1603 = vmul.f32 %v1327, %v1554
      %v1604 = vmul.f32 %v1330, %v1556
      %v1605 = vmul.f32 %v1335, %v1558
      %v1606 = vmul.f32 %v1338, %v1560
      %v1607 = vmul.f32 %v1343, %v1562
      %v1608 = vmul.f32 %v1346, %v1564
      %v1609 = vmul.f32 %v1351, %v1566
      %v1610 = vmul.f32 %v1354, %v1568
      %v1611 = vmul.f32 %v1359, %v1570
      %v1612 = vmul.f32 %v1362, %v1572
      %v1613 = vmul.f32 %v1367, %v1574
      %v1614 = vmul.f32 %v1370, %v1576
      %v1615 = vmul.f32 %v1375, %v1578
      %v1616 = vmul.f32 %v1378, %v1580
      %v1617 = vmul.f32 %v1383, %v1582
      %v1618 = vmul.f32 %v1386, %v1584
      %v1619 = vmul.f32 %v1391, %v1586
      %v1620 = vmul.f32 %v1394, %v1588
      %v1621 = vpack.c.bf16 %v1590, %v1589
      %v1622 = vpack.c.bf16 %v1592, %v1591
      %v1623 = vpack.c.bf16 %v1594, %v1593
      %v1624 = vpack.c.bf16 %v1596, %v1595
      %v1625 = vpack.c.bf16 %v1598, %v1597
      %v1626 = vpack.c.bf16 %v1600, %v1599
      %v1627 = vpack.c.bf16 %v1602, %v1601
      %v1628 = vpack.c.bf16 %v1604, %v1603
      %v1629 = vpack.c.bf16 %v1606, %v1605
      %v1630 = vpack.c.bf16 %v1608, %v1607
      %v1631 = vpack.c.bf16 %v1610, %v1609
      %v1632 = vpack.c.bf16 %v1612, %v1611
      %v1633 = vpack.c.bf16 %v1614, %v1613
      %v1634 = vpack.c.bf16 %v1616, %v1615
      %v1635 = vpack.c.bf16 %v1618, %v1617
      %v1636 = vpack.c.bf16 %v1620, %v1619
      %v1637 = vlaneseq
      %v1638 = vshrl.u32 %v1637, 7
      %v1639 = vadd.s32 %v1638, 8
      %v1640 = vadd.s32 %v1638, 16
      %v1641 = vadd.s32 %v1638, 24
      %v1642 = vadd.s32 %v1638, 32
      %v1643 = vadd.s32 %v1638, 40
      %v1644 = vadd.s32 %v1638, 48
      %v1645 = vadd.s32 %v1638, 56
      %v1646 = vadd.s32 %v1638, 64
      %v1647 = vadd.s32 %v1638, 72
      %v1648 = vadd.s32 %v1638, 80
      %v1649 = vadd.s32 %v1638, 88
      %v1650 = vadd.s32 %v1638, 96
      %v1651 = vadd.s32 %v1638, 104
      %v1652 = vadd.s32 %v1638, 112
      %v1653 = vadd.s32 %v1638, 120
      %v1654 = vadd.s32 %v1638, 128
      %v1655 = vadd.s32 %v1638, 136
      %v1656 = vadd.s32 %v1638, 144
      %v1657 = vadd.s32 %v1638, 152
      %v1658 = vadd.s32 %v1638, 160
      %v1659 = vadd.s32 %v1638, 168
      %v1660 = vadd.s32 %v1638, 176
      %v1661 = vadd.s32 %v1638, 184
      %v1662 = vadd.s32 %v1638, 192
      %v1663 = vadd.s32 %v1638, 200
      %v1664 = vadd.s32 %v1638, 208
      %v1665 = vadd.s32 %v1638, 216
      %v1666 = vadd.s32 %v1638, 224
      %v1667 = vadd.s32 %v1638, 232
      %v1668 = vadd.s32 %v1638, 240
      %v1669 = vadd.s32 %v1638, 248
      %v1670 = vand.u32 %v1638, 15
      %v1671 = vand.u32 %v1639, 15
      %v1672 = vand.u32 %v1640, 15
      %v1673 = vand.u32 %v1641, 15
      %v1674 = vand.u32 %v1642, 15
      %v1675 = vand.u32 %v1643, 15
      %v1676 = vand.u32 %v1644, 15
      %v1677 = vand.u32 %v1645, 15
      %v1678 = vand.u32 %v1646, 15
      %v1679 = vand.u32 %v1647, 15
      %v1680 = vand.u32 %v1648, 15
      %v1681 = vand.u32 %v1649, 15
      %v1682 = vand.u32 %v1650, 15
      %v1683 = vand.u32 %v1651, 15
      %v1684 = vand.u32 %v1652, 15
      %v1685 = vand.u32 %v1653, 15
      %v1686 = vand.u32 %v1654, 15
      %v1687 = vand.u32 %v1655, 15
      %v1688 = vand.u32 %v1656, 15
      %v1689 = vand.u32 %v1657, 15
      %v1690 = vand.u32 %v1658, 15
      %v1691 = vand.u32 %v1659, 15
      %v1692 = vand.u32 %v1660, 15
      %v1693 = vand.u32 %v1661, 15
      %v1694 = vand.u32 %v1662, 15
      %v1695 = vand.u32 %v1663, 15
      %v1696 = vand.u32 %v1664, 15
      %v1697 = vand.u32 %v1665, 15
      %v1698 = vand.u32 %v1666, 15
      %v1699 = vand.u32 %v1667, 15
      %v1700 = vand.u32 %v1668, 15
      %v1701 = vand.u32 %v1669, 15
      %vm1702 = vsmask.f32 256
      %v1704 = vshrl.u32 %v1621, 16
      %v1706 = vrot.slane %v1704, 7
      %v1707 = vshll.u32 %v1621, 16
      %v1709 = vor.u32 %v1706, %v1707
      %v1711 = vshrl.u32 %v1622, 16
      %v1713 = vrot.slane %v1711, 7
      %v1714 = vshll.u32 %v1622, 16
      %v1716 = vor.u32 %v1713, %v1714
      %v1717 = vsel %vm1702, %v1706, %v1716
      %v1719 = vshrl.u32 %v1623, 16
      %v1721 = vrot.slane %v1719, 7
      %v1722 = vshll.u32 %v1623, 16
      %v1724 = vor.u32 %v1721, %v1722
      %v1725 = vsel %vm1702, %v1713, %v1724
      %v1727 = vshrl.u32 %v1624, 16
      %v1729 = vrot.slane %v1727, 7
      %v1730 = vshll.u32 %v1624, 16
      %v1732 = vor.u32 %v1729, %v1730
      %v1733 = vsel %vm1702, %v1721, %v1732
      %v1735 = vshrl.u32 %v1625, 16
      %v1737 = vrot.slane %v1735, 7
      %v1738 = vshll.u32 %v1625, 16
      %v1740 = vor.u32 %v1737, %v1738
      %v1741 = vsel %vm1702, %v1729, %v1740
      %v1743 = vshrl.u32 %v1626, 16
      %v1745 = vrot.slane %v1743, 7
      %v1746 = vshll.u32 %v1626, 16
      %v1748 = vor.u32 %v1745, %v1746
      %v1749 = vsel %vm1702, %v1737, %v1748
      %v1751 = vshrl.u32 %v1627, 16
      %v1753 = vrot.slane %v1751, 7
      %v1754 = vshll.u32 %v1627, 16
      %v1756 = vor.u32 %v1753, %v1754
      %v1757 = vsel %vm1702, %v1745, %v1756
      %v1759 = vshrl.u32 %v1628, 16
      %v1761 = vrot.slane %v1759, 7
      %v1762 = vshll.u32 %v1628, 16
      %v1764 = vor.u32 %v1761, %v1762
      %v1765 = vsel %vm1702, %v1753, %v1764
      %v1767 = vshrl.u32 %v1629, 16
      %v1769 = vrot.slane %v1767, 7
      %v1770 = vshll.u32 %v1629, 16
      %v1772 = vor.u32 %v1769, %v1770
      %v1773 = vsel %vm1702, %v1761, %v1772
      %v1775 = vshrl.u32 %v1630, 16
      %v1777 = vrot.slane %v1775, 7
      %v1778 = vshll.u32 %v1630, 16
      %v1780 = vor.u32 %v1777, %v1778
      %v1781 = vsel %vm1702, %v1769, %v1780
      %v1783 = vshrl.u32 %v1631, 16
      %v1785 = vrot.slane %v1783, 7
      %v1786 = vshll.u32 %v1631, 16
      %v1788 = vor.u32 %v1785, %v1786
      %v1789 = vsel %vm1702, %v1777, %v1788
      %v1791 = vshrl.u32 %v1632, 16
      %v1793 = vrot.slane %v1791, 7
      %v1794 = vshll.u32 %v1632, 16
      %v1796 = vor.u32 %v1793, %v1794
      %v1797 = vsel %vm1702, %v1785, %v1796
      %v1799 = vshrl.u32 %v1633, 16
      %v1801 = vrot.slane %v1799, 7
      %v1802 = vshll.u32 %v1633, 16
      %v1804 = vor.u32 %v1801, %v1802
      %v1805 = vsel %vm1702, %v1793, %v1804
      %v1807 = vshrl.u32 %v1634, 16
      %v1809 = vrot.slane %v1807, 7
      %v1810 = vshll.u32 %v1634, 16
      %v1812 = vor.u32 %v1809, %v1810
      %v1813 = vsel %vm1702, %v1801, %v1812
      %v1815 = vshrl.u32 %v1635, 16
      %v1817 = vrot.slane %v1815, 7
      %v1818 = vshll.u32 %v1635, 16
      %v1820 = vor.u32 %v1817, %v1818
      %v1821 = vsel %vm1702, %v1809, %v1820
      %vm1837 = vcmask 1040384
      %vm1838 = vmand %vm1837, %vm1702
      %v1839 = vsel %vm1838, 0, %v1709
      %vm1840 = vcmp.ge.s32.totalorder %v1638, 16
      %vm1841 = vcmp.ge.s32.totalorder %v1639, 16
      %vm1842 = vcmp.ge.s32.totalorder %v1640, 16
      %vm1843 = vcmp.ge.s32.totalorder %v1641, 16
      %vm1844 = vcmp.ge.s32.totalorder %v1642, 16
      %vm1845 = vcmp.ge.s32.totalorder %v1643, 16
      %vm1846 = vcmp.ge.s32.totalorder %v1644, 16
      %vm1847 = vcmp.ge.s32.totalorder %v1645, 16
      %vm1848 = vcmp.ge.s32.totalorder %v1646, 16
      %vm1849 = vcmp.ge.s32.totalorder %v1647, 16
      %vm1850 = vcmp.ge.s32.totalorder %v1648, 16
      %vm1851 = vcmp.ge.s32.totalorder %v1649, 16
      %vm1852 = vcmp.ge.s32.totalorder %v1650, 16
      %vm1853 = vcmp.ge.s32.totalorder %v1651, 16
      %vm1854 = vcmp.ge.s32.totalorder %v1652, 16
      %vm1855 = vcmp.ge.s32.totalorder %v1653, 16
      %vm1856 = vcmp.ge.s32.totalorder %v1654, 16
      %vm1857 = vcmp.ge.s32.totalorder %v1655, 16
      %vm1858 = vcmp.ge.s32.totalorder %v1656, 16
      %vm1859 = vcmp.ge.s32.totalorder %v1657, 16
      %vm1860 = vcmp.ge.s32.totalorder %v1658, 16
      %vm1861 = vcmp.ge.s32.totalorder %v1659, 16
      %vm1862 = vcmp.ge.s32.totalorder %v1660, 16
      %vm1863 = vcmp.ge.s32.totalorder %v1661, 16
      %vm1864 = vcmp.ge.s32.totalorder %v1662, 16
      %vm1865 = vcmp.ge.s32.totalorder %v1663, 16
      %vm1866 = vcmp.ge.s32.totalorder %v1664, 16
      %vm1867 = vcmp.ge.s32.totalorder %v1665, 16
      %vm1868 = vcmp.ge.s32.totalorder %v1666, 16
      %vm1869 = vcmp.ge.s32.totalorder %v1667, 16
      %vm1870 = vcmp.ge.s32.totalorder %v1668, 16
      %vm1871 = vcmp.ge.s32.totalorder %v1669, 16
      %vm1872 = vcmp.gt.s32.totalorder %v1670, 0
      %vm1873 = vcmp.gt.s32.totalorder %v1671, 0
      %vm1874 = vcmp.gt.s32.totalorder %v1672, 0
      %vm1875 = vcmp.gt.s32.totalorder %v1673, 0
      %vm1876 = vcmp.gt.s32.totalorder %v1674, 0
      %vm1877 = vcmp.gt.s32.totalorder %v1675, 0
      %vm1878 = vcmp.gt.s32.totalorder %v1676, 0
      %vm1879 = vcmp.gt.s32.totalorder %v1677, 0
      %vm1880 = vcmp.gt.s32.totalorder %v1678, 0
      %vm1881 = vcmp.gt.s32.totalorder %v1679, 0
      %vm1882 = vcmp.gt.s32.totalorder %v1680, 0
      %vm1883 = vcmp.gt.s32.totalorder %v1681, 0
      %vm1884 = vcmp.gt.s32.totalorder %v1682, 0
      %vm1885 = vcmp.gt.s32.totalorder %v1683, 0
      %vm1886 = vcmp.gt.s32.totalorder %v1684, 0
      %vm1887 = vcmp.gt.s32.totalorder %v1685, 0
      %vm1888 = vcmp.gt.s32.totalorder %v1686, 0
      %vm1889 = vcmp.gt.s32.totalorder %v1687, 0
      %vm1890 = vcmp.gt.s32.totalorder %v1688, 0
      %vm1891 = vcmp.gt.s32.totalorder %v1689, 0
      %vm1892 = vcmp.gt.s32.totalorder %v1690, 0
      %vm1893 = vcmp.gt.s32.totalorder %v1691, 0
      %vm1894 = vcmp.gt.s32.totalorder %v1692, 0
      %vm1895 = vcmp.gt.s32.totalorder %v1693, 0
      %vm1896 = vcmp.gt.s32.totalorder %v1694, 0
      %vm1897 = vcmp.gt.s32.totalorder %v1695, 0
      %vm1898 = vcmp.gt.s32.totalorder %v1696, 0
      %vm1899 = vcmp.gt.s32.totalorder %v1697, 0
      %vm1900 = vcmp.gt.s32.totalorder %v1698, 0
      %vm1901 = vcmp.gt.s32.totalorder %v1699, 0
      %vm1902 = vcmp.gt.s32.totalorder %v1700, 0
      %vm1903 = vcmp.gt.s32.totalorder %v1701, 0
      %vm1904 = vmand %vm1842, %vm1874
      %vm1905 = vmand %vm1843, %vm1875
      %vm1906 = vmand %vm1844, %vm1876
      %vm1907 = vmand %vm1845, %vm1877
      %vm1908 = vmand %vm1846, %vm1878
      %vm1909 = vmand %vm1847, %vm1879
      %vm1910 = vmand %vm1848, %vm1880
      %vm1911 = vmand %vm1849, %vm1881
      %vm1912 = vmand %vm1850, %vm1882
      %vm1913 = vmand %vm1851, %vm1883
      %vm1914 = vmand %vm1852, %vm1884
      %vm1915 = vmand %vm1853, %vm1885
      %vm1916 = vmand %vm1854, %vm1886
      %vm1917 = vmand %vm1855, %vm1887
      %vm1918 = vmand %vm1856, %vm1888
      %vm1919 = vmand %vm1857, %vm1889
      %vm1920 = vmand %vm1858, %vm1890
      %vm1921 = vmand %vm1859, %vm1891
      %vm1922 = vmand %vm1860, %vm1892
      %vm1923 = vmand %vm1861, %vm1893
      %vm1924 = vmand %vm1862, %vm1894
      %vm1925 = vmand %vm1863, %vm1895
      %vm1926 = vmand %vm1864, %vm1896
      %vm1927 = vmand %vm1865, %vm1897
      %vm1928 = vmand %vm1866, %vm1898
      %vm1929 = vmand %vm1867, %vm1899
      %vm1930 = vmand %vm1868, %vm1900
      %vm1931 = vmand %vm1869, %vm1901
      %vm1932 = vmand %vm1870, %vm1902
      %vm1933 = vmand %vm1871, %vm1903
      %vm1934 = vmpackc.low %vm1904, %vm1904
      %vm1935 = vmpackc.low %vm1905, %vm1905
      %vm1936 = vmpackc.low %vm1906, %vm1906
      %vm1937 = vmpackc.low %vm1907, %vm1907
      %vm1938 = vmpackc.low %vm1908, %vm1908
      %vm1939 = vmpackc.low %vm1909, %vm1909
      %vm1940 = vmpackc.low %vm1910, %vm1910
      %vm1941 = vmpackc.low %vm1911, %vm1911
      %vm1942 = vmpackc.low %vm1912, %vm1912
      %vm1943 = vmpackc.low %vm1913, %vm1913
      %vm1944 = vmpackc.low %vm1914, %vm1914
      %vm1945 = vmpackc.low %vm1915, %vm1915
      %vm1946 = vmpackc.low %vm1916, %vm1916
      %vm1947 = vmpackc.low %vm1917, %vm1917
      %vm1948 = vmpackc.low %vm1918, %vm1918
      %vm1949 = vmpackc.low %vm1919, %vm1919
      %vm1950 = vmpackc.low %vm1920, %vm1920
      %vm1951 = vmpackc.low %vm1921, %vm1921
      %vm1952 = vmpackc.low %vm1922, %vm1922
      %vm1953 = vmpackc.low %vm1923, %vm1923
      %vm1954 = vmpackc.low %vm1924, %vm1924
      %vm1955 = vmpackc.low %vm1925, %vm1925
      %vm1956 = vmpackc.low %vm1926, %vm1926
      %vm1957 = vmpackc.low %vm1927, %vm1927
      %vm1958 = vmpackc.low %vm1928, %vm1928
      %vm1959 = vmpackc.low %vm1929, %vm1929
      %vm1960 = vmpackc.low %vm1930, %vm1930
      %vm1961 = vmpackc.low %vm1931, %vm1931
      %vm1962 = vmpackc.low %vm1932, %vm1932
      %vm1963 = vmpackc.low %vm1933, %vm1933
      %v1964 = vsel %vm1934, 65537, 0
      %v1965 = vsel %vm1935, 65537, 0
      %v1966 = vsel %vm1936, 65537, 0
      %v1967 = vsel %vm1937, 65537, 0
      %v1968 = vsel %vm1938, 65537, 0
      %v1969 = vsel %vm1939, 65537, 0
      %v1970 = vsel %vm1940, 65537, 0
      %v1971 = vsel %vm1941, 65537, 0
      %v1972 = vsel %vm1942, 65537, 0
      %v1973 = vsel %vm1943, 65537, 0
      %v1974 = vsel %vm1944, 65537, 0
      %v1975 = vsel %vm1945, 65537, 0
      %v1976 = vsel %vm1946, 65537, 0
      %v1977 = vsel %vm1947, 65537, 0
      %v1978 = vsel %vm1948, 65537, 0
      %v1979 = vsel %vm1949, 65537, 0
      %v1980 = vsel %vm1950, 65537, 0
      %v1981 = vsel %vm1951, 65537, 0
      %v1982 = vsel %vm1952, 65537, 0
      %v1983 = vsel %vm1953, 65537, 0
      %v1984 = vsel %vm1954, 65537, 0
      %v1985 = vsel %vm1955, 65537, 0
      %v1986 = vsel %vm1956, 65537, 0
      %v1987 = vsel %vm1957, 65537, 0
      %v1988 = vsel %vm1958, 65537, 0
      %v1989 = vsel %vm1959, 65537, 0
      %v1990 = vsel %vm1960, 65537, 0
      %v1991 = vsel %vm1961, 65537, 0
      %v1992 = vsel %vm1962, 65537, 0
      %v1993 = vsel %vm1963, 65537, 0
      %v1994 = vunpack.c.l.b16 %v1964
      %v1995 = vunpack.c.l.b16 %v1965
      %v1996 = vunpack.c.l.b16 %v1966
      %v1997 = vunpack.c.l.b16 %v1967
      %v1998 = vunpack.c.l.b16 %v1968
      %v1999 = vunpack.c.l.b16 %v1969
      %v2000 = vunpack.c.l.b16 %v1970
      %v2001 = vunpack.c.l.b16 %v1971
      %v2002 = vunpack.c.l.b16 %v1972
      %v2003 = vunpack.c.l.b16 %v1973
      %v2004 = vunpack.c.l.b16 %v1974
      %v2005 = vunpack.c.l.b16 %v1975
      %v2006 = vunpack.c.l.b16 %v1976
      %v2007 = vunpack.c.l.b16 %v1977
      %v2008 = vunpack.c.l.b16 %v1978
      %v2009 = vunpack.c.l.b16 %v1979
      %v2010 = vunpack.c.l.b16 %v1980
      %v2011 = vunpack.c.l.b16 %v1981
      %v2012 = vunpack.c.l.b16 %v1982
      %v2013 = vunpack.c.l.b16 %v1983
      %v2014 = vunpack.c.l.b16 %v1984
      %v2015 = vunpack.c.l.b16 %v1985
      %v2016 = vunpack.c.l.b16 %v1986
      %v2017 = vunpack.c.l.b16 %v1987
      %v2018 = vunpack.c.l.b16 %v1988
      %v2019 = vunpack.c.l.b16 %v1989
      %v2020 = vunpack.c.l.b16 %v1990
      %v2021 = vunpack.c.l.b16 %v1991
      %v2022 = vunpack.c.l.b16 %v1992
      %v2023 = vunpack.c.l.b16 %v1993
      %v2024 = vpack.c.b16 %v1995, %v1994
      %v2025 = vpack.c.b16 %v1997, %v1996
      %v2026 = vpack.c.b16 %v1999, %v1998
      %v2027 = vpack.c.b16 %v2001, %v2000
      %v2028 = vpack.c.b16 %v2003, %v2002
      %v2029 = vpack.c.b16 %v2005, %v2004
      %v2030 = vpack.c.b16 %v2007, %v2006
      %v2031 = vpack.c.b16 %v2009, %v2008
      %v2032 = vpack.c.b16 %v2011, %v2010
      %v2033 = vpack.c.b16 %v2013, %v2012
      %v2034 = vpack.c.b16 %v2015, %v2014
      %v2035 = vpack.c.b16 %v2017, %v2016
      %v2036 = vpack.c.b16 %v2019, %v2018
      %v2037 = vpack.c.b16 %v2021, %v2020
      %v2038 = vpack.c.b16 %v2023, %v2022
      %vm2039 = vcmp.ne.s16.totalorder %v2024, 0
      %vm2040 = vcmp.ne.s16.totalorder %v2025, 0
      %vm2041 = vcmp.ne.s16.totalorder %v2026, 0
      %vm2042 = vcmp.ne.s16.totalorder %v2027, 0
      %vm2043 = vcmp.ne.s16.totalorder %v2028, 0
      %vm2044 = vcmp.ne.s16.totalorder %v2029, 0
      %vm2045 = vcmp.ne.s16.totalorder %v2030, 0
      %vm2046 = vcmp.ne.s16.totalorder %v2031, 0
      %vm2047 = vcmp.ne.s16.totalorder %v2032, 0
      %vm2048 = vcmp.ne.s16.totalorder %v2033, 0
      %vm2049 = vcmp.ne.s16.totalorder %v2034, 0
      %vm2050 = vcmp.ne.s16.totalorder %v2035, 0
      %vm2051 = vcmp.ne.s16.totalorder %v2036, 0
      %vm2052 = vcmp.ne.s16.totalorder %v2037, 0
      %vm2053 = vcmp.ne.s16.totalorder %v2038, 0
      %v2054 = vsel %vm2039, %v1839, 0
      %v2055 = vsel %vm2040, %v1717, 0
      %v2056 = vsel %vm2041, %v1725, 0
      %v2057 = vsel %vm2042, %v1733, 0
      %v2058 = vsel %vm2043, %v1741, 0
      %v2059 = vsel %vm2044, %v1749, 0
      %v2060 = vsel %vm2045, %v1757, 0
      %v2061 = vsel %vm2046, %v1765, 0
      %v2062 = vsel %vm2047, %v1773, 0
      %v2063 = vsel %vm2048, %v1781, 0
      %v2064 = vsel %vm2049, %v1789, 0
      %v2065 = vsel %vm2050, %v1797, 0
      %v2066 = vsel %vm2051, %v1805, 0
      %v2067 = vsel %vm2052, %v1813, 0
      %v2068 = vsel %vm2053, %v1821, 0
      %vm2069 = vmpackc.low %vm1842, %vm1842
      %vm2070 = vmpackc.low %vm1843, %vm1843
      %vm2071 = vmpackc.low %vm1844, %vm1844
      %vm2072 = vmpackc.low %vm1845, %vm1845
      %vm2073 = vmpackc.low %vm1846, %vm1846
      %vm2074 = vmpackc.low %vm1847, %vm1847
      %vm2075 = vmpackc.low %vm1848, %vm1848
      %vm2076 = vmpackc.low %vm1849, %vm1849
      %vm2077 = vmpackc.low %vm1850, %vm1850
      %vm2078 = vmpackc.low %vm1851, %vm1851
      %vm2079 = vmpackc.low %vm1852, %vm1852
      %vm2080 = vmpackc.low %vm1853, %vm1853
      %vm2081 = vmpackc.low %vm1854, %vm1854
      %vm2082 = vmpackc.low %vm1855, %vm1855
      %vm2083 = vmpackc.low %vm1856, %vm1856
      %vm2084 = vmpackc.low %vm1857, %vm1857
      %vm2085 = vmpackc.low %vm1858, %vm1858
      %vm2086 = vmpackc.low %vm1859, %vm1859
      %vm2087 = vmpackc.low %vm1860, %vm1860
      %vm2088 = vmpackc.low %vm1861, %vm1861
      %vm2089 = vmpackc.low %vm1862, %vm1862
      %vm2090 = vmpackc.low %vm1863, %vm1863
      %vm2091 = vmpackc.low %vm1864, %vm1864
      %vm2092 = vmpackc.low %vm1865, %vm1865
      %vm2093 = vmpackc.low %vm1866, %vm1866
      %vm2094 = vmpackc.low %vm1867, %vm1867
      %vm2095 = vmpackc.low %vm1868, %vm1868
      %vm2096 = vmpackc.low %vm1869, %vm1869
      %vm2097 = vmpackc.low %vm1870, %vm1870
      %vm2098 = vmpackc.low %vm1871, %vm1871
      %v2099 = vsel %vm2069, 65537, 0
      %v2100 = vsel %vm2070, 65537, 0
      %v2101 = vsel %vm2071, 65537, 0
      %v2102 = vsel %vm2072, 65537, 0
      %v2103 = vsel %vm2073, 65537, 0
      %v2104 = vsel %vm2074, 65537, 0
      %v2105 = vsel %vm2075, 65537, 0
      %v2106 = vsel %vm2076, 65537, 0
      %v2107 = vsel %vm2077, 65537, 0
      %v2108 = vsel %vm2078, 65537, 0
      %v2109 = vsel %vm2079, 65537, 0
      %v2110 = vsel %vm2080, 65537, 0
      %v2111 = vsel %vm2081, 65537, 0
      %v2112 = vsel %vm2082, 65537, 0
      %v2113 = vsel %vm2083, 65537, 0
      %v2114 = vsel %vm2084, 65537, 0
      %v2115 = vsel %vm2085, 65537, 0
      %v2116 = vsel %vm2086, 65537, 0
      %v2117 = vsel %vm2087, 65537, 0
      %v2118 = vsel %vm2088, 65537, 0
      %v2119 = vsel %vm2089, 65537, 0
      %v2120 = vsel %vm2090, 65537, 0
      %v2121 = vsel %vm2091, 65537, 0
      %v2122 = vsel %vm2092, 65537, 0
      %v2123 = vsel %vm2093, 65537, 0
      %v2124 = vsel %vm2094, 65537, 0
      %v2125 = vsel %vm2095, 65537, 0
      %v2126 = vsel %vm2096, 65537, 0
      %v2127 = vsel %vm2097, 65537, 0
      %v2128 = vsel %vm2098, 65537, 0
      %v2129 = vunpack.c.l.b16 %v2099
      %v2130 = vunpack.c.l.b16 %v2100
      %v2131 = vunpack.c.l.b16 %v2101
      %v2132 = vunpack.c.l.b16 %v2102
      %v2133 = vunpack.c.l.b16 %v2103
      %v2134 = vunpack.c.l.b16 %v2104
      %v2135 = vunpack.c.l.b16 %v2105
      %v2136 = vunpack.c.l.b16 %v2106
      %v2137 = vunpack.c.l.b16 %v2107
      %v2138 = vunpack.c.l.b16 %v2108
      %v2139 = vunpack.c.l.b16 %v2109
      %v2140 = vunpack.c.l.b16 %v2110
      %v2141 = vunpack.c.l.b16 %v2111
      %v2142 = vunpack.c.l.b16 %v2112
      %v2143 = vunpack.c.l.b16 %v2113
      %v2144 = vunpack.c.l.b16 %v2114
      %v2145 = vunpack.c.l.b16 %v2115
      %v2146 = vunpack.c.l.b16 %v2116
      %v2147 = vunpack.c.l.b16 %v2117
      %v2148 = vunpack.c.l.b16 %v2118
      %v2149 = vunpack.c.l.b16 %v2119
      %v2150 = vunpack.c.l.b16 %v2120
      %v2151 = vunpack.c.l.b16 %v2121
      %v2152 = vunpack.c.l.b16 %v2122
      %v2153 = vunpack.c.l.b16 %v2123
      %v2154 = vunpack.c.l.b16 %v2124
      %v2155 = vunpack.c.l.b16 %v2125
      %v2156 = vunpack.c.l.b16 %v2126
      %v2157 = vunpack.c.l.b16 %v2127
      %v2158 = vunpack.c.l.b16 %v2128
      %v2159 = vpack.c.b16 %v2130, %v2129
      %v2160 = vpack.c.b16 %v2132, %v2131
      %v2161 = vpack.c.b16 %v2134, %v2133
      %v2162 = vpack.c.b16 %v2136, %v2135
      %v2163 = vpack.c.b16 %v2138, %v2137
      %v2164 = vpack.c.b16 %v2140, %v2139
      %v2165 = vpack.c.b16 %v2142, %v2141
      %v2166 = vpack.c.b16 %v2144, %v2143
      %v2167 = vpack.c.b16 %v2146, %v2145
      %v2168 = vpack.c.b16 %v2148, %v2147
      %v2169 = vpack.c.b16 %v2150, %v2149
      %v2170 = vpack.c.b16 %v2152, %v2151
      %v2171 = vpack.c.b16 %v2154, %v2153
      %v2172 = vpack.c.b16 %v2156, %v2155
      %v2173 = vpack.c.b16 %v2158, %v2157
      %vm2174 = vcmp.ne.s16.totalorder %v2159, 0
      %vm2175 = vcmp.ne.s16.totalorder %v2160, 0
      %vm2176 = vcmp.ne.s16.totalorder %v2161, 0
      %vm2177 = vcmp.ne.s16.totalorder %v2162, 0
      %vm2178 = vcmp.ne.s16.totalorder %v2163, 0
      %vm2179 = vcmp.ne.s16.totalorder %v2164, 0
      %vm2180 = vcmp.ne.s16.totalorder %v2165, 0
      %vm2181 = vcmp.ne.s16.totalorder %v2166, 0
      %vm2182 = vcmp.ne.s16.totalorder %v2167, 0
      %vm2183 = vcmp.ne.s16.totalorder %v2168, 0
      %vm2184 = vcmp.ne.s16.totalorder %v2169, 0
      %vm2185 = vcmp.ne.s16.totalorder %v2170, 0
      %vm2186 = vcmp.ne.s16.totalorder %v2171, 0
      %vm2187 = vcmp.ne.s16.totalorder %v2172, 0
      %vm2188 = vcmp.ne.s16.totalorder %v2173, 0
      %v2189 = vsel %vm2174, %v1621, 0
      %v2190 = vsel %vm2175, %v1622, 0
      %v2191 = vsel %vm2176, %v1623, 0
      %v2192 = vsel %vm2177, %v1624, 0
      %v2193 = vsel %vm2178, %v1625, 0
      %v2194 = vsel %vm2179, %v1626, 0
      %v2195 = vsel %vm2180, %v1627, 0
      %v2196 = vsel %vm2181, %v1628, 0
      %v2197 = vsel %vm2182, %v1629, 0
      %v2198 = vsel %vm2183, %v1630, 0
      %v2199 = vsel %vm2184, %v1631, 0
      %v2200 = vsel %vm2185, %v1632, 0
      %v2201 = vsel %vm2186, %v1633, 0
      %v2202 = vsel %vm2187, %v1634, 0
      %v2203 = vsel %vm2188, %v1635, 0
      %vm2204 = vsmask.f32 7424
      %v2205 = vrot.slane %v1707, 1
      %v2206 = vor.u32 %v1704, %v2205
      %v2207 = vrot.slane %v1714, 1
      %v2208 = vsel %vm2204, %v2206, %v2207
      %v2209 = vor.u32 %v1711, %v2207
      %v2210 = vrot.slane %v1722, 1
      %v2211 = vsel %vm2204, %v2209, %v2210
      %v2212 = vor.u32 %v1719, %v2210
      %v2213 = vrot.slane %v1730, 1
      %v2214 = vsel %vm2204, %v2212, %v2213
      %v2215 = vor.u32 %v1727, %v2213
      %v2216 = vrot.slane %v1738, 1
      %v2217 = vsel %vm2204, %v2215, %v2216
      %v2218 = vor.u32 %v1735, %v2216
      %v2219 = vrot.slane %v1746, 1
      %v2220 = vsel %vm2204, %v2218, %v2219
      %v2221 = vor.u32 %v1743, %v2219
      %v2222 = vrot.slane %v1754, 1
      %v2223 = vsel %vm2204, %v2221, %v2222
      %v2224 = vor.u32 %v1751, %v2222
      %v2225 = vrot.slane %v1762, 1
      %v2226 = vsel %vm2204, %v2224, %v2225
      %v2227 = vor.u32 %v1759, %v2225
      %v2228 = vrot.slane %v1770, 1
      %v2229 = vsel %vm2204, %v2227, %v2228
      %v2230 = vor.u32 %v1767, %v2228
      %v2231 = vrot.slane %v1778, 1
      %v2232 = vsel %vm2204, %v2230, %v2231
      %v2233 = vor.u32 %v1775, %v2231
      %v2234 = vrot.slane %v1786, 1
      %v2235 = vsel %vm2204, %v2233, %v2234
      %v2236 = vor.u32 %v1783, %v2234
      %v2237 = vrot.slane %v1794, 1
      %v2238 = vsel %vm2204, %v2236, %v2237
      %v2239 = vor.u32 %v1791, %v2237
      %v2240 = vrot.slane %v1802, 1
      %v2241 = vsel %vm2204, %v2239, %v2240
      %v2242 = vor.u32 %v1799, %v2240
      %v2243 = vrot.slane %v1810, 1
      %v2244 = vsel %vm2204, %v2242, %v2243
      %v2245 = vor.u32 %v1807, %v2243
      %v2246 = vrot.slane %v1818, 1
      %v2247 = vsel %vm2204, %v2245, %v2246
      %v2248 = vor.u32 %v1815, %v2246
      %v2250 = vshll.u32 %v1636, 16
      %v2252 = vrot.slane %v2250, 1
      %v2253 = vsel %vm2204, %v2248, %v2252
      %vm2270 = vcmask 1047552
      %vm2271 = vmand %vm2270, %vm2204
      %v2272 = vsel %vm2271, 0, %v2205
      %vm2273 = vcmp.lt.s32.totalorder %v1670, 15
      %vm2274 = vcmp.lt.s32.totalorder %v1671, 15
      %vm2275 = vcmp.lt.s32.totalorder %v1672, 15
      %vm2276 = vcmp.lt.s32.totalorder %v1673, 15
      %vm2277 = vcmp.lt.s32.totalorder %v1674, 15
      %vm2278 = vcmp.lt.s32.totalorder %v1675, 15
      %vm2279 = vcmp.lt.s32.totalorder %v1676, 15
      %vm2280 = vcmp.lt.s32.totalorder %v1677, 15
      %vm2281 = vcmp.lt.s32.totalorder %v1678, 15
      %vm2282 = vcmp.lt.s32.totalorder %v1679, 15
      %vm2283 = vcmp.lt.s32.totalorder %v1680, 15
      %vm2284 = vcmp.lt.s32.totalorder %v1681, 15
      %vm2285 = vcmp.lt.s32.totalorder %v1682, 15
      %vm2286 = vcmp.lt.s32.totalorder %v1683, 15
      %vm2287 = vcmp.lt.s32.totalorder %v1684, 15
      %vm2288 = vcmp.lt.s32.totalorder %v1685, 15
      %vm2289 = vcmp.lt.s32.totalorder %v1686, 15
      %vm2290 = vcmp.lt.s32.totalorder %v1687, 15
      %vm2291 = vcmp.lt.s32.totalorder %v1688, 15
      %vm2292 = vcmp.lt.s32.totalorder %v1689, 15
      %vm2293 = vcmp.lt.s32.totalorder %v1690, 15
      %vm2294 = vcmp.lt.s32.totalorder %v1691, 15
      %vm2295 = vcmp.lt.s32.totalorder %v1692, 15
      %vm2296 = vcmp.lt.s32.totalorder %v1693, 15
      %vm2297 = vcmp.lt.s32.totalorder %v1694, 15
      %vm2298 = vcmp.lt.s32.totalorder %v1695, 15
      %vm2299 = vcmp.lt.s32.totalorder %v1696, 15
      %vm2300 = vcmp.lt.s32.totalorder %v1697, 15
      %vm2301 = vcmp.lt.s32.totalorder %v1698, 15
      %vm2302 = vcmp.lt.s32.totalorder %v1699, 15
      %vm2303 = vcmp.lt.s32.totalorder %v1700, 15
      %vm2304 = vcmp.lt.s32.totalorder %v1701, 15
      %vm2305 = vmand %vm1840, %vm2273
      %vm2306 = vmand %vm1841, %vm2274
      %vm2307 = vmand %vm1842, %vm2275
      %vm2308 = vmand %vm1843, %vm2276
      %vm2309 = vmand %vm1844, %vm2277
      %vm2310 = vmand %vm1845, %vm2278
      %vm2311 = vmand %vm1846, %vm2279
      %vm2312 = vmand %vm1847, %vm2280
      %vm2313 = vmand %vm1848, %vm2281
      %vm2314 = vmand %vm1849, %vm2282
      %vm2315 = vmand %vm1850, %vm2283
      %vm2316 = vmand %vm1851, %vm2284
      %vm2317 = vmand %vm1852, %vm2285
      %vm2318 = vmand %vm1853, %vm2286
      %vm2319 = vmand %vm1854, %vm2287
      %vm2320 = vmand %vm1855, %vm2288
      %vm2321 = vmand %vm1856, %vm2289
      %vm2322 = vmand %vm1857, %vm2290
      %vm2323 = vmand %vm1858, %vm2291
      %vm2324 = vmand %vm1859, %vm2292
      %vm2325 = vmand %vm1860, %vm2293
      %vm2326 = vmand %vm1861, %vm2294
      %vm2327 = vmand %vm1862, %vm2295
      %vm2328 = vmand %vm1863, %vm2296
      %vm2329 = vmand %vm1864, %vm2297
      %vm2330 = vmand %vm1865, %vm2298
      %vm2331 = vmand %vm1866, %vm2299
      %vm2332 = vmand %vm1867, %vm2300
      %vm2333 = vmand %vm1868, %vm2301
      %vm2334 = vmand %vm1869, %vm2302
      %vm2335 = vmand %vm1870, %vm2303
      %vm2336 = vmand %vm1871, %vm2304
      %vm2337 = vmpackc.low %vm2305, %vm2305
      %vm2338 = vmpackc.low %vm2306, %vm2306
      %vm2339 = vmpackc.low %vm2307, %vm2307
      %vm2340 = vmpackc.low %vm2308, %vm2308
      %vm2341 = vmpackc.low %vm2309, %vm2309
      %vm2342 = vmpackc.low %vm2310, %vm2310
      %vm2343 = vmpackc.low %vm2311, %vm2311
      %vm2344 = vmpackc.low %vm2312, %vm2312
      %vm2345 = vmpackc.low %vm2313, %vm2313
      %vm2346 = vmpackc.low %vm2314, %vm2314
      %vm2347 = vmpackc.low %vm2315, %vm2315
      %vm2348 = vmpackc.low %vm2316, %vm2316
      %vm2349 = vmpackc.low %vm2317, %vm2317
      %vm2350 = vmpackc.low %vm2318, %vm2318
      %vm2351 = vmpackc.low %vm2319, %vm2319
      %vm2352 = vmpackc.low %vm2320, %vm2320
      %vm2353 = vmpackc.low %vm2321, %vm2321
      %vm2354 = vmpackc.low %vm2322, %vm2322
      %vm2355 = vmpackc.low %vm2323, %vm2323
      %vm2356 = vmpackc.low %vm2324, %vm2324
      %vm2357 = vmpackc.low %vm2325, %vm2325
      %vm2358 = vmpackc.low %vm2326, %vm2326
      %vm2359 = vmpackc.low %vm2327, %vm2327
      %vm2360 = vmpackc.low %vm2328, %vm2328
      %vm2361 = vmpackc.low %vm2329, %vm2329
      %vm2362 = vmpackc.low %vm2330, %vm2330
      %vm2363 = vmpackc.low %vm2331, %vm2331
      %vm2364 = vmpackc.low %vm2332, %vm2332
      %vm2365 = vmpackc.low %vm2333, %vm2333
      %vm2366 = vmpackc.low %vm2334, %vm2334
      %vm2367 = vmpackc.low %vm2335, %vm2335
      %vm2368 = vmpackc.low %vm2336, %vm2336
      %v2369 = vsel %vm2337, 65537, 0
      %v2370 = vsel %vm2338, 65537, 0
      %v2371 = vsel %vm2339, 65537, 0
      %v2372 = vsel %vm2340, 65537, 0
      %v2373 = vsel %vm2341, 65537, 0
      %v2374 = vsel %vm2342, 65537, 0
      %v2375 = vsel %vm2343, 65537, 0
      %v2376 = vsel %vm2344, 65537, 0
      %v2377 = vsel %vm2345, 65537, 0
      %v2378 = vsel %vm2346, 65537, 0
      %v2379 = vsel %vm2347, 65537, 0
      %v2380 = vsel %vm2348, 65537, 0
      %v2381 = vsel %vm2349, 65537, 0
      %v2382 = vsel %vm2350, 65537, 0
      %v2383 = vsel %vm2351, 65537, 0
      %v2384 = vsel %vm2352, 65537, 0
      %v2385 = vsel %vm2353, 65537, 0
      %v2386 = vsel %vm2354, 65537, 0
      %v2387 = vsel %vm2355, 65537, 0
      %v2388 = vsel %vm2356, 65537, 0
      %v2389 = vsel %vm2357, 65537, 0
      %v2390 = vsel %vm2358, 65537, 0
      %v2391 = vsel %vm2359, 65537, 0
      %v2392 = vsel %vm2360, 65537, 0
      %v2393 = vsel %vm2361, 65537, 0
      %v2394 = vsel %vm2362, 65537, 0
      %v2395 = vsel %vm2363, 65537, 0
      %v2396 = vsel %vm2364, 65537, 0
      %v2397 = vsel %vm2365, 65537, 0
      %v2398 = vsel %vm2366, 65537, 0
      %v2399 = vsel %vm2367, 65537, 0
      %v2400 = vsel %vm2368, 65537, 0
      %v2401 = vunpack.c.l.b16 %v2369
      %v2402 = vunpack.c.l.b16 %v2370
      %v2403 = vunpack.c.l.b16 %v2371
      %v2404 = vunpack.c.l.b16 %v2372
      %v2405 = vunpack.c.l.b16 %v2373
      %v2406 = vunpack.c.l.b16 %v2374
      %v2407 = vunpack.c.l.b16 %v2375
      %v2408 = vunpack.c.l.b16 %v2376
      %v2409 = vunpack.c.l.b16 %v2377
      %v2410 = vunpack.c.l.b16 %v2378
      %v2411 = vunpack.c.l.b16 %v2379
      %v2412 = vunpack.c.l.b16 %v2380
      %v2413 = vunpack.c.l.b16 %v2381
      %v2414 = vunpack.c.l.b16 %v2382
      %v2415 = vunpack.c.l.b16 %v2383
      %v2416 = vunpack.c.l.b16 %v2384
      %v2417 = vunpack.c.l.b16 %v2385
      %v2418 = vunpack.c.l.b16 %v2386
      %v2419 = vunpack.c.l.b16 %v2387
      %v2420 = vunpack.c.l.b16 %v2388
      %v2421 = vunpack.c.l.b16 %v2389
      %v2422 = vunpack.c.l.b16 %v2390
      %v2423 = vunpack.c.l.b16 %v2391
      %v2424 = vunpack.c.l.b16 %v2392
      %v2425 = vunpack.c.l.b16 %v2393
      %v2426 = vunpack.c.l.b16 %v2394
      %v2427 = vunpack.c.l.b16 %v2395
      %v2428 = vunpack.c.l.b16 %v2396
      %v2429 = vunpack.c.l.b16 %v2397
      %v2430 = vunpack.c.l.b16 %v2398
      %v2431 = vunpack.c.l.b16 %v2399
      %v2432 = vunpack.c.l.b16 %v2400
      %v2433 = vpack.c.b16 %v2402, %v2401
      %v2434 = vpack.c.b16 %v2404, %v2403
      %v2435 = vpack.c.b16 %v2406, %v2405
      %v2436 = vpack.c.b16 %v2408, %v2407
      %v2437 = vpack.c.b16 %v2410, %v2409
      %v2438 = vpack.c.b16 %v2412, %v2411
      %v2439 = vpack.c.b16 %v2414, %v2413
      %v2440 = vpack.c.b16 %v2416, %v2415
      %v2441 = vpack.c.b16 %v2418, %v2417
      %v2442 = vpack.c.b16 %v2420, %v2419
      %v2443 = vpack.c.b16 %v2422, %v2421
      %v2444 = vpack.c.b16 %v2424, %v2423
      %v2445 = vpack.c.b16 %v2426, %v2425
      %v2446 = vpack.c.b16 %v2428, %v2427
      %v2447 = vpack.c.b16 %v2430, %v2429
      %v2448 = vpack.c.b16 %v2432, %v2431
      %vm2449 = vcmp.ne.s16.totalorder %v2433, 0
      %vm2450 = vcmp.ne.s16.totalorder %v2434, 0
      %vm2451 = vcmp.ne.s16.totalorder %v2435, 0
      %vm2452 = vcmp.ne.s16.totalorder %v2436, 0
      %vm2453 = vcmp.ne.s16.totalorder %v2437, 0
      %vm2454 = vcmp.ne.s16.totalorder %v2438, 0
      %vm2455 = vcmp.ne.s16.totalorder %v2439, 0
      %vm2456 = vcmp.ne.s16.totalorder %v2440, 0
      %vm2457 = vcmp.ne.s16.totalorder %v2441, 0
      %vm2458 = vcmp.ne.s16.totalorder %v2442, 0
      %vm2459 = vcmp.ne.s16.totalorder %v2443, 0
      %vm2460 = vcmp.ne.s16.totalorder %v2444, 0
      %vm2461 = vcmp.ne.s16.totalorder %v2445, 0
      %vm2462 = vcmp.ne.s16.totalorder %v2446, 0
      %vm2463 = vcmp.ne.s16.totalorder %v2447, 0
      %vm2464 = vcmp.ne.s16.totalorder %v2448, 0
      %v2465 = vsel %vm2449, %v2272, 0
      %v2466 = vsel %vm2450, %v2208, 0
      %v2467 = vsel %vm2451, %v2211, 0
      %v2468 = vsel %vm2452, %v2214, 0
      %v2469 = vsel %vm2453, %v2217, 0
      %v2470 = vsel %vm2454, %v2220, 0
      %v2471 = vsel %vm2455, %v2223, 0
      %v2472 = vsel %vm2456, %v2226, 0
      %v2473 = vsel %vm2457, %v2229, 0
      %v2474 = vsel %vm2458, %v2232, 0
      %v2475 = vsel %vm2459, %v2235, 0
      %v2476 = vsel %vm2460, %v2238, 0
      %v2477 = vsel %vm2461, %v2241, 0
      %v2478 = vsel %vm2462, %v2244, 0
      %v2479 = vsel %vm2463, %v2247, 0
      %v2480 = vsel %vm2464, %v2253, 0
      %v2481 = vshrl.u32 %v1636, 16
      %v2483 = vrot.slane %v2481, 7
      %v2484 = vor.u32 %v2483, %v2250
      %v2485 = vsel %vm1702, %v1817, %v2484
      %vm2487 = vmpackc.low %vm1872, %vm1872
      %vm2488 = vmpackc.low %vm1873, %vm1873
      %vm2489 = vmpackc.low %vm1874, %vm1874
      %vm2490 = vmpackc.low %vm1875, %vm1875
      %vm2491 = vmpackc.low %vm1876, %vm1876
      %vm2492 = vmpackc.low %vm1877, %vm1877
      %vm2493 = vmpackc.low %vm1878, %vm1878
      %vm2494 = vmpackc.low %vm1879, %vm1879
      %vm2495 = vmpackc.low %vm1880, %vm1880
      %vm2496 = vmpackc.low %vm1881, %vm1881
      %vm2497 = vmpackc.low %vm1882, %vm1882
      %vm2498 = vmpackc.low %vm1883, %vm1883
      %vm2499 = vmpackc.low %vm1884, %vm1884
      %vm2500 = vmpackc.low %vm1885, %vm1885
      %vm2501 = vmpackc.low %vm1886, %vm1886
      %vm2502 = vmpackc.low %vm1887, %vm1887
      %vm2503 = vmpackc.low %vm1888, %vm1888
      %vm2504 = vmpackc.low %vm1889, %vm1889
      %vm2505 = vmpackc.low %vm1890, %vm1890
      %vm2506 = vmpackc.low %vm1891, %vm1891
      %vm2507 = vmpackc.low %vm1892, %vm1892
      %vm2508 = vmpackc.low %vm1893, %vm1893
      %vm2509 = vmpackc.low %vm1894, %vm1894
      %vm2510 = vmpackc.low %vm1895, %vm1895
      %vm2511 = vmpackc.low %vm1896, %vm1896
      %vm2512 = vmpackc.low %vm1897, %vm1897
      %vm2513 = vmpackc.low %vm1898, %vm1898
      %vm2514 = vmpackc.low %vm1899, %vm1899
      %vm2515 = vmpackc.low %vm1900, %vm1900
      %vm2516 = vmpackc.low %vm1901, %vm1901
      %vm2517 = vmpackc.low %vm1902, %vm1902
      %vm2518 = vmpackc.low %vm1903, %vm1903
      %v2519 = vsel %vm2487, 65537, 0
      %v2520 = vsel %vm2488, 65537, 0
      %v2521 = vsel %vm2489, 65537, 0
      %v2522 = vsel %vm2490, 65537, 0
      %v2523 = vsel %vm2491, 65537, 0
      %v2524 = vsel %vm2492, 65537, 0
      %v2525 = vsel %vm2493, 65537, 0
      %v2526 = vsel %vm2494, 65537, 0
      %v2527 = vsel %vm2495, 65537, 0
      %v2528 = vsel %vm2496, 65537, 0
      %v2529 = vsel %vm2497, 65537, 0
      %v2530 = vsel %vm2498, 65537, 0
      %v2531 = vsel %vm2499, 65537, 0
      %v2532 = vsel %vm2500, 65537, 0
      %v2533 = vsel %vm2501, 65537, 0
      %v2534 = vsel %vm2502, 65537, 0
      %v2535 = vsel %vm2503, 65537, 0
      %v2536 = vsel %vm2504, 65537, 0
      %v2537 = vsel %vm2505, 65537, 0
      %v2538 = vsel %vm2506, 65537, 0
      %v2539 = vsel %vm2507, 65537, 0
      %v2540 = vsel %vm2508, 65537, 0
      %v2541 = vsel %vm2509, 65537, 0
      %v2542 = vsel %vm2510, 65537, 0
      %v2543 = vsel %vm2511, 65537, 0
      %v2544 = vsel %vm2512, 65537, 0
      %v2545 = vsel %vm2513, 65537, 0
      %v2546 = vsel %vm2514, 65537, 0
      %v2547 = vsel %vm2515, 65537, 0
      %v2548 = vsel %vm2516, 65537, 0
      %v2549 = vsel %vm2517, 65537, 0
      %v2550 = vsel %vm2518, 65537, 0
      %v2551 = vunpack.c.l.b16 %v2519
      %v2552 = vunpack.c.l.b16 %v2520
      %v2553 = vunpack.c.l.b16 %v2521
      %v2554 = vunpack.c.l.b16 %v2522
      %v2555 = vunpack.c.l.b16 %v2523
      %v2556 = vunpack.c.l.b16 %v2524
      %v2557 = vunpack.c.l.b16 %v2525
      %v2558 = vunpack.c.l.b16 %v2526
      %v2559 = vunpack.c.l.b16 %v2527
      %v2560 = vunpack.c.l.b16 %v2528
      %v2561 = vunpack.c.l.b16 %v2529
      %v2562 = vunpack.c.l.b16 %v2530
      %v2563 = vunpack.c.l.b16 %v2531
      %v2564 = vunpack.c.l.b16 %v2532
      %v2565 = vunpack.c.l.b16 %v2533
      %v2566 = vunpack.c.l.b16 %v2534
      %v2567 = vunpack.c.l.b16 %v2535
      %v2568 = vunpack.c.l.b16 %v2536
      %v2569 = vunpack.c.l.b16 %v2537
      %v2570 = vunpack.c.l.b16 %v2538
      %v2571 = vunpack.c.l.b16 %v2539
      %v2572 = vunpack.c.l.b16 %v2540
      %v2573 = vunpack.c.l.b16 %v2541
      %v2574 = vunpack.c.l.b16 %v2542
      %v2575 = vunpack.c.l.b16 %v2543
      %v2576 = vunpack.c.l.b16 %v2544
      %v2577 = vunpack.c.l.b16 %v2545
      %v2578 = vunpack.c.l.b16 %v2546
      %v2579 = vunpack.c.l.b16 %v2547
      %v2580 = vunpack.c.l.b16 %v2548
      %v2581 = vunpack.c.l.b16 %v2549
      %v2582 = vunpack.c.l.b16 %v2550
      %v2583 = vpack.c.b16 %v2552, %v2551
      %v2584 = vpack.c.b16 %v2554, %v2553
      %v2585 = vpack.c.b16 %v2556, %v2555
      %v2586 = vpack.c.b16 %v2558, %v2557
      %v2587 = vpack.c.b16 %v2560, %v2559
      %v2588 = vpack.c.b16 %v2562, %v2561
      %v2589 = vpack.c.b16 %v2564, %v2563
      %v2590 = vpack.c.b16 %v2566, %v2565
      %v2591 = vpack.c.b16 %v2568, %v2567
      %v2592 = vpack.c.b16 %v2570, %v2569
      %v2593 = vpack.c.b16 %v2572, %v2571
      %v2594 = vpack.c.b16 %v2574, %v2573
      %v2595 = vpack.c.b16 %v2576, %v2575
      %v2596 = vpack.c.b16 %v2578, %v2577
      %v2597 = vpack.c.b16 %v2580, %v2579
      %v2598 = vpack.c.b16 %v2582, %v2581
      %vm2599 = vcmp.ne.s16.totalorder %v2583, 0
      %vm2600 = vcmp.ne.s16.totalorder %v2584, 0
      %vm2601 = vcmp.ne.s16.totalorder %v2585, 0
      %vm2602 = vcmp.ne.s16.totalorder %v2586, 0
      %vm2603 = vcmp.ne.s16.totalorder %v2587, 0
      %vm2604 = vcmp.ne.s16.totalorder %v2588, 0
      %vm2605 = vcmp.ne.s16.totalorder %v2589, 0
      %vm2606 = vcmp.ne.s16.totalorder %v2590, 0
      %vm2607 = vcmp.ne.s16.totalorder %v2591, 0
      %vm2608 = vcmp.ne.s16.totalorder %v2592, 0
      %vm2609 = vcmp.ne.s16.totalorder %v2593, 0
      %vm2610 = vcmp.ne.s16.totalorder %v2594, 0
      %vm2611 = vcmp.ne.s16.totalorder %v2595, 0
      %vm2612 = vcmp.ne.s16.totalorder %v2596, 0
      %vm2613 = vcmp.ne.s16.totalorder %v2597, 0
      %vm2614 = vcmp.ne.s16.totalorder %v2598, 0
      %v2615 = vsel %vm2599, %v1839, 0
      %v2616 = vsel %vm2600, %v1717, 0
      %v2617 = vsel %vm2601, %v1725, 0
      %v2618 = vsel %vm2602, %v1733, 0
      %v2619 = vsel %vm2603, %v1741, 0
      %v2620 = vsel %vm2604, %v1749, 0
      %v2621 = vsel %vm2605, %v1757, 0
      %v2622 = vsel %vm2606, %v1765, 0
      %v2623 = vsel %vm2607, %v1773, 0
      %v2624 = vsel %vm2608, %v1781, 0
      %v2625 = vsel %vm2609, %v1789, 0
      %v2626 = vsel %vm2610, %v1797, 0
      %v2627 = vsel %vm2611, %v1805, 0
      %v2628 = vsel %vm2612, %v1813, 0
      %v2629 = vsel %vm2613, %v1821, 0
      %v2630 = vsel %vm2614, %v2485, 0
      %v2631 = vor.u32 %v2481, %v2252
      %v2633 = vsel %vm2271, %v2631, 0
      %vm2634 = vmpackc.low %vm2273, %vm2273
      %vm2635 = vmpackc.low %vm2274, %vm2274
      %vm2636 = vmpackc.low %vm2275, %vm2275
      %vm2637 = vmpackc.low %vm2276, %vm2276
      %vm2638 = vmpackc.low %vm2277, %vm2277
      %vm2639 = vmpackc.low %vm2278, %vm2278
      %vm2640 = vmpackc.low %vm2279, %vm2279
      %vm2641 = vmpackc.low %vm2280, %vm2280
      %vm2642 = vmpackc.low %vm2281, %vm2281
      %vm2643 = vmpackc.low %vm2282, %vm2282
      %vm2644 = vmpackc.low %vm2283, %vm2283
      %vm2645 = vmpackc.low %vm2284, %vm2284
      %vm2646 = vmpackc.low %vm2285, %vm2285
      %vm2647 = vmpackc.low %vm2286, %vm2286
      %vm2648 = vmpackc.low %vm2287, %vm2287
      %vm2649 = vmpackc.low %vm2288, %vm2288
      %vm2650 = vmpackc.low %vm2289, %vm2289
      %vm2651 = vmpackc.low %vm2290, %vm2290
      %vm2652 = vmpackc.low %vm2291, %vm2291
      %vm2653 = vmpackc.low %vm2292, %vm2292
      %vm2654 = vmpackc.low %vm2293, %vm2293
      %vm2655 = vmpackc.low %vm2294, %vm2294
      %vm2656 = vmpackc.low %vm2295, %vm2295
      %vm2657 = vmpackc.low %vm2296, %vm2296
      %vm2658 = vmpackc.low %vm2297, %vm2297
      %vm2659 = vmpackc.low %vm2298, %vm2298
      %vm2660 = vmpackc.low %vm2299, %vm2299
      %vm2661 = vmpackc.low %vm2300, %vm2300
      %vm2662 = vmpackc.low %vm2301, %vm2301
      %vm2663 = vmpackc.low %vm2302, %vm2302
      %vm2664 = vmpackc.low %vm2303, %vm2303
      %vm2665 = vmpackc.low %vm2304, %vm2304
      %v2666 = vsel %vm2634, 65537, 0
      %v2667 = vsel %vm2635, 65537, 0
      %v2668 = vsel %vm2636, 65537, 0
      %v2669 = vsel %vm2637, 65537, 0
      %v2670 = vsel %vm2638, 65537, 0
      %v2671 = vsel %vm2639, 65537, 0
      %v2672 = vsel %vm2640, 65537, 0
      %v2673 = vsel %vm2641, 65537, 0
      %v2674 = vsel %vm2642, 65537, 0
      %v2675 = vsel %vm2643, 65537, 0
      %v2676 = vsel %vm2644, 65537, 0
      %v2677 = vsel %vm2645, 65537, 0
      %v2678 = vsel %vm2646, 65537, 0
      %v2679 = vsel %vm2647, 65537, 0
      %v2680 = vsel %vm2648, 65537, 0
      %v2681 = vsel %vm2649, 65537, 0
      %v2682 = vsel %vm2650, 65537, 0
      %v2683 = vsel %vm2651, 65537, 0
      %v2684 = vsel %vm2652, 65537, 0
      %v2685 = vsel %vm2653, 65537, 0
      %v2686 = vsel %vm2654, 65537, 0
      %v2687 = vsel %vm2655, 65537, 0
      %v2688 = vsel %vm2656, 65537, 0
      %v2689 = vsel %vm2657, 65537, 0
      %v2690 = vsel %vm2658, 65537, 0
      %v2691 = vsel %vm2659, 65537, 0
      %v2692 = vsel %vm2660, 65537, 0
      %v2693 = vsel %vm2661, 65537, 0
      %v2694 = vsel %vm2662, 65537, 0
      %v2695 = vsel %vm2663, 65537, 0
      %v2696 = vsel %vm2664, 65537, 0
      %v2697 = vsel %vm2665, 65537, 0
      %v2698 = vunpack.c.l.b16 %v2666
      %v2699 = vunpack.c.l.b16 %v2667
      %v2700 = vunpack.c.l.b16 %v2668
      %v2701 = vunpack.c.l.b16 %v2669
      %v2702 = vunpack.c.l.b16 %v2670
      %v2703 = vunpack.c.l.b16 %v2671
      %v2704 = vunpack.c.l.b16 %v2672
      %v2705 = vunpack.c.l.b16 %v2673
      %v2706 = vunpack.c.l.b16 %v2674
      %v2707 = vunpack.c.l.b16 %v2675
      %v2708 = vunpack.c.l.b16 %v2676
      %v2709 = vunpack.c.l.b16 %v2677
      %v2710 = vunpack.c.l.b16 %v2678
      %v2711 = vunpack.c.l.b16 %v2679
      %v2712 = vunpack.c.l.b16 %v2680
      %v2713 = vunpack.c.l.b16 %v2681
      %v2714 = vunpack.c.l.b16 %v2682
      %v2715 = vunpack.c.l.b16 %v2683
      %v2716 = vunpack.c.l.b16 %v2684
      %v2717 = vunpack.c.l.b16 %v2685
      %v2718 = vunpack.c.l.b16 %v2686
      %v2719 = vunpack.c.l.b16 %v2687
      %v2720 = vunpack.c.l.b16 %v2688
      %v2721 = vunpack.c.l.b16 %v2689
      %v2722 = vunpack.c.l.b16 %v2690
      %v2723 = vunpack.c.l.b16 %v2691
      %v2724 = vunpack.c.l.b16 %v2692
      %v2725 = vunpack.c.l.b16 %v2693
      %v2726 = vunpack.c.l.b16 %v2694
      %v2727 = vunpack.c.l.b16 %v2695
      %v2728 = vunpack.c.l.b16 %v2696
      %v2729 = vunpack.c.l.b16 %v2697
      %v2730 = vpack.c.b16 %v2699, %v2698
      %v2731 = vpack.c.b16 %v2701, %v2700
      %v2732 = vpack.c.b16 %v2703, %v2702
      %v2733 = vpack.c.b16 %v2705, %v2704
      %v2734 = vpack.c.b16 %v2707, %v2706
      %v2735 = vpack.c.b16 %v2709, %v2708
      %v2736 = vpack.c.b16 %v2711, %v2710
      %v2737 = vpack.c.b16 %v2713, %v2712
      %v2738 = vpack.c.b16 %v2715, %v2714
      %v2739 = vpack.c.b16 %v2717, %v2716
      %v2740 = vpack.c.b16 %v2719, %v2718
      %v2741 = vpack.c.b16 %v2721, %v2720
      %v2742 = vpack.c.b16 %v2723, %v2722
      %v2743 = vpack.c.b16 %v2725, %v2724
      %v2744 = vpack.c.b16 %v2727, %v2726
      %v2745 = vpack.c.b16 %v2729, %v2728
      %vm2746 = vcmp.ne.s16.totalorder %v2730, 0
      %vm2747 = vcmp.ne.s16.totalorder %v2731, 0
      %vm2748 = vcmp.ne.s16.totalorder %v2732, 0
      %vm2749 = vcmp.ne.s16.totalorder %v2733, 0
      %vm2750 = vcmp.ne.s16.totalorder %v2734, 0
      %vm2751 = vcmp.ne.s16.totalorder %v2735, 0
      %vm2752 = vcmp.ne.s16.totalorder %v2736, 0
      %vm2753 = vcmp.ne.s16.totalorder %v2737, 0
      %vm2754 = vcmp.ne.s16.totalorder %v2738, 0
      %vm2755 = vcmp.ne.s16.totalorder %v2739, 0
      %vm2756 = vcmp.ne.s16.totalorder %v2740, 0
      %vm2757 = vcmp.ne.s16.totalorder %v2741, 0
      %vm2758 = vcmp.ne.s16.totalorder %v2742, 0
      %vm2759 = vcmp.ne.s16.totalorder %v2743, 0
      %vm2760 = vcmp.ne.s16.totalorder %v2744, 0
      %vm2761 = vcmp.ne.s16.totalorder %v2745, 0
      %v2762 = vsel %vm2746, %v2208, 0
      %v2763 = vsel %vm2747, %v2211, 0
      %v2764 = vsel %vm2748, %v2214, 0
      %v2765 = vsel %vm2749, %v2217, 0
      %v2766 = vsel %vm2750, %v2220, 0
      %v2767 = vsel %vm2751, %v2223, 0
      %v2768 = vsel %vm2752, %v2226, 0
      %v2769 = vsel %vm2753, %v2229, 0
      %v2770 = vsel %vm2754, %v2232, 0
      %v2771 = vsel %vm2755, %v2235, 0
      %v2772 = vsel %vm2756, %v2238, 0
      %v2773 = vsel %vm2757, %v2241, 0
      %v2774 = vsel %vm2758, %v2244, 0
      %v2775 = vsel %vm2759, %v2247, 0
      %v2776 = vsel %vm2760, %v2253, 0
      %v2777 = vsel %vm2761, %v2633, 0
      %v2779 = vsel %vm1838, %v2483, 0
      %vm2780 = vcmp.lt.s32.totalorder %v1638, 240
      %vm2781 = vcmp.lt.s32.totalorder %v1639, 240
      %vm2782 = vcmp.lt.s32.totalorder %v1640, 240
      %vm2783 = vcmp.lt.s32.totalorder %v1641, 240
      %vm2784 = vcmp.lt.s32.totalorder %v1642, 240
      %vm2785 = vcmp.lt.s32.totalorder %v1643, 240
      %vm2786 = vcmp.lt.s32.totalorder %v1644, 240
      %vm2787 = vcmp.lt.s32.totalorder %v1645, 240
      %vm2788 = vcmp.lt.s32.totalorder %v1646, 240
      %vm2789 = vcmp.lt.s32.totalorder %v1647, 240
      %vm2790 = vcmp.lt.s32.totalorder %v1648, 240
      %vm2791 = vcmp.lt.s32.totalorder %v1649, 240
      %vm2792 = vcmp.lt.s32.totalorder %v1650, 240
      %vm2793 = vcmp.lt.s32.totalorder %v1651, 240
      %vm2794 = vcmp.lt.s32.totalorder %v1652, 240
      %vm2795 = vcmp.lt.s32.totalorder %v1653, 240
      %vm2796 = vcmp.lt.s32.totalorder %v1654, 240
      %vm2797 = vcmp.lt.s32.totalorder %v1655, 240
      %vm2798 = vcmp.lt.s32.totalorder %v1656, 240
      %vm2799 = vcmp.lt.s32.totalorder %v1657, 240
      %vm2800 = vcmp.lt.s32.totalorder %v1658, 240
      %vm2801 = vcmp.lt.s32.totalorder %v1659, 240
      %vm2802 = vcmp.lt.s32.totalorder %v1660, 240
      %vm2803 = vcmp.lt.s32.totalorder %v1661, 240
      %vm2804 = vcmp.lt.s32.totalorder %v1662, 240
      %vm2805 = vcmp.lt.s32.totalorder %v1663, 240
      %vm2806 = vcmp.lt.s32.totalorder %v1664, 240
      %vm2807 = vcmp.lt.s32.totalorder %v1665, 240
      %vm2808 = vcmp.lt.s32.totalorder %v1666, 240
      %vm2809 = vcmp.lt.s32.totalorder %v1667, 240
      %vm2810 = vcmp.lt.s32.totalorder %v1668, 240
      %vm2811 = vcmp.lt.s32.totalorder %v1669, 240
      %vm2812 = vmand %vm2780, %vm1872
      %vm2813 = vmand %vm2781, %vm1873
      %vm2814 = vmand %vm2782, %vm1874
      %vm2815 = vmand %vm2783, %vm1875
      %vm2816 = vmand %vm2784, %vm1876
      %vm2817 = vmand %vm2785, %vm1877
      %vm2818 = vmand %vm2786, %vm1878
      %vm2819 = vmand %vm2787, %vm1879
      %vm2820 = vmand %vm2788, %vm1880
      %vm2821 = vmand %vm2789, %vm1881
      %vm2822 = vmand %vm2790, %vm1882
      %vm2823 = vmand %vm2791, %vm1883
      %vm2824 = vmand %vm2792, %vm1884
      %vm2825 = vmand %vm2793, %vm1885
      %vm2826 = vmand %vm2794, %vm1886
      %vm2827 = vmand %vm2795, %vm1887
      %vm2828 = vmand %vm2796, %vm1888
      %vm2829 = vmand %vm2797, %vm1889
      %vm2830 = vmand %vm2798, %vm1890
      %vm2831 = vmand %vm2799, %vm1891
      %vm2832 = vmand %vm2800, %vm1892
      %vm2833 = vmand %vm2801, %vm1893
      %vm2834 = vmand %vm2802, %vm1894
      %vm2835 = vmand %vm2803, %vm1895
      %vm2836 = vmand %vm2804, %vm1896
      %vm2837 = vmand %vm2805, %vm1897
      %vm2838 = vmand %vm2806, %vm1898
      %vm2839 = vmand %vm2807, %vm1899
      %vm2840 = vmand %vm2808, %vm1900
      %vm2841 = vmand %vm2809, %vm1901
      %vm2842 = vmand %vm2810, %vm1902
      %vm2843 = vmand %vm2811, %vm1903
      %vm2844 = vmpackc.low %vm2812, %vm2812
      %vm2845 = vmpackc.low %vm2813, %vm2813
      %vm2846 = vmpackc.low %vm2814, %vm2814
      %vm2847 = vmpackc.low %vm2815, %vm2815
      %vm2848 = vmpackc.low %vm2816, %vm2816
      %vm2849 = vmpackc.low %vm2817, %vm2817
      %vm2850 = vmpackc.low %vm2818, %vm2818
      %vm2851 = vmpackc.low %vm2819, %vm2819
      %vm2852 = vmpackc.low %vm2820, %vm2820
      %vm2853 = vmpackc.low %vm2821, %vm2821
      %vm2854 = vmpackc.low %vm2822, %vm2822
      %vm2855 = vmpackc.low %vm2823, %vm2823
      %vm2856 = vmpackc.low %vm2824, %vm2824
      %vm2857 = vmpackc.low %vm2825, %vm2825
      %vm2858 = vmpackc.low %vm2826, %vm2826
      %vm2859 = vmpackc.low %vm2827, %vm2827
      %vm2860 = vmpackc.low %vm2828, %vm2828
      %vm2861 = vmpackc.low %vm2829, %vm2829
      %vm2862 = vmpackc.low %vm2830, %vm2830
      %vm2863 = vmpackc.low %vm2831, %vm2831
      %vm2864 = vmpackc.low %vm2832, %vm2832
      %vm2865 = vmpackc.low %vm2833, %vm2833
      %vm2866 = vmpackc.low %vm2834, %vm2834
      %vm2867 = vmpackc.low %vm2835, %vm2835
      %vm2868 = vmpackc.low %vm2836, %vm2836
      %vm2869 = vmpackc.low %vm2837, %vm2837
      %vm2870 = vmpackc.low %vm2838, %vm2838
      %vm2871 = vmpackc.low %vm2839, %vm2839
      %vm2872 = vmpackc.low %vm2840, %vm2840
      %vm2873 = vmpackc.low %vm2841, %vm2841
      %vm2874 = vmpackc.low %vm2842, %vm2842
      %vm2875 = vmpackc.low %vm2843, %vm2843
      %v2876 = vsel %vm2844, 65537, 0
      %v2877 = vsel %vm2845, 65537, 0
      %v2878 = vsel %vm2846, 65537, 0
      %v2879 = vsel %vm2847, 65537, 0
      %v2880 = vsel %vm2848, 65537, 0
      %v2881 = vsel %vm2849, 65537, 0
      %v2882 = vsel %vm2850, 65537, 0
      %v2883 = vsel %vm2851, 65537, 0
      %v2884 = vsel %vm2852, 65537, 0
      %v2885 = vsel %vm2853, 65537, 0
      %v2886 = vsel %vm2854, 65537, 0
      %v2887 = vsel %vm2855, 65537, 0
      %v2888 = vsel %vm2856, 65537, 0
      %v2889 = vsel %vm2857, 65537, 0
      %v2890 = vsel %vm2858, 65537, 0
      %v2891 = vsel %vm2859, 65537, 0
      %v2892 = vsel %vm2860, 65537, 0
      %v2893 = vsel %vm2861, 65537, 0
      %v2894 = vsel %vm2862, 65537, 0
      %v2895 = vsel %vm2863, 65537, 0
      %v2896 = vsel %vm2864, 65537, 0
      %v2897 = vsel %vm2865, 65537, 0
      %v2898 = vsel %vm2866, 65537, 0
      %v2899 = vsel %vm2867, 65537, 0
      %v2900 = vsel %vm2868, 65537, 0
      %v2901 = vsel %vm2869, 65537, 0
      %v2902 = vsel %vm2870, 65537, 0
      %v2903 = vsel %vm2871, 65537, 0
      %v2904 = vsel %vm2872, 65537, 0
      %v2905 = vsel %vm2873, 65537, 0
      %v2906 = vsel %vm2874, 65537, 0
      %v2907 = vsel %vm2875, 65537, 0
      %v2908 = vunpack.c.l.b16 %v2876
      %v2909 = vunpack.c.l.b16 %v2877
      %v2910 = vunpack.c.l.b16 %v2878
      %v2911 = vunpack.c.l.b16 %v2879
      %v2912 = vunpack.c.l.b16 %v2880
      %v2913 = vunpack.c.l.b16 %v2881
      %v2914 = vunpack.c.l.b16 %v2882
      %v2915 = vunpack.c.l.b16 %v2883
      %v2916 = vunpack.c.l.b16 %v2884
      %v2917 = vunpack.c.l.b16 %v2885
      %v2918 = vunpack.c.l.b16 %v2886
      %v2919 = vunpack.c.l.b16 %v2887
      %v2920 = vunpack.c.l.b16 %v2888
      %v2921 = vunpack.c.l.b16 %v2889
      %v2922 = vunpack.c.l.b16 %v2890
      %v2923 = vunpack.c.l.b16 %v2891
      %v2924 = vunpack.c.l.b16 %v2892
      %v2925 = vunpack.c.l.b16 %v2893
      %v2926 = vunpack.c.l.b16 %v2894
      %v2927 = vunpack.c.l.b16 %v2895
      %v2928 = vunpack.c.l.b16 %v2896
      %v2929 = vunpack.c.l.b16 %v2897
      %v2930 = vunpack.c.l.b16 %v2898
      %v2931 = vunpack.c.l.b16 %v2899
      %v2932 = vunpack.c.l.b16 %v2900
      %v2933 = vunpack.c.l.b16 %v2901
      %v2934 = vunpack.c.l.b16 %v2902
      %v2935 = vunpack.c.l.b16 %v2903
      %v2936 = vunpack.c.l.b16 %v2904
      %v2937 = vunpack.c.l.b16 %v2905
      %v2938 = vunpack.c.l.b16 %v2906
      %v2939 = vunpack.c.l.b16 %v2907
      %v2940 = vpack.c.b16 %v2909, %v2908
      %v2941 = vpack.c.b16 %v2911, %v2910
      %v2942 = vpack.c.b16 %v2913, %v2912
      %v2943 = vpack.c.b16 %v2915, %v2914
      %v2944 = vpack.c.b16 %v2917, %v2916
      %v2945 = vpack.c.b16 %v2919, %v2918
      %v2946 = vpack.c.b16 %v2921, %v2920
      %v2947 = vpack.c.b16 %v2923, %v2922
      %v2948 = vpack.c.b16 %v2925, %v2924
      %v2949 = vpack.c.b16 %v2927, %v2926
      %v2950 = vpack.c.b16 %v2929, %v2928
      %v2951 = vpack.c.b16 %v2931, %v2930
      %v2952 = vpack.c.b16 %v2933, %v2932
      %v2953 = vpack.c.b16 %v2935, %v2934
      %v2954 = vpack.c.b16 %v2937, %v2936
      %v2955 = vpack.c.b16 %v2939, %v2938
      %vm2956 = vcmp.ne.s16.totalorder %v2940, 0
      %vm2957 = vcmp.ne.s16.totalorder %v2941, 0
      %vm2958 = vcmp.ne.s16.totalorder %v2942, 0
      %vm2959 = vcmp.ne.s16.totalorder %v2943, 0
      %vm2960 = vcmp.ne.s16.totalorder %v2944, 0
      %vm2961 = vcmp.ne.s16.totalorder %v2945, 0
      %vm2962 = vcmp.ne.s16.totalorder %v2946, 0
      %vm2963 = vcmp.ne.s16.totalorder %v2947, 0
      %vm2964 = vcmp.ne.s16.totalorder %v2948, 0
      %vm2965 = vcmp.ne.s16.totalorder %v2949, 0
      %vm2966 = vcmp.ne.s16.totalorder %v2950, 0
      %vm2967 = vcmp.ne.s16.totalorder %v2951, 0
      %vm2968 = vcmp.ne.s16.totalorder %v2952, 0
      %vm2969 = vcmp.ne.s16.totalorder %v2953, 0
      %vm2970 = vcmp.ne.s16.totalorder %v2954, 0
      %vm2971 = vcmp.ne.s16.totalorder %v2955, 0
      %v2972 = vsel %vm2956, %v1717, 0
      %v2973 = vsel %vm2957, %v1725, 0
      %v2974 = vsel %vm2958, %v1733, 0
      %v2975 = vsel %vm2959, %v1741, 0
      %v2976 = vsel %vm2960, %v1749, 0
      %v2977 = vsel %vm2961, %v1757, 0
      %v2978 = vsel %vm2962, %v1765, 0
      %v2979 = vsel %vm2963, %v1773, 0
      %v2980 = vsel %vm2964, %v1781, 0
      %v2981 = vsel %vm2965, %v1789, 0
      %v2982 = vsel %vm2966, %v1797, 0
      %v2983 = vsel %vm2967, %v1805, 0
      %v2984 = vsel %vm2968, %v1813, 0
      %v2985 = vsel %vm2969, %v1821, 0
      %v2986 = vsel %vm2970, %v2485, 0
      %v2987 = vsel %vm2971, %v2779, 0
      %vm2988 = vmpackc.low %vm2780, %vm2780
      %vm2989 = vmpackc.low %vm2781, %vm2781
      %vm2990 = vmpackc.low %vm2782, %vm2782
      %vm2991 = vmpackc.low %vm2783, %vm2783
      %vm2992 = vmpackc.low %vm2784, %vm2784
      %vm2993 = vmpackc.low %vm2785, %vm2785
      %vm2994 = vmpackc.low %vm2786, %vm2786
      %vm2995 = vmpackc.low %vm2787, %vm2787
      %vm2996 = vmpackc.low %vm2788, %vm2788
      %vm2997 = vmpackc.low %vm2789, %vm2789
      %vm2998 = vmpackc.low %vm2790, %vm2790
      %vm2999 = vmpackc.low %vm2791, %vm2791
      %vm3000 = vmpackc.low %vm2792, %vm2792
      %vm3001 = vmpackc.low %vm2793, %vm2793
      %vm3002 = vmpackc.low %vm2794, %vm2794
      %vm3003 = vmpackc.low %vm2795, %vm2795
      %vm3004 = vmpackc.low %vm2796, %vm2796
      %vm3005 = vmpackc.low %vm2797, %vm2797
      %vm3006 = vmpackc.low %vm2798, %vm2798
      %vm3007 = vmpackc.low %vm2799, %vm2799
      %vm3008 = vmpackc.low %vm2800, %vm2800
      %vm3009 = vmpackc.low %vm2801, %vm2801
      %vm3010 = vmpackc.low %vm2802, %vm2802
      %vm3011 = vmpackc.low %vm2803, %vm2803
      %vm3012 = vmpackc.low %vm2804, %vm2804
      %vm3013 = vmpackc.low %vm2805, %vm2805
      %vm3014 = vmpackc.low %vm2806, %vm2806
      %vm3015 = vmpackc.low %vm2807, %vm2807
      %vm3016 = vmpackc.low %vm2808, %vm2808
      %vm3017 = vmpackc.low %vm2809, %vm2809
      %v3018 = vsel %vm2988, 65537, 0
      %v3019 = vsel %vm2989, 65537, 0
      %v3020 = vsel %vm2990, 65537, 0
      %v3021 = vsel %vm2991, 65537, 0
      %v3022 = vsel %vm2992, 65537, 0
      %v3023 = vsel %vm2993, 65537, 0
      %v3024 = vsel %vm2994, 65537, 0
      %v3025 = vsel %vm2995, 65537, 0
      %v3026 = vsel %vm2996, 65537, 0
      %v3027 = vsel %vm2997, 65537, 0
      %v3028 = vsel %vm2998, 65537, 0
      %v3029 = vsel %vm2999, 65537, 0
      %v3030 = vsel %vm3000, 65537, 0
      %v3031 = vsel %vm3001, 65537, 0
      %v3032 = vsel %vm3002, 65537, 0
      %v3033 = vsel %vm3003, 65537, 0
      %v3034 = vsel %vm3004, 65537, 0
      %v3035 = vsel %vm3005, 65537, 0
      %v3036 = vsel %vm3006, 65537, 0
      %v3037 = vsel %vm3007, 65537, 0
      %v3038 = vsel %vm3008, 65537, 0
      %v3039 = vsel %vm3009, 65537, 0
      %v3040 = vsel %vm3010, 65537, 0
      %v3041 = vsel %vm3011, 65537, 0
      %v3042 = vsel %vm3012, 65537, 0
      %v3043 = vsel %vm3013, 65537, 0
      %v3044 = vsel %vm3014, 65537, 0
      %v3045 = vsel %vm3015, 65537, 0
      %v3046 = vsel %vm3016, 65537, 0
      %v3047 = vsel %vm3017, 65537, 0
      %v3048 = vunpack.c.l.b16 %v3018
      %v3049 = vunpack.c.l.b16 %v3019
      %v3050 = vunpack.c.l.b16 %v3020
      %v3051 = vunpack.c.l.b16 %v3021
      %v3052 = vunpack.c.l.b16 %v3022
      %v3053 = vunpack.c.l.b16 %v3023
      %v3054 = vunpack.c.l.b16 %v3024
      %v3055 = vunpack.c.l.b16 %v3025
      %v3056 = vunpack.c.l.b16 %v3026
      %v3057 = vunpack.c.l.b16 %v3027
      %v3058 = vunpack.c.l.b16 %v3028
      %v3059 = vunpack.c.l.b16 %v3029
      %v3060 = vunpack.c.l.b16 %v3030
      %v3061 = vunpack.c.l.b16 %v3031
      %v3062 = vunpack.c.l.b16 %v3032
      %v3063 = vunpack.c.l.b16 %v3033
      %v3064 = vunpack.c.l.b16 %v3034
      %v3065 = vunpack.c.l.b16 %v3035
      %v3066 = vunpack.c.l.b16 %v3036
      %v3067 = vunpack.c.l.b16 %v3037
      %v3068 = vunpack.c.l.b16 %v3038
      %v3069 = vunpack.c.l.b16 %v3039
      %v3070 = vunpack.c.l.b16 %v3040
      %v3071 = vunpack.c.l.b16 %v3041
      %v3072 = vunpack.c.l.b16 %v3042
      %v3073 = vunpack.c.l.b16 %v3043
      %v3074 = vunpack.c.l.b16 %v3044
      %v3075 = vunpack.c.l.b16 %v3045
      %v3076 = vunpack.c.l.b16 %v3046
      %v3077 = vunpack.c.l.b16 %v3047
      %v3078 = vpack.c.b16 %v3049, %v3048
      %v3079 = vpack.c.b16 %v3051, %v3050
      %v3080 = vpack.c.b16 %v3053, %v3052
      %v3081 = vpack.c.b16 %v3055, %v3054
      %v3082 = vpack.c.b16 %v3057, %v3056
      %v3083 = vpack.c.b16 %v3059, %v3058
      %v3084 = vpack.c.b16 %v3061, %v3060
      %v3085 = vpack.c.b16 %v3063, %v3062
      %v3086 = vpack.c.b16 %v3065, %v3064
      %v3087 = vpack.c.b16 %v3067, %v3066
      %v3088 = vpack.c.b16 %v3069, %v3068
      %v3089 = vpack.c.b16 %v3071, %v3070
      %v3090 = vpack.c.b16 %v3073, %v3072
      %v3091 = vpack.c.b16 %v3075, %v3074
      %v3092 = vpack.c.b16 %v3077, %v3076
      %vm3093 = vcmp.ne.s16.totalorder %v3078, 0
      %vm3094 = vcmp.ne.s16.totalorder %v3079, 0
      %vm3095 = vcmp.ne.s16.totalorder %v3080, 0
      %vm3096 = vcmp.ne.s16.totalorder %v3081, 0
      %vm3097 = vcmp.ne.s16.totalorder %v3082, 0
      %vm3098 = vcmp.ne.s16.totalorder %v3083, 0
      %vm3099 = vcmp.ne.s16.totalorder %v3084, 0
      %vm3100 = vcmp.ne.s16.totalorder %v3085, 0
      %vm3101 = vcmp.ne.s16.totalorder %v3086, 0
      %vm3102 = vcmp.ne.s16.totalorder %v3087, 0
      %vm3103 = vcmp.ne.s16.totalorder %v3088, 0
      %vm3104 = vcmp.ne.s16.totalorder %v3089, 0
      %vm3105 = vcmp.ne.s16.totalorder %v3090, 0
      %vm3106 = vcmp.ne.s16.totalorder %v3091, 0
      %vm3107 = vcmp.ne.s16.totalorder %v3092, 0
      %v3108 = vsel %vm3093, %v1622, 0
      %v3109 = vsel %vm3094, %v1623, 0
      %v3110 = vsel %vm3095, %v1624, 0
      %v3111 = vsel %vm3096, %v1625, 0
      %v3112 = vsel %vm3097, %v1626, 0
      %v3113 = vsel %vm3098, %v1627, 0
      %v3114 = vsel %vm3099, %v1628, 0
      %v3115 = vsel %vm3100, %v1629, 0
      %v3116 = vsel %vm3101, %v1630, 0
      %v3117 = vsel %vm3102, %v1631, 0
      %v3118 = vsel %vm3103, %v1632, 0
      %v3119 = vsel %vm3104, %v1633, 0
      %v3120 = vsel %vm3105, %v1634, 0
      %v3121 = vsel %vm3106, %v1635, 0
      %v3122 = vsel %vm3107, %v1636, 0
      %vm3123 = vmand %vm2780, %vm2273
      %vm3124 = vmand %vm2781, %vm2274
      %vm3125 = vmand %vm2782, %vm2275
      %vm3126 = vmand %vm2783, %vm2276
      %vm3127 = vmand %vm2784, %vm2277
      %vm3128 = vmand %vm2785, %vm2278
      %vm3129 = vmand %vm2786, %vm2279
      %vm3130 = vmand %vm2787, %vm2280
      %vm3131 = vmand %vm2788, %vm2281
      %vm3132 = vmand %vm2789, %vm2282
      %vm3133 = vmand %vm2790, %vm2283
      %vm3134 = vmand %vm2791, %vm2284
      %vm3135 = vmand %vm2792, %vm2285
      %vm3136 = vmand %vm2793, %vm2286
      %vm3137 = vmand %vm2794, %vm2287
      %vm3138 = vmand %vm2795, %vm2288
      %vm3139 = vmand %vm2796, %vm2289
      %vm3140 = vmand %vm2797, %vm2290
      %vm3141 = vmand %vm2798, %vm2291
      %vm3142 = vmand %vm2799, %vm2292
      %vm3143 = vmand %vm2800, %vm2293
      %vm3144 = vmand %vm2801, %vm2294
      %vm3145 = vmand %vm2802, %vm2295
      %vm3146 = vmand %vm2803, %vm2296
      %vm3147 = vmand %vm2804, %vm2297
      %vm3148 = vmand %vm2805, %vm2298
      %vm3149 = vmand %vm2806, %vm2299
      %vm3150 = vmand %vm2807, %vm2300
      %vm3151 = vmand %vm2808, %vm2301
      %vm3152 = vmand %vm2809, %vm2302
      %vm3153 = vmpackc.low %vm3123, %vm3123
      %vm3154 = vmpackc.low %vm3124, %vm3124
      %vm3155 = vmpackc.low %vm3125, %vm3125
      %vm3156 = vmpackc.low %vm3126, %vm3126
      %vm3157 = vmpackc.low %vm3127, %vm3127
      %vm3158 = vmpackc.low %vm3128, %vm3128
      %vm3159 = vmpackc.low %vm3129, %vm3129
      %vm3160 = vmpackc.low %vm3130, %vm3130
      %vm3161 = vmpackc.low %vm3131, %vm3131
      %vm3162 = vmpackc.low %vm3132, %vm3132
      %vm3163 = vmpackc.low %vm3133, %vm3133
      %vm3164 = vmpackc.low %vm3134, %vm3134
      %vm3165 = vmpackc.low %vm3135, %vm3135
      %vm3166 = vmpackc.low %vm3136, %vm3136
      %vm3167 = vmpackc.low %vm3137, %vm3137
      %vm3168 = vmpackc.low %vm3138, %vm3138
      %vm3169 = vmpackc.low %vm3139, %vm3139
      %vm3170 = vmpackc.low %vm3140, %vm3140
      %vm3171 = vmpackc.low %vm3141, %vm3141
      %vm3172 = vmpackc.low %vm3142, %vm3142
      %vm3173 = vmpackc.low %vm3143, %vm3143
      %vm3174 = vmpackc.low %vm3144, %vm3144
      %vm3175 = vmpackc.low %vm3145, %vm3145
      %vm3176 = vmpackc.low %vm3146, %vm3146
      %vm3177 = vmpackc.low %vm3147, %vm3147
      %vm3178 = vmpackc.low %vm3148, %vm3148
      %vm3179 = vmpackc.low %vm3149, %vm3149
      %vm3180 = vmpackc.low %vm3150, %vm3150
      %vm3181 = vmpackc.low %vm3151, %vm3151
      %vm3182 = vmpackc.low %vm3152, %vm3152
      %v3183 = vsel %vm3153, 65537, 0
      %v3184 = vsel %vm3154, 65537, 0
      %v3185 = vsel %vm3155, 65537, 0
      %v3186 = vsel %vm3156, 65537, 0
      %v3187 = vsel %vm3157, 65537, 0
      %v3188 = vsel %vm3158, 65537, 0
      %v3189 = vsel %vm3159, 65537, 0
      %v3190 = vsel %vm3160, 65537, 0
      %v3191 = vsel %vm3161, 65537, 0
      %v3192 = vsel %vm3162, 65537, 0
      %v3193 = vsel %vm3163, 65537, 0
      %v3194 = vsel %vm3164, 65537, 0
      %v3195 = vsel %vm3165, 65537, 0
      %v3196 = vsel %vm3166, 65537, 0
      %v3197 = vsel %vm3167, 65537, 0
      %v3198 = vsel %vm3168, 65537, 0
      %v3199 = vsel %vm3169, 65537, 0
      %v3200 = vsel %vm3170, 65537, 0
      %v3201 = vsel %vm3171, 65537, 0
      %v3202 = vsel %vm3172, 65537, 0
      %v3203 = vsel %vm3173, 65537, 0
      %v3204 = vsel %vm3174, 65537, 0
      %v3205 = vsel %vm3175, 65537, 0
      %v3206 = vsel %vm3176, 65537, 0
      %v3207 = vsel %vm3177, 65537, 0
      %v3208 = vsel %vm3178, 65537, 0
      %v3209 = vsel %vm3179, 65537, 0
      %v3210 = vsel %vm3180, 65537, 0
      %v3211 = vsel %vm3181, 65537, 0
      %v3212 = vsel %vm3182, 65537, 0
      %v3213 = vunpack.c.l.b16 %v3183
      %v3214 = vunpack.c.l.b16 %v3184
      %v3215 = vunpack.c.l.b16 %v3185
      %v3216 = vunpack.c.l.b16 %v3186
      %v3217 = vunpack.c.l.b16 %v3187
      %v3218 = vunpack.c.l.b16 %v3188
      %v3219 = vunpack.c.l.b16 %v3189
      %v3220 = vunpack.c.l.b16 %v3190
      %v3221 = vunpack.c.l.b16 %v3191
      %v3222 = vunpack.c.l.b16 %v3192
      %v3223 = vunpack.c.l.b16 %v3193
      %v3224 = vunpack.c.l.b16 %v3194
      %v3225 = vunpack.c.l.b16 %v3195
      %v3226 = vunpack.c.l.b16 %v3196
      %v3227 = vunpack.c.l.b16 %v3197
      %v3228 = vunpack.c.l.b16 %v3198
      %v3229 = vunpack.c.l.b16 %v3199
      %v3230 = vunpack.c.l.b16 %v3200
      %v3231 = vunpack.c.l.b16 %v3201
      %v3232 = vunpack.c.l.b16 %v3202
      %v3233 = vunpack.c.l.b16 %v3203
      %v3234 = vunpack.c.l.b16 %v3204
      %v3235 = vunpack.c.l.b16 %v3205
      %v3236 = vunpack.c.l.b16 %v3206
      %v3237 = vunpack.c.l.b16 %v3207
      %v3238 = vunpack.c.l.b16 %v3208
      %v3239 = vunpack.c.l.b16 %v3209
      %v3240 = vunpack.c.l.b16 %v3210
      %v3241 = vunpack.c.l.b16 %v3211
      %v3242 = vunpack.c.l.b16 %v3212
      %v3243 = vpack.c.b16 %v3214, %v3213
      %v3244 = vpack.c.b16 %v3216, %v3215
      %v3245 = vpack.c.b16 %v3218, %v3217
      %v3246 = vpack.c.b16 %v3220, %v3219
      %v3247 = vpack.c.b16 %v3222, %v3221
      %v3248 = vpack.c.b16 %v3224, %v3223
      %v3249 = vpack.c.b16 %v3226, %v3225
      %v3250 = vpack.c.b16 %v3228, %v3227
      %v3251 = vpack.c.b16 %v3230, %v3229
      %v3252 = vpack.c.b16 %v3232, %v3231
      %v3253 = vpack.c.b16 %v3234, %v3233
      %v3254 = vpack.c.b16 %v3236, %v3235
      %v3255 = vpack.c.b16 %v3238, %v3237
      %v3256 = vpack.c.b16 %v3240, %v3239
      %v3257 = vpack.c.b16 %v3242, %v3241
      %vm3258 = vcmp.ne.s16.totalorder %v3243, 0
      %vm3259 = vcmp.ne.s16.totalorder %v3244, 0
      %vm3260 = vcmp.ne.s16.totalorder %v3245, 0
      %vm3261 = vcmp.ne.s16.totalorder %v3246, 0
      %vm3262 = vcmp.ne.s16.totalorder %v3247, 0
      %vm3263 = vcmp.ne.s16.totalorder %v3248, 0
      %vm3264 = vcmp.ne.s16.totalorder %v3249, 0
      %vm3265 = vcmp.ne.s16.totalorder %v3250, 0
      %vm3266 = vcmp.ne.s16.totalorder %v3251, 0
      %vm3267 = vcmp.ne.s16.totalorder %v3252, 0
      %vm3268 = vcmp.ne.s16.totalorder %v3253, 0
      %vm3269 = vcmp.ne.s16.totalorder %v3254, 0
      %vm3270 = vcmp.ne.s16.totalorder %v3255, 0
      %vm3271 = vcmp.ne.s16.totalorder %v3256, 0
      %vm3272 = vcmp.ne.s16.totalorder %v3257, 0
      %v3273 = vsel %vm3258, %v2211, 0
      %v3274 = vsel %vm3259, %v2214, 0
      %v3275 = vsel %vm3260, %v2217, 0
      %v3276 = vsel %vm3261, %v2220, 0
      %v3277 = vsel %vm3262, %v2223, 0
      %v3278 = vsel %vm3263, %v2226, 0
      %v3279 = vsel %vm3264, %v2229, 0
      %v3280 = vsel %vm3265, %v2232, 0
      %v3281 = vsel %vm3266, %v2235, 0
      %v3282 = vsel %vm3267, %v2238, 0
      %v3283 = vsel %vm3268, %v2241, 0
      %v3284 = vsel %vm3269, %v2244, 0
      %v3285 = vsel %vm3270, %v2247, 0
      %v3286 = vsel %vm3271, %v2253, 0
      %v3287 = vsel %vm3272, %v2633, 0
      %3304 = vrot.lane.b32.xlu0 0, 16
      %v3305 = vpop.permute.xlu0 %3304
      %3306 = vrot.lane.b32.xlu0 %v2189, 16
      %v3307 = vpop.permute.xlu0 %3306
      %3308 = vrot.lane.b32.xlu0 %v2190, 16
      %v3309 = vpop.permute.xlu0 %3308
      %3310 = vrot.lane.b32.xlu0 %v2191, 16
      %v3311 = vpop.permute.xlu0 %3310
      %3312 = vrot.lane.b32.xlu0 %v2192, 16
      %v3313 = vpop.permute.xlu0 %3312
      %3314 = vrot.lane.b32.xlu0 %v2193, 16
      %v3315 = vpop.permute.xlu0 %3314
      %3316 = vrot.lane.b32.xlu0 %v2194, 16
      %v3317 = vpop.permute.xlu0 %3316
      %3318 = vrot.lane.b32.xlu0 %v2195, 16
      %v3319 = vpop.permute.xlu0 %3318
      %3320 = vrot.lane.b32.xlu0 %v2196, 16
      %v3321 = vpop.permute.xlu0 %3320
      %3322 = vrot.lane.b32.xlu0 %v2197, 16
      %v3323 = vpop.permute.xlu0 %3322
      %3324 = vrot.lane.b32.xlu0 %v2198, 16
      %v3325 = vpop.permute.xlu0 %3324
      %3326 = vrot.lane.b32.xlu0 %v2199, 16
      %v3327 = vpop.permute.xlu0 %3326
      %3328 = vrot.lane.b32.xlu0 %v2200, 16
      %v3329 = vpop.permute.xlu0 %3328
      %3330 = vrot.lane.b32.xlu0 %v2201, 16
      %v3331 = vpop.permute.xlu0 %3330
      %3332 = vrot.lane.b32.xlu0 %v2202, 16
      %v3333 = vpop.permute.xlu0 %3332
      %3334 = vrot.lane.b32.xlu0 %v2203, 16
      %v3335 = vpop.permute.xlu0 %3334
      %3352 = vrot.lane.b32.xlu0 %v2465, 32
      %v3353 = vpop.permute.xlu0 %3352
      %3354 = vrot.lane.b32.xlu0 %v2466, 32
      %v3355 = vpop.permute.xlu0 %3354
      %3356 = vrot.lane.b32.xlu0 %v2467, 32
      %v3357 = vpop.permute.xlu0 %3356
      %3358 = vrot.lane.b32.xlu0 %v2468, 32
      %v3359 = vpop.permute.xlu0 %3358
      %3360 = vrot.lane.b32.xlu0 %v2469, 32
      %v3361 = vpop.permute.xlu0 %3360
      %3362 = vrot.lane.b32.xlu0 %v2470, 32
      %v3363 = vpop.permute.xlu0 %3362
      %3364 = vrot.lane.b32.xlu0 %v2471, 32
      %v3365 = vpop.permute.xlu0 %3364
      %3366 = vrot.lane.b32.xlu0 %v2472, 32
      %v3367 = vpop.permute.xlu0 %3366
      %3368 = vrot.lane.b32.xlu0 %v2473, 32
      %v3369 = vpop.permute.xlu0 %3368
      %3370 = vrot.lane.b32.xlu0 %v2474, 32
      %v3371 = vpop.permute.xlu0 %3370
      %3372 = vrot.lane.b32.xlu0 %v2475, 32
      %v3373 = vpop.permute.xlu0 %3372
      %3374 = vrot.lane.b32.xlu0 %v2476, 32
      %v3375 = vpop.permute.xlu0 %3374
      %3376 = vrot.lane.b32.xlu0 %v2477, 32
      %v3377 = vpop.permute.xlu0 %3376
      %3378 = vrot.lane.b32.xlu0 %v2478, 32
      %v3379 = vpop.permute.xlu0 %3378
      %3380 = vrot.lane.b32.xlu0 %v2479, 32
      %v3381 = vpop.permute.xlu0 %3380
      %3382 = vrot.lane.b32.xlu0 %v2480, 32
      %v3383 = vpop.permute.xlu0 %3382
      %3400 = vrot.lane.b32.xlu0 %v2615, 48
      %v3401 = vpop.permute.xlu0 %3400
      %3402 = vrot.lane.b32.xlu0 %v2616, 48
      %v3403 = vpop.permute.xlu0 %3402
      %3404 = vrot.lane.b32.xlu0 %v2617, 48
      %v3405 = vpop.permute.xlu0 %3404
      %3406 = vrot.lane.b32.xlu0 %v2618, 48
      %v3407 = vpop.permute.xlu0 %3406
      %3408 = vrot.lane.b32.xlu0 %v2619, 48
      %v3409 = vpop.permute.xlu0 %3408
      %3410 = vrot.lane.b32.xlu0 %v2620, 48
      %v3411 = vpop.permute.xlu0 %3410
      %3412 = vrot.lane.b32.xlu0 %v2621, 48
      %v3413 = vpop.permute.xlu0 %3412
      %3414 = vrot.lane.b32.xlu0 %v2622, 48
      %v3415 = vpop.permute.xlu0 %3414
      %3416 = vrot.lane.b32.xlu0 %v2623, 48
      %v3417 = vpop.permute.xlu0 %3416
      %3418 = vrot.lane.b32.xlu0 %v2624, 48
      %v3419 = vpop.permute.xlu0 %3418
      %3420 = vrot.lane.b32.xlu0 %v2625, 48
      %v3421 = vpop.permute.xlu0 %3420
      %3422 = vrot.lane.b32.xlu0 %v2626, 48
      %v3423 = vpop.permute.xlu0 %3422
      %3424 = vrot.lane.b32.xlu0 %v2627, 48
      %v3425 = vpop.permute.xlu0 %3424
      %3426 = vrot.lane.b32.xlu0 %v2628, 48
      %v3427 = vpop.permute.xlu0 %3426
      %3428 = vrot.lane.b32.xlu0 %v2629, 48
      %v3429 = vpop.permute.xlu0 %3428
      %3430 = vrot.lane.b32.xlu0 %v2630, 48
      %v3431 = vpop.permute.xlu0 %3430
      %3448 = vrot.lane.b32.xlu0 %v1621, 64
      %v3449 = vpop.permute.xlu0 %3448
      %3450 = vrot.lane.b32.xlu0 %v1622, 64
      %v3451 = vpop.permute.xlu0 %3450
      %3452 = vrot.lane.b32.xlu0 %v1623, 64
      %v3453 = vpop.permute.xlu0 %3452
      %3454 = vrot.lane.b32.xlu0 %v1624, 64
      %v3455 = vpop.permute.xlu0 %3454
      %3456 = vrot.lane.b32.xlu0 %v1625, 64
      %v3457 = vpop.permute.xlu0 %3456
      %3458 = vrot.lane.b32.xlu0 %v1626, 64
      %v3459 = vpop.permute.xlu0 %3458
      %3460 = vrot.lane.b32.xlu0 %v1627, 64
      %v3461 = vpop.permute.xlu0 %3460
      %3462 = vrot.lane.b32.xlu0 %v1628, 64
      %v3463 = vpop.permute.xlu0 %3462
      %3464 = vrot.lane.b32.xlu0 %v1629, 64
      %v3465 = vpop.permute.xlu0 %3464
      %3466 = vrot.lane.b32.xlu0 %v1630, 64
      %v3467 = vpop.permute.xlu0 %3466
      %3468 = vrot.lane.b32.xlu0 %v1631, 64
      %v3469 = vpop.permute.xlu0 %3468
      %3470 = vrot.lane.b32.xlu0 %v1632, 64
      %v3471 = vpop.permute.xlu0 %3470
      %3472 = vrot.lane.b32.xlu0 %v1633, 64
      %v3473 = vpop.permute.xlu0 %3472
      %3474 = vrot.lane.b32.xlu0 %v1634, 64
      %v3475 = vpop.permute.xlu0 %3474
      %3476 = vrot.lane.b32.xlu0 %v1635, 64
      %v3477 = vpop.permute.xlu0 %3476
      %3478 = vrot.lane.b32.xlu0 %v1636, 64
      %v3479 = vpop.permute.xlu0 %3478
      %3496 = vrot.lane.b32.xlu0 %v2762, 80
      %v3497 = vpop.permute.xlu0 %3496
      %3498 = vrot.lane.b32.xlu0 %v2763, 80
      %v3499 = vpop.permute.xlu0 %3498
      %3500 = vrot.lane.b32.xlu0 %v2764, 80
      %v3501 = vpop.permute.xlu0 %3500
      %3502 = vrot.lane.b32.xlu0 %v2765, 80
      %v3503 = vpop.permute.xlu0 %3502
      %3504 = vrot.lane.b32.xlu0 %v2766, 80
      %v3505 = vpop.permute.xlu0 %3504
      %3506 = vrot.lane.b32.xlu0 %v2767, 80
      %v3507 = vpop.permute.xlu0 %3506
      %3508 = vrot.lane.b32.xlu0 %v2768, 80
      %v3509 = vpop.permute.xlu0 %3508
      %3510 = vrot.lane.b32.xlu0 %v2769, 80
      %v3511 = vpop.permute.xlu0 %3510
      %3512 = vrot.lane.b32.xlu0 %v2770, 80
      %v3513 = vpop.permute.xlu0 %3512
      %3514 = vrot.lane.b32.xlu0 %v2771, 80
      %v3515 = vpop.permute.xlu0 %3514
      %3516 = vrot.lane.b32.xlu0 %v2772, 80
      %v3517 = vpop.permute.xlu0 %3516
      %3518 = vrot.lane.b32.xlu0 %v2773, 80
      %v3519 = vpop.permute.xlu0 %3518
      %3520 = vrot.lane.b32.xlu0 %v2774, 80
      %v3521 = vpop.permute.xlu0 %3520
      %3522 = vrot.lane.b32.xlu0 %v2775, 80
      %v3523 = vpop.permute.xlu0 %3522
      %3524 = vrot.lane.b32.xlu0 %v2776, 80
      %v3525 = vpop.permute.xlu0 %3524
      %3526 = vrot.lane.b32.xlu0 %v2777, 80
      %v3527 = vpop.permute.xlu0 %3526
      %3544 = vrot.lane.b32.xlu0 %v2972, 96
      %v3545 = vpop.permute.xlu0 %3544
      %3546 = vrot.lane.b32.xlu0 %v2973, 96
      %v3547 = vpop.permute.xlu0 %3546
      %3548 = vrot.lane.b32.xlu0 %v2974, 96
      %v3549 = vpop.permute.xlu0 %3548
      %3550 = vrot.lane.b32.xlu0 %v2975, 96
      %v3551 = vpop.permute.xlu0 %3550
      %3552 = vrot.lane.b32.xlu0 %v2976, 96
      %v3553 = vpop.permute.xlu0 %3552
      %3554 = vrot.lane.b32.xlu0 %v2977, 96
      %v3555 = vpop.permute.xlu0 %3554
      %3556 = vrot.lane.b32.xlu0 %v2978, 96
      %v3557 = vpop.permute.xlu0 %3556
      %3558 = vrot.lane.b32.xlu0 %v2979, 96
      %v3559 = vpop.permute.xlu0 %3558
      %3560 = vrot.lane.b32.xlu0 %v2980, 96
      %v3561 = vpop.permute.xlu0 %3560
      %3562 = vrot.lane.b32.xlu0 %v2981, 96
      %v3563 = vpop.permute.xlu0 %3562
      %3564 = vrot.lane.b32.xlu0 %v2982, 96
      %v3565 = vpop.permute.xlu0 %3564
      %3566 = vrot.lane.b32.xlu0 %v2983, 96
      %v3567 = vpop.permute.xlu0 %3566
      %3568 = vrot.lane.b32.xlu0 %v2984, 96
      %v3569 = vpop.permute.xlu0 %3568
      %3570 = vrot.lane.b32.xlu0 %v2985, 96
      %v3571 = vpop.permute.xlu0 %3570
      %3572 = vrot.lane.b32.xlu0 %v2986, 96
      %v3573 = vpop.permute.xlu0 %3572
      %3574 = vrot.lane.b32.xlu0 %v2987, 96
      %v3575 = vpop.permute.xlu0 %3574
      %3591 = vrot.lane.b32.xlu0 %v3108, 112
      %v3592 = vpop.permute.xlu0 %3591
      %3593 = vrot.lane.b32.xlu0 %v3109, 112
      %v3594 = vpop.permute.xlu0 %3593
      %3595 = vrot.lane.b32.xlu0 %v3110, 112
      %v3596 = vpop.permute.xlu0 %3595
      %3597 = vrot.lane.b32.xlu0 %v3111, 112
      %v3598 = vpop.permute.xlu0 %3597
      %3599 = vrot.lane.b32.xlu0 %v3112, 112
      %v3600 = vpop.permute.xlu0 %3599
      %3601 = vrot.lane.b32.xlu0 %v3113, 112
      %v3602 = vpop.permute.xlu0 %3601
      %3603 = vrot.lane.b32.xlu0 %v3114, 112
      %v3604 = vpop.permute.xlu0 %3603
      %3605 = vrot.lane.b32.xlu0 %v3115, 112
      %v3606 = vpop.permute.xlu0 %3605
      %3607 = vrot.lane.b32.xlu0 %v3116, 112
      %v3608 = vpop.permute.xlu0 %3607
      %3609 = vrot.lane.b32.xlu0 %v3117, 112
      %v3610 = vpop.permute.xlu0 %3609
      %3611 = vrot.lane.b32.xlu0 %v3118, 112
      %v3612 = vpop.permute.xlu0 %3611
      %3613 = vrot.lane.b32.xlu0 %v3119, 112
      %v3614 = vpop.permute.xlu0 %3613
      %3615 = vrot.lane.b32.xlu0 %v3120, 112
      %v3616 = vpop.permute.xlu0 %3615
      %3617 = vrot.lane.b32.xlu0 %v3121, 112
      %v3618 = vpop.permute.xlu0 %3617
      %3619 = vrot.lane.b32.xlu0 %v3122, 112
      %v3620 = vpop.permute.xlu0 %3619
      %3621 = vrot.lane.b32.xlu0 0, 112
      %v3622 = vpop.permute.xlu0 %3621
      %vm3623 = vcmask 130048
      %v3626 = vsel %vm3623, 0, %v3305
      %v3629 = vsel %vm3623, %v2054, %v3307
      %v3632 = vsel %vm3623, %v2055, %v3309
      %v3635 = vsel %vm3623, %v2056, %v3311
      %v3638 = vsel %vm3623, %v2057, %v3313
      %v3641 = vsel %vm3623, %v2058, %v3315
      %v3644 = vsel %vm3623, %v2059, %v3317
      %v3647 = vsel %vm3623, %v2060, %v3319
      %v3650 = vsel %vm3623, %v2061, %v3321
      %v3653 = vsel %vm3623, %v2062, %v3323
      %v3656 = vsel %vm3623, %v2063, %v3325
      %v3659 = vsel %vm3623, %v2064, %v3327
      %v3662 = vsel %vm3623, %v2065, %v3329
      %v3665 = vsel %vm3623, %v2066, %v3331
      %v3668 = vsel %vm3623, %v2067, %v3333
      %v3671 = vsel %vm3623, %v2068, %v3335
      %vm3672 = vcmask 261120
      %v3674 = vsel %vm3672, %v3626, %v3353
      %v3676 = vsel %vm3672, %v3629, %v3355
      %v3678 = vsel %vm3672, %v3632, %v3357
      %v3680 = vsel %vm3672, %v3635, %v3359
      %v3682 = vsel %vm3672, %v3638, %v3361
      %v3684 = vsel %vm3672, %v3641, %v3363
      %v3686 = vsel %vm3672, %v3644, %v3365
      %v3688 = vsel %vm3672, %v3647, %v3367
      %v3690 = vsel %vm3672, %v3650, %v3369
      %v3692 = vsel %vm3672, %v3653, %v3371
      %v3694 = vsel %vm3672, %v3656, %v3373
      %v3696 = vsel %vm3672, %v3659, %v3375
      %v3698 = vsel %vm3672, %v3662, %v3377
      %v3700 = vsel %vm3672, %v3665, %v3379
      %v3702 = vsel %vm3672, %v3668, %v3381
      %v3704 = vsel %vm3672, %v3671, %v3383
      %vm3705 = vcmask 392192
      %v3707 = vsel %vm3705, %v3674, %v3401
      %v3709 = vsel %vm3705, %v3676, %v3403
      %v3711 = vsel %vm3705, %v3678, %v3405
      %v3713 = vsel %vm3705, %v3680, %v3407
      %v3715 = vsel %vm3705, %v3682, %v3409
      %v3717 = vsel %vm3705, %v3684, %v3411
      %v3719 = vsel %vm3705, %v3686, %v3413
      %v3721 = vsel %vm3705, %v3688, %v3415
      %v3723 = vsel %vm3705, %v3690, %v3417
      %v3725 = vsel %vm3705, %v3692, %v3419
      %v3727 = vsel %vm3705, %v3694, %v3421
      %v3729 = vsel %vm3705, %v3696, %v3423
      %v3731 = vsel %vm3705, %v3698, %v3425
      %v3733 = vsel %vm3705, %v3700, %v3427
      %v3735 = vsel %vm3705, %v3702, %v3429
      %v3737 = vsel %vm3705, %v3704, %v3431
      %vm3738 = vcmask 523264
      %v3740 = vsel %vm3738, %v3707, %v3449
      %v3742 = vsel %vm3738, %v3709, %v3451
      %v3744 = vsel %vm3738, %v3711, %v3453
      %v3746 = vsel %vm3738, %v3713, %v3455
      %v3748 = vsel %vm3738, %v3715, %v3457
      %v3750 = vsel %vm3738, %v3717, %v3459
      %v3752 = vsel %vm3738, %v3719, %v3461
      %v3754 = vsel %vm3738, %v3721, %v3463
      %v3756 = vsel %vm3738, %v3723, %v3465
      %v3758 = vsel %vm3738, %v3725, %v3467
      %v3760 = vsel %vm3738, %v3727, %v3469
      %v3762 = vsel %vm3738, %v3729, %v3471
      %v3764 = vsel %vm3738, %v3731, %v3473
      %v3766 = vsel %vm3738, %v3733, %v3475
      %v3768 = vsel %vm3738, %v3735, %v3477
      %v3770 = vsel %vm3738, %v3737, %v3479
      %vm3771 = vcmask 654336
      %v3773 = vsel %vm3771, %v3740, %v3497
      %v3775 = vsel %vm3771, %v3742, %v3499
      %v3777 = vsel %vm3771, %v3744, %v3501
      %v3779 = vsel %vm3771, %v3746, %v3503
      %v3781 = vsel %vm3771, %v3748, %v3505
      %v3783 = vsel %vm3771, %v3750, %v3507
      %v3785 = vsel %vm3771, %v3752, %v3509
      %v3787 = vsel %vm3771, %v3754, %v3511
      %v3789 = vsel %vm3771, %v3756, %v3513
      %v3791 = vsel %vm3771, %v3758, %v3515
      %v3793 = vsel %vm3771, %v3760, %v3517
      %v3795 = vsel %vm3771, %v3762, %v3519
      %v3797 = vsel %vm3771, %v3764, %v3521
      %v3799 = vsel %vm3771, %v3766, %v3523
      %v3801 = vsel %vm3771, %v3768, %v3525
      %v3803 = vsel %vm3771, %v3770, %v3527
      %vm3804 = vcmask 785408
      %v3806 = vsel %vm3804, %v3773, %v3545
      %v3808 = vsel %vm3804, %v3775, %v3547
      %v3810 = vsel %vm3804, %v3777, %v3549
      %v3812 = vsel %vm3804, %v3779, %v3551
      %v3814 = vsel %vm3804, %v3781, %v3553
      %v3816 = vsel %vm3804, %v3783, %v3555
      %v3818 = vsel %vm3804, %v3785, %v3557
      %v3820 = vsel %vm3804, %v3787, %v3559
      %v3822 = vsel %vm3804, %v3789, %v3561
      %v3824 = vsel %vm3804, %v3791, %v3563
      %v3826 = vsel %vm3804, %v3793, %v3565
      %v3828 = vsel %vm3804, %v3795, %v3567
      %v3830 = vsel %vm3804, %v3797, %v3569
      %v3832 = vsel %vm3804, %v3799, %v3571
      %v3834 = vsel %vm3804, %v3801, %v3573
      %v3836 = vsel %vm3804, %v3803, %v3575
      %vm3837 = vcmask 916480
      %v3839 = vsel %vm3837, %v3806, %v3592
      %v3842 = vsel %vm3837, %v3808, %v3594
      %v3845 = vsel %vm3837, %v3810, %v3596
      %v3848 = vsel %vm3837, %v3812, %v3598
      %v3851 = vsel %vm3837, %v3814, %v3600
      %v3854 = vsel %vm3837, %v3816, %v3602
      %v3857 = vsel %vm3837, %v3818, %v3604
      %v3860 = vsel %vm3837, %v3820, %v3606
      %v3863 = vsel %vm3837, %v3822, %v3608
      %v3866 = vsel %vm3837, %v3824, %v3610
      %v3869 = vsel %vm3837, %v3826, %v3612
      %v3872 = vsel %vm3837, %v3828, %v3614
      %v3875 = vsel %vm3837, %v3830, %v3616
      %v3878 = vsel %vm3837, %v3832, %v3618
      %v3881 = vsel %vm3837, %v3834, %v3620
      %v3884 = vsel %vm3837, %v3836, %v3622
      %v3886 = vld [vmem:[%s3] sm:$0xff]
      %v3887 = vld [vmem:[%s3 + $0x8] sm:$0xff]
      %v3888 = vld [vmem:[%s3 + $0x10] sm:$0xff]
      %v3889 = vld [vmem:[%s3 + $0x18] sm:$0xff]
      %v3890 = vld [vmem:[%s3 + $0x20] sm:$0xff]
      %v3891 = vld [vmem:[%s3 + $0x28] sm:$0xff]
      %v3892 = vld [vmem:[%s3 + $0x30] sm:$0xff]
      %v3893 = vld [vmem:[%s3 + $0x38] sm:$0xff]
      %v3902 = vunpack.c.l.b16 %v3886
      %v3903 = vunpack.c.h.b16 %v3886
      %v3904 = vunpack.c.l.b16 %v3887
      %v3905 = vunpack.c.h.b16 %v3887
      %v3906 = vunpack.c.l.b16 %v3888
      %v3907 = vunpack.c.h.b16 %v3888
      %v3908 = vunpack.c.l.b16 %v3889
      %v3909 = vunpack.c.h.b16 %v3889
      %v3910 = vunpack.c.l.b16 %v3890
      %v3911 = vunpack.c.h.b16 %v3890
      %v3912 = vunpack.c.l.b16 %v3891
      %v3913 = vunpack.c.h.b16 %v3891
      %v3914 = vunpack.c.l.b16 %v3892
      %v3915 = vunpack.c.h.b16 %v3892
      %v3916 = vunpack.c.l.b16 %v3893
      %v3917 = vunpack.c.h.b16 %v3893
      %v3918 = vpack.c.b16 %v3904, %v3902
      %v3919 = vpack.c.b16 %v3905, %v3903
      %v3920 = vpack.c.b16 %v3908, %v3906
      %v3921 = vpack.c.b16 %v3909, %v3907
      %v3922 = vpack.c.b16 %v3912, %v3910
      %v3923 = vpack.c.b16 %v3913, %v3911
      %v3924 = vpack.c.b16 %v3916, %v3914
      %v3925 = vpack.c.b16 %v3917, %v3915
      %3934 = vmatprep.subr.bf16.mxu0 %v3280
      %3935 = vmatpush1.bf16.msra.mxu0 %v3860
      %3936 = vmatprep.subr.bf16.mxu0 %v3279
      %3937 = vmatpush1.bf16.msra.mxu0 %v3857
      %3938 = vmatprep.subr.bf16.mxu0 %v3278
      %3939 = vmatpush1.bf16.msra.mxu0 %v3854
      %3940 = vmatprep.subr.bf16.mxu0 %v3277
      %3941 = vmatpush1.bf16.msra.mxu0 %v3851
      %3942 = vmatprep.subr.bf16.mxu0 %v3276
      %3943 = vmatpush1.bf16.msra.mxu0 %v3848
      %3944 = vmatprep.subr.bf16.mxu0 %v3275
      %3945 = vmatpush1.bf16.msra.mxu0 %v3845
      %3946 = vmatprep.subr.bf16.mxu0 %v3274
      %3947 = vmatpush1.bf16.msra.mxu0 %v3842
      %3948 = vmatprep.subr.bf16.mxu0 %v3273
      %3949 = vmatpush1.bf16.msra.mxu0 %v3839
      %3950 = vmatprep.subr.bf16.mxu0 0
      %3951 = vmatpush2.bf16.msra.mxu0 %v3884
      %3952 = vmatprep.subr.bf16.mxu0 %v3287
      %3953 = vmatpush2.bf16.msra.mxu0 %v3881
      %3954 = vmatprep.subr.bf16.mxu0 %v3286
      %3955 = vmatpush2.bf16.msra.mxu0 %v3878
      %3956 = vmatprep.subr.bf16.mxu0 %v3285
      %3957 = vmatpush2.bf16.msra.mxu0 %v3875
      %3958 = vmatprep.subr.bf16.mxu0 %v3284
      %3959 = vmatpush2.bf16.msra.mxu0 %v3872
      %3960 = vmatprep.subr.bf16.mxu0 %v3283
      %3961 = vmatpush2.bf16.msra.mxu0 %v3869
      %3962 = vmatprep.subr.bf16.mxu0 %v3282
      %3963 = vmatpush2.bf16.msra.mxu0 %v3866
      %3964 = vmatprep.subr.bf16.mxu0 %v3281
      %3965 = vmatpush2.bf16.msra.mxu0 %v3863
      %3966 = vmatprep.mubr.bf16.mxu0 %v3919
      %3967 = vmatmul.mubr.bf16.gmra.mxu0 %v3918
      %v3968 = vpop.f32.mrf.mxu0
      %v3969 = vadd.f32 0.0, %v3968
      %v3970 = vpop.f32.mrf.mxu0
      %v3971 = vadd.f32 0.0, %v3970
      %v3972 = vpop.f32.mrf.mxu0
      %v3973 = vadd.f32 0.0, %v3972
      %v3974 = vpop.f32.mrf.mxu0
      %v3975 = vadd.f32 0.0, %v3974
      %3976 = vmatprep.mubr.bf16.mxu0 %v3921
      %3977 = vmatmul.mubr.bf16.gmra.mxu0 %v3920
      %v3978 = vpop.f32.mrf.mxu0
      %v3979 = vadd.f32 0.0, %v3978
      %v3980 = vpop.f32.mrf.mxu0
      %v3981 = vadd.f32 0.0, %v3980
      %v3982 = vpop.f32.mrf.mxu0
      %v3983 = vadd.f32 0.0, %v3982
      %v3984 = vpop.f32.mrf.mxu0
      %v3985 = vadd.f32 0.0, %v3984
      %3986 = vmatprep.mubr.bf16.mxu0 %v3923
      %3987 = vmatmul.mubr.bf16.gmra.mxu0 %v3922
      %v3988 = vpop.f32.mrf.mxu0
      %v3989 = vadd.f32 0.0, %v3988
      %v3990 = vpop.f32.mrf.mxu0
      %v3991 = vadd.f32 0.0, %v3990
      %v3992 = vpop.f32.mrf.mxu0
      %v3993 = vadd.f32 0.0, %v3992
      %v3994 = vpop.f32.mrf.mxu0
      %v3995 = vadd.f32 0.0, %v3994
      %3996 = vmatprep.mubr.bf16.mxu0 %v3925
      %3997 = vmatmul.mubr.bf16.gmra.mxu0 %v3924
      %v3998 = vpop.f32.mrf.mxu0
      %v3999 = vadd.f32 0.0, %v3998
      %v4000 = vpop.f32.mrf.mxu0
      %v4001 = vadd.f32 0.0, %v4000
      %v4002 = vpop.f32.mrf.mxu0
      %v4003 = vadd.f32 0.0, %v4002
      %v4004 = vpop.f32.mrf.mxu0
      %v4005 = vadd.f32 0.0, %v4004
      %4006 = vdwg.mxu0
      %v4007 = vpack.c.bf16 %v3973, %v3969
      %v4008 = vpack.c.bf16 %v3975, %v3971
      %v4009 = vpack.c.bf16 %v3983, %v3979
      %v4010 = vpack.c.bf16 %v3985, %v3981
      %v4011 = vpack.c.bf16 %v3993, %v3989
      %v4012 = vpack.c.bf16 %v3995, %v3991
      %v4013 = vpack.c.bf16 %v4003, %v3999
      %v4014 = vpack.c.bf16 %v4005, %v4001
      %v4015 = vld [vmem:[%s13] sm:$0xf]
      %v4016 = vld [vmem:[%s13 + $0x4] sm:$0xf]
      %v4017 = vld [vmem:[%s13 + $0x8] sm:$0xf]
      %v4018 = vld [vmem:[%s13 + $0xc] sm:$0xf]
      %v4019 = vld [vmem:[%s13 + $0x10] sm:$0xf]
      %v4020 = vld [vmem:[%s13 + $0x14] sm:$0xf]
      %v4021 = vld [vmem:[%s13 + $0x18] sm:$0xf]
      %v4022 = vld [vmem:[%s13 + $0x1c] sm:$0xf]
      %v4023 = vld [vmem:[%s13 + $0x20] sm:$0xf]
      %v4024 = vld [vmem:[%s13 + $0x24] sm:$0xf]
      %v4025 = vld [vmem:[%s13 + $0x28] sm:$0xf]
      %v4026 = vld [vmem:[%s13 + $0x2c] sm:$0xf]
      %v4027 = vld [vmem:[%s13 + $0x30] sm:$0xf]
      %v4028 = vld [vmem:[%s13 + $0x34] sm:$0xf]
      %v4029 = vld [vmem:[%s13 + $0x38] sm:$0xf]
      %v4030 = vld [vmem:[%s13 + $0x3c] sm:$0xf]
      %v4031 = vld [vmem:[%s13 + $0x40] sm:$0xf]
      %v4032 = vld [vmem:[%s13 + $0x44] sm:$0xf]
      %v4033 = vld [vmem:[%s15] sm:$0x1]
      %v4035 = vlaneseq
      %v4036 = vshrl.u32 %v4035, 7
      %v4037 = vsub.s32 0, %v4036
      %v4038 = vrot.slane %v4033, %v4037
      %v4058 = vunpack.c.l.b16 %v4015
      %v4059 = vunpack.c.l.b16 %v4016
      %v4060 = vunpack.c.l.b16 %v4017
      %v4061 = vunpack.c.l.b16 %v4018
      %v4062 = vunpack.c.l.b16 %v4019
      %v4063 = vunpack.c.l.b16 %v4020
      %v4064 = vunpack.c.l.b16 %v4021
      %v4065 = vunpack.c.l.b16 %v4022
      %v4066 = vunpack.c.l.b16 %v4023
      %v4067 = vunpack.c.l.b16 %v4024
      %v4068 = vunpack.c.l.b16 %v4025
      %v4069 = vunpack.c.l.b16 %v4026
      %v4070 = vunpack.c.l.b16 %v4027
      %v4071 = vunpack.c.l.b16 %v4028
      %v4072 = vunpack.c.l.b16 %v4029
      %v4073 = vunpack.c.l.b16 %v4030
      %v4074 = vunpack.c.l.b16 %v4031
      %v4075 = vunpack.c.l.b16 %v4032
      %v4076 = vpack.c.b16 %v4059, %v4058
      %v4077 = vpack.c.b16 %v4061, %v4060
      %v4078 = vpack.c.b16 %v4063, %v4062
      %v4079 = vpack.c.b16 %v4065, %v4064
      %v4080 = vpack.c.b16 %v4067, %v4066
      %v4081 = vpack.c.b16 %v4069, %v4068
      %v4082 = vpack.c.b16 %v4071, %v4070
      %v4083 = vpack.c.b16 %v4073, %v4072
      %v4084 = vpack.c.b16 %v4075, %v4074
      %v4095 = vsel %vm3623, %v4008, 0
      %v4098 = vsel %vm3623, %v4010, 0
      %v4101 = vsel %vm3623, %v4012, 0
      %v4104 = vsel %vm3623, %v4014, 0
      %4106 = vmatprep.subr.bf16.mxu0 0
      %4107 = vmatpush1.bf16.msra.mxu0 %v4083
      %4108 = vmatprep.subr.bf16.mxu0 0
      %4109 = vmatpush1.bf16.msra.mxu0 %v4082
      %4110 = vmatprep.subr.bf16.mxu0 0
      %4111 = vmatpush1.bf16.msra.mxu0 %v4081
      %4112 = vmatprep.subr.bf16.mxu0 0
      %4113 = vmatpush1.bf16.msra.mxu0 %v4080
      %4114 = vmatprep.subr.bf16.mxu0 0
      %4115 = vmatpush1.bf16.msra.mxu0 %v4079
      %4116 = vmatprep.subr.bf16.mxu0 0
      %4117 = vmatpush1.bf16.msra.mxu0 %v4078
      %4118 = vmatprep.subr.bf16.mxu0 0
      %4119 = vmatpush1.bf16.msra.mxu0 %v4077
      %4120 = vmatprep.subr.bf16.mxu0 0
      %4121 = vmatpush1.bf16.msra.mxu0 %v4076
      %4122 = vmatprep.subr.bf16.mxu0 0
      %4123 = vmatpush2.bf16.msra.mxu0 0
      %4124 = vmatprep.subr.bf16.mxu0 0
      %4125 = vmatpush2.bf16.msra.mxu0 0
      %4126 = vmatprep.subr.bf16.mxu0 0
      %4127 = vmatpush2.bf16.msra.mxu0 0
      %4128 = vmatprep.subr.bf16.mxu0 0
      %4129 = vmatpush2.bf16.msra.mxu0 0
      %4130 = vmatprep.subr.bf16.mxu0 0
      %4131 = vmatpush2.bf16.msra.mxu0 0
      %4132 = vmatprep.subr.bf16.mxu0 0
      %4133 = vmatpush2.bf16.msra.mxu0 0
      %4134 = vmatprep.subr.bf16.mxu0 0
      %4135 = vmatpush2.bf16.msra.mxu0 0
      %4136 = vmatprep.subr.bf16.mxu0 0
      %4137 = vmatpush2.bf16.msra.mxu0 %v4084
      %4138 = vmatprep.mubr.bf16.mxu0 %v4095
      %4139 = vmatmul.mubr.bf16.gmra.mxu0 %v4007
      %v4140 = vpop.f32.mrf.mxu0
      %v4141 = vadd.f32 %v4038, %v4140
      %v4142 = vpop.f32.mrf.mxu0
      %v4143 = vpop.f32.mrf.mxu0
      %v4144 = vadd.f32 %v4038, %v4143
      %v4145 = vpop.f32.mrf.mxu0
      %4146 = vmatprep.mubr.bf16.mxu0 %v4098
      %4147 = vmatmul.mubr.bf16.gmra.mxu0 %v4009
      %v4148 = vpop.f32.mrf.mxu0
      %v4149 = vadd.f32 %v4038, %v4148
      %v4150 = vpop.f32.mrf.mxu0
      %v4151 = vpop.f32.mrf.mxu0
      %v4152 = vadd.f32 %v4038, %v4151
      %v4153 = vpop.f32.mrf.mxu0
      %4154 = vmatprep.mubr.bf16.mxu0 %v4101
      %4155 = vmatmul.mubr.bf16.gmra.mxu0 %v4011
      %v4156 = vpop.f32.mrf.mxu0
      %v4157 = vadd.f32 %v4038, %v4156
      %v4158 = vpop.f32.mrf.mxu0
      %v4159 = vpop.f32.mrf.mxu0
      %v4160 = vadd.f32 %v4038, %v4159
      %v4161 = vpop.f32.mrf.mxu0
      %4162 = vmatprep.mubr.bf16.mxu0 %v4104
      %4163 = vmatmul.mubr.bf16.gmra.mxu0 %v4013
      %v4164 = vpop.f32.mrf.mxu0
      %v4165 = vadd.f32 %v4038, %v4164
      %v4166 = vpop.f32.mrf.mxu0
      %v4167 = vpop.f32.mrf.mxu0
      %v4168 = vadd.f32 %v4038, %v4167
      %v4169 = vpop.f32.mrf.mxu0
      %4170 = vdwg.mxu0
      %v4171 = vxor.u32 %v4141, 2147483648
      %v4172 = vxor.u32 %v4144, 2147483648
      %v4173 = vxor.u32 %v4149, 2147483648
      %v4174 = vxor.u32 %v4152, 2147483648
      %v4175 = vxor.u32 %v4157, 2147483648
      %v4176 = vxor.u32 %v4160, 2147483648
      %v4177 = vxor.u32 %v4165, 2147483648
      %v4178 = vxor.u32 %v4168, 2147483648
      %v4179 = vmul.f32 %v4171, 1.442695
      %v4180 = vpow.pop %v4179
      %v4181 = vmul.f32 %v4172, 1.442695
      %v4182 = vpow.pop %v4181
      %v4183 = vmul.f32 %v4173, 1.442695
      %v4184 = vpow.pop %v4183
      %v4185 = vmul.f32 %v4174, 1.442695
      %v4186 = vpow.pop %v4185
      %v4187 = vmul.f32 %v4175, 1.442695
      %v4188 = vpow.pop %v4187
      %v4189 = vmul.f32 %v4176, 1.442695
      %v4190 = vpow.pop %v4189
      %v4191 = vmul.f32 %v4177, 1.442695
      %v4192 = vpow.pop %v4191
      %v4193 = vmul.f32 %v4178, 1.442695
      %v4194 = vpow.pop %v4193
      %v4195 = vadd.f32 %v4180, 1.0
      %v4196 = vadd.f32 %v4182, 1.0
      %v4197 = vadd.f32 %v4184, 1.0
      %v4198 = vadd.f32 %v4186, 1.0
      %v4199 = vadd.f32 %v4188, 1.0
      %v4200 = vadd.f32 %v4190, 1.0
      %v4201 = vadd.f32 %v4192, 1.0
      %v4202 = vadd.f32 %v4194, 1.0
      %v4203 = vrcp.pop %v4195
      %v4204 = vmul.f32 1.0, %v4203
      %v4205 = vrcp.pop %v4196
      %v4206 = vmul.f32 1.0, %v4205
      %v4207 = vrcp.pop %v4197
      %v4208 = vmul.f32 1.0, %v4207
      %v4209 = vrcp.pop %v4198
      %v4210 = vmul.f32 1.0, %v4209
      %v4211 = vrcp.pop %v4199
      %v4212 = vmul.f32 1.0, %v4211
      %v4213 = vrcp.pop %v4200
      %v4214 = vmul.f32 1.0, %v4213
      %v4215 = vrcp.pop %v4201
      %v4216 = vmul.f32 1.0, %v4215
      %v4217 = vrcp.pop %v4202
      %v4218 = vmul.f32 1.0, %v4217
      %v4219 = vmul.f32 %v4141, %v4204
      %v4220 = vmul.f32 %v4144, %v4206
      %v4221 = vmul.f32 %v4149, %v4208
      %v4222 = vmul.f32 %v4152, %v4210
      %v4223 = vmul.f32 %v4157, %v4212
      %v4224 = vmul.f32 %v4160, %v4214
      %v4225 = vmul.f32 %v4165, %v4216
      %v4226 = vmul.f32 %v4168, %v4218
      %v4227 = vpack.c.bf16 %v4220, %v4219
      %v4228 = vpack.c.bf16 %v4222, %v4221
      %v4229 = vpack.c.bf16 %v4224, %v4223
      %v4230 = vpack.c.bf16 %v4226, %v4225
      %v4231 = vld [vmem:[%s17] sm:$0xf]
      %v4232 = vld [vmem:[%s17 + $0x4] sm:$0xf]
      %v4233 = vld [vmem:[%s17 + $0x8] sm:$0xf]
      %v4234 = vld [vmem:[%s17 + $0xc] sm:$0xf]
      %v4235 = vld [vmem:[%s19] sm:$0x1]
      %v4237 = vlaneseq
      %v4238 = vshrl.u32 %v4237, 7
      %v4239 = vsub.s32 0, %v4238
      %v4240 = vrot.slane %v4235, %v4239
      %v4246 = vunpack.c.l.b16 %v4231
      %v4247 = vunpack.c.l.b16 %v4232
      %v4248 = vunpack.c.l.b16 %v4233
      %v4249 = vunpack.c.l.b16 %v4234
      %v4250 = vpack.c.b16 %v4247, %v4246
      %v4251 = vpack.c.b16 %v4249, %v4248
      %v4255 = vsel %vm3672, %v4227, 0
      %v4258 = vsel %vm3672, %v4228, 0
      %v4261 = vsel %vm3672, %v4229, 0
      %v4264 = vsel %vm3672, %v4230, 0
      %4266 = vmatprep.subr.bf16.mxu0 0
      %4267 = vmatpush1.bf16.msra.mxu0 0
      %4268 = vmatprep.subr.bf16.mxu0 0
      %4269 = vmatpush1.bf16.msra.mxu0 0
      %4270 = vmatprep.subr.bf16.mxu0 0
      %4271 = vmatpush1.bf16.msra.mxu0 0
      %4272 = vmatprep.subr.bf16.mxu0 0
      %4273 = vmatpush1.bf16.msra.mxu0 0
      %4274 = vmatprep.subr.bf16.mxu0 0
      %4275 = vmatpush1.bf16.msra.mxu0 0
      %4276 = vmatprep.subr.bf16.mxu0 0
      %4277 = vmatpush1.bf16.msra.mxu0 0
      %4278 = vmatprep.subr.bf16.mxu0 0
      %4279 = vmatpush1.bf16.msra.mxu0 %v4251
      %4280 = vmatprep.subr.bf16.mxu0 0
      %4281 = vmatpush1.bf16.msra.mxu0 %v4250
      %4282 = vmatprep.subr.bf16.mxu0 0
      %4283 = vmatpush2.bf16.msra.mxu0 0
      %4284 = vmatprep.subr.bf16.mxu0 0
      %4285 = vmatpush2.bf16.msra.mxu0 0
      %4286 = vmatprep.subr.bf16.mxu0 0
      %4287 = vmatpush2.bf16.msra.mxu0 0
      %4288 = vmatprep.subr.bf16.mxu0 0
      %4289 = vmatpush2.bf16.msra.mxu0 0
      %4290 = vmatprep.subr.bf16.mxu0 0
      %4291 = vmatpush2.bf16.msra.mxu0 0
      %4292 = vmatprep.subr.bf16.mxu0 0
      %4293 = vmatpush2.bf16.msra.mxu0 0
      %4294 = vmatprep.subr.bf16.mxu0 0
      %4295 = vmatpush2.bf16.msra.mxu0 0
      %4296 = vmatprep.subr.bf16.mxu0 0
      %4297 = vmatpush2.bf16.msra.mxu0 0
      %4298 = vmatprep.mubr.bf16.mxu0 0
      %4299 = vmatmul.mubr.bf16.gmra.mxu0 %v4255
      %v4300 = vpop.f32.mrf.mxu0
      %v4301 = vadd.f32 %v4240, %v4300
      %v4302 = vpop.f32.mrf.mxu0
      %v4303 = vpop.f32.mrf.mxu0
      %v4304 = vadd.f32 %v4240, %v4303
      %v4305 = vpop.f32.mrf.mxu0
      %4306 = vmatprep.mubr.bf16.mxu0 0
      %4307 = vmatmul.mubr.bf16.gmra.mxu0 %v4258
      %v4308 = vpop.f32.mrf.mxu0
      %v4309 = vadd.f32 %v4240, %v4308
      %v4310 = vpop.f32.mrf.mxu0
      %v4311 = vpop.f32.mrf.mxu0
      %v4312 = vadd.f32 %v4240, %v4311
      %v4313 = vpop.f32.mrf.mxu0
      %4314 = vmatprep.mubr.bf16.mxu0 0
      %4315 = vmatmul.mubr.bf16.gmra.mxu0 %v4261
      %v4316 = vpop.f32.mrf.mxu0
      %v4317 = vadd.f32 %v4240, %v4316
      %v4318 = vpop.f32.mrf.mxu0
      %v4319 = vpop.f32.mrf.mxu0
      %v4320 = vadd.f32 %v4240, %v4319
      %v4321 = vpop.f32.mrf.mxu0
      %4322 = vmatprep.mubr.bf16.mxu0 0
      %4323 = vmatmul.mubr.bf16.gmra.mxu0 %v4264
      %v4324 = vpop.f32.mrf.mxu0
      %v4325 = vadd.f32 %v4240, %v4324
      %v4326 = vpop.f32.mrf.mxu0
      %v4327 = vpop.f32.mrf.mxu0
      %v4328 = vadd.f32 %v4240, %v4327
      %v4329 = vpop.f32.mrf.mxu0
      %4330 = vdwg.mxu0
      %v4331 = vxor.u32 %v4301, 2147483648
      %v4332 = vxor.u32 %v4304, 2147483648
      %v4333 = vxor.u32 %v4309, 2147483648
      %v4334 = vxor.u32 %v4312, 2147483648
      %v4335 = vxor.u32 %v4317, 2147483648
      %v4336 = vxor.u32 %v4320, 2147483648
      %v4337 = vxor.u32 %v4325, 2147483648
      %v4338 = vxor.u32 %v4328, 2147483648
      %v4339 = vmul.f32 %v4331, 1.442695
      %v4340 = vpow.pop %v4339
      %v4341 = vmul.f32 %v4332, 1.442695
      %v4342 = vpow.pop %v4341
      %v4343 = vmul.f32 %v4333, 1.442695
      %v4344 = vpow.pop %v4343
      %v4345 = vmul.f32 %v4334, 1.442695
      %v4346 = vpow.pop %v4345
      %v4347 = vmul.f32 %v4335, 1.442695
      %v4348 = vpow.pop %v4347
      %v4349 = vmul.f32 %v4336, 1.442695
      %v4350 = vpow.pop %v4349
      %v4351 = vmul.f32 %v4337, 1.442695
      %v4352 = vpow.pop %v4351
      %v4353 = vmul.f32 %v4338, 1.442695
      %v4354 = vpow.pop %v4353
      %v4355 = vadd.f32 %v4340, 1.0
      %v4356 = vadd.f32 %v4342, 1.0
      %v4357 = vadd.f32 %v4344, 1.0
      %v4358 = vadd.f32 %v4346, 1.0
      %v4359 = vadd.f32 %v4348, 1.0
      %v4360 = vadd.f32 %v4350, 1.0
      %v4361 = vadd.f32 %v4352, 1.0
      %v4362 = vadd.f32 %v4354, 1.0
      %v4363 = vrcp.pop %v4355
      %v4364 = vmul.f32 1.0, %v4363
      %v4365 = vrcp.pop %v4356
      %v4366 = vmul.f32 1.0, %v4365
      %v4367 = vrcp.pop %v4357
      %v4368 = vmul.f32 1.0, %v4367
      %v4369 = vrcp.pop %v4358
      %v4370 = vmul.f32 1.0, %v4369
      %v4371 = vrcp.pop %v4359
      %v4372 = vmul.f32 1.0, %v4371
      %v4373 = vrcp.pop %v4360
      %v4374 = vmul.f32 1.0, %v4373
      %v4375 = vrcp.pop %v4361
      %v4376 = vmul.f32 1.0, %v4375
      %v4377 = vrcp.pop %v4362
      %v4378 = vmul.f32 1.0, %v4377
      %v4379 = vmul.f32 %v4301, %v4364
      %v4380 = vmul.f32 %v4304, %v4366
      %v4381 = vmul.f32 %v4309, %v4368
      %v4382 = vmul.f32 %v4312, %v4370
      %v4383 = vmul.f32 %v4317, %v4372
      %v4384 = vmul.f32 %v4320, %v4374
      %v4385 = vmul.f32 %v4325, %v4376
      %v4386 = vmul.f32 %v4328, %v4378
      %v4387 = vpack.c.bf16 %v4380, %v4379
      %v4388 = vpack.c.bf16 %v4382, %v4381
      %v4389 = vpack.c.bf16 %v4384, %v4383
      %v4390 = vpack.c.bf16 %v4386, %v4385
      %v4391 = vand.u32 %v1638, 7
      %v4392 = vand.u32 %v1639, 7
      %v4393 = vand.u32 %v1640, 7
      %v4394 = vand.u32 %v1641, 7
      %v4395 = vand.u32 %v1642, 7
      %v4396 = vand.u32 %v1643, 7
      %v4397 = vand.u32 %v1644, 7
      %v4398 = vand.u32 %v1645, 7
      %vm4399 = vsmask.f32 4352
      %v4401 = vshrl.u32 %v4387, 16
      %v4403 = vrot.slane %v4401, 3
      %v4404 = vshll.u32 %v4387, 16
      %v4406 = vrot.slane %v4404, 4
      %v4407 = vor.u32 %v4403, %v4406
      %v4409 = vshrl.u32 %v4388, 16
      %v4411 = vrot.slane %v4409, 3
      %v4412 = vshll.u32 %v4388, 16
      %v4414 = vrot.slane %v4412, 4
      %v4415 = vor.u32 %v4411, %v4414
      %v4416 = vsel %vm4399, %v4407, %v4415
      %v4418 = vshrl.u32 %v4389, 16
      %v4420 = vrot.slane %v4418, 3
      %v4421 = vshll.u32 %v4389, 16
      %v4423 = vrot.slane %v4421, 4
      %v4424 = vor.u32 %v4420, %v4423
      %v4425 = vsel %vm4399, %v4415, %v4424
      %v4427 = vshrl.u32 %v4390, 16
      %v4429 = vrot.slane %v4427, 3
      %v4430 = vshll.u32 %v4390, 16
      %v4432 = vrot.slane %v4430, 4
      %v4433 = vor.u32 %v4429, %v4432
      %v4434 = vsel %vm4399, %v4424, %v4433
      %4435 = vrot.lane.b32.xlu0 %v4407, 112
      %v4436 = vpop.permute.xlu0 %4435
      %4437 = vrot.lane.b32.xlu0 %v4416, 112
      %v4438 = vpop.permute.xlu0 %4437
      %4439 = vrot.lane.b32.xlu0 %v4425, 112
      %v4440 = vpop.permute.xlu0 %4439
      %4441 = vrot.lane.b32.xlu0 %v4434, 112
      %v4442 = vpop.permute.xlu0 %4441
      %vm4447 = vcmask 1044480
      %vm4448 = vmand %vm4447, %vm4399
      %v4449 = vsel %vm4448, 0, %v4436
      %vm4450 = vcmp.ge.s32.totalorder %v1638, 8
      %vm4451 = vcmp.ge.s32.totalorder %v1639, 8
      %vm4452 = vcmp.ge.s32.totalorder %v1640, 8
      %vm4453 = vcmp.ge.s32.totalorder %v1641, 8
      %vm4454 = vcmp.ge.s32.totalorder %v1642, 8
      %vm4455 = vcmp.ge.s32.totalorder %v1643, 8
      %vm4456 = vcmp.ge.s32.totalorder %v1644, 8
      %vm4457 = vcmp.ge.s32.totalorder %v1645, 8
      %vm4458 = vcmp.gt.s32.totalorder %v4391, 0
      %vm4459 = vcmp.gt.s32.totalorder %v4392, 0
      %vm4460 = vcmp.gt.s32.totalorder %v4393, 0
      %vm4461 = vcmp.gt.s32.totalorder %v4394, 0
      %vm4462 = vcmp.gt.s32.totalorder %v4395, 0
      %vm4463 = vcmp.gt.s32.totalorder %v4396, 0
      %vm4464 = vcmp.gt.s32.totalorder %v4397, 0
      %vm4465 = vcmp.gt.s32.totalorder %v4398, 0
      %vm4466 = vmand %vm4450, %vm4458
      %vm4467 = vmand %vm4451, %vm4459
      %vm4468 = vmand %vm4452, %vm4460
      %vm4469 = vmand %vm4453, %vm4461
      %vm4470 = vmand %vm4454, %vm4462
      %vm4471 = vmand %vm4455, %vm4463
      %vm4472 = vmand %vm4456, %vm4464
      %vm4473 = vmand %vm4457, %vm4465
      %vm4474 = vmpackc.low %vm4466, %vm4466
      %vm4475 = vmpackc.low %vm4467, %vm4467
      %vm4476 = vmpackc.low %vm4468, %vm4468
      %vm4477 = vmpackc.low %vm4469, %vm4469
      %vm4478 = vmpackc.low %vm4470, %vm4470
      %vm4479 = vmpackc.low %vm4471, %vm4471
      %vm4480 = vmpackc.low %vm4472, %vm4472
      %vm4481 = vmpackc.low %vm4473, %vm4473
      %v4482 = vsel %vm4474, 65537, 0
      %v4483 = vsel %vm4475, 65537, 0
      %v4484 = vsel %vm4476, 65537, 0
      %v4485 = vsel %vm4477, 65537, 0
      %v4486 = vsel %vm4478, 65537, 0
      %v4487 = vsel %vm4479, 65537, 0
      %v4488 = vsel %vm4480, 65537, 0
      %v4489 = vsel %vm4481, 65537, 0
      %v4490 = vunpack.c.l.b16 %v4482
      %v4491 = vunpack.c.l.b16 %v4483
      %v4492 = vunpack.c.l.b16 %v4484
      %v4493 = vunpack.c.l.b16 %v4485
      %v4494 = vunpack.c.l.b16 %v4486
      %v4495 = vunpack.c.l.b16 %v4487
      %v4496 = vunpack.c.l.b16 %v4488
      %v4497 = vunpack.c.l.b16 %v4489
      %v4498 = vpack.c.b16 %v4491, %v4490
      %v4499 = vpack.c.b16 %v4493, %v4492
      %v4500 = vpack.c.b16 %v4495, %v4494
      %v4501 = vpack.c.b16 %v4497, %v4496
      %vm4502 = vcmp.ne.s16.totalorder %v4498, 0
      %vm4503 = vcmp.ne.s16.totalorder %v4499, 0
      %vm4504 = vcmp.ne.s16.totalorder %v4500, 0
      %vm4505 = vcmp.ne.s16.totalorder %v4501, 0
      %v4506 = vsel %vm4502, %v4449, 0
      %v4507 = vsel %vm4503, %v4438, 0
      %v4508 = vsel %vm4504, %v4440, 0
      %v4509 = vsel %vm4505, %v4442, 0
      %vm4514 = vcmask 1043456
      %v4515 = vrot.slane %v4387, 4
      %v4516 = vrot.slane %v4388, 4
      %v4517 = vsel %vm4514, %v4515, %v4516
      %v4518 = vrot.slane %v4389, 4
      %v4519 = vsel %vm4514, %v4516, %v4518
      %v4520 = vrot.slane %v4390, 4
      %v4521 = vsel %vm4514, %v4518, %v4520
      %4522 = vrot.lane.b32.xlu0 %v4515, 112
      %v4523 = vpop.permute.xlu0 %4522
      %4524 = vrot.lane.b32.xlu0 %v4517, 112
      %v4525 = vpop.permute.xlu0 %4524
      %4526 = vrot.lane.b32.xlu0 %v4519, 112
      %v4527 = vpop.permute.xlu0 %4526
      %4528 = vrot.lane.b32.xlu0 %v4521, 112
      %v4529 = vpop.permute.xlu0 %4528
      %vm4533 = vcmask 1043456
      %v4535 = vsel %vm4533, 0, %v4523
      %vm4537 = vmpackc.low %vm4450, %vm4450
      %vm4538 = vmpackc.low %vm4451, %vm4451
      %vm4539 = vmpackc.low %vm4452, %vm4452
      %vm4540 = vmpackc.low %vm4453, %vm4453
      %vm4541 = vmpackc.low %vm4454, %vm4454
      %vm4542 = vmpackc.low %vm4455, %vm4455
      %vm4543 = vmpackc.low %vm4456, %vm4456
      %vm4544 = vmpackc.low %vm4457, %vm4457
      %v4545 = vsel %vm4537, 65537, 0
      %v4546 = vsel %vm4538, 65537, 0
      %v4547 = vsel %vm4539, 65537, 0
      %v4548 = vsel %vm4540, 65537, 0
      %v4549 = vsel %vm4541, 65537, 0
      %v4550 = vsel %vm4542, 65537, 0
      %v4551 = vsel %vm4543, 65537, 0
      %v4552 = vsel %vm4544, 65537, 0
      %v4553 = vunpack.c.l.b16 %v4545
      %v4554 = vunpack.c.l.b16 %v4546
      %v4555 = vunpack.c.l.b16 %v4547
      %v4556 = vunpack.c.l.b16 %v4548
      %v4557 = vunpack.c.l.b16 %v4549
      %v4558 = vunpack.c.l.b16 %v4550
      %v4559 = vunpack.c.l.b16 %v4551
      %v4560 = vunpack.c.l.b16 %v4552
      %v4561 = vpack.c.b16 %v4554, %v4553
      %v4562 = vpack.c.b16 %v4556, %v4555
      %v4563 = vpack.c.b16 %v4558, %v4557
      %v4564 = vpack.c.b16 %v4560, %v4559
      %vm4565 = vcmp.ne.s16.totalorder %v4561, 0
      %vm4566 = vcmp.ne.s16.totalorder %v4562, 0
      %vm4567 = vcmp.ne.s16.totalorder %v4563, 0
      %vm4568 = vcmp.ne.s16.totalorder %v4564, 0
      %v4569 = vsel %vm4565, %v4535, 0
      %v4570 = vsel %vm4566, %v4525, 0
      %v4571 = vsel %vm4567, %v4527, 0
      %v4572 = vsel %vm4568, %v4529, 0
      %vm4573 = vsmask.f32 3328
      %v4574 = vrot.slane %v4401, 4
      %v4575 = vrot.slane %v4404, 5
      %v4576 = vor.u32 %v4574, %v4575
      %v4577 = vrot.slane %v4409, 4
      %v4578 = vrot.slane %v4412, 5
      %v4579 = vor.u32 %v4577, %v4578
      %v4580 = vsel %vm4573, %v4576, %v4579
      %v4581 = vrot.slane %v4418, 4
      %v4582 = vrot.slane %v4421, 5
      %v4583 = vor.u32 %v4581, %v4582
      %v4584 = vsel %vm4573, %v4579, %v4583
      %v4585 = vrot.slane %v4427, 4
      %v4586 = vrot.slane %v4430, 5
      %v4587 = vor.u32 %v4585, %v4586
      %v4588 = vsel %vm4573, %v4583, %v4587
      %4589 = vrot.lane.b32.xlu0 %v4576, 112
      %v4590 = vpop.permute.xlu0 %4589
      %4591 = vrot.lane.b32.xlu0 %v4580, 112
      %v4592 = vpop.permute.xlu0 %4591
      %4593 = vrot.lane.b32.xlu0 %v4584, 112
      %v4594 = vpop.permute.xlu0 %4593
      %4595 = vrot.lane.b32.xlu0 %v4588, 112
      %v4596 = vpop.permute.xlu0 %4595
      %vm4601 = vmand %vm4514, %vm4573
      %v4602 = vsel %vm4601, 0, %v4590
      %vm4603 = vcmp.lt.s32.totalorder %v4391, 7
      %vm4604 = vcmp.lt.s32.totalorder %v4392, 7
      %vm4605 = vcmp.lt.s32.totalorder %v4393, 7
      %vm4606 = vcmp.lt.s32.totalorder %v4394, 7
      %vm4607 = vcmp.lt.s32.totalorder %v4395, 7
      %vm4608 = vcmp.lt.s32.totalorder %v4396, 7
      %vm4609 = vcmp.lt.s32.totalorder %v4397, 7
      %vm4610 = vcmp.lt.s32.totalorder %v4398, 7
      %vm4611 = vmand %vm4450, %vm4603
      %vm4612 = vmand %vm4451, %vm4604
      %vm4613 = vmand %vm4452, %vm4605
      %vm4614 = vmand %vm4453, %vm4606
      %vm4615 = vmand %vm4454, %vm4607
      %vm4616 = vmand %vm4455, %vm4608
      %vm4617 = vmand %vm4456, %vm4609
      %vm4618 = vmand %vm4457, %vm4610
      %vm4619 = vmpackc.low %vm4611, %vm4611
      %vm4620 = vmpackc.low %vm4612, %vm4612
      %vm4621 = vmpackc.low %vm4613, %vm4613
      %vm4622 = vmpackc.low %vm4614, %vm4614
      %vm4623 = vmpackc.low %vm4615, %vm4615
      %vm4624 = vmpackc.low %vm4616, %vm4616
      %vm4625 = vmpackc.low %vm4617, %vm4617
      %vm4626 = vmpackc.low %vm4618, %vm4618
      %v4627 = vsel %vm4619, 65537, 0
      %v4628 = vsel %vm4620, 65537, 0
      %v4629 = vsel %vm4621, 65537, 0
      %v4630 = vsel %vm4622, 65537, 0
      %v4631 = vsel %vm4623, 65537, 0
      %v4632 = vsel %vm4624, 65537, 0
      %v4633 = vsel %vm4625, 65537, 0
      %v4634 = vsel %vm4626, 65537, 0
      %v4635 = vunpack.c.l.b16 %v4627
      %v4636 = vunpack.c.l.b16 %v4628
      %v4637 = vunpack.c.l.b16 %v4629
      %v4638 = vunpack.c.l.b16 %v4630
      %v4639 = vunpack.c.l.b16 %v4631
      %v4640 = vunpack.c.l.b16 %v4632
      %v4641 = vunpack.c.l.b16 %v4633
      %v4642 = vunpack.c.l.b16 %v4634
      %v4643 = vpack.c.b16 %v4636, %v4635
      %v4644 = vpack.c.b16 %v4638, %v4637
      %v4645 = vpack.c.b16 %v4640, %v4639
      %v4646 = vpack.c.b16 %v4642, %v4641
      %vm4647 = vcmp.ne.s16.totalorder %v4643, 0
      %vm4648 = vcmp.ne.s16.totalorder %v4644, 0
      %vm4649 = vcmp.ne.s16.totalorder %v4645, 0
      %vm4650 = vcmp.ne.s16.totalorder %v4646, 0
      %v4651 = vsel %vm4647, %v4602, 0
      %v4652 = vsel %vm4648, %v4592, 0
      %v4653 = vsel %vm4649, %v4594, 0
      %v4654 = vsel %vm4650, %v4596, 0
      %v4655 = vrot.slane %v4401, 7
      %v4656 = vor.u32 %v4655, %v4404
      %v4657 = vrot.slane %v4409, 7
      %v4658 = vor.u32 %v4657, %v4412
      %v4659 = vsel %vm1702, %v4655, %v4658
      %v4660 = vrot.slane %v4418, 7
      %v4661 = vor.u32 %v4660, %v4421
      %v4662 = vsel %vm1702, %v4657, %v4661
      %v4663 = vrot.slane %v4427, 7
      %v4664 = vor.u32 %v4663, %v4430
      %v4665 = vsel %vm1702, %v4660, %v4664
      %4666 = vrot.lane.b32.xlu0 %v4656, 112
      %v4667 = vpop.permute.xlu0 %4666
      %4668 = vrot.lane.b32.xlu0 %v4659, 112
      %v4669 = vpop.permute.xlu0 %4668
      %4670 = vrot.lane.b32.xlu0 %v4662, 112
      %v4671 = vpop.permute.xlu0 %4670
      %4672 = vrot.lane.b32.xlu0 %v4665, 112
      %v4673 = vpop.permute.xlu0 %4672
      %v4678 = vsel %vm1838, 0, %v4667
      %vm4679 = vmpackc.low %vm4458, %vm4458
      %vm4680 = vmpackc.low %vm4459, %vm4459
      %vm4681 = vmpackc.low %vm4460, %vm4460
      %vm4682 = vmpackc.low %vm4461, %vm4461
      %vm4683 = vmpackc.low %vm4462, %vm4462
      %vm4684 = vmpackc.low %vm4463, %vm4463
      %vm4685 = vmpackc.low %vm4464, %vm4464
      %vm4686 = vmpackc.low %vm4465, %vm4465
      %v4687 = vsel %vm4679, 65537, 0
      %v4688 = vsel %vm4680, 65537, 0
      %v4689 = vsel %vm4681, 65537, 0
      %v4690 = vsel %vm4682, 65537, 0
      %v4691 = vsel %vm4683, 65537, 0
      %v4692 = vsel %vm4684, 65537, 0
      %v4693 = vsel %vm4685, 65537, 0
      %v4694 = vsel %vm4686, 65537, 0
      %v4695 = vunpack.c.l.b16 %v4687
      %v4696 = vunpack.c.l.b16 %v4688
      %v4697 = vunpack.c.l.b16 %v4689
      %v4698 = vunpack.c.l.b16 %v4690
      %v4699 = vunpack.c.l.b16 %v4691
      %v4700 = vunpack.c.l.b16 %v4692
      %v4701 = vunpack.c.l.b16 %v4693
      %v4702 = vunpack.c.l.b16 %v4694
      %v4703 = vpack.c.b16 %v4696, %v4695
      %v4704 = vpack.c.b16 %v4698, %v4697
      %v4705 = vpack.c.b16 %v4700, %v4699
      %v4706 = vpack.c.b16 %v4702, %v4701
      %vm4707 = vcmp.ne.s16.totalorder %v4703, 0
      %vm4708 = vcmp.ne.s16.totalorder %v4704, 0
      %vm4709 = vcmp.ne.s16.totalorder %v4705, 0
      %vm4710 = vcmp.ne.s16.totalorder %v4706, 0
      %v4711 = vsel %vm4707, %v4678, 0
      %v4712 = vsel %vm4708, %v4669, 0
      %v4713 = vsel %vm4709, %v4671, 0
      %v4714 = vsel %vm4710, %v4673, 0
      %v4715 = vrot.slane %v4404, 1
      %v4716 = vor.u32 %v4401, %v4715
      %v4717 = vrot.slane %v4412, 1
      %v4718 = vsel %vm2204, %v4716, %v4717
      %v4719 = vor.u32 %v4409, %v4717
      %v4720 = vrot.slane %v4421, 1
      %v4721 = vsel %vm2204, %v4719, %v4720
      %v4722 = vor.u32 %v4418, %v4720
      %v4723 = vrot.slane %v4430, 1
      %v4724 = vsel %vm2204, %v4722, %v4723
      %v4725 = vor.u32 %v4427, %v4723
      %v4730 = vsel %vm2271, %v4725, 0
      %vm4731 = vmpackc.low %vm4603, %vm4603
      %vm4732 = vmpackc.low %vm4604, %vm4604
      %vm4733 = vmpackc.low %vm4605, %vm4605
      %vm4734 = vmpackc.low %vm4606, %vm4606
      %vm4735 = vmpackc.low %vm4607, %vm4607
      %vm4736 = vmpackc.low %vm4608, %vm4608
      %vm4737 = vmpackc.low %vm4609, %vm4609
      %vm4738 = vmpackc.low %vm4610, %vm4610
      %v4739 = vsel %vm4731, 65537, 0
      %v4740 = vsel %vm4732, 65537, 0
      %v4741 = vsel %vm4733, 65537, 0
      %v4742 = vsel %vm4734, 65537, 0
      %v4743 = vsel %vm4735, 65537, 0
      %v4744 = vsel %vm4736, 65537, 0
      %v4745 = vsel %vm4737, 65537, 0
      %v4746 = vsel %vm4738, 65537, 0
      %v4747 = vunpack.c.l.b16 %v4739
      %v4748 = vunpack.c.l.b16 %v4740
      %v4749 = vunpack.c.l.b16 %v4741
      %v4750 = vunpack.c.l.b16 %v4742
      %v4751 = vunpack.c.l.b16 %v4743
      %v4752 = vunpack.c.l.b16 %v4744
      %v4753 = vunpack.c.l.b16 %v4745
      %v4754 = vunpack.c.l.b16 %v4746
      %v4755 = vpack.c.b16 %v4748, %v4747
      %v4756 = vpack.c.b16 %v4750, %v4749
      %v4757 = vpack.c.b16 %v4752, %v4751
      %v4758 = vpack.c.b16 %v4754, %v4753
      %vm4759 = vcmp.ne.s16.totalorder %v4755, 0
      %vm4760 = vcmp.ne.s16.totalorder %v4756, 0
      %vm4761 = vcmp.ne.s16.totalorder %v4757, 0
      %vm4762 = vcmp.ne.s16.totalorder %v4758, 0
      %v4763 = vsel %vm4759, %v4718, 0
      %v4764 = vsel %vm4760, %v4721, 0
      %v4765 = vsel %vm4761, %v4724, 0
      %v4766 = vsel %vm4762, %v4730, 0
      %v4771 = vsel %vm4448, %v4433, 0
      %vm4772 = vcmp.lt.s32.totalorder %v1638, 56
      %vm4773 = vcmp.lt.s32.totalorder %v1639, 56
      %vm4774 = vcmp.lt.s32.totalorder %v1640, 56
      %vm4775 = vcmp.lt.s32.totalorder %v1641, 56
      %vm4776 = vcmp.lt.s32.totalorder %v1642, 56
      %vm4777 = vcmp.lt.s32.totalorder %v1643, 56
      %vm4778 = vcmp.lt.s32.totalorder %v1644, 56
      %vm4779 = vcmp.lt.s32.totalorder %v1645, 56
      %vm4780 = vmand %vm4772, %vm4458
      %vm4781 = vmand %vm4773, %vm4459
      %vm4782 = vmand %vm4774, %vm4460
      %vm4783 = vmand %vm4775, %vm4461
      %vm4784 = vmand %vm4776, %vm4462
      %vm4785 = vmand %vm4777, %vm4463
      %vm4786 = vmand %vm4778, %vm4464
      %vm4787 = vmand %vm4779, %vm4465
      %vm4788 = vmpackc.low %vm4780, %vm4780
      %vm4789 = vmpackc.low %vm4781, %vm4781
      %vm4790 = vmpackc.low %vm4782, %vm4782
      %vm4791 = vmpackc.low %vm4783, %vm4783
      %vm4792 = vmpackc.low %vm4784, %vm4784
      %vm4793 = vmpackc.low %vm4785, %vm4785
      %vm4794 = vmpackc.low %vm4786, %vm4786
      %vm4795 = vmpackc.low %vm4787, %vm4787
      %v4796 = vsel %vm4788, 65537, 0
      %v4797 = vsel %vm4789, 65537, 0
      %v4798 = vsel %vm4790, 65537, 0
      %v4799 = vsel %vm4791, 65537, 0
      %v4800 = vsel %vm4792, 65537, 0
      %v4801 = vsel %vm4793, 65537, 0
      %v4802 = vsel %vm4794, 65537, 0
      %v4803 = vsel %vm4795, 65537, 0
      %v4804 = vunpack.c.l.b16 %v4796
      %v4805 = vunpack.c.l.b16 %v4797
      %v4806 = vunpack.c.l.b16 %v4798
      %v4807 = vunpack.c.l.b16 %v4799
      %v4808 = vunpack.c.l.b16 %v4800
      %v4809 = vunpack.c.l.b16 %v4801
      %v4810 = vunpack.c.l.b16 %v4802
      %v4811 = vunpack.c.l.b16 %v4803
      %v4812 = vpack.c.b16 %v4805, %v4804
      %v4813 = vpack.c.b16 %v4807, %v4806
      %v4814 = vpack.c.b16 %v4809, %v4808
      %v4815 = vpack.c.b16 %v4811, %v4810
      %vm4816 = vcmp.ne.s16.totalorder %v4812, 0
      %vm4817 = vcmp.ne.s16.totalorder %v4813, 0
      %vm4818 = vcmp.ne.s16.totalorder %v4814, 0
      %vm4819 = vcmp.ne.s16.totalorder %v4815, 0
      %v4820 = vsel %vm4816, %v4416, 0
      %v4821 = vsel %vm4817, %v4425, 0
      %v4822 = vsel %vm4818, %v4434, 0
      %v4823 = vsel %vm4819, %v4771, 0
      %v4828 = vsel %vm4533, %v4520, 0
      %vm4830 = vmpackc.low %vm4772, %vm4772
      %vm4831 = vmpackc.low %vm4773, %vm4773
      %vm4832 = vmpackc.low %vm4774, %vm4774
      %vm4833 = vmpackc.low %vm4775, %vm4775
      %vm4834 = vmpackc.low %vm4776, %vm4776
      %vm4835 = vmpackc.low %vm4777, %vm4777
      %vm4836 = vmpackc.low %vm4778, %vm4778
      %vm4837 = vmpackc.low %vm4779, %vm4779
      %v4838 = vsel %vm4830, 65537, 0
      %v4839 = vsel %vm4831, 65537, 0
      %v4840 = vsel %vm4832, 65537, 0
      %v4841 = vsel %vm4833, 65537, 0
      %v4842 = vsel %vm4834, 65537, 0
      %v4843 = vsel %vm4835, 65537, 0
      %v4844 = vsel %vm4836, 65537, 0
      %v4845 = vsel %vm4837, 65537, 0
      %v4846 = vunpack.c.l.b16 %v4838
      %v4847 = vunpack.c.l.b16 %v4839
      %v4848 = vunpack.c.l.b16 %v4840
      %v4849 = vunpack.c.l.b16 %v4841
      %v4850 = vunpack.c.l.b16 %v4842
      %v4851 = vunpack.c.l.b16 %v4843
      %v4852 = vunpack.c.l.b16 %v4844
      %v4853 = vunpack.c.l.b16 %v4845
      %v4854 = vpack.c.b16 %v4847, %v4846
      %v4855 = vpack.c.b16 %v4849, %v4848
      %v4856 = vpack.c.b16 %v4851, %v4850
      %v4857 = vpack.c.b16 %v4853, %v4852
      %vm4858 = vcmp.ne.s16.totalorder %v4854, 0
      %vm4859 = vcmp.ne.s16.totalorder %v4855, 0
      %vm4860 = vcmp.ne.s16.totalorder %v4856, 0
      %vm4861 = vcmp.ne.s16.totalorder %v4857, 0
      %v4862 = vsel %vm4858, %v4517, 0
      %v4863 = vsel %vm4859, %v4519, 0
      %v4864 = vsel %vm4860, %v4521, 0
      %v4865 = vsel %vm4861, %v4828, 0
      %v4870 = vsel %vm4601, %v4587, 0
      %vm4871 = vmand %vm4772, %vm4603
      %vm4872 = vmand %vm4773, %vm4604
      %vm4873 = vmand %vm4774, %vm4605
      %vm4874 = vmand %vm4775, %vm4606
      %vm4875 = vmand %vm4776, %vm4607
      %vm4876 = vmand %vm4777, %vm4608
      %vm4877 = vmand %vm4778, %vm4609
      %vm4878 = vmand %vm4779, %vm4610
      %vm4879 = vmpackc.low %vm4871, %vm4871
      %vm4880 = vmpackc.low %vm4872, %vm4872
      %vm4881 = vmpackc.low %vm4873, %vm4873
      %vm4882 = vmpackc.low %vm4874, %vm4874
      %vm4883 = vmpackc.low %vm4875, %vm4875
      %vm4884 = vmpackc.low %vm4876, %vm4876
      %vm4885 = vmpackc.low %vm4877, %vm4877
      %vm4886 = vmpackc.low %vm4878, %vm4878
      %v4887 = vsel %vm4879, 65537, 0
      %v4888 = vsel %vm4880, 65537, 0
      %v4889 = vsel %vm4881, 65537, 0
      %v4890 = vsel %vm4882, 65537, 0
      %v4891 = vsel %vm4883, 65537, 0
      %v4892 = vsel %vm4884, 65537, 0
      %v4893 = vsel %vm4885, 65537, 0
      %v4894 = vsel %vm4886, 65537, 0
      %v4895 = vunpack.c.l.b16 %v4887
      %v4896 = vunpack.c.l.b16 %v4888
      %v4897 = vunpack.c.l.b16 %v4889
      %v4898 = vunpack.c.l.b16 %v4890
      %v4899 = vunpack.c.l.b16 %v4891
      %v4900 = vunpack.c.l.b16 %v4892
      %v4901 = vunpack.c.l.b16 %v4893
      %v4902 = vunpack.c.l.b16 %v4894
      %v4903 = vpack.c.b16 %v4896, %v4895
      %v4904 = vpack.c.b16 %v4898, %v4897
      %v4905 = vpack.c.b16 %v4900, %v4899
      %v4906 = vpack.c.b16 %v4902, %v4901
      %vm4907 = vcmp.ne.s16.totalorder %v4903, 0
      %vm4908 = vcmp.ne.s16.totalorder %v4904, 0
      %vm4909 = vcmp.ne.s16.totalorder %v4905, 0
      %vm4910 = vcmp.ne.s16.totalorder %v4906, 0
      %v4911 = vsel %vm4907, %v4580, 0
      %v4912 = vsel %vm4908, %v4584, 0
      %v4913 = vsel %vm4909, %v4588, 0
      %v4914 = vsel %vm4910, %v4870, 0
      %4919 = vrot.lane.b32.xlu0 %v4569, 16
      %v4920 = vpop.permute.xlu0 %4919
      %4921 = vrot.lane.b32.xlu0 %v4570, 16
      %v4922 = vpop.permute.xlu0 %4921
      %4923 = vrot.lane.b32.xlu0 %v4571, 16
      %v4924 = vpop.permute.xlu0 %4923
      %4925 = vrot.lane.b32.xlu0 %v4572, 16
      %v4926 = vpop.permute.xlu0 %4925
      %4931 = vrot.lane.b32.xlu0 %v4651, 32
      %v4932 = vpop.permute.xlu0 %4931
      %4933 = vrot.lane.b32.xlu0 %v4652, 32
      %v4934 = vpop.permute.xlu0 %4933
      %4935 = vrot.lane.b32.xlu0 %v4653, 32
      %v4936 = vpop.permute.xlu0 %4935
      %4937 = vrot.lane.b32.xlu0 %v4654, 32
      %v4938 = vpop.permute.xlu0 %4937
      %4943 = vrot.lane.b32.xlu0 %v4711, 48
      %v4944 = vpop.permute.xlu0 %4943
      %4945 = vrot.lane.b32.xlu0 %v4712, 48
      %v4946 = vpop.permute.xlu0 %4945
      %4947 = vrot.lane.b32.xlu0 %v4713, 48
      %v4948 = vpop.permute.xlu0 %4947
      %4949 = vrot.lane.b32.xlu0 %v4714, 48
      %v4950 = vpop.permute.xlu0 %4949
      %4951 = vrot.lane.b32.xlu0 %v4387, 48
      %v4952 = vpop.permute.xlu0 %4951
      %4953 = vrot.lane.b32.xlu0 %v4388, 48
      %v4954 = vpop.permute.xlu0 %4953
      %4955 = vrot.lane.b32.xlu0 %v4389, 48
      %v4956 = vpop.permute.xlu0 %4955
      %4957 = vrot.lane.b32.xlu0 %v4390, 48
      %v4958 = vpop.permute.xlu0 %4957
      %4963 = vrot.lane.b32.xlu0 %v4763, 64
      %v4964 = vpop.permute.xlu0 %4963
      %4965 = vrot.lane.b32.xlu0 %v4764, 64
      %v4966 = vpop.permute.xlu0 %4965
      %4967 = vrot.lane.b32.xlu0 %v4765, 64
      %v4968 = vpop.permute.xlu0 %4967
      %4969 = vrot.lane.b32.xlu0 %v4766, 64
      %v4970 = vpop.permute.xlu0 %4969
      %4975 = vrot.lane.b32.xlu0 %v4820, 80
      %v4976 = vpop.permute.xlu0 %4975
      %4977 = vrot.lane.b32.xlu0 %v4821, 80
      %v4978 = vpop.permute.xlu0 %4977
      %4979 = vrot.lane.b32.xlu0 %v4822, 80
      %v4980 = vpop.permute.xlu0 %4979
      %4981 = vrot.lane.b32.xlu0 %v4823, 80
      %v4982 = vpop.permute.xlu0 %4981
      %4987 = vrot.lane.b32.xlu0 %v4862, 96
      %v4988 = vpop.permute.xlu0 %4987
      %4989 = vrot.lane.b32.xlu0 %v4863, 96
      %v4990 = vpop.permute.xlu0 %4989
      %4991 = vrot.lane.b32.xlu0 %v4864, 96
      %v4992 = vpop.permute.xlu0 %4991
      %4993 = vrot.lane.b32.xlu0 %v4865, 96
      %v4994 = vpop.permute.xlu0 %4993
      %4999 = vrot.lane.b32.xlu0 %v4911, 112
      %v5000 = vpop.permute.xlu0 %4999
      %5001 = vrot.lane.b32.xlu0 %v4912, 112
      %v5002 = vpop.permute.xlu0 %5001
      %5003 = vrot.lane.b32.xlu0 %v4913, 112
      %v5004 = vpop.permute.xlu0 %5003
      %5005 = vrot.lane.b32.xlu0 %v4914, 112
      %v5006 = vpop.permute.xlu0 %5005
      %v5009 = vsel %vm3623, %v4506, %v4920
      %v5012 = vsel %vm3623, %v4507, %v4922
      %v5015 = vsel %vm3623, %v4508, %v4924
      %v5018 = vsel %vm3623, %v4509, %v4926
      %v5020 = vsel %vm3672, %v5009, %v4932
      %v5022 = vsel %vm3672, %v5012, %v4934
      %v5024 = vsel %vm3672, %v5015, %v4936
      %v5026 = vsel %vm3672, %v5018, %v4938
      %v5028 = vsel %vm3705, %v5020, %v4944
      %v5030 = vsel %vm3705, %v5022, %v4946
      %v5032 = vsel %vm3705, %v5024, %v4948
      %v5034 = vsel %vm3705, %v5026, %v4950
      %v5036 = vsel %vm3738, %v5028, %v4952
      %v5038 = vsel %vm3738, %v5030, %v4954
      %v5040 = vsel %vm3738, %v5032, %v4956
      %v5042 = vsel %vm3738, %v5034, %v4958
      %v5044 = vsel %vm3771, %v5036, %v4964
      %v5046 = vsel %vm3771, %v5038, %v4966
      %v5048 = vsel %vm3771, %v5040, %v4968
      %v5050 = vsel %vm3771, %v5042, %v4970
      %v5052 = vsel %vm3804, %v5044, %v4976
      %v5054 = vsel %vm3804, %v5046, %v4978
      %v5056 = vsel %vm3804, %v5048, %v4980
      %v5058 = vsel %vm3804, %v5050, %v4982
      %v5060 = vsel %vm3837, %v5052, %v4988
      %v5063 = vsel %vm3837, %v5054, %v4990
      %v5066 = vsel %vm3837, %v5056, %v4992
      %v5069 = vsel %vm3837, %v5058, %v4994
      %v5071 = vld [vmem:[%s21] sm:$0xf]
      %v5072 = vld [vmem:[%s21 + $0x4] sm:$0xf]
      %v5073 = vld [vmem:[%s21 + $0x8] sm:$0xf]
      %v5074 = vld [vmem:[%s21 + $0xc] sm:$0xf]
      %v5075 = vld [vmem:[%s21 + $0x10] sm:$0xf]
      %v5076 = vld [vmem:[%s21 + $0x14] sm:$0xf]
      %v5077 = vld [vmem:[%s21 + $0x18] sm:$0xf]
      %v5078 = vld [vmem:[%s21 + $0x1c] sm:$0xf]
      %v5079 = vld [vmem:[%s21 + $0x20] sm:$0xf]
      %v5080 = vld [vmem:[%s21 + $0x24] sm:$0xf]
      %v5081 = vld [vmem:[%s21 + $0x28] sm:$0xf]
      %v5082 = vld [vmem:[%s21 + $0x2c] sm:$0xf]
      %v5083 = vld [vmem:[%s21 + $0x30] sm:$0xf]
      %v5084 = vld [vmem:[%s21 + $0x34] sm:$0xf]
      %v5085 = vld [vmem:[%s21 + $0x38] sm:$0xf]
      %v5086 = vld [vmem:[%s21 + $0x3c] sm:$0xf]
      %v5087 = vld [vmem:[%s21 + $0x40] sm:$0xf]
      %v5088 = vld [vmem:[%s21 + $0x44] sm:$0xf]
      %v5089 = vld [vmem:[%s23] sm:$0x1]
      %v5091 = vlaneseq
      %v5092 = vshrl.u32 %v5091, 7
      %v5093 = vsub.s32 0, %v5092
      %v5094 = vrot.slane %v5089, %v5093
      %v5114 = vunpack.c.l.b16 %v5071
      %v5115 = vunpack.c.l.b16 %v5072
      %v5116 = vunpack.c.l.b16 %v5073
      %v5117 = vunpack.c.l.b16 %v5074
      %v5118 = vunpack.c.l.b16 %v5075
      %v5119 = vunpack.c.l.b16 %v5076
      %v5120 = vunpack.c.l.b16 %v5077
      %v5121 = vunpack.c.l.b16 %v5078
      %v5122 = vunpack.c.l.b16 %v5079
      %v5123 = vunpack.c.l.b16 %v5080
      %v5124 = vunpack.c.l.b16 %v5081
      %v5125 = vunpack.c.l.b16 %v5082
      %v5126 = vunpack.c.l.b16 %v5083
      %v5127 = vunpack.c.l.b16 %v5084
      %v5128 = vunpack.c.l.b16 %v5085
      %v5129 = vunpack.c.l.b16 %v5086
      %v5130 = vunpack.c.l.b16 %v5087
      %v5131 = vunpack.c.l.b16 %v5088
      %v5132 = vpack.c.b16 %v5115, %v5114
      %v5133 = vpack.c.b16 %v5117, %v5116
      %v5134 = vpack.c.b16 %v5119, %v5118
      %v5135 = vpack.c.b16 %v5121, %v5120
      %v5136 = vpack.c.b16 %v5123, %v5122
      %v5137 = vpack.c.b16 %v5125, %v5124
      %v5138 = vpack.c.b16 %v5127, %v5126
      %v5139 = vpack.c.b16 %v5129, %v5128
      %v5140 = vpack.c.b16 %v5131, %v5130
      %v5151 = vsel %vm3623, %v5000, 0
      %v5154 = vsel %vm3623, %v5002, 0
      %v5157 = vsel %vm3623, %v5004, 0
      %v5160 = vsel %vm3623, %v5006, 0
      %5162 = vmatprep.subr.bf16.mxu0 0
      %5163 = vmatpush1.bf16.msra.mxu0 %v5139
      %5164 = vmatprep.subr.bf16.mxu0 0
      %5165 = vmatpush1.bf16.msra.mxu0 %v5138
      %5166 = vmatprep.subr.bf16.mxu0 0
      %5167 = vmatpush1.bf16.msra.mxu0 %v5137
      %5168 = vmatprep.subr.bf16.mxu0 0
      %5169 = vmatpush1.bf16.msra.mxu0 %v5136
      %5170 = vmatprep.subr.bf16.mxu0 0
      %5171 = vmatpush1.bf16.msra.mxu0 %v5135
      %5172 = vmatprep.subr.bf16.mxu0 0
      %5173 = vmatpush1.bf16.msra.mxu0 %v5134
      %5174 = vmatprep.subr.bf16.mxu0 0
      %5175 = vmatpush1.bf16.msra.mxu0 %v5133
      %5176 = vmatprep.subr.bf16.mxu0 0
      %5177 = vmatpush1.bf16.msra.mxu0 %v5132
      %5178 = vmatprep.subr.bf16.mxu0 0
      %5179 = vmatpush2.bf16.msra.mxu0 0
      %5180 = vmatprep.subr.bf16.mxu0 0
      %5181 = vmatpush2.bf16.msra.mxu0 0
      %5182 = vmatprep.subr.bf16.mxu0 0
      %5183 = vmatpush2.bf16.msra.mxu0 0
      %5184 = vmatprep.subr.bf16.mxu0 0
      %5185 = vmatpush2.bf16.msra.mxu0 0
      %5186 = vmatprep.subr.bf16.mxu0 0
      %5187 = vmatpush2.bf16.msra.mxu0 0
      %5188 = vmatprep.subr.bf16.mxu0 0
      %5189 = vmatpush2.bf16.msra.mxu0 0
      %5190 = vmatprep.subr.bf16.mxu0 0
      %5191 = vmatpush2.bf16.msra.mxu0 0
      %5192 = vmatprep.subr.bf16.mxu0 0
      %5193 = vmatpush2.bf16.msra.mxu0 %v5140
      %5194 = vmatprep.mubr.bf16.mxu0 %v5151
      %5195 = vmatmul.mubr.bf16.gmra.mxu0 %v5060
      %v5196 = vpop.f32.mrf.mxu0
      %v5197 = vadd.f32 %v5094, %v5196
      %v5198 = vpop.f32.mrf.mxu0
      %v5199 = vpop.f32.mrf.mxu0
      %v5200 = vadd.f32 %v5094, %v5199
      %v5201 = vpop.f32.mrf.mxu0
      %5202 = vmatprep.mubr.bf16.mxu0 %v5154
      %5203 = vmatmul.mubr.bf16.gmra.mxu0 %v5063
      %v5204 = vpop.f32.mrf.mxu0
      %v5205 = vadd.f32 %v5094, %v5204
      %v5206 = vpop.f32.mrf.mxu0
      %v5207 = vpop.f32.mrf.mxu0
      %v5208 = vadd.f32 %v5094, %v5207
      %v5209 = vpop.f32.mrf.mxu0
      %5210 = vmatprep.mubr.bf16.mxu0 %v5157
      %5211 = vmatmul.mubr.bf16.gmra.mxu0 %v5066
      %v5212 = vpop.f32.mrf.mxu0
      %v5213 = vadd.f32 %v5094, %v5212
      %v5214 = vpop.f32.mrf.mxu0
      %v5215 = vpop.f32.mrf.mxu0
      %v5216 = vadd.f32 %v5094, %v5215
      %v5217 = vpop.f32.mrf.mxu0
      %5218 = vmatprep.mubr.bf16.mxu0 %v5160
      %5219 = vmatmul.mubr.bf16.gmra.mxu0 %v5069
      %v5220 = vpop.f32.mrf.mxu0
      %v5221 = vadd.f32 %v5094, %v5220
      %v5222 = vpop.f32.mrf.mxu0
      %v5223 = vpop.f32.mrf.mxu0
      %v5224 = vadd.f32 %v5094, %v5223
      %v5225 = vpop.f32.mrf.mxu0
      %5226 = vdwg.mxu0
      %v5227 = vxor.u32 %v5197, 2147483648
      %v5228 = vxor.u32 %v5200, 2147483648
      %v5229 = vxor.u32 %v5205, 2147483648
      %v5230 = vxor.u32 %v5208, 2147483648
      %v5231 = vxor.u32 %v5213, 2147483648
      %v5232 = vxor.u32 %v5216, 2147483648
      %v5233 = vxor.u32 %v5221, 2147483648
      %v5234 = vxor.u32 %v5224, 2147483648
      %v5235 = vmul.f32 %v5227, 1.442695
      %v5236 = vpow.pop %v5235
      %v5237 = vmul.f32 %v5228, 1.442695
      %v5238 = vpow.pop %v5237
      %v5239 = vmul.f32 %v5229, 1.442695
      %v5240 = vpow.pop %v5239
      %v5241 = vmul.f32 %v5230, 1.442695
      %v5242 = vpow.pop %v5241
      %v5243 = vmul.f32 %v5231, 1.442695
      %v5244 = vpow.pop %v5243
      %v5245 = vmul.f32 %v5232, 1.442695
      %v5246 = vpow.pop %v5245
      %v5247 = vmul.f32 %v5233, 1.442695
      %v5248 = vpow.pop %v5247
      %v5249 = vmul.f32 %v5234, 1.442695
      %v5250 = vpow.pop %v5249
      %v5251 = vadd.f32 %v5236, 1.0
      %v5252 = vadd.f32 %v5238, 1.0
      %v5253 = vadd.f32 %v5240, 1.0
      %v5254 = vadd.f32 %v5242, 1.0
      %v5255 = vadd.f32 %v5244, 1.0
      %v5256 = vadd.f32 %v5246, 1.0
      %v5257 = vadd.f32 %v5248, 1.0
      %v5258 = vadd.f32 %v5250, 1.0
      %v5259 = vrcp.pop %v5251
      %v5260 = vmul.f32 1.0, %v5259
      %v5261 = vrcp.pop %v5252
      %v5262 = vmul.f32 1.0, %v5261
      %v5263 = vrcp.pop %v5253
      %v5264 = vmul.f32 1.0, %v5263
      %v5265 = vrcp.pop %v5254
      %v5266 = vmul.f32 1.0, %v5265
      %v5267 = vrcp.pop %v5255
      %v5268 = vmul.f32 1.0, %v5267
      %v5269 = vrcp.pop %v5256
      %v5270 = vmul.f32 1.0, %v5269
      %v5271 = vrcp.pop %v5257
      %v5272 = vmul.f32 1.0, %v5271
      %v5273 = vrcp.pop %v5258
      %v5274 = vmul.f32 1.0, %v5273
      %v5275 = vmul.f32 %v5197, %v5260
      %v5276 = vmul.f32 %v5200, %v5262
      %v5277 = vmul.f32 %v5205, %v5264
      %v5278 = vmul.f32 %v5208, %v5266
      %v5279 = vmul.f32 %v5213, %v5268
      %v5280 = vmul.f32 %v5216, %v5270
      %v5281 = vmul.f32 %v5221, %v5272
      %v5282 = vmul.f32 %v5224, %v5274
      %v5283 = vpack.c.bf16 %v5276, %v5275
      %v5284 = vpack.c.bf16 %v5278, %v5277
      %v5285 = vpack.c.bf16 %v5280, %v5279
      %v5286 = vpack.c.bf16 %v5282, %v5281
      %v5288 = vshrl.u32 %v5283, 16
      %v5290 = vrot.slane %v5288, 3
      %v5291 = vshll.u32 %v5283, 16
      %v5293 = vrot.slane %v5291, 4
      %v5294 = vor.u32 %v5290, %v5293
      %v5296 = vshrl.u32 %v5284, 16
      %v5298 = vrot.slane %v5296, 3
      %v5299 = vshll.u32 %v5284, 16
      %v5301 = vrot.slane %v5299, 4
      %v5302 = vor.u32 %v5298, %v5301
      %v5303 = vsel %vm4399, %v5294, %v5302
      %v5305 = vshrl.u32 %v5285, 16
      %v5307 = vrot.slane %v5305, 3
      %v5308 = vshll.u32 %v5285, 16
      %v5310 = vrot.slane %v5308, 4
      %v5311 = vor.u32 %v5307, %v5310
      %v5312 = vsel %vm4399, %v5302, %v5311
      %v5314 = vshrl.u32 %v5286, 16
      %v5316 = vrot.slane %v5314, 3
      %v5317 = vshll.u32 %v5286, 16
      %v5319 = vrot.slane %v5317, 4
      %v5320 = vor.u32 %v5316, %v5319
      %v5321 = vsel %vm4399, %v5311, %v5320
      %v5326 = vsel %vm4448, 0, %v5294
      %v5327 = vsel %vm4502, %v5326, 0
      %v5328 = vsel %vm4503, %v5303, 0
      %v5329 = vsel %vm4504, %v5312, 0
      %v5330 = vsel %vm4505, %v5321, 0
      %v5335 = vrot.slane %v5283, 4
      %v5336 = vrot.slane %v5284, 4
      %v5337 = vsel %vm4514, %v5335, %v5336
      %v5338 = vrot.slane %v5285, 4
      %v5339 = vsel %vm4514, %v5336, %v5338
      %v5340 = vrot.slane %v5286, 4
      %v5341 = vsel %vm4514, %v5338, %v5340
      %v5346 = vsel %vm4533, 0, %v5335
      %v5348 = vsel %vm4565, %v5346, 0
      %v5349 = vsel %vm4566, %v5337, 0
      %v5350 = vsel %vm4567, %v5339, 0
      %v5351 = vsel %vm4568, %v5341, 0
      %v5352 = vrot.slane %v5288, 4
      %v5353 = vrot.slane %v5291, 5
      %v5354 = vor.u32 %v5352, %v5353
      %v5355 = vrot.slane %v5296, 4
      %v5356 = vrot.slane %v5299, 5
      %v5357 = vor.u32 %v5355, %v5356
      %v5358 = vsel %vm4573, %v5354, %v5357
      %v5359 = vrot.slane %v5305, 4
      %v5360 = vrot.slane %v5308, 5
      %v5361 = vor.u32 %v5359, %v5360
      %v5362 = vsel %vm4573, %v5357, %v5361
      %v5363 = vrot.slane %v5314, 4
      %v5364 = vrot.slane %v5317, 5
      %v5365 = vor.u32 %v5363, %v5364
      %v5366 = vsel %vm4573, %v5361, %v5365
      %v5371 = vsel %vm4601, 0, %v5354
      %v5372 = vsel %vm4647, %v5371, 0
      %v5373 = vsel %vm4648, %v5358, 0
      %v5374 = vsel %vm4649, %v5362, 0
      %v5375 = vsel %vm4650, %v5366, 0
      %v5376 = vrot.slane %v5288, 7
      %v5377 = vor.u32 %v5376, %v5291
      %v5378 = vrot.slane %v5296, 7
      %v5379 = vor.u32 %v5378, %v5299
      %v5380 = vsel %vm1702, %v5376, %v5379
      %v5381 = vrot.slane %v5305, 7
      %v5382 = vor.u32 %v5381, %v5308
      %v5383 = vsel %vm1702, %v5378, %v5382
      %v5384 = vrot.slane %v5314, 7
      %v5385 = vor.u32 %v5384, %v5317
      %v5386 = vsel %vm1702, %v5381, %v5385
      %v5391 = vsel %vm1838, 0, %v5377
      %v5392 = vsel %vm4707, %v5391, 0
      %v5393 = vsel %vm4708, %v5380, 0
      %v5394 = vsel %vm4709, %v5383, 0
      %v5395 = vsel %vm4710, %v5386, 0
      %v5396 = vrot.slane %v5291, 1
      %v5397 = vor.u32 %v5288, %v5396
      %v5398 = vrot.slane %v5299, 1
      %v5399 = vsel %vm2204, %v5397, %v5398
      %v5400 = vor.u32 %v5296, %v5398
      %v5401 = vrot.slane %v5308, 1
      %v5402 = vsel %vm2204, %v5400, %v5401
      %v5403 = vor.u32 %v5305, %v5401
      %v5404 = vrot.slane %v5317, 1
      %v5405 = vsel %vm2204, %v5403, %v5404
      %v5406 = vor.u32 %v5314, %v5404
      %v5411 = vsel %vm2271, %v5406, 0
      %v5412 = vsel %vm4759, %v5399, 0
      %v5413 = vsel %vm4760, %v5402, 0
      %v5414 = vsel %vm4761, %v5405, 0
      %v5415 = vsel %vm4762, %v5411, 0
      %v5417 = vsel %vm4448, %v5320, 0
      %v5418 = vsel %vm4816, %v5303, 0
      %v5419 = vsel %vm4817, %v5312, 0
      %v5420 = vsel %vm4818, %v5321, 0
      %v5421 = vsel %vm4819, %v5417, 0
      %v5423 = vsel %vm4533, %v5340, 0
      %v5425 = vsel %vm4858, %v5337, 0
      %v5426 = vsel %vm4859, %v5339, 0
      %v5427 = vsel %vm4860, %v5341, 0
      %v5428 = vsel %vm4861, %v5423, 0
      %v5430 = vsel %vm4601, %v5365, 0
      %v5431 = vsel %vm4907, %v5358, 0
      %v5432 = vsel %vm4908, %v5362, 0
      %v5433 = vsel %vm4909, %v5366, 0
      %v5434 = vsel %vm4910, %v5430, 0
      %5439 = vrot.lane.b32.xlu0 %v5348, 16
      %v5440 = vpop.permute.xlu0 %5439
      %5441 = vrot.lane.b32.xlu0 %v5349, 16
      %v5442 = vpop.permute.xlu0 %5441
      %5443 = vrot.lane.b32.xlu0 %v5350, 16
      %v5444 = vpop.permute.xlu0 %5443
      %5445 = vrot.lane.b32.xlu0 %v5351, 16
      %v5446 = vpop.permute.xlu0 %5445
      %5451 = vrot.lane.b32.xlu0 %v5372, 32
      %v5452 = vpop.permute.xlu0 %5451
      %5453 = vrot.lane.b32.xlu0 %v5373, 32
      %v5454 = vpop.permute.xlu0 %5453
      %5455 = vrot.lane.b32.xlu0 %v5374, 32
      %v5456 = vpop.permute.xlu0 %5455
      %5457 = vrot.lane.b32.xlu0 %v5375, 32
      %v5458 = vpop.permute.xlu0 %5457
      %5463 = vrot.lane.b32.xlu0 %v5392, 48
      %v5464 = vpop.permute.xlu0 %5463
      %5465 = vrot.lane.b32.xlu0 %v5393, 48
      %v5466 = vpop.permute.xlu0 %5465
      %5467 = vrot.lane.b32.xlu0 %v5394, 48
      %v5468 = vpop.permute.xlu0 %5467
      %5469 = vrot.lane.b32.xlu0 %v5395, 48
      %v5470 = vpop.permute.xlu0 %5469
      %5471 = vrot.lane.b32.xlu0 %v5283, 64
      %v5472 = vpop.permute.xlu0 %5471
      %5473 = vrot.lane.b32.xlu0 %v5284, 64
      %v5474 = vpop.permute.xlu0 %5473
      %5475 = vrot.lane.b32.xlu0 %v5285, 64
      %v5476 = vpop.permute.xlu0 %5475
      %5477 = vrot.lane.b32.xlu0 %v5286, 64
      %v5478 = vpop.permute.xlu0 %5477
      %5483 = vrot.lane.b32.xlu0 %v5412, 80
      %v5484 = vpop.permute.xlu0 %5483
      %5485 = vrot.lane.b32.xlu0 %v5413, 80
      %v5486 = vpop.permute.xlu0 %5485
      %5487 = vrot.lane.b32.xlu0 %v5414, 80
      %v5488 = vpop.permute.xlu0 %5487
      %5489 = vrot.lane.b32.xlu0 %v5415, 80
      %v5490 = vpop.permute.xlu0 %5489
      %5495 = vrot.lane.b32.xlu0 %v5418, 96
      %v5496 = vpop.permute.xlu0 %5495
      %5497 = vrot.lane.b32.xlu0 %v5419, 96
      %v5498 = vpop.permute.xlu0 %5497
      %5499 = vrot.lane.b32.xlu0 %v5420, 96
      %v5500 = vpop.permute.xlu0 %5499
      %5501 = vrot.lane.b32.xlu0 %v5421, 96
      %v5502 = vpop.permute.xlu0 %5501
      %5507 = vrot.lane.b32.xlu0 %v5425, 112
      %v5508 = vpop.permute.xlu0 %5507
      %5509 = vrot.lane.b32.xlu0 %v5426, 112
      %v5510 = vpop.permute.xlu0 %5509
      %5511 = vrot.lane.b32.xlu0 %v5427, 112
      %v5512 = vpop.permute.xlu0 %5511
      %5513 = vrot.lane.b32.xlu0 %v5428, 112
      %v5514 = vpop.permute.xlu0 %5513
      %v5517 = vsel %vm3623, %v5327, %v5440
      %v5520 = vsel %vm3623, %v5328, %v5442
      %v5523 = vsel %vm3623, %v5329, %v5444
      %v5526 = vsel %vm3623, %v5330, %v5446
      %v5528 = vsel %vm3672, %v5517, %v5452
      %v5530 = vsel %vm3672, %v5520, %v5454
      %v5532 = vsel %vm3672, %v5523, %v5456
      %v5534 = vsel %vm3672, %v5526, %v5458
      %v5536 = vsel %vm3705, %v5528, %v5464
      %v5538 = vsel %vm3705, %v5530, %v5466
      %v5540 = vsel %vm3705, %v5532, %v5468
      %v5542 = vsel %vm3705, %v5534, %v5470
      %v5544 = vsel %vm3738, %v5536, %v5472
      %v5546 = vsel %vm3738, %v5538, %v5474
      %v5548 = vsel %vm3738, %v5540, %v5476
      %v5550 = vsel %vm3738, %v5542, %v5478
      %v5552 = vsel %vm3771, %v5544, %v5484
      %v5554 = vsel %vm3771, %v5546, %v5486
      %v5556 = vsel %vm3771, %v5548, %v5488
      %v5558 = vsel %vm3771, %v5550, %v5490
      %v5560 = vsel %vm3804, %v5552, %v5496
      %v5562 = vsel %vm3804, %v5554, %v5498
      %v5564 = vsel %vm3804, %v5556, %v5500
      %v5566 = vsel %vm3804, %v5558, %v5502
      %v5568 = vsel %vm3837, %v5560, %v5508
      %v5571 = vsel %vm3837, %v5562, %v5510
      %v5574 = vsel %vm3837, %v5564, %v5512
      %v5577 = vsel %vm3837, %v5566, %v5514
      %v5579 = vld [vmem:[%s25] sm:$0xf]
      %v5580 = vld [vmem:[%s25 + $0x4] sm:$0xf]
      %v5581 = vld [vmem:[%s25 + $0x8] sm:$0xf]
      %v5582 = vld [vmem:[%s25 + $0xc] sm:$0xf]
      %v5583 = vld [vmem:[%s25 + $0x10] sm:$0xf]
      %v5584 = vld [vmem:[%s25 + $0x14] sm:$0xf]
      %v5585 = vld [vmem:[%s25 + $0x18] sm:$0xf]
      %v5586 = vld [vmem:[%s25 + $0x1c] sm:$0xf]
      %v5587 = vld [vmem:[%s25 + $0x20] sm:$0xf]
      %v5588 = vld [vmem:[%s25 + $0x24] sm:$0xf]
      %v5589 = vld [vmem:[%s25 + $0x28] sm:$0xf]
      %v5590 = vld [vmem:[%s25 + $0x2c] sm:$0xf]
      %v5591 = vld [vmem:[%s25 + $0x30] sm:$0xf]
      %v5592 = vld [vmem:[%s25 + $0x34] sm:$0xf]
      %v5593 = vld [vmem:[%s25 + $0x38] sm:$0xf]
      %v5594 = vld [vmem:[%s25 + $0x3c] sm:$0xf]
      %v5595 = vld [vmem:[%s25 + $0x40] sm:$0xf]
      %v5596 = vld [vmem:[%s25 + $0x44] sm:$0xf]
      %v5597 = vld [vmem:[%s27] sm:$0x1]
      %v5599 = vlaneseq
      %v5600 = vshrl.u32 %v5599, 7
      %v5601 = vsub.s32 0, %v5600
      %v5602 = vrot.slane %v5597, %v5601
      %v5622 = vunpack.c.l.b16 %v5579
      %v5623 = vunpack.c.l.b16 %v5580
      %v5624 = vunpack.c.l.b16 %v5581
      %v5625 = vunpack.c.l.b16 %v5582
      %v5626 = vunpack.c.l.b16 %v5583
      %v5627 = vunpack.c.l.b16 %v5584
      %v5628 = vunpack.c.l.b16 %v5585
      %v5629 = vunpack.c.l.b16 %v5586
      %v5630 = vunpack.c.l.b16 %v5587
      %v5631 = vunpack.c.l.b16 %v5588
      %v5632 = vunpack.c.l.b16 %v5589
      %v5633 = vunpack.c.l.b16 %v5590
      %v5634 = vunpack.c.l.b16 %v5591
      %v5635 = vunpack.c.l.b16 %v5592
      %v5636 = vunpack.c.l.b16 %v5593
      %v5637 = vunpack.c.l.b16 %v5594
      %v5638 = vunpack.c.l.b16 %v5595
      %v5639 = vunpack.c.l.b16 %v5596
      %v5640 = vpack.c.b16 %v5623, %v5622
      %v5641 = vpack.c.b16 %v5625, %v5624
      %v5642 = vpack.c.b16 %v5627, %v5626
      %v5643 = vpack.c.b16 %v5629, %v5628
      %v5644 = vpack.c.b16 %v5631, %v5630
      %v5645 = vpack.c.b16 %v5633, %v5632
      %v5646 = vpack.c.b16 %v5635, %v5634
      %v5647 = vpack.c.b16 %v5637, %v5636
      %v5648 = vpack.c.b16 %v5639, %v5638
      %v5659 = vsel %vm3623, %v5431, 0
      %v5662 = vsel %vm3623, %v5432, 0
      %v5665 = vsel %vm3623, %v5433, 0
      %v5668 = vsel %vm3623, %v5434, 0
      %5670 = vmatprep.subr.bf16.mxu0 0
      %5671 = vmatpush1.bf16.msra.mxu0 %v5647
      %5672 = vmatprep.subr.bf16.mxu0 0
      %5673 = vmatpush1.bf16.msra.mxu0 %v5646
      %5674 = vmatprep.subr.bf16.mxu0 0
      %5675 = vmatpush1.bf16.msra.mxu0 %v5645
      %5676 = vmatprep.subr.bf16.mxu0 0
      %5677 = vmatpush1.bf16.msra.mxu0 %v5644
      %5678 = vmatprep.subr.bf16.mxu0 0
      %5679 = vmatpush1.bf16.msra.mxu0 %v5643
      %5680 = vmatprep.subr.bf16.mxu0 0
      %5681 = vmatpush1.bf16.msra.mxu0 %v5642
      %5682 = vmatprep.subr.bf16.mxu0 0
      %5683 = vmatpush1.bf16.msra.mxu0 %v5641
      %5684 = vmatprep.subr.bf16.mxu0 0
      %5685 = vmatpush1.bf16.msra.mxu0 %v5640
      %5686 = vmatprep.subr.bf16.mxu0 0
      %5687 = vmatpush2.bf16.msra.mxu0 0
      %5688 = vmatprep.subr.bf16.mxu0 0
      %5689 = vmatpush2.bf16.msra.mxu0 0
      %5690 = vmatprep.subr.bf16.mxu0 0
      %5691 = vmatpush2.bf16.msra.mxu0 0
      %5692 = vmatprep.subr.bf16.mxu0 0
      %5693 = vmatpush2.bf16.msra.mxu0 0
      %5694 = vmatprep.subr.bf16.mxu0 0
      %5695 = vmatpush2.bf16.msra.mxu0 0
      %5696 = vmatprep.subr.bf16.mxu0 0
      %5697 = vmatpush2.bf16.msra.mxu0 0
      %5698 = vmatprep.subr.bf16.mxu0 0
      %5699 = vmatpush2.bf16.msra.mxu0 0
      %5700 = vmatprep.subr.bf16.mxu0 0
      %5701 = vmatpush2.bf16.msra.mxu0 %v5648
      %5702 = vmatprep.mubr.bf16.mxu0 %v5659
      %5703 = vmatmul.mubr.bf16.gmra.mxu0 %v5568
      %v5704 = vpop.f32.mrf.mxu0
      %v5705 = vadd.f32 %v5602, %v5704
      %v5706 = vpop.f32.mrf.mxu0
      %v5707 = vpop.f32.mrf.mxu0
      %v5708 = vadd.f32 %v5602, %v5707
      %v5709 = vpop.f32.mrf.mxu0
      %5710 = vmatprep.mubr.bf16.mxu0 %v5662
      %5711 = vmatmul.mubr.bf16.gmra.mxu0 %v5571
      %v5712 = vpop.f32.mrf.mxu0
      %v5713 = vadd.f32 %v5602, %v5712
      %v5714 = vpop.f32.mrf.mxu0
      %v5715 = vpop.f32.mrf.mxu0
      %v5716 = vadd.f32 %v5602, %v5715
      %v5717 = vpop.f32.mrf.mxu0
      %5718 = vmatprep.mubr.bf16.mxu0 %v5665
      %5719 = vmatmul.mubr.bf16.gmra.mxu0 %v5574
      %v5720 = vpop.f32.mrf.mxu0
      %v5721 = vadd.f32 %v5602, %v5720
      %v5722 = vpop.f32.mrf.mxu0
      %v5723 = vpop.f32.mrf.mxu0
      %v5724 = vadd.f32 %v5602, %v5723
      %v5725 = vpop.f32.mrf.mxu0
      %5726 = vmatprep.mubr.bf16.mxu0 %v5668
      %5727 = vmatmul.mubr.bf16.gmra.mxu0 %v5577
      %v5728 = vpop.f32.mrf.mxu0
      %v5729 = vadd.f32 %v5602, %v5728
      %v5730 = vpop.f32.mrf.mxu0
      %v5731 = vpop.f32.mrf.mxu0
      %v5732 = vadd.f32 %v5602, %v5731
      %v5733 = vpop.f32.mrf.mxu0
      %5734 = vdwg.mxu0
      %v5735 = vxor.u32 %v5705, 2147483648
      %v5736 = vxor.u32 %v5708, 2147483648
      %v5737 = vxor.u32 %v5713, 2147483648
      %v5738 = vxor.u32 %v5716, 2147483648
      %v5739 = vxor.u32 %v5721, 2147483648
      %v5740 = vxor.u32 %v5724, 2147483648
      %v5741 = vxor.u32 %v5729, 2147483648
      %v5742 = vxor.u32 %v5732, 2147483648
      %v5743 = vmul.f32 %v5735, 1.442695
      %v5744 = vpow.pop %v5743
      %v5745 = vmul.f32 %v5736, 1.442695
      %v5746 = vpow.pop %v5745
      %v5747 = vmul.f32 %v5737, 1.442695
      %v5748 = vpow.pop %v5747
      %v5749 = vmul.f32 %v5738, 1.442695
      %v5750 = vpow.pop %v5749
      %v5751 = vmul.f32 %v5739, 1.442695
      %v5752 = vpow.pop %v5751
      %v5753 = vmul.f32 %v5740, 1.442695
      %v5754 = vpow.pop %v5753
      %v5755 = vmul.f32 %v5741, 1.442695
      %v5756 = vpow.pop %v5755
      %v5757 = vmul.f32 %v5742, 1.442695
      %v5758 = vpow.pop %v5757
      %v5759 = vadd.f32 %v5744, 1.0
      %v5760 = vadd.f32 %v5746, 1.0
      %v5761 = vadd.f32 %v5748, 1.0
      %v5762 = vadd.f32 %v5750, 1.0
      %v5763 = vadd.f32 %v5752, 1.0
      %v5764 = vadd.f32 %v5754, 1.0
      %v5765 = vadd.f32 %v5756, 1.0
      %v5766 = vadd.f32 %v5758, 1.0
      %v5767 = vrcp.pop %v5759
      %v5768 = vmul.f32 1.0, %v5767
      %v5769 = vrcp.pop %v5760
      %v5770 = vmul.f32 1.0, %v5769
      %v5771 = vrcp.pop %v5761
      %v5772 = vmul.f32 1.0, %v5771
      %v5773 = vrcp.pop %v5762
      %v5774 = vmul.f32 1.0, %v5773
      %v5775 = vrcp.pop %v5763
      %v5776 = vmul.f32 1.0, %v5775
      %v5777 = vrcp.pop %v5764
      %v5778 = vmul.f32 1.0, %v5777
      %v5779 = vrcp.pop %v5765
      %v5780 = vmul.f32 1.0, %v5779
      %v5781 = vrcp.pop %v5766
      %v5782 = vmul.f32 1.0, %v5781
      %v5783 = vmul.f32 %v5705, %v5768
      %v5784 = vmul.f32 %v5708, %v5770
      %v5785 = vmul.f32 %v5713, %v5772
      %v5786 = vmul.f32 %v5716, %v5774
      %v5787 = vmul.f32 %v5721, %v5776
      %v5788 = vmul.f32 %v5724, %v5778
      %v5789 = vmul.f32 %v5729, %v5780
      %v5790 = vmul.f32 %v5732, %v5782
      %5799 = vrot.lane.b32.xlu0 %v5783, 16
      %v5800 = vpop.permute.xlu0 %5799
      %5801 = vrot.lane.b32.xlu0 %v5784, 16
      %v5802 = vpop.permute.xlu0 %5801
      %5803 = vrot.lane.b32.xlu0 %v5785, 16
      %v5804 = vpop.permute.xlu0 %5803
      %5805 = vrot.lane.b32.xlu0 %v5786, 16
      %v5806 = vpop.permute.xlu0 %5805
      %5807 = vrot.lane.b32.xlu0 %v5787, 16
      %v5808 = vpop.permute.xlu0 %5807
      %5809 = vrot.lane.b32.xlu0 %v5788, 16
      %v5810 = vpop.permute.xlu0 %5809
      %5811 = vrot.lane.b32.xlu0 %v5789, 16
      %v5812 = vpop.permute.xlu0 %5811
      %5813 = vrot.lane.b32.xlu0 %v5790, 16
      %v5814 = vpop.permute.xlu0 %5813
      %v5823 = vadd.f32 %v4379, %v5800
      %v5824 = vadd.f32 %v4380, %v5802
      %v5825 = vadd.f32 %v4381, %v5804
      %v5826 = vadd.f32 %v4382, %v5806
      %v5827 = vadd.f32 %v4383, %v5808
      %v5828 = vadd.f32 %v4384, %v5810
      %v5829 = vadd.f32 %v4385, %v5812
      %v5830 = vadd.f32 %v4386, %v5814
      %v5831 = vpack.c.bf16 %v5824, %v5823
      %v5832 = vpack.c.bf16 %v5826, %v5825
      %v5833 = vpack.c.bf16 %v5828, %v5827
      %v5834 = vpack.c.bf16 %v5830, %v5829
      %5839 = vrot.lane.b32.xlu0 %v5831, 16
      %v5840 = vpop.permute.xlu0 %5839
      %5841 = vrot.lane.b32.xlu0 %v5832, 16
      %v5842 = vpop.permute.xlu0 %5841
      %5843 = vrot.lane.b32.xlu0 %v5833, 16
      %v5844 = vpop.permute.xlu0 %5843
      %5845 = vrot.lane.b32.xlu0 %v5834, 16
      %v5846 = vpop.permute.xlu0 %5845
      %v5848 = vsel %vm3672, %v4387, %v5840
      %v5850 = vsel %vm3672, %v4388, %v5842
      %v5852 = vsel %vm3672, %v4389, %v5844
      %v5854 = vsel %vm3672, %v4390, %v5846
      %v5855 = vld [vmem:[%s29] sm:$0xf]
      %v5856 = vld [vmem:[%s29 + $0x4] sm:$0xf]
      %v5857 = vld [vmem:[%s29 + $0x8] sm:$0xf]
      %v5858 = vld [vmem:[%s29 + $0xc] sm:$0xf]
      %v5859 = vld [vmem:[%s29 + $0x10] sm:$0xf]
      %v5860 = vld [vmem:[%s29 + $0x14] sm:$0xf]
      %v5861 = vld [vmem:[%s31] sm:$0x1]
      %v5863 = vlaneseq
      %v5864 = vshrl.u32 %v5863, 7
      %v5865 = vsub.s32 0, %v5864
      %v5866 = vrot.slane %v5861, %v5865
      %v5874 = vunpack.c.l.b16 %v5855
      %v5875 = vunpack.c.l.b16 %v5856
      %v5876 = vunpack.c.l.b16 %v5857
      %v5877 = vunpack.c.l.b16 %v5858
      %v5878 = vunpack.c.l.b16 %v5859
      %v5879 = vunpack.c.l.b16 %v5860
      %v5880 = vpack.c.b16 %v5875, %v5874
      %v5881 = vpack.c.b16 %v5877, %v5876
      %v5882 = vpack.c.b16 %v5879, %v5878
      %v5886 = vsel %vm3705, %v5848, 0
      %v5888 = vsel %vm3705, %v5850, 0
      %v5890 = vsel %vm3705, %v5852, 0
      %v5892 = vsel %vm3705, %v5854, 0
      %5894 = vmatprep.subr.bf16.mxu0 0
      %5895 = vmatpush1.bf16.msra.mxu0 0
      %5896 = vmatprep.subr.bf16.mxu0 0
      %5897 = vmatpush1.bf16.msra.mxu0 0
      %5898 = vmatprep.subr.bf16.mxu0 0
      %5899 = vmatpush1.bf16.msra.mxu0 0
      %5900 = vmatprep.subr.bf16.mxu0 0
      %5901 = vmatpush1.bf16.msra.mxu0 0
      %5902 = vmatprep.subr.bf16.mxu0 0
      %5903 = vmatpush1.bf16.msra.mxu0 0
      %5904 = vmatprep.subr.bf16.mxu0 0
      %5905 = vmatpush1.bf16.msra.mxu0 %v5882
      %5906 = vmatprep.subr.bf16.mxu0 0
      %5907 = vmatpush1.bf16.msra.mxu0 %v5881
      %5908 = vmatprep.subr.bf16.mxu0 0
      %5909 = vmatpush1.bf16.msra.mxu0 %v5880
      %5910 = vmatprep.subr.bf16.mxu0 0
      %5911 = vmatpush2.bf16.msra.mxu0 0
      %5912 = vmatprep.subr.bf16.mxu0 0
      %5913 = vmatpush2.bf16.msra.mxu0 0
      %5914 = vmatprep.subr.bf16.mxu0 0
      %5915 = vmatpush2.bf16.msra.mxu0 0
      %5916 = vmatprep.subr.bf16.mxu0 0
      %5917 = vmatpush2.bf16.msra.mxu0 0
      %5918 = vmatprep.subr.bf16.mxu0 0
      %5919 = vmatpush2.bf16.msra.mxu0 0
      %5920 = vmatprep.subr.bf16.mxu0 0
      %5921 = vmatpush2.bf16.msra.mxu0 0
      %5922 = vmatprep.subr.bf16.mxu0 0
      %5923 = vmatpush2.bf16.msra.mxu0 0
      %5924 = vmatprep.subr.bf16.mxu0 0
      %5925 = vmatpush2.bf16.msra.mxu0 0
      %5926 = vmatprep.mubr.bf16.mxu0 0
      %5927 = vmatmul.mubr.bf16.gmra.mxu0 %v5886
      %v5928 = vpop.f32.mrf.mxu0
      %v5929 = vadd.f32 %v5866, %v5928
      %v5930 = vpop.f32.mrf.mxu0
      %v5931 = vpop.f32.mrf.mxu0
      %v5932 = vadd.f32 %v5866, %v5931
      %v5933 = vpop.f32.mrf.mxu0
      %5934 = vmatprep.mubr.bf16.mxu0 0
      %5935 = vmatmul.mubr.bf16.gmra.mxu0 %v5888
      %v5936 = vpop.f32.mrf.mxu0
      %v5937 = vadd.f32 %v5866, %v5936
      %v5938 = vpop.f32.mrf.mxu0
      %v5939 = vpop.f32.mrf.mxu0
      %v5940 = vadd.f32 %v5866, %v5939
      %v5941 = vpop.f32.mrf.mxu0
      %5942 = vmatprep.mubr.bf16.mxu0 0
      %5943 = vmatmul.mubr.bf16.gmra.mxu0 %v5890
      %v5944 = vpop.f32.mrf.mxu0
      %v5945 = vadd.f32 %v5866, %v5944
      %v5946 = vpop.f32.mrf.mxu0
      %v5947 = vpop.f32.mrf.mxu0
      %v5948 = vadd.f32 %v5866, %v5947
      %v5949 = vpop.f32.mrf.mxu0
      %5950 = vmatprep.mubr.bf16.mxu0 0
      %5951 = vmatmul.mubr.bf16.gmra.mxu0 %v5892
      %v5952 = vpop.f32.mrf.mxu0
      %v5953 = vadd.f32 %v5866, %v5952
      %v5954 = vpop.f32.mrf.mxu0
      %v5955 = vpop.f32.mrf.mxu0
      %v5956 = vadd.f32 %v5866, %v5955
      %v5957 = vpop.f32.mrf.mxu0
      %5958 = vdwg.mxu0
      %v5959 = vxor.u32 %v5929, 2147483648
      %v5960 = vxor.u32 %v5932, 2147483648
      %v5961 = vxor.u32 %v5937, 2147483648
      %v5962 = vxor.u32 %v5940, 2147483648
      %v5963 = vxor.u32 %v5945, 2147483648
      %v5964 = vxor.u32 %v5948, 2147483648
      %v5965 = vxor.u32 %v5953, 2147483648
      %v5966 = vxor.u32 %v5956, 2147483648
      %v5967 = vmul.f32 %v5959, 1.442695
      %v5968 = vpow.pop %v5967
      %v5969 = vmul.f32 %v5960, 1.442695
      %v5970 = vpow.pop %v5969
      %v5971 = vmul.f32 %v5961, 1.442695
      %v5972 = vpow.pop %v5971
      %v5973 = vmul.f32 %v5962, 1.442695
      %v5974 = vpow.pop %v5973
      %v5975 = vmul.f32 %v5963, 1.442695
      %v5976 = vpow.pop %v5975
      %v5977 = vmul.f32 %v5964, 1.442695
      %v5978 = vpow.pop %v5977
      %v5979 = vmul.f32 %v5965, 1.442695
      %v5980 = vpow.pop %v5979
      %v5981 = vmul.f32 %v5966, 1.442695
      %v5982 = vpow.pop %v5981
      %v5983 = vadd.f32 %v5968, 1.0
      %v5984 = vadd.f32 %v5970, 1.0
      %v5985 = vadd.f32 %v5972, 1.0
      %v5986 = vadd.f32 %v5974, 1.0
      %v5987 = vadd.f32 %v5976, 1.0
      %v5988 = vadd.f32 %v5978, 1.0
      %v5989 = vadd.f32 %v5980, 1.0
      %v5990 = vadd.f32 %v5982, 1.0
      %v5991 = vrcp.pop %v5983
      %v5992 = vmul.f32 1.0, %v5991
      %v5993 = vrcp.pop %v5984
      %v5994 = vmul.f32 1.0, %v5993
      %v5995 = vrcp.pop %v5985
      %v5996 = vmul.f32 1.0, %v5995
      %v5997 = vrcp.pop %v5986
      %v5998 = vmul.f32 1.0, %v5997
      %v5999 = vrcp.pop %v5987
      %v6000 = vmul.f32 1.0, %v5999
      %v6001 = vrcp.pop %v5988
      %v6002 = vmul.f32 1.0, %v6001
      %v6003 = vrcp.pop %v5989
      %v6004 = vmul.f32 1.0, %v6003
      %v6005 = vrcp.pop %v5990
      %v6006 = vmul.f32 1.0, %v6005
      %v6007 = vmul.f32 %v5929, %v5992
      %v6008 = vmul.f32 %v5932, %v5994
      %v6009 = vmul.f32 %v5937, %v5996
      %v6010 = vmul.f32 %v5940, %v5998
      %v6011 = vmul.f32 %v5945, %v6000
      %v6012 = vmul.f32 %v5948, %v6002
      %v6013 = vmul.f32 %v5953, %v6004
      %v6014 = vmul.f32 %v5956, %v6006
      %v6015 = vpack.c.bf16 %v6008, %v6007
      %v6016 = vpack.c.bf16 %v6010, %v6009
      %v6017 = vpack.c.bf16 %v6012, %v6011
      %v6018 = vpack.c.bf16 %v6014, %v6013
      %v6020 = vshrl.u32 %v6015, 16
      %v6022 = vrot.slane %v6020, 3
      %v6023 = vshll.u32 %v6015, 16
      %v6025 = vrot.slane %v6023, 4
      %v6026 = vor.u32 %v6022, %v6025
      %v6028 = vshrl.u32 %v6016, 16
      %v6030 = vrot.slane %v6028, 3
      %v6031 = vshll.u32 %v6016, 16
      %v6033 = vrot.slane %v6031, 4
      %v6034 = vor.u32 %v6030, %v6033
      %v6035 = vsel %vm4399, %v6026, %v6034
      %v6037 = vshrl.u32 %v6017, 16
      %v6039 = vrot.slane %v6037, 3
      %v6040 = vshll.u32 %v6017, 16
      %v6042 = vrot.slane %v6040, 4
      %v6043 = vor.u32 %v6039, %v6042
      %v6044 = vsel %vm4399, %v6034, %v6043
      %v6046 = vshrl.u32 %v6018, 16
      %v6048 = vrot.slane %v6046, 3
      %v6049 = vshll.u32 %v6018, 16
      %v6051 = vrot.slane %v6049, 4
      %v6052 = vor.u32 %v6048, %v6051
      %v6053 = vsel %vm4399, %v6043, %v6052
      %v6058 = vsel %vm4448, 0, %v6026
      %v6059 = vsel %vm4502, %v6058, 0
      %v6060 = vsel %vm4503, %v6035, 0
      %v6061 = vsel %vm4504, %v6044, 0
      %v6062 = vsel %vm4505, %v6053, 0
      %v6067 = vrot.slane %v6015, 4
      %v6068 = vrot.slane %v6016, 4
      %v6069 = vsel %vm4514, %v6067, %v6068
      %v6070 = vrot.slane %v6017, 4
      %v6071 = vsel %vm4514, %v6068, %v6070
      %v6072 = vrot.slane %v6018, 4
      %v6073 = vsel %vm4514, %v6070, %v6072
      %v6078 = vsel %vm4533, 0, %v6067
      %v6080 = vsel %vm4565, %v6078, 0
      %v6081 = vsel %vm4566, %v6069, 0
      %v6082 = vsel %vm4567, %v6071, 0
      %v6083 = vsel %vm4568, %v6073, 0
      %v6084 = vrot.slane %v6020, 4
      %v6085 = vrot.slane %v6023, 5
      %v6086 = vor.u32 %v6084, %v6085
      %v6087 = vrot.slane %v6028, 4
      %v6088 = vrot.slane %v6031, 5
      %v6089 = vor.u32 %v6087, %v6088
      %v6090 = vsel %vm4573, %v6086, %v6089
      %v6091 = vrot.slane %v6037, 4
      %v6092 = vrot.slane %v6040, 5
      %v6093 = vor.u32 %v6091, %v6092
      %v6094 = vsel %vm4573, %v6089, %v6093
      %v6095 = vrot.slane %v6046, 4
      %v6096 = vrot.slane %v6049, 5
      %v6097 = vor.u32 %v6095, %v6096
      %v6098 = vsel %vm4573, %v6093, %v6097
      %v6103 = vsel %vm4601, 0, %v6086
      %v6104 = vsel %vm4647, %v6103, 0
      %v6105 = vsel %vm4648, %v6090, 0
      %v6106 = vsel %vm4649, %v6094, 0
      %v6107 = vsel %vm4650, %v6098, 0
      %v6108 = vrot.slane %v6020, 7
      %v6109 = vor.u32 %v6108, %v6023
      %v6110 = vrot.slane %v6028, 7
      %v6111 = vor.u32 %v6110, %v6031
      %v6112 = vsel %vm1702, %v6108, %v6111
      %v6113 = vrot.slane %v6037, 7
      %v6114 = vor.u32 %v6113, %v6040
      %v6115 = vsel %vm1702, %v6110, %v6114
      %v6116 = vrot.slane %v6046, 7
      %v6117 = vor.u32 %v6116, %v6049
      %v6118 = vsel %vm1702, %v6113, %v6117
      %v6123 = vsel %vm1838, 0, %v6109
      %v6124 = vsel %vm4707, %v6123, 0
      %v6125 = vsel %vm4708, %v6112, 0
      %v6126 = vsel %vm4709, %v6115, 0
      %v6127 = vsel %vm4710, %v6118, 0
      %v6128 = vrot.slane %v6023, 1
      %v6129 = vor.u32 %v6020, %v6128
      %v6130 = vrot.slane %v6031, 1
      %v6131 = vsel %vm2204, %v6129, %v6130
      %v6132 = vor.u32 %v6028, %v6130
      %v6133 = vrot.slane %v6040, 1
      %v6134 = vsel %vm2204, %v6132, %v6133
      %v6135 = vor.u32 %v6037, %v6133
      %v6136 = vrot.slane %v6049, 1
      %v6137 = vsel %vm2204, %v6135, %v6136
      %v6138 = vor.u32 %v6046, %v6136
      %v6143 = vsel %vm2271, %v6138, 0
      %v6144 = vsel %vm4759, %v6131, 0
      %v6145 = vsel %vm4760, %v6134, 0
      %v6146 = vsel %vm4761, %v6137, 0
      %v6147 = vsel %vm4762, %v6143, 0
      %v6149 = vsel %vm4448, %v6052, 0
      %v6150 = vsel %vm4816, %v6035, 0
      %v6151 = vsel %vm4817, %v6044, 0
      %v6152 = vsel %vm4818, %v6053, 0
      %v6153 = vsel %vm4819, %v6149, 0
      %v6155 = vsel %vm4533, %v6072, 0
      %v6157 = vsel %vm4858, %v6069, 0
      %v6158 = vsel %vm4859, %v6071, 0
      %v6159 = vsel %vm4860, %v6073, 0
      %v6160 = vsel %vm4861, %v6155, 0
      %v6162 = vsel %vm4601, %v6097, 0
      %v6163 = vsel %vm4907, %v6090, 0
      %v6164 = vsel %vm4908, %v6094, 0
      %v6165 = vsel %vm4909, %v6098, 0
      %v6166 = vsel %vm4910, %v6162, 0
      %6171 = vrot.lane.b32.xlu0 %v6080, 32
      %v6172 = vpop.permute.xlu0 %6171
      %6173 = vrot.lane.b32.xlu0 %v6081, 32
      %v6174 = vpop.permute.xlu0 %6173
      %6175 = vrot.lane.b32.xlu0 %v6082, 32
      %v6176 = vpop.permute.xlu0 %6175
      %6177 = vrot.lane.b32.xlu0 %v6083, 32
      %v6178 = vpop.permute.xlu0 %6177
      %6183 = vrot.lane.b32.xlu0 %v6104, 64
      %v6184 = vpop.permute.xlu0 %6183
      %6185 = vrot.lane.b32.xlu0 %v6105, 64
      %v6186 = vpop.permute.xlu0 %6185
      %6187 = vrot.lane.b32.xlu0 %v6106, 64
      %v6188 = vpop.permute.xlu0 %6187
      %6189 = vrot.lane.b32.xlu0 %v6107, 64
      %v6190 = vpop.permute.xlu0 %6189
      %6195 = vrot.lane.b32.xlu0 %v6124, 96
      %v6196 = vpop.permute.xlu0 %6195
      %6197 = vrot.lane.b32.xlu0 %v6125, 96
      %v6198 = vpop.permute.xlu0 %6197
      %6199 = vrot.lane.b32.xlu0 %v6126, 96
      %v6200 = vpop.permute.xlu0 %6199
      %6201 = vrot.lane.b32.xlu0 %v6127, 96
      %v6202 = vpop.permute.xlu0 %6201
      %6207 = vrot.lane.b32.xlu0 %v6144, 32
      %v6208 = vpop.permute.xlu0 %6207
      %6209 = vrot.lane.b32.xlu0 %v6145, 32
      %v6210 = vpop.permute.xlu0 %6209
      %6211 = vrot.lane.b32.xlu0 %v6146, 32
      %v6212 = vpop.permute.xlu0 %6211
      %6213 = vrot.lane.b32.xlu0 %v6147, 32
      %v6214 = vpop.permute.xlu0 %6213
      %6219 = vrot.lane.b32.xlu0 %v6150, 64
      %v6220 = vpop.permute.xlu0 %6219
      %6221 = vrot.lane.b32.xlu0 %v6151, 64
      %v6222 = vpop.permute.xlu0 %6221
      %6223 = vrot.lane.b32.xlu0 %v6152, 64
      %v6224 = vpop.permute.xlu0 %6223
      %6225 = vrot.lane.b32.xlu0 %v6153, 64
      %v6226 = vpop.permute.xlu0 %6225
      %6231 = vrot.lane.b32.xlu0 %v6157, 96
      %v6232 = vpop.permute.xlu0 %6231
      %6233 = vrot.lane.b32.xlu0 %v6158, 96
      %v6234 = vpop.permute.xlu0 %6233
      %6235 = vrot.lane.b32.xlu0 %v6159, 96
      %v6236 = vpop.permute.xlu0 %6235
      %6237 = vrot.lane.b32.xlu0 %v6160, 96
      %v6238 = vpop.permute.xlu0 %6237
      %v6241 = vsel %vm3672, %v6059, %v6172
      %v6244 = vsel %vm3672, %v6060, %v6174
      %v6247 = vsel %vm3672, %v6061, %v6176
      %v6250 = vsel %vm3672, %v6062, %v6178
      %v6252 = vsel %vm3738, %v6241, %v6184
      %v6254 = vsel %vm3738, %v6244, %v6186
      %v6256 = vsel %vm3738, %v6247, %v6188
      %v6258 = vsel %vm3738, %v6250, %v6190
      %v6260 = vsel %vm3804, %v6252, %v6196
      %v6263 = vsel %vm3804, %v6254, %v6198
      %v6266 = vsel %vm3804, %v6256, %v6200
      %v6269 = vsel %vm3804, %v6258, %v6202
      %v6272 = vsel %vm3672, %v6015, %v6208
      %v6274 = vsel %vm3672, %v6016, %v6210
      %v6276 = vsel %vm3672, %v6017, %v6212
      %v6278 = vsel %vm3672, %v6018, %v6214
      %v6280 = vsel %vm3738, %v6272, %v6220
      %v6282 = vsel %vm3738, %v6274, %v6222
      %v6284 = vsel %vm3738, %v6276, %v6224
      %v6286 = vsel %vm3738, %v6278, %v6226
      %v6288 = vsel %vm3804, %v6280, %v6232
      %v6291 = vsel %vm3804, %v6282, %v6234
      %v6294 = vsel %vm3804, %v6284, %v6236
      %v6297 = vsel %vm3804, %v6286, %v6238
      %v6299 = vld [vmem:[%s5] sm:$0xf]
      %v6300 = vld [vmem:[%s5 + $0x4] sm:$0xf]
      %v6303 = vunpack.c.l.b16 %v6299
      %v6304 = vunpack.c.l.b16 %v6300
      %v6305 = vpack.c.b16 %v6304, %v6303
      %v6307 = vsel %vm3738, %v6305, 0
      %6309 = vmatprep.subr.bf16.mxu0 0
      %6310 = vmatpush1.bf16.msra.mxu0 0
      %6311 = vmatprep.subr.bf16.mxu0 0
      %6312 = vmatpush1.bf16.msra.mxu0 0
      %6313 = vmatprep.subr.bf16.mxu0 0
      %6314 = vmatpush1.bf16.msra.mxu0 0
      %6315 = vmatprep.subr.bf16.mxu0 0
      %6316 = vmatpush1.bf16.msra.mxu0 0
      %6317 = vmatprep.subr.bf16.mxu0 %v6297
      %6318 = vmatpush1.bf16.msra.mxu0 %v6269
      %6319 = vmatprep.subr.bf16.mxu0 %v6294
      %6320 = vmatpush1.bf16.msra.mxu0 %v6266
      %6321 = vmatprep.subr.bf16.mxu0 %v6291
      %6322 = vmatpush1.bf16.msra.mxu0 %v6263
      %6323 = vmatprep.subr.bf16.mxu0 %v6288
      %6324 = vmatpush1.bf16.msra.mxu0 %v6260
      %6325 = vmatprep.subr.bf16.mxu0 0
      %6326 = vmatpush2.bf16.msra.mxu0 0
      %6327 = vmatprep.subr.bf16.mxu0 0
      %6328 = vmatpush2.bf16.msra.mxu0 0
      %6329 = vmatprep.subr.bf16.mxu0 0
      %6330 = vmatpush2.bf16.msra.mxu0 0
      %6331 = vmatprep.subr.bf16.mxu0 0
      %6332 = vmatpush2.bf16.msra.mxu0 0
      %6333 = vmatprep.subr.bf16.mxu0 0
      %6334 = vmatpush2.bf16.msra.mxu0 0
      %6335 = vmatprep.subr.bf16.mxu0 0
      %6336 = vmatpush2.bf16.msra.mxu0 0
      %6337 = vmatprep.subr.bf16.mxu0 0
      %6338 = vmatpush2.bf16.msra.mxu0 0
      %6339 = vmatprep.subr.bf16.mxu0 0
      %6340 = vmatpush2.bf16.msra.mxu0 0
      %6341 = vmatprep.mubr.bf16.mxu0 0
      %6342 = vmatmul.mubr.bf16.gmra.mxu0 %v6307
      %v6343 = vpop.f32.mrf.mxu0
      %v6344 = vadd.f32 0.0, %v6343
      %v6345 = vpop.f32.mrf.mxu0
      %v6346 = vadd.f32 0.0, %v6345
      %v6347 = vpop.f32.mrf.mxu0
      %v6348 = vadd.f32 0.0, %v6347
      %v6349 = vpop.f32.mrf.mxu0
      %v6350 = vadd.f32 0.0, %v6349
      %6351 = vdwg.mxu0
      %6352 = vmatprep.subr.bf16.mxu0 0
      %6353 = vmatpush1.bf16.msra.mxu0 0
      %6354 = vmatprep.subr.bf16.mxu0 0
      %6355 = vmatpush1.bf16.msra.mxu0 0
      %6356 = vmatprep.subr.bf16.mxu0 0
      %6357 = vmatpush1.bf16.msra.mxu0 0
      %6358 = vmatprep.subr.bf16.mxu0 0
      %6359 = vmatpush1.bf16.msra.mxu0 0
      %6360 = vmatprep.subr.bf16.mxu0 0
      %6361 = vmatpush1.bf16.msra.mxu0 %v6166
      %6362 = vmatprep.subr.bf16.mxu0 0
      %6363 = vmatpush1.bf16.msra.mxu0 %v6165
      %6364 = vmatprep.subr.bf16.mxu0 0
      %6365 = vmatpush1.bf16.msra.mxu0 %v6164
      %6366 = vmatprep.subr.bf16.mxu0 0
      %6367 = vmatpush1.bf16.msra.mxu0 %v6163
      %6368 = vmatprep.subr.bf16.mxu0 0
      %6369 = vmatpush2.bf16.msra.mxu0 0
      %6370 = vmatprep.subr.bf16.mxu0 0
      %6371 = vmatpush2.bf16.msra.mxu0 0
      %6372 = vmatprep.subr.bf16.mxu0 0
      %6373 = vmatpush2.bf16.msra.mxu0 0
      %6374 = vmatprep.subr.bf16.mxu0 0
      %6375 = vmatpush2.bf16.msra.mxu0 0
      %6376 = vmatprep.subr.bf16.mxu0 0
      %6377 = vmatpush2.bf16.msra.mxu0 0
      %6378 = vmatprep.subr.bf16.mxu0 0
      %6379 = vmatpush2.bf16.msra.mxu0 0
      %6380 = vmatprep.subr.bf16.mxu0 0
      %6381 = vmatpush2.bf16.msra.mxu0 0
      %6382 = vmatprep.subr.bf16.mxu0 0
      %6383 = vmatpush2.bf16.msra.mxu0 0
      %6384 = vmatprep.mubr.bf16.mxu0 0
      %6385 = vmatmul.mubr.bf16.gmra.mxu0 %v6307
      %v6386 = vpop.f32.mrf.mxu0
      %v6387 = vadd.f32 0.0, %v6386
      %v6388 = vpop.f32.mrf.mxu0
      %v6389 = vpop.f32.mrf.mxu0
      %v6390 = vadd.f32 0.0, %v6389
      %v6391 = vpop.f32.mrf.mxu0
      %6392 = vdwg.mxu0
      %v6393 = vpack.c.bf16 %v6348, %v6344
      %v6394 = vpack.c.bf16 %v6350, %v6346
      %v6395 = vpack.c.bf16 %v6390, %v6387
      %v6396 = vld [vmem:[%s33] sm:$0xf]
      %v6397 = vld [vmem:[%s33 + $0x4] sm:$0xf]
      %v6398 = vld [vmem:[%s33 + $0x8] sm:$0xf]
      %v6399 = vld [vmem:[%s33 + $0xc] sm:$0xf]
      %v6400 = vld [vmem:[%s33 + $0x10] sm:$0xf]
      %v6401 = vld [vmem:[%s33 + $0x14] sm:$0xf]
      %v6402 = vld [vmem:[%s33 + $0x18] sm:$0xf]
      %v6403 = vld [vmem:[%s33 + $0x1c] sm:$0xf]
      %v6404 = vld [vmem:[%s33 + $0x20] sm:$0xf]
      %v6405 = vld [vmem:[%s33 + $0x24] sm:$0xf]
      %v6406 = vld [vmem:[%s33 + $0x28] sm:$0xf]
      %v6407 = vld [vmem:[%s33 + $0x2c] sm:$0xf]
      %v6408 = vld [vmem:[%s33 + $0x30] sm:$0xf]
      %v6409 = vld [vmem:[%s33 + $0x34] sm:$0xf]
      %v6410 = vld [vmem:[%s33 + $0x38] sm:$0xf]
      %v6411 = vld [vmem:[%s33 + $0x3c] sm:$0xf]
      %v6412 = vld [vmem:[%s33 + $0x40] sm:$0xf]
      %v6413 = vld [vmem:[%s33 + $0x44] sm:$0xf]
      %v6414 = vld [vmem:[%s33 + $0x48] sm:$0xf]
      %v6415 = vld [vmem:[%s33 + $0x4c] sm:$0xf]
      %v6416 = vld [vmem:[%s33 + $0x50] sm:$0xf]
      %v6417 = vld [vmem:[%s33 + $0x54] sm:$0xf]
      %v6418 = vld [vmem:[%s33 + $0x58] sm:$0xf]
      %v6419 = vld [vmem:[%s33 + $0x5c] sm:$0xf]
      %v6420 = vld [vmem:[%s33 + $0x60] sm:$0xf]
      %v6421 = vld [vmem:[%s33 + $0x64] sm:$0xf]
      %v6422 = vld [vmem:[%s33 + $0x68] sm:$0xf]
      %v6423 = vld [vmem:[%s33 + $0x6c] sm:$0xf]
      %v6424 = vld [vmem:[%s33 + $0x70] sm:$0xf]
      %v6425 = vld [vmem:[%s33 + $0x74] sm:$0xf]
      %v6426 = vld [vmem:[%s33 + $0x78] sm:$0xf]
      %v6427 = vld [vmem:[%s33 + $0x7c] sm:$0xf]
      %v6428 = vld [vmem:[%s33 + $0x80] sm:$0xf]
      %v6429 = vld [vmem:[%s33 + $0x84] sm:$0xf]
      %v6430 = vld [vmem:[%s33 + $0x88] sm:$0xf]
      %v6431 = vld [vmem:[%s33 + $0x8c] sm:$0xf]
      %v6432 = vld [vmem:[%s35] sm:$0x1]
      %v6434 = vlaneseq
      %v6435 = vshrl.u32 %v6434, 7
      %v6436 = vsub.s32 0, %v6435
      %v6437 = vrot.slane %v6432, %v6436
      %v6475 = vunpack.c.l.b16 %v6396
      %v6476 = vunpack.c.l.b16 %v6397
      %v6477 = vunpack.c.l.b16 %v6398
      %v6478 = vunpack.c.l.b16 %v6399
      %v6479 = vunpack.c.l.b16 %v6400
      %v6480 = vunpack.c.l.b16 %v6401
      %v6481 = vunpack.c.l.b16 %v6402
      %v6482 = vunpack.c.l.b16 %v6403
      %v6483 = vunpack.c.l.b16 %v6404
      %v6484 = vunpack.c.l.b16 %v6405
      %v6485 = vunpack.c.l.b16 %v6406
      %v6486 = vunpack.c.l.b16 %v6407
      %v6487 = vunpack.c.l.b16 %v6408
      %v6488 = vunpack.c.l.b16 %v6409
      %v6489 = vunpack.c.l.b16 %v6410
      %v6490 = vunpack.c.l.b16 %v6411
      %v6491 = vunpack.c.l.b16 %v6412
      %v6492 = vunpack.c.l.b16 %v6413
      %v6493 = vunpack.c.l.b16 %v6414
      %v6494 = vunpack.c.l.b16 %v6415
      %v6495 = vunpack.c.l.b16 %v6416
      %v6496 = vunpack.c.l.b16 %v6417
      %v6497 = vunpack.c.l.b16 %v6418
      %v6498 = vunpack.c.l.b16 %v6419
      %v6499 = vunpack.c.l.b16 %v6420
      %v6500 = vunpack.c.l.b16 %v6421
      %v6501 = vunpack.c.l.b16 %v6422
      %v6502 = vunpack.c.l.b16 %v6423
      %v6503 = vunpack.c.l.b16 %v6424
      %v6504 = vunpack.c.l.b16 %v6425
      %v6505 = vunpack.c.l.b16 %v6426
      %v6506 = vunpack.c.l.b16 %v6427
      %v6507 = vunpack.c.l.b16 %v6428
      %v6508 = vunpack.c.l.b16 %v6429
      %v6509 = vunpack.c.l.b16 %v6430
      %v6510 = vunpack.c.l.b16 %v6431
      %v6511 = vpack.c.b16 %v6476, %v6475
      %v6512 = vpack.c.b16 %v6478, %v6477
      %v6513 = vpack.c.b16 %v6480, %v6479
      %v6514 = vpack.c.b16 %v6482, %v6481
      %v6515 = vpack.c.b16 %v6484, %v6483
      %v6516 = vpack.c.b16 %v6486, %v6485
      %v6517 = vpack.c.b16 %v6488, %v6487
      %v6518 = vpack.c.b16 %v6490, %v6489
      %v6519 = vpack.c.b16 %v6492, %v6491
      %v6520 = vpack.c.b16 %v6494, %v6493
      %v6521 = vpack.c.b16 %v6496, %v6495
      %v6522 = vpack.c.b16 %v6498, %v6497
      %v6523 = vpack.c.b16 %v6500, %v6499
      %v6524 = vpack.c.b16 %v6502, %v6501
      %v6525 = vpack.c.b16 %v6504, %v6503
      %v6526 = vpack.c.b16 %v6506, %v6505
      %v6527 = vpack.c.b16 %v6508, %v6507
      %v6528 = vpack.c.b16 %v6510, %v6509
      %v6548 = vsel %vm3672, %v6395, 0
      %6550 = vmatprep.subr.bf16.mxu0 0
      %6551 = vmatpush1.bf16.msra.mxu0 %v6518
      %6552 = vmatprep.subr.bf16.mxu0 0
      %6553 = vmatpush1.bf16.msra.mxu0 %v6517
      %6554 = vmatprep.subr.bf16.mxu0 0
      %6555 = vmatpush1.bf16.msra.mxu0 %v6516
      %6556 = vmatprep.subr.bf16.mxu0 0
      %6557 = vmatpush1.bf16.msra.mxu0 %v6515
      %6558 = vmatprep.subr.bf16.mxu0 0
      %6559 = vmatpush1.bf16.msra.mxu0 %v6514
      %6560 = vmatprep.subr.bf16.mxu0 0
      %6561 = vmatpush1.bf16.msra.mxu0 %v6513
      %6562 = vmatprep.subr.bf16.mxu0 0
      %6563 = vmatpush1.bf16.msra.mxu0 %v6512
      %6564 = vmatprep.subr.bf16.mxu0 0
      %6565 = vmatpush1.bf16.msra.mxu0 %v6511
      %6566 = vmatprep.subr.bf16.mxu0 0
      %6567 = vmatpush2.bf16.msra.mxu0 %v6526
      %6568 = vmatprep.subr.bf16.mxu0 0
      %6569 = vmatpush2.bf16.msra.mxu0 %v6525
      %6570 = vmatprep.subr.bf16.mxu0 0
      %6571 = vmatpush2.bf16.msra.mxu0 %v6524
      %6572 = vmatprep.subr.bf16.mxu0 0
      %6573 = vmatpush2.bf16.msra.mxu0 %v6523
      %6574 = vmatprep.subr.bf16.mxu0 0
      %6575 = vmatpush2.bf16.msra.mxu0 %v6522
      %6576 = vmatprep.subr.bf16.mxu0 0
      %6577 = vmatpush2.bf16.msra.mxu0 %v6521
      %6578 = vmatprep.subr.bf16.mxu0 0
      %6579 = vmatpush2.bf16.msra.mxu0 %v6520
      %6580 = vmatprep.subr.bf16.mxu0 0
      %6581 = vmatpush2.bf16.msra.mxu0 %v6519
      %6582 = vmatprep.mubr.bf16.mxu0 %v6394
      %6583 = vmatmul.mubr.bf16.gmra.mxu0 %v6393
      %v6584 = vpop.f32.mrf.mxu0
      %v6585 = vadd.f32 %v6437, %v6584
      %v6586 = vpop.f32.mrf.mxu0
      %v6587 = vpop.f32.mrf.mxu0
      %v6588 = vadd.f32 %v6437, %v6587
      %v6589 = vpop.f32.mrf.mxu0
      %6590 = vdwg.mxu0
      %6591 = vmatprep.subr.bf16.mxu0 0
      %6592 = vmatpush1.bf16.msra.mxu0 0
      %6593 = vmatprep.subr.bf16.mxu0 0
      %6594 = vmatpush1.bf16.msra.mxu0 0
      %6595 = vmatprep.subr.bf16.mxu0 0
      %6596 = vmatpush1.bf16.msra.mxu0 0
      %6597 = vmatprep.subr.bf16.mxu0 0
      %6598 = vmatpush1.bf16.msra.mxu0 0
      %6599 = vmatprep.subr.bf16.mxu0 0
      %6600 = vmatpush1.bf16.msra.mxu0 0
      %6601 = vmatprep.subr.bf16.mxu0 0
      %6602 = vmatpush1.bf16.msra.mxu0 0
      %6603 = vmatprep.subr.bf16.mxu0 0
      %6604 = vmatpush1.bf16.msra.mxu0 %v6528
      %6605 = vmatprep.subr.bf16.mxu0 0
      %6606 = vmatpush1.bf16.msra.mxu0 %v6527
      %6607 = vmatprep.subr.bf16.mxu0 0
      %6608 = vmatpush2.bf16.msra.mxu0 0
      %6609 = vmatprep.subr.bf16.mxu0 0
      %6610 = vmatpush2.bf16.msra.mxu0 0
      %6611 = vmatprep.subr.bf16.mxu0 0
      %6612 = vmatpush2.bf16.msra.mxu0 0
      %6613 = vmatprep.subr.bf16.mxu0 0
      %6614 = vmatpush2.bf16.msra.mxu0 0
      %6615 = vmatprep.subr.bf16.mxu0 0
      %6616 = vmatpush2.bf16.msra.mxu0 0
      %6617 = vmatprep.subr.bf16.mxu0 0
      %6618 = vmatpush2.bf16.msra.mxu0 0
      %6619 = vmatprep.subr.bf16.mxu0 0
      %6620 = vmatpush2.bf16.msra.mxu0 0
      %6621 = vmatprep.subr.bf16.mxu0 0
      %6622 = vmatpush2.bf16.msra.mxu0 0
      %6623 = vmatprep.mubr.bf16.mxu0 0
      %6624 = vmatmul.mubr.bf16.gmra.mxu0 %v6548
      %v6625 = vpop.f32.mrf.mxu0
      %v6626 = vadd.f32 %v6585, %v6625
      %v6627 = vpop.f32.mrf.mxu0
      %v6628 = vpop.f32.mrf.mxu0
      %v6629 = vadd.f32 %v6588, %v6628
      %v6630 = vpop.f32.mrf.mxu0
      %6631 = vdwg.mxu0
      %v6632 = vxor.u32 %v6626, 2147483648
      %v6633 = vxor.u32 %v6629, 2147483648
      %v6634 = vmul.f32 %v6632, 1.442695
      %v6635 = vpow.pop %v6634
      %v6636 = vmul.f32 %v6633, 1.442695
      %v6637 = vpow.pop %v6636
      %v6638 = vadd.f32 %v6635, 1.0
      %v6639 = vadd.f32 %v6637, 1.0
      %v6640 = vrcp.pop %v6638
      %v6641 = vmul.f32 1.0, %v6640
      %v6642 = vrcp.pop %v6639
      %v6643 = vmul.f32 1.0, %v6642
      %v6644 = vmul.f32 %v6626, %v6641
      %v6645 = vmul.f32 %v6629, %v6643
      %v6646 = vpack.c.bf16 %v6645, %v6644
      %v6647 = vld [vmem:[%s37] sm:$0xf]
      %v6648 = vld [vmem:[%s37 + $0x4] sm:$0xf]
      %v6649 = vld [vmem:[%s37 + $0x8] sm:$0xf]
      %v6650 = vld [vmem:[%s37 + $0xc] sm:$0xf]
      %v6651 = vld [vmem:[%s37 + $0x10] sm:$0xf]
      %v6652 = vld [vmem:[%s37 + $0x14] sm:$0xf]
      %v6653 = vld [vmem:[%s37 + $0x18] sm:$0xf]
      %v6654 = vld [vmem:[%s37 + $0x1c] sm:$0xf]
      %v6655 = vld [vmem:[%s39] sm:$0x1]
      %v6657 = vlaneseq
      %v6658 = vshrl.u32 %v6657, 7
      %v6659 = vsub.s32 0, %v6658
      %v6660 = vrot.slane %v6655, %v6659
      %v6670 = vunpack.c.l.b16 %v6647
      %v6671 = vunpack.c.l.b16 %v6648
      %v6672 = vunpack.c.l.b16 %v6649
      %v6673 = vunpack.c.l.b16 %v6650
      %v6674 = vunpack.c.l.b16 %v6651
      %v6675 = vunpack.c.l.b16 %v6652
      %v6676 = vunpack.c.l.b16 %v6653
      %v6677 = vunpack.c.l.b16 %v6654
      %v6678 = vpack.c.b16 %v6671, %v6670
      %v6679 = vpack.c.b16 %v6673, %v6672
      %v6680 = vpack.c.b16 %v6675, %v6674
      %v6681 = vpack.c.b16 %v6677, %v6676
      %v6687 = vsel %vm3738, %v6646, 0
      %6689 = vmatprep.subr.bf16.mxu0 0
      %6690 = vmatpush1.bf16.msra.mxu0 0
      %6691 = vmatprep.subr.bf16.mxu0 0
      %6692 = vmatpush1.bf16.msra.mxu0 0
      %6693 = vmatprep.subr.bf16.mxu0 0
      %6694 = vmatpush1.bf16.msra.mxu0 0
      %6695 = vmatprep.subr.bf16.mxu0 0
      %6696 = vmatpush1.bf16.msra.mxu0 0
      %6697 = vmatprep.subr.bf16.mxu0 0
      %6698 = vmatpush1.bf16.msra.mxu0 %v6681
      %6699 = vmatprep.subr.bf16.mxu0 0
      %6700 = vmatpush1.bf16.msra.mxu0 %v6680
      %6701 = vmatprep.subr.bf16.mxu0 0
      %6702 = vmatpush1.bf16.msra.mxu0 %v6679
      %6703 = vmatprep.subr.bf16.mxu0 0
      %6704 = vmatpush1.bf16.msra.mxu0 %v6678
      %6705 = vmatprep.subr.bf16.mxu0 0
      %6706 = vmatpush2.bf16.msra.mxu0 0
      %6707 = vmatprep.subr.bf16.mxu0 0
      %6708 = vmatpush2.bf16.msra.mxu0 0
      %6709 = vmatprep.subr.bf16.mxu0 0
      %6710 = vmatpush2.bf16.msra.mxu0 0
      %6711 = vmatprep.subr.bf16.mxu0 0
      %6712 = vmatpush2.bf16.msra.mxu0 0
      %6713 = vmatprep.subr.bf16.mxu0 0
      %6714 = vmatpush2.bf16.msra.mxu0 0
      %6715 = vmatprep.subr.bf16.mxu0 0
      %6716 = vmatpush2.bf16.msra.mxu0 0
      %6717 = vmatprep.subr.bf16.mxu0 0
      %6718 = vmatpush2.bf16.msra.mxu0 0
      %6719 = vmatprep.subr.bf16.mxu0 0
      %6720 = vmatpush2.bf16.msra.mxu0 0
      %6721 = vmatprep.mubr.bf16.mxu0 0
      %6722 = vmatmul.mubr.bf16.gmra.mxu0 %v6687
      %v6723 = vpop.f32.mrf.mxu0
      %v6724 = vadd.f32 %v6660, %v6723
      %v6725 = vpop.f32.mrf.mxu0
      %v6726 = vpop.f32.mrf.mxu0
      %v6727 = vadd.f32 %v6660, %v6726
      %v6728 = vpop.f32.mrf.mxu0
      %6729 = vdwg.mxu0
      %v6730 = vxor.u32 %v6724, 2147483648
      %v6731 = vxor.u32 %v6727, 2147483648
      %v6732 = vmul.f32 %v6730, 1.442695
      %v6733 = vpow.pop %v6732
      %v6734 = vmul.f32 %v6731, 1.442695
      %v6735 = vpow.pop %v6734
      %v6736 = vadd.f32 %v6733, 1.0
      %v6737 = vadd.f32 %v6735, 1.0
      %v6738 = vrcp.pop %v6736
      %v6739 = vmul.f32 1.0, %v6738
      %v6740 = vrcp.pop %v6737
      %v6741 = vmul.f32 1.0, %v6740
      %v6742 = vmul.f32 %v6724, %v6739
      %v6743 = vmul.f32 %v6727, %v6741
      %v6744 = vpack.c.bf16 %v6743, %v6742
      %v6745 = vand.u32 %v1638, 3
      %v6746 = vand.u32 %v1639, 3
      %v6748 = vshrl.u32 %v6744, 16
      %v6750 = vrot.slane %v6748, 5
      %v6751 = vshll.u32 %v6744, 16
      %v6753 = vrot.slane %v6751, 6
      %v6754 = vor.u32 %v6750, %v6753
      %6755 = vrot.lane.b32.xlu0 %v6754, 96
      %v6756 = vpop.permute.xlu0 %6755
      %vm6758 = vcmask 1042432
      %vm6759 = vsmask.f32 2304
      %vm6760 = vmand %vm6758, %vm6759
      %v6761 = vsel %vm6760, 0, %v6756
      %vm6762 = vcmp.ge.s32.totalorder %v1638, 4
      %vm6763 = vcmp.ge.s32.totalorder %v1639, 4
      %vm6764 = vcmp.gt.s32.totalorder %v6745, 0
      %vm6765 = vcmp.gt.s32.totalorder %v6746, 0
      %vm6766 = vmand %vm6762, %vm6764
      %vm6767 = vmand %vm6763, %vm6765
      %vm6768 = vmpackc.low %vm6766, %vm6766
      %vm6769 = vmpackc.low %vm6767, %vm6767
      %v6770 = vsel %vm6768, 65537, 0
      %v6771 = vsel %vm6769, 65537, 0
      %v6772 = vunpack.c.l.b16 %v6770
      %v6773 = vunpack.c.l.b16 %v6771
      %v6774 = vpack.c.b16 %v6773, %v6772
      %vm6775 = vcmp.ne.s16.totalorder %v6774, 0
      %v6776 = vsel %vm6775, %v6761, 0
      %v6778 = vrot.slane %v6744, 6
      %6779 = vrot.lane.b32.xlu0 %v6778, 96
      %v6780 = vpop.permute.xlu0 %6779
      %vm6781 = vcmask 1041408
      %v6783 = vsel %vm6781, 0, %v6780
      %vm6785 = vmpackc.low %vm6762, %vm6762
      %vm6786 = vmpackc.low %vm6763, %vm6763
      %v6787 = vsel %vm6785, 65537, 0
      %v6788 = vsel %vm6786, 65537, 0
      %v6789 = vunpack.c.l.b16 %v6787
      %v6790 = vunpack.c.l.b16 %v6788
      %v6791 = vpack.c.b16 %v6790, %v6789
      %vm6792 = vcmp.ne.s16.totalorder %v6791, 0
      %v6793 = vsel %vm6792, %v6783, 0
      %v6794 = vrot.slane %v6748, 6
      %v6795 = vrot.slane %v6751, 7
      %v6796 = vor.u32 %v6794, %v6795
      %6797 = vrot.lane.b32.xlu0 %v6796, 96
      %v6798 = vpop.permute.xlu0 %6797
      %vm6800 = vcmask 1041408
      %vm6801 = vsmask.f32 1280
      %vm6802 = vmand %vm6800, %vm6801
      %v6803 = vsel %vm6802, 0, %v6798
      %vm6804 = vcmp.lt.s32.totalorder %v6745, 3
      %vm6805 = vcmp.lt.s32.totalorder %v6746, 3
      %vm6806 = vmand %vm6762, %vm6804
      %vm6807 = vmand %vm6763, %vm6805
      %vm6808 = vmpackc.low %vm6806, %vm6806
      %vm6809 = vmpackc.low %vm6807, %vm6807
      %v6810 = vsel %vm6808, 65537, 0
      %v6811 = vsel %vm6809, 65537, 0
      %v6812 = vunpack.c.l.b16 %v6810
      %v6813 = vunpack.c.l.b16 %v6811
      %v6814 = vpack.c.b16 %v6813, %v6812
      %vm6815 = vcmp.ne.s16.totalorder %v6814, 0
      %v6816 = vsel %vm6815, %v6803, 0
      %v6817 = vrot.slane %v6748, 7
      %v6818 = vor.u32 %v6817, %v6751
      %6819 = vrot.lane.b32.xlu0 %v6818, 96
      %v6820 = vpop.permute.xlu0 %6819
      %v6822 = vsel %vm1838, 0, %v6820
      %vm6823 = vmpackc.low %vm6764, %vm6764
      %vm6824 = vmpackc.low %vm6765, %vm6765
      %v6825 = vsel %vm6823, 65537, 0
      %v6826 = vsel %vm6824, 65537, 0
      %v6827 = vunpack.c.l.b16 %v6825
      %v6828 = vunpack.c.l.b16 %v6826
      %v6829 = vpack.c.b16 %v6828, %v6827
      %vm6830 = vcmp.ne.s16.totalorder %v6829, 0
      %v6831 = vsel %vm6830, %v6822, 0
      %v6832 = vrot.slane %v6751, 1
      %v6833 = vor.u32 %v6748, %v6832
      %v6835 = vsel %vm2271, %v6833, 0
      %vm6836 = vmpackc.low %vm6804, %vm6804
      %vm6837 = vmpackc.low %vm6805, %vm6805
      %v6838 = vsel %vm6836, 65537, 0
      %v6839 = vsel %vm6837, 65537, 0
      %v6840 = vunpack.c.l.b16 %v6838
      %v6841 = vunpack.c.l.b16 %v6839
      %v6842 = vpack.c.b16 %v6841, %v6840
      %vm6843 = vcmp.ne.s16.totalorder %v6842, 0
      %v6844 = vsel %vm6843, %v6835, 0
      %v6845 = vrot.slane %v6748, 1
      %v6846 = vrot.slane %v6751, 2
      %v6847 = vor.u32 %v6845, %v6846
      %vm6849 = vcmask 1046528
      %vm6850 = vsmask.f32 6400
      %vm6851 = vmand %vm6849, %vm6850
      %v6852 = vsel %vm6851, %v6847, 0
      %vm6853 = vcmp.lt.s32.totalorder %v1638, 12
      %vm6854 = vcmp.lt.s32.totalorder %v1639, 12
      %vm6855 = vmand %vm6853, %vm6764
      %vm6856 = vmand %vm6854, %vm6765
      %vm6857 = vmpackc.low %vm6855, %vm6855
      %vm6858 = vmpackc.low %vm6856, %vm6856
      %v6859 = vsel %vm6857, 65537, 0
      %v6860 = vsel %vm6858, 65537, 0
      %v6861 = vunpack.c.l.b16 %v6859
      %v6862 = vunpack.c.l.b16 %v6860
      %v6863 = vpack.c.b16 %v6862, %v6861
      %vm6864 = vcmp.ne.s16.totalorder %v6863, 0
      %v6865 = vsel %vm6864, %v6852, 0
      %v6866 = vrot.slane %v6744, 2
      %v6868 = vsel %vm1230, %v6866, 0
      %vm6870 = vmpackc.low %vm6853, %vm6853
      %vm6871 = vmpackc.low %vm6854, %vm6854
      %v6872 = vsel %vm6870, 65537, 0
      %v6873 = vsel %vm6871, 65537, 0
      %v6874 = vunpack.c.l.b16 %v6872
      %v6875 = vunpack.c.l.b16 %v6873
      %v6876 = vpack.c.b16 %v6875, %v6874
      %vm6877 = vcmp.ne.s16.totalorder %v6876, 0
      %v6878 = vsel %vm6877, %v6868, 0
      %v6879 = vrot.slane %v6748, 2
      %v6880 = vrot.slane %v6751, 3
      %v6881 = vor.u32 %v6879, %v6880
      %vm6883 = vcmask 1045504
      %vm6884 = vsmask.f32 5376
      %vm6885 = vmand %vm6883, %vm6884
      %v6886 = vsel %vm6885, %v6881, 0
      %vm6887 = vmand %vm6853, %vm6804
      %vm6888 = vmand %vm6854, %vm6805
      %vm6889 = vmpackc.low %vm6887, %vm6887
      %vm6890 = vmpackc.low %vm6888, %vm6888
      %v6891 = vsel %vm6889, 65537, 0
      %v6892 = vsel %vm6890, 65537, 0
      %v6893 = vunpack.c.l.b16 %v6891
      %v6894 = vunpack.c.l.b16 %v6892
      %v6895 = vpack.c.b16 %v6894, %v6893
      %vm6896 = vcmp.ne.s16.totalorder %v6895, 0
      %v6897 = vsel %vm6896, %v6886, 0
      %6899 = vrot.lane.b32.xlu0 %v6793, 32
      %v6900 = vpop.permute.xlu0 %6899
      %6902 = vrot.lane.b32.xlu0 %v6816, 64
      %v6903 = vpop.permute.xlu0 %6902
      %6905 = vrot.lane.b32.xlu0 %v6831, 96
      %v6906 = vpop.permute.xlu0 %6905
      %6907 = vrot.lane.b32.xlu0 %v6744, 96
      %v6908 = vpop.permute.xlu0 %6907
      %6910 = vrot.lane.b32.xlu0 %v6865, 32
      %v6911 = vpop.permute.xlu0 %6910
      %6913 = vrot.lane.b32.xlu0 %v6878, 64
      %v6914 = vpop.permute.xlu0 %6913
      %6916 = vrot.lane.b32.xlu0 %v6897, 96
      %v6917 = vpop.permute.xlu0 %6916
      %v6920 = vsel %vm3672, %v6776, %v6900
      %v6922 = vsel %vm3738, %v6920, %v6903
      %v6924 = vsel %vm3804, %v6922, %v6906
      %v6928 = vsel %vm3672, %v6908, %v6844
      %v6930 = vsel %vm3738, %v6928, %v6911
      %v6932 = vsel %vm3804, %v6930, %v6914
      %v6934 = vld [vmem:[%s41] sm:$0xf]
      %v6935 = vld [vmem:[%s41 + $0x4] sm:$0xf]
      %v6936 = vld [vmem:[%s41 + $0x8] sm:$0xf]
      %v6937 = vld [vmem:[%s41 + $0xc] sm:$0xf]
      %v6938 = vld [vmem:[%s41 + $0x10] sm:$0xf]
      %v6939 = vld [vmem:[%s41 + $0x14] sm:$0xf]
      %v6940 = vld [vmem:[%s41 + $0x18] sm:$0xf]
      %v6941 = vld [vmem:[%s41 + $0x1c] sm:$0xf]
      %v6942 = vld [vmem:[%s41 + $0x20] sm:$0xf]
      %v6943 = vld [vmem:[%s41 + $0x24] sm:$0xf]
      %v6944 = vld [vmem:[%s41 + $0x28] sm:$0xf]
      %v6945 = vld [vmem:[%s41 + $0x2c] sm:$0xf]
      %v6946 = vld [vmem:[%s41 + $0x30] sm:$0xf]
      %v6947 = vld [vmem:[%s41 + $0x34] sm:$0xf]
      %v6948 = vld [vmem:[%s41 + $0x38] sm:$0xf]
      %v6949 = vld [vmem:[%s41 + $0x3c] sm:$0xf]
      %v6950 = vld [vmem:[%s41 + $0x40] sm:$0xf]
      %v6951 = vld [vmem:[%s41 + $0x44] sm:$0xf]
      %v6952 = vld [vmem:[%s41 + $0x48] sm:$0xf]
      %v6953 = vld [vmem:[%s41 + $0x4c] sm:$0xf]
      %v6954 = vld [vmem:[%s41 + $0x50] sm:$0xf]
      %v6955 = vld [vmem:[%s41 + $0x54] sm:$0xf]
      %v6956 = vld [vmem:[%s41 + $0x58] sm:$0xf]
      %v6957 = vld [vmem:[%s41 + $0x5c] sm:$0xf]
      %v6958 = vld [vmem:[%s41 + $0x60] sm:$0xf]
      %v6959 = vld [vmem:[%s41 + $0x64] sm:$0xf]
      %v6960 = vld [vmem:[%s41 + $0x68] sm:$0xf]
      %v6961 = vld [vmem:[%s41 + $0x6c] sm:$0xf]
      %v6962 = vld [vmem:[%s41 + $0x70] sm:$0xf]
      %v6963 = vld [vmem:[%s41 + $0x74] sm:$0xf]
      %v6964 = vld [vmem:[%s41 + $0x78] sm:$0xf]
      %v6965 = vld [vmem:[%s41 + $0x7c] sm:$0xf]
      %v6966 = vld [vmem:[%s41 + $0x80] sm:$0xf]
      %v6967 = vld [vmem:[%s41 + $0x84] sm:$0xf]
      %v6968 = vld [vmem:[%s41 + $0x88] sm:$0xf]
      %v6969 = vld [vmem:[%s41 + $0x8c] sm:$0xf]
      %v6970 = vld [vmem:[%s43] sm:$0x1]
      %v6972 = vlaneseq
      %v6973 = vshrl.u32 %v6972, 7
      %v6974 = vsub.s32 0, %v6973
      %v6975 = vrot.slane %v6970, %v6974
      %v7013 = vunpack.c.l.b16 %v6934
      %v7014 = vunpack.c.l.b16 %v6935
      %v7015 = vunpack.c.l.b16 %v6936
      %v7016 = vunpack.c.l.b16 %v6937
      %v7017 = vunpack.c.l.b16 %v6938
      %v7018 = vunpack.c.l.b16 %v6939
      %v7019 = vunpack.c.l.b16 %v6940
      %v7020 = vunpack.c.l.b16 %v6941
      %v7021 = vunpack.c.l.b16 %v6942
      %v7022 = vunpack.c.l.b16 %v6943
      %v7023 = vunpack.c.l.b16 %v6944
      %v7024 = vunpack.c.l.b16 %v6945
      %v7025 = vunpack.c.l.b16 %v6946
      %v7026 = vunpack.c.l.b16 %v6947
      %v7027 = vunpack.c.l.b16 %v6948
      %v7028 = vunpack.c.l.b16 %v6949
      %v7029 = vunpack.c.l.b16 %v6950
      %v7030 = vunpack.c.l.b16 %v6951
      %v7031 = vunpack.c.l.b16 %v6952
      %v7032 = vunpack.c.l.b16 %v6953
      %v7033 = vunpack.c.l.b16 %v6954
      %v7034 = vunpack.c.l.b16 %v6955
      %v7035 = vunpack.c.l.b16 %v6956
      %v7036 = vunpack.c.l.b16 %v6957
      %v7037 = vunpack.c.l.b16 %v6958
      %v7038 = vunpack.c.l.b16 %v6959
      %v7039 = vunpack.c.l.b16 %v6960
      %v7040 = vunpack.c.l.b16 %v6961
      %v7041 = vunpack.c.l.b16 %v6962
      %v7042 = vunpack.c.l.b16 %v6963
      %v7043 = vunpack.c.l.b16 %v6964
      %v7044 = vunpack.c.l.b16 %v6965
      %v7045 = vunpack.c.l.b16 %v6966
      %v7046 = vunpack.c.l.b16 %v6967
      %v7047 = vunpack.c.l.b16 %v6968
      %v7048 = vunpack.c.l.b16 %v6969
      %v7049 = vpack.c.b16 %v7014, %v7013
      %v7050 = vpack.c.b16 %v7016, %v7015
      %v7051 = vpack.c.b16 %v7018, %v7017
      %v7052 = vpack.c.b16 %v7020, %v7019
      %v7053 = vpack.c.b16 %v7022, %v7021
      %v7054 = vpack.c.b16 %v7024, %v7023
      %v7055 = vpack.c.b16 %v7026, %v7025
      %v7056 = vpack.c.b16 %v7028, %v7027
      %v7057 = vpack.c.b16 %v7030, %v7029
      %v7058 = vpack.c.b16 %v7032, %v7031
      %v7059 = vpack.c.b16 %v7034, %v7033
      %v7060 = vpack.c.b16 %v7036, %v7035
      %v7061 = vpack.c.b16 %v7038, %v7037
      %v7062 = vpack.c.b16 %v7040, %v7039
      %v7063 = vpack.c.b16 %v7042, %v7041
      %v7064 = vpack.c.b16 %v7044, %v7043
      %v7065 = vpack.c.b16 %v7046, %v7045
      %v7066 = vpack.c.b16 %v7048, %v7047
      %v7086 = vsel %vm3672, %v6917, 0
      %7088 = vmatprep.subr.bf16.mxu0 0
      %7089 = vmatpush1.bf16.msra.mxu0 %v7056
      %7090 = vmatprep.subr.bf16.mxu0 0
      %7091 = vmatpush1.bf16.msra.mxu0 %v7055
      %7092 = vmatprep.subr.bf16.mxu0 0
      %7093 = vmatpush1.bf16.msra.mxu0 %v7054
      %7094 = vmatprep.subr.bf16.mxu0 0
      %7095 = vmatpush1.bf16.msra.mxu0 %v7053
      %7096 = vmatprep.subr.bf16.mxu0 0
      %7097 = vmatpush1.bf16.msra.mxu0 %v7052
      %7098 = vmatprep.subr.bf16.mxu0 0
      %7099 = vmatpush1.bf16.msra.mxu0 %v7051
      %7100 = vmatprep.subr.bf16.mxu0 0
      %7101 = vmatpush1.bf16.msra.mxu0 %v7050
      %7102 = vmatprep.subr.bf16.mxu0 0
      %7103 = vmatpush1.bf16.msra.mxu0 %v7049
      %7104 = vmatprep.subr.bf16.mxu0 0
      %7105 = vmatpush2.bf16.msra.mxu0 %v7064
      %7106 = vmatprep.subr.bf16.mxu0 0
      %7107 = vmatpush2.bf16.msra.mxu0 %v7063
      %7108 = vmatprep.subr.bf16.mxu0 0
      %7109 = vmatpush2.bf16.msra.mxu0 %v7062
      %7110 = vmatprep.subr.bf16.mxu0 0
      %7111 = vmatpush2.bf16.msra.mxu0 %v7061
      %7112 = vmatprep.subr.bf16.mxu0 0
      %7113 = vmatpush2.bf16.msra.mxu0 %v7060
      %7114 = vmatprep.subr.bf16.mxu0 0
      %7115 = vmatpush2.bf16.msra.mxu0 %v7059
      %7116 = vmatprep.subr.bf16.mxu0 0
      %7117 = vmatpush2.bf16.msra.mxu0 %v7058
      %7118 = vmatprep.subr.bf16.mxu0 0
      %7119 = vmatpush2.bf16.msra.mxu0 %v7057
      %7120 = vmatprep.mubr.bf16.mxu0 %v6932
      %7121 = vmatmul.mubr.bf16.gmra.mxu0 %v6924
      %v7122 = vpop.f32.mrf.mxu0
      %v7123 = vadd.f32 %v6975, %v7122
      %v7124 = vpop.f32.mrf.mxu0
      %v7125 = vpop.f32.mrf.mxu0
      %v7126 = vadd.f32 %v6975, %v7125
      %v7127 = vpop.f32.mrf.mxu0
      %7128 = vdwg.mxu0
      %7129 = vmatprep.subr.bf16.mxu0 0
      %7130 = vmatpush1.bf16.msra.mxu0 0
      %7131 = vmatprep.subr.bf16.mxu0 0
      %7132 = vmatpush1.bf16.msra.mxu0 0
      %7133 = vmatprep.subr.bf16.mxu0 0
      %7134 = vmatpush1.bf16.msra.mxu0 0
      %7135 = vmatprep.subr.bf16.mxu0 0
      %7136 = vmatpush1.bf16.msra.mxu0 0
      %7137 = vmatprep.subr.bf16.mxu0 0
      %7138 = vmatpush1.bf16.msra.mxu0 0
      %7139 = vmatprep.subr.bf16.mxu0 0
      %7140 = vmatpush1.bf16.msra.mxu0 0
      %7141 = vmatprep.subr.bf16.mxu0 0
      %7142 = vmatpush1.bf16.msra.mxu0 %v7066
      %7143 = vmatprep.subr.bf16.mxu0 0
      %7144 = vmatpush1.bf16.msra.mxu0 %v7065
      %7145 = vmatprep.subr.bf16.mxu0 0
      %7146 = vmatpush2.bf16.msra.mxu0 0
      %7147 = vmatprep.subr.bf16.mxu0 0
      %7148 = vmatpush2.bf16.msra.mxu0 0
      %7149 = vmatprep.subr.bf16.mxu0 0
      %7150 = vmatpush2.bf16.msra.mxu0 0
      %7151 = vmatprep.subr.bf16.mxu0 0
      %7152 = vmatpush2.bf16.msra.mxu0 0
      %7153 = vmatprep.subr.bf16.mxu0 0
      %7154 = vmatpush2.bf16.msra.mxu0 0
      %7155 = vmatprep.subr.bf16.mxu0 0
      %7156 = vmatpush2.bf16.msra.mxu0 0
      %7157 = vmatprep.subr.bf16.mxu0 0
      %7158 = vmatpush2.bf16.msra.mxu0 0
      %7159 = vmatprep.subr.bf16.mxu0 0
      %7160 = vmatpush2.bf16.msra.mxu0 0
      %7161 = vmatprep.mubr.bf16.mxu0 0
      %7162 = vmatmul.mubr.bf16.gmra.mxu0 %v7086
      %v7163 = vpop.f32.mrf.mxu0
      %v7164 = vadd.f32 %v7123, %v7163
      %v7165 = vpop.f32.mrf.mxu0
      %v7166 = vpop.f32.mrf.mxu0
      %v7167 = vadd.f32 %v7126, %v7166
      %v7168 = vpop.f32.mrf.mxu0
      %7169 = vdwg.mxu0
      %v7170 = vxor.u32 %v7164, 2147483648
      %v7171 = vxor.u32 %v7167, 2147483648
      %v7172 = vmul.f32 %v7170, 1.442695
      %v7173 = vpow.pop %v7172
      %v7174 = vmul.f32 %v7171, 1.442695
      %v7175 = vpow.pop %v7174
      %v7176 = vadd.f32 %v7173, 1.0
      %v7177 = vadd.f32 %v7175, 1.0
      %v7178 = vrcp.pop %v7176
      %v7179 = vmul.f32 1.0, %v7178
      %v7180 = vrcp.pop %v7177
      %v7181 = vmul.f32 1.0, %v7180
      %v7182 = vmul.f32 %v7164, %v7179
      %v7183 = vmul.f32 %v7167, %v7181
      %v7184 = vpack.c.bf16 %v7183, %v7182
      %v7186 = vshrl.u32 %v7184, 16
      %v7188 = vrot.slane %v7186, 5
      %v7189 = vshll.u32 %v7184, 16
      %v7191 = vrot.slane %v7189, 6
      %v7192 = vor.u32 %v7188, %v7191
      %v7194 = vsel %vm6760, 0, %v7192
      %v7195 = vsel %vm6775, %v7194, 0
      %v7197 = vrot.slane %v7184, 6
      %v7199 = vsel %vm6781, 0, %v7197
      %v7201 = vsel %vm6792, %v7199, 0
      %v7202 = vrot.slane %v7186, 6
      %v7203 = vrot.slane %v7189, 7
      %v7204 = vor.u32 %v7202, %v7203
      %v7206 = vsel %vm6802, 0, %v7204
      %v7207 = vsel %vm6815, %v7206, 0
      %v7208 = vrot.slane %v7186, 7
      %v7209 = vor.u32 %v7208, %v7189
      %v7211 = vsel %vm1838, 0, %v7209
      %v7212 = vsel %vm6830, %v7211, 0
      %v7213 = vrot.slane %v7189, 1
      %v7214 = vor.u32 %v7186, %v7213
      %v7216 = vsel %vm2271, %v7214, 0
      %v7217 = vsel %vm6843, %v7216, 0
      %v7218 = vrot.slane %v7186, 1
      %v7219 = vrot.slane %v7189, 2
      %v7220 = vor.u32 %v7218, %v7219
      %v7222 = vsel %vm6851, %v7220, 0
      %v7223 = vsel %vm6864, %v7222, 0
      %v7224 = vrot.slane %v7184, 2
      %v7226 = vsel %vm1230, %v7224, 0
      %v7228 = vsel %vm6877, %v7226, 0
      %v7229 = vrot.slane %v7186, 2
      %v7230 = vrot.slane %v7189, 3
      %v7231 = vor.u32 %v7229, %v7230
      %v7233 = vsel %vm6885, %v7231, 0
      %v7234 = vsel %vm6896, %v7233, 0
      %7236 = vrot.lane.b32.xlu0 %v7201, 32
      %v7237 = vpop.permute.xlu0 %7236
      %7239 = vrot.lane.b32.xlu0 %v7207, 64
      %v7240 = vpop.permute.xlu0 %7239
      %7242 = vrot.lane.b32.xlu0 %v7212, 96
      %v7243 = vpop.permute.xlu0 %7242
      %7245 = vrot.lane.b32.xlu0 %v7217, 32
      %v7246 = vpop.permute.xlu0 %7245
      %7248 = vrot.lane.b32.xlu0 %v7223, 64
      %v7249 = vpop.permute.xlu0 %7248
      %7251 = vrot.lane.b32.xlu0 %v7228, 96
      %v7252 = vpop.permute.xlu0 %7251
      %v7255 = vsel %vm3672, %v7195, %v7237
      %v7257 = vsel %vm3738, %v7255, %v7240
      %v7259 = vsel %vm3804, %v7257, %v7243
      %v7262 = vsel %vm3672, %v7184, %v7246
      %v7264 = vsel %vm3738, %v7262, %v7249
      %v7266 = vsel %vm3804, %v7264, %v7252
      %v7268 = vld [vmem:[%s45] sm:$0xf]
      %v7269 = vld [vmem:[%s45 + $0x4] sm:$0xf]
      %v7270 = vld [vmem:[%s45 + $0x8] sm:$0xf]
      %v7271 = vld [vmem:[%s45 + $0xc] sm:$0xf]
      %v7272 = vld [vmem:[%s45 + $0x10] sm:$0xf]
      %v7273 = vld [vmem:[%s45 + $0x14] sm:$0xf]
      %v7274 = vld [vmem:[%s45 + $0x18] sm:$0xf]
      %v7275 = vld [vmem:[%s45 + $0x1c] sm:$0xf]
      %v7276 = vld [vmem:[%s45 + $0x20] sm:$0xf]
      %v7277 = vld [vmem:[%s45 + $0x24] sm:$0xf]
      %v7278 = vld [vmem:[%s45 + $0x28] sm:$0xf]
      %v7279 = vld [vmem:[%s45 + $0x2c] sm:$0xf]
      %v7280 = vld [vmem:[%s45 + $0x30] sm:$0xf]
      %v7281 = vld [vmem:[%s45 + $0x34] sm:$0xf]
      %v7282 = vld [vmem:[%s45 + $0x38] sm:$0xf]
      %v7283 = vld [vmem:[%s45 + $0x3c] sm:$0xf]
      %v7284 = vld [vmem:[%s45 + $0x40] sm:$0xf]
      %v7285 = vld [vmem:[%s45 + $0x44] sm:$0xf]
      %v7286 = vld [vmem:[%s45 + $0x48] sm:$0xf]
      %v7287 = vld [vmem:[%s45 + $0x4c] sm:$0xf]
      %v7288 = vld [vmem:[%s45 + $0x50] sm:$0xf]
      %v7289 = vld [vmem:[%s45 + $0x54] sm:$0xf]
      %v7290 = vld [vmem:[%s45 + $0x58] sm:$0xf]
      %v7291 = vld [vmem:[%s45 + $0x5c] sm:$0xf]
      %v7292 = vld [vmem:[%s45 + $0x60] sm:$0xf]
      %v7293 = vld [vmem:[%s45 + $0x64] sm:$0xf]
      %v7294 = vld [vmem:[%s45 + $0x68] sm:$0xf]
      %v7295 = vld [vmem:[%s45 + $0x6c] sm:$0xf]
      %v7296 = vld [vmem:[%s45 + $0x70] sm:$0xf]
      %v7297 = vld [vmem:[%s45 + $0x74] sm:$0xf]
      %v7298 = vld [vmem:[%s45 + $0x78] sm:$0xf]
      %v7299 = vld [vmem:[%s45 + $0x7c] sm:$0xf]
      %v7300 = vld [vmem:[%s45 + $0x80] sm:$0xf]
      %v7301 = vld [vmem:[%s45 + $0x84] sm:$0xf]
      %v7302 = vld [vmem:[%s45 + $0x88] sm:$0xf]
      %v7303 = vld [vmem:[%s45 + $0x8c] sm:$0xf]
      %v7304 = vld [vmem:[%s47] sm:$0x1]
      %v7306 = vlaneseq
      %v7307 = vshrl.u32 %v7306, 7
      %v7308 = vsub.s32 0, %v7307
      %v7309 = vrot.slane %v7304, %v7308
      %v7347 = vunpack.c.l.b16 %v7268
      %v7348 = vunpack.c.l.b16 %v7269
      %v7349 = vunpack.c.l.b16 %v7270
      %v7350 = vunpack.c.l.b16 %v7271
      %v7351 = vunpack.c.l.b16 %v7272
      %v7352 = vunpack.c.l.b16 %v7273
      %v7353 = vunpack.c.l.b16 %v7274
      %v7354 = vunpack.c.l.b16 %v7275
      %v7355 = vunpack.c.l.b16 %v7276
      %v7356 = vunpack.c.l.b16 %v7277
      %v7357 = vunpack.c.l.b16 %v7278
      %v7358 = vunpack.c.l.b16 %v7279
      %v7359 = vunpack.c.l.b16 %v7280
      %v7360 = vunpack.c.l.b16 %v7281
      %v7361 = vunpack.c.l.b16 %v7282
      %v7362 = vunpack.c.l.b16 %v7283
      %v7363 = vunpack.c.l.b16 %v7284
      %v7364 = vunpack.c.l.b16 %v7285
      %v7365 = vunpack.c.l.b16 %v7286
      %v7366 = vunpack.c.l.b16 %v7287
      %v7367 = vunpack.c.l.b16 %v7288
      %v7368 = vunpack.c.l.b16 %v7289
      %v7369 = vunpack.c.l.b16 %v7290
      %v7370 = vunpack.c.l.b16 %v7291
      %v7371 = vunpack.c.l.b16 %v7292
      %v7372 = vunpack.c.l.b16 %v7293
      %v7373 = vunpack.c.l.b16 %v7294
      %v7374 = vunpack.c.l.b16 %v7295
      %v7375 = vunpack.c.l.b16 %v7296
      %v7376 = vunpack.c.l.b16 %v7297
      %v7377 = vunpack.c.l.b16 %v7298
      %v7378 = vunpack.c.l.b16 %v7299
      %v7379 = vunpack.c.l.b16 %v7300
      %v7380 = vunpack.c.l.b16 %v7301
      %v7381 = vunpack.c.l.b16 %v7302
      %v7382 = vunpack.c.l.b16 %v7303
      %v7383 = vpack.c.b16 %v7348, %v7347
      %v7384 = vpack.c.b16 %v7350, %v7349
      %v7385 = vpack.c.b16 %v7352, %v7351
      %v7386 = vpack.c.b16 %v7354, %v7353
      %v7387 = vpack.c.b16 %v7356, %v7355
      %v7388 = vpack.c.b16 %v7358, %v7357
      %v7389 = vpack.c.b16 %v7360, %v7359
      %v7390 = vpack.c.b16 %v7362, %v7361
      %v7391 = vpack.c.b16 %v7364, %v7363
      %v7392 = vpack.c.b16 %v7366, %v7365
      %v7393 = vpack.c.b16 %v7368, %v7367
      %v7394 = vpack.c.b16 %v7370, %v7369
      %v7395 = vpack.c.b16 %v7372, %v7371
      %v7396 = vpack.c.b16 %v7374, %v7373
      %v7397 = vpack.c.b16 %v7376, %v7375
      %v7398 = vpack.c.b16 %v7378, %v7377
      %v7399 = vpack.c.b16 %v7380, %v7379
      %v7400 = vpack.c.b16 %v7382, %v7381
      %v7420 = vsel %vm3672, %v7234, 0
      %7422 = vmatprep.subr.bf16.mxu0 0
      %7423 = vmatpush1.bf16.msra.mxu0 %v7390
      %7424 = vmatprep.subr.bf16.mxu0 0
      %7425 = vmatpush1.bf16.msra.mxu0 %v7389
      %7426 = vmatprep.subr.bf16.mxu0 0
      %7427 = vmatpush1.bf16.msra.mxu0 %v7388
      %7428 = vmatprep.subr.bf16.mxu0 0
      %7429 = vmatpush1.bf16.msra.mxu0 %v7387
      %7430 = vmatprep.subr.bf16.mxu0 0
      %7431 = vmatpush1.bf16.msra.mxu0 %v7386
      %7432 = vmatprep.subr.bf16.mxu0 0
      %7433 = vmatpush1.bf16.msra.mxu0 %v7385
      %7434 = vmatprep.subr.bf16.mxu0 0
      %7435 = vmatpush1.bf16.msra.mxu0 %v7384
      %7436 = vmatprep.subr.bf16.mxu0 0
      %7437 = vmatpush1.bf16.msra.mxu0 %v7383
      %7438 = vmatprep.subr.bf16.mxu0 0
      %7439 = vmatpush2.bf16.msra.mxu0 %v7398
      %7440 = vmatprep.subr.bf16.mxu0 0
      %7441 = vmatpush2.bf16.msra.mxu0 %v7397
      %7442 = vmatprep.subr.bf16.mxu0 0
      %7443 = vmatpush2.bf16.msra.mxu0 %v7396
      %7444 = vmatprep.subr.bf16.mxu0 0
      %7445 = vmatpush2.bf16.msra.mxu0 %v7395
      %7446 = vmatprep.subr.bf16.mxu0 0
      %7447 = vmatpush2.bf16.msra.mxu0 %v7394
      %7448 = vmatprep.subr.bf16.mxu0 0
      %7449 = vmatpush2.bf16.msra.mxu0 %v7393
      %7450 = vmatprep.subr.bf16.mxu0 0
      %7451 = vmatpush2.bf16.msra.mxu0 %v7392
      %7452 = vmatprep.subr.bf16.mxu0 0
      %7453 = vmatpush2.bf16.msra.mxu0 %v7391
      %7454 = vmatprep.mubr.bf16.mxu0 %v7266
      %7455 = vmatmul.mubr.bf16.gmra.mxu0 %v7259
      %v7456 = vpop.f32.mrf.mxu0
      %v7457 = vadd.f32 %v7309, %v7456
      %v7458 = vpop.f32.mrf.mxu0
      %v7459 = vpop.f32.mrf.mxu0
      %v7460 = vadd.f32 %v7309, %v7459
      %v7461 = vpop.f32.mrf.mxu0
      %7462 = vdwg.mxu0
      %7463 = vmatprep.subr.bf16.mxu0 0
      %7464 = vmatpush1.bf16.msra.mxu0 0
      %7465 = vmatprep.subr.bf16.mxu0 0
      %7466 = vmatpush1.bf16.msra.mxu0 0
      %7467 = vmatprep.subr.bf16.mxu0 0
      %7468 = vmatpush1.bf16.msra.mxu0 0
      %7469 = vmatprep.subr.bf16.mxu0 0
      %7470 = vmatpush1.bf16.msra.mxu0 0
      %7471 = vmatprep.subr.bf16.mxu0 0
      %7472 = vmatpush1.bf16.msra.mxu0 0
      %7473 = vmatprep.subr.bf16.mxu0 0
      %7474 = vmatpush1.bf16.msra.mxu0 0
      %7475 = vmatprep.subr.bf16.mxu0 0
      %7476 = vmatpush1.bf16.msra.mxu0 %v7400
      %7477 = vmatprep.subr.bf16.mxu0 0
      %7478 = vmatpush1.bf16.msra.mxu0 %v7399
      %7479 = vmatprep.subr.bf16.mxu0 0
      %7480 = vmatpush2.bf16.msra.mxu0 0
      %7481 = vmatprep.subr.bf16.mxu0 0
      %7482 = vmatpush2.bf16.msra.mxu0 0
      %7483 = vmatprep.subr.bf16.mxu0 0
      %7484 = vmatpush2.bf16.msra.mxu0 0
      %7485 = vmatprep.subr.bf16.mxu0 0
      %7486 = vmatpush2.bf16.msra.mxu0 0
      %7487 = vmatprep.subr.bf16.mxu0 0
      %7488 = vmatpush2.bf16.msra.mxu0 0
      %7489 = vmatprep.subr.bf16.mxu0 0
      %7490 = vmatpush2.bf16.msra.mxu0 0
      %7491 = vmatprep.subr.bf16.mxu0 0
      %7492 = vmatpush2.bf16.msra.mxu0 0
      %7493 = vmatprep.subr.bf16.mxu0 0
      %7494 = vmatpush2.bf16.msra.mxu0 0
      %7495 = vmatprep.mubr.bf16.mxu0 0
      %7496 = vmatmul.mubr.bf16.gmra.mxu0 %v7420
      %v7497 = vpop.f32.mrf.mxu0
      %v7498 = vadd.f32 %v7457, %v7497
      %v7499 = vpop.f32.mrf.mxu0
      %v7500 = vpop.f32.mrf.mxu0
      %v7501 = vadd.f32 %v7460, %v7500
      %v7502 = vpop.f32.mrf.mxu0
      %7503 = vdwg.mxu0
      %v7504 = vxor.u32 %v7498, 2147483648
      %v7505 = vxor.u32 %v7501, 2147483648
      %v7506 = vmul.f32 %v7504, 1.442695
      %v7507 = vpow.pop %v7506
      %v7508 = vmul.f32 %v7505, 1.442695
      %v7509 = vpow.pop %v7508
      %v7510 = vadd.f32 %v7507, 1.0
      %v7511 = vadd.f32 %v7509, 1.0
      %v7512 = vrcp.pop %v7510
      %v7513 = vmul.f32 1.0, %v7512
      %v7514 = vrcp.pop %v7511
      %v7515 = vmul.f32 1.0, %v7514
      %v7516 = vmul.f32 %v7498, %v7513
      %v7517 = vmul.f32 %v7501, %v7515
      %7520 = vrot.lane.b32.xlu0 %v7516, 32
      %v7521 = vpop.permute.xlu0 %7520
      %7522 = vrot.lane.b32.xlu0 %v7517, 32
      %v7523 = vpop.permute.xlu0 %7522
      %v7526 = vadd.f32 %v6742, %v7521
      %v7527 = vadd.f32 %v6743, %v7523
      %v7528 = vpack.c.bf16 %v7527, %v7526
      %v7530 = vshrl.u32 %v7528, 16
      %v7532 = vrot.slane %v7530, 5
      %v7533 = vshll.u32 %v7528, 16
      %v7535 = vrot.slane %v7533, 6
      %v7536 = vor.u32 %v7532, %v7535
      %7537 = vrot.lane.b32.xlu0 %v7536, 96
      %v7538 = vpop.permute.xlu0 %7537
      %v7540 = vsel %vm6760, 0, %v7538
      %v7541 = vsel %vm6775, %v7540, 0
      %v7543 = vrot.slane %v7528, 6
      %7544 = vrot.lane.b32.xlu0 %v7543, 96
      %v7545 = vpop.permute.xlu0 %7544
      %v7547 = vsel %vm6781, 0, %v7545
      %v7549 = vsel %vm6792, %v7547, 0
      %v7550 = vrot.slane %v7530, 6
      %v7551 = vrot.slane %v7533, 7
      %v7552 = vor.u32 %v7550, %v7551
      %7553 = vrot.lane.b32.xlu0 %v7552, 96
      %v7554 = vpop.permute.xlu0 %7553
      %v7556 = vsel %vm6802, 0, %v7554
      %v7557 = vsel %vm6815, %v7556, 0
      %v7558 = vrot.slane %v7530, 7
      %v7559 = vor.u32 %v7558, %v7533
      %7560 = vrot.lane.b32.xlu0 %v7559, 96
      %v7561 = vpop.permute.xlu0 %7560
      %v7563 = vsel %vm1838, 0, %v7561
      %v7564 = vsel %vm6830, %v7563, 0
      %v7565 = vrot.slane %v7533, 1
      %v7566 = vor.u32 %v7530, %v7565
      %v7568 = vsel %vm2271, %v7566, 0
      %v7569 = vsel %vm6843, %v7568, 0
      %v7570 = vrot.slane %v7530, 1
      %v7571 = vrot.slane %v7533, 2
      %v7572 = vor.u32 %v7570, %v7571
      %v7574 = vsel %vm6851, %v7572, 0
      %v7575 = vsel %vm6864, %v7574, 0
      %v7576 = vrot.slane %v7528, 2
      %v7578 = vsel %vm1230, %v7576, 0
      %v7580 = vsel %vm6877, %v7578, 0
      %v7581 = vrot.slane %v7530, 2
      %v7582 = vrot.slane %v7533, 3
      %v7583 = vor.u32 %v7581, %v7582
      %v7585 = vsel %vm6885, %v7583, 0
      %v7586 = vsel %vm6896, %v7585, 0
      %7588 = vrot.lane.b32.xlu0 %v7549, 32
      %v7589 = vpop.permute.xlu0 %7588
      %7591 = vrot.lane.b32.xlu0 %v7557, 64
      %v7592 = vpop.permute.xlu0 %7591
      %7594 = vrot.lane.b32.xlu0 %v7564, 96
      %v7595 = vpop.permute.xlu0 %7594
      %7596 = vrot.lane.b32.xlu0 %v7528, 96
      %v7597 = vpop.permute.xlu0 %7596
      %7599 = vrot.lane.b32.xlu0 %v7575, 32
      %v7600 = vpop.permute.xlu0 %7599
      %7602 = vrot.lane.b32.xlu0 %v7580, 64
      %v7603 = vpop.permute.xlu0 %7602
      %7605 = vrot.lane.b32.xlu0 %v7586, 96
      %v7606 = vpop.permute.xlu0 %7605
      %v7609 = vsel %vm3672, %v7541, %v7589
      %v7611 = vsel %vm3738, %v7609, %v7592
      %v7613 = vsel %vm3804, %v7611, %v7595
      %v7617 = vsel %vm3672, %v7597, %v7569
      %v7619 = vsel %vm3738, %v7617, %v7600
      %v7621 = vsel %vm3804, %v7619, %v7603
      %v7623 = vld [vmem:[%s49] sm:$0xf]
      %v7624 = vld [vmem:[%s49 + $0x4] sm:$0xf]
      %v7625 = vld [vmem:[%s49 + $0x8] sm:$0xf]
      %v7626 = vld [vmem:[%s49 + $0xc] sm:$0xf]
      %v7627 = vld [vmem:[%s49 + $0x10] sm:$0xf]
      %v7628 = vld [vmem:[%s49 + $0x14] sm:$0xf]
      %v7629 = vld [vmem:[%s49 + $0x18] sm:$0xf]
      %v7630 = vld [vmem:[%s49 + $0x1c] sm:$0xf]
      %v7631 = vld [vmem:[%s49 + $0x20] sm:$0xf]
      %v7632 = vld [vmem:[%s49 + $0x24] sm:$0xf]
      %v7633 = vld [vmem:[%s49 + $0x28] sm:$0xf]
      %v7634 = vld [vmem:[%s49 + $0x2c] sm:$0xf]
      %v7635 = vld [vmem:[%s49 + $0x30] sm:$0xf]
      %v7636 = vld [vmem:[%s49 + $0x34] sm:$0xf]
      %v7637 = vld [vmem:[%s49 + $0x38] sm:$0xf]
      %v7638 = vld [vmem:[%s49 + $0x3c] sm:$0xf]
      %v7639 = vld [vmem:[%s49 + $0x40] sm:$0xf]
      %v7640 = vld [vmem:[%s49 + $0x44] sm:$0xf]
      %v7641 = vld [vmem:[%s49 + $0x48] sm:$0xf]
      %v7642 = vld [vmem:[%s49 + $0x4c] sm:$0xf]
      %v7643 = vld [vmem:[%s49 + $0x50] sm:$0xf]
      %v7644 = vld [vmem:[%s49 + $0x54] sm:$0xf]
      %v7645 = vld [vmem:[%s49 + $0x58] sm:$0xf]
      %v7646 = vld [vmem:[%s49 + $0x5c] sm:$0xf]
      %v7647 = vld [vmem:[%s49 + $0x60] sm:$0xf]
      %v7648 = vld [vmem:[%s49 + $0x64] sm:$0xf]
      %v7649 = vld [vmem:[%s49 + $0x68] sm:$0xf]
      %v7650 = vld [vmem:[%s49 + $0x6c] sm:$0xf]
      %v7651 = vld [vmem:[%s49 + $0x70] sm:$0xf]
      %v7652 = vld [vmem:[%s49 + $0x74] sm:$0xf]
      %v7653 = vld [vmem:[%s49 + $0x78] sm:$0xf]
      %v7654 = vld [vmem:[%s49 + $0x7c] sm:$0xf]
      %v7655 = vld [vmem:[%s49 + $0x80] sm:$0xf]
      %v7656 = vld [vmem:[%s49 + $0x84] sm:$0xf]
      %v7657 = vld [vmem:[%s49 + $0x88] sm:$0xf]
      %v7658 = vld [vmem:[%s49 + $0x8c] sm:$0xf]
      %v7659 = vld [vmem:[%s51] sm:$0x1]
      %v7661 = vlaneseq
      %v7662 = vshrl.u32 %v7661, 7
      %v7663 = vsub.s32 0, %v7662
      %v7664 = vrot.slane %v7659, %v7663
      %v7702 = vunpack.c.l.b16 %v7623
      %v7703 = vunpack.c.l.b16 %v7624
      %v7704 = vunpack.c.l.b16 %v7625
      %v7705 = vunpack.c.l.b16 %v7626
      %v7706 = vunpack.c.l.b16 %v7627
      %v7707 = vunpack.c.l.b16 %v7628
      %v7708 = vunpack.c.l.b16 %v7629
      %v7709 = vunpack.c.l.b16 %v7630
      %v7710 = vunpack.c.l.b16 %v7631
      %v7711 = vunpack.c.l.b16 %v7632
      %v7712 = vunpack.c.l.b16 %v7633
      %v7713 = vunpack.c.l.b16 %v7634
      %v7714 = vunpack.c.l.b16 %v7635
      %v7715 = vunpack.c.l.b16 %v7636
      %v7716 = vunpack.c.l.b16 %v7637
      %v7717 = vunpack.c.l.b16 %v7638
      %v7718 = vunpack.c.l.b16 %v7639
      %v7719 = vunpack.c.l.b16 %v7640
      %v7720 = vunpack.c.l.b16 %v7641
      %v7721 = vunpack.c.l.b16 %v7642
      %v7722 = vunpack.c.l.b16 %v7643
      %v7723 = vunpack.c.l.b16 %v7644
      %v7724 = vunpack.c.l.b16 %v7645
      %v7725 = vunpack.c.l.b16 %v7646
      %v7726 = vunpack.c.l.b16 %v7647
      %v7727 = vunpack.c.l.b16 %v7648
      %v7728 = vunpack.c.l.b16 %v7649
      %v7729 = vunpack.c.l.b16 %v7650
      %v7730 = vunpack.c.l.b16 %v7651
      %v7731 = vunpack.c.l.b16 %v7652
      %v7732 = vunpack.c.l.b16 %v7653
      %v7733 = vunpack.c.l.b16 %v7654
      %v7734 = vunpack.c.l.b16 %v7655
      %v7735 = vunpack.c.l.b16 %v7656
      %v7736 = vunpack.c.l.b16 %v7657
      %v7737 = vunpack.c.l.b16 %v7658
      %v7738 = vpack.c.b16 %v7703, %v7702
      %v7739 = vpack.c.b16 %v7705, %v7704
      %v7740 = vpack.c.b16 %v7707, %v7706
      %v7741 = vpack.c.b16 %v7709, %v7708
      %v7742 = vpack.c.b16 %v7711, %v7710
      %v7743 = vpack.c.b16 %v7713, %v7712
      %v7744 = vpack.c.b16 %v7715, %v7714
      %v7745 = vpack.c.b16 %v7717, %v7716
      %v7746 = vpack.c.b16 %v7719, %v7718
      %v7747 = vpack.c.b16 %v7721, %v7720
      %v7748 = vpack.c.b16 %v7723, %v7722
      %v7749 = vpack.c.b16 %v7725, %v7724
      %v7750 = vpack.c.b16 %v7727, %v7726
      %v7751 = vpack.c.b16 %v7729, %v7728
      %v7752 = vpack.c.b16 %v7731, %v7730
      %v7753 = vpack.c.b16 %v7733, %v7732
      %v7754 = vpack.c.b16 %v7735, %v7734
      %v7755 = vpack.c.b16 %v7737, %v7736
      %v7775 = vsel %vm3672, %v7606, 0
      %7777 = vmatprep.subr.bf16.mxu0 0
      %7778 = vmatpush1.bf16.msra.mxu0 %v7745
      %7779 = vmatprep.subr.bf16.mxu0 0
      %7780 = vmatpush1.bf16.msra.mxu0 %v7744
      %7781 = vmatprep.subr.bf16.mxu0 0
      %7782 = vmatpush1.bf16.msra.mxu0 %v7743
      %7783 = vmatprep.subr.bf16.mxu0 0
      %7784 = vmatpush1.bf16.msra.mxu0 %v7742
      %7785 = vmatprep.subr.bf16.mxu0 0
      %7786 = vmatpush1.bf16.msra.mxu0 %v7741
      %7787 = vmatprep.subr.bf16.mxu0 0
      %7788 = vmatpush1.bf16.msra.mxu0 %v7740
      %7789 = vmatprep.subr.bf16.mxu0 0
      %7790 = vmatpush1.bf16.msra.mxu0 %v7739
      %7791 = vmatprep.subr.bf16.mxu0 0
      %7792 = vmatpush1.bf16.msra.mxu0 %v7738
      %7793 = vmatprep.subr.bf16.mxu0 0
      %7794 = vmatpush2.bf16.msra.mxu0 %v7753
      %7795 = vmatprep.subr.bf16.mxu0 0
      %7796 = vmatpush2.bf16.msra.mxu0 %v7752
      %7797 = vmatprep.subr.bf16.mxu0 0
      %7798 = vmatpush2.bf16.msra.mxu0 %v7751
      %7799 = vmatprep.subr.bf16.mxu0 0
      %7800 = vmatpush2.bf16.msra.mxu0 %v7750
      %7801 = vmatprep.subr.bf16.mxu0 0
      %7802 = vmatpush2.bf16.msra.mxu0 %v7749
      %7803 = vmatprep.subr.bf16.mxu0 0
      %7804 = vmatpush2.bf16.msra.mxu0 %v7748
      %7805 = vmatprep.subr.bf16.mxu0 0
      %7806 = vmatpush2.bf16.msra.mxu0 %v7747
      %7807 = vmatprep.subr.bf16.mxu0 0
      %7808 = vmatpush2.bf16.msra.mxu0 %v7746
      %7809 = vmatprep.mubr.bf16.mxu0 %v7621
      %7810 = vmatmul.mubr.bf16.gmra.mxu0 %v7613
      %v7811 = vpop.f32.mrf.mxu0
      %v7812 = vadd.f32 %v7664, %v7811
      %v7813 = vpop.f32.mrf.mxu0
      %v7814 = vpop.f32.mrf.mxu0
      %v7815 = vadd.f32 %v7664, %v7814
      %v7816 = vpop.f32.mrf.mxu0
      %7817 = vdwg.mxu0
      %7818 = vmatprep.subr.bf16.mxu0 0
      %7819 = vmatpush1.bf16.msra.mxu0 0
      %7820 = vmatprep.subr.bf16.mxu0 0
      %7821 = vmatpush1.bf16.msra.mxu0 0
      %7822 = vmatprep.subr.bf16.mxu0 0
      %7823 = vmatpush1.bf16.msra.mxu0 0
      %7824 = vmatprep.subr.bf16.mxu0 0
      %7825 = vmatpush1.bf16.msra.mxu0 0
      %7826 = vmatprep.subr.bf16.mxu0 0
      %7827 = vmatpush1.bf16.msra.mxu0 0
      %7828 = vmatprep.subr.bf16.mxu0 0
      %7829 = vmatpush1.bf16.msra.mxu0 0
      %7830 = vmatprep.subr.bf16.mxu0 0
      %7831 = vmatpush1.bf16.msra.mxu0 %v7755
      %7832 = vmatprep.subr.bf16.mxu0 0
      %7833 = vmatpush1.bf16.msra.mxu0 %v7754
      %7834 = vmatprep.subr.bf16.mxu0 0
      %7835 = vmatpush2.bf16.msra.mxu0 0
      %7836 = vmatprep.subr.bf16.mxu0 0
      %7837 = vmatpush2.bf16.msra.mxu0 0
      %7838 = vmatprep.subr.bf16.mxu0 0
      %7839 = vmatpush2.bf16.msra.mxu0 0
      %7840 = vmatprep.subr.bf16.mxu0 0
      %7841 = vmatpush2.bf16.msra.mxu0 0
      %7842 = vmatprep.subr.bf16.mxu0 0
      %7843 = vmatpush2.bf16.msra.mxu0 0
      %7844 = vmatprep.subr.bf16.mxu0 0
      %7845 = vmatpush2.bf16.msra.mxu0 0
      %7846 = vmatprep.subr.bf16.mxu0 0
      %7847 = vmatpush2.bf16.msra.mxu0 0
      %7848 = vmatprep.subr.bf16.mxu0 0
      %7849 = vmatpush2.bf16.msra.mxu0 0
      %7850 = vmatprep.mubr.bf16.mxu0 0
      %7851 = vmatmul.mubr.bf16.gmra.mxu0 %v7775
      %v7852 = vpop.f32.mrf.mxu0
      %v7853 = vadd.f32 %v7812, %v7852
      %v7854 = vpop.f32.mrf.mxu0
      %v7855 = vpop.f32.mrf.mxu0
      %v7856 = vadd.f32 %v7815, %v7855
      %v7857 = vpop.f32.mrf.mxu0
      %7858 = vdwg.mxu0
      %v7859 = vxor.u32 %v7853, 2147483648
      %v7860 = vxor.u32 %v7856, 2147483648
      %v7861 = vmul.f32 %v7859, 1.442695
      %v7862 = vpow.pop %v7861
      %v7863 = vmul.f32 %v7860, 1.442695
      %v7864 = vpow.pop %v7863
      %v7865 = vadd.f32 %v7862, 1.0
      %v7866 = vadd.f32 %v7864, 1.0
      %v7867 = vrcp.pop %v7865
      %v7868 = vmul.f32 1.0, %v7867
      %v7869 = vrcp.pop %v7866
      %v7870 = vmul.f32 1.0, %v7869
      %v7871 = vmul.f32 %v7853, %v7868
      %v7872 = vmul.f32 %v7856, %v7870
      %v7873 = vpack.c.bf16 %v7872, %v7871
      %v7875 = vshrl.u32 %v7873, 16
      %v7877 = vrot.slane %v7875, 5
      %v7878 = vshll.u32 %v7873, 16
      %v7880 = vrot.slane %v7878, 6
      %v7881 = vor.u32 %v7877, %v7880
      %v7883 = vsel %vm6760, 0, %v7881
      %v7884 = vsel %vm6775, %v7883, 0
      %v7886 = vrot.slane %v7873, 6
      %v7888 = vsel %vm6781, 0, %v7886
      %v7890 = vsel %vm6792, %v7888, 0
      %v7891 = vrot.slane %v7875, 6
      %v7892 = vrot.slane %v7878, 7
      %v7893 = vor.u32 %v7891, %v7892
      %v7895 = vsel %vm6802, 0, %v7893
      %v7896 = vsel %vm6815, %v7895, 0
      %v7897 = vrot.slane %v7875, 7
      %v7898 = vor.u32 %v7897, %v7878
      %v7900 = vsel %vm1838, 0, %v7898
      %v7901 = vsel %vm6830, %v7900, 0
      %v7902 = vrot.slane %v7878, 1
      %v7903 = vor.u32 %v7875, %v7902
      %v7905 = vsel %vm2271, %v7903, 0
      %v7906 = vsel %vm6843, %v7905, 0
      %v7907 = vrot.slane %v7875, 1
      %v7908 = vrot.slane %v7878, 2
      %v7909 = vor.u32 %v7907, %v7908
      %v7911 = vsel %vm6851, %v7909, 0
      %v7912 = vsel %vm6864, %v7911, 0
      %v7913 = vrot.slane %v7873, 2
      %v7915 = vsel %vm1230, %v7913, 0
      %v7917 = vsel %vm6877, %v7915, 0
      %v7918 = vrot.slane %v7875, 2
      %v7919 = vrot.slane %v7878, 3
      %v7920 = vor.u32 %v7918, %v7919
      %v7922 = vsel %vm6885, %v7920, 0
      %v7923 = vsel %vm6896, %v7922, 0
      %7925 = vrot.lane.b32.xlu0 %v7890, 32
      %v7926 = vpop.permute.xlu0 %7925
      %7928 = vrot.lane.b32.xlu0 %v7896, 64
      %v7929 = vpop.permute.xlu0 %7928
      %7931 = vrot.lane.b32.xlu0 %v7901, 96
      %v7932 = vpop.permute.xlu0 %7931
      %7934 = vrot.lane.b32.xlu0 %v7906, 32
      %v7935 = vpop.permute.xlu0 %7934
      %7937 = vrot.lane.b32.xlu0 %v7912, 64
      %v7938 = vpop.permute.xlu0 %7937
      %7940 = vrot.lane.b32.xlu0 %v7917, 96
      %v7941 = vpop.permute.xlu0 %7940
      %v7944 = vsel %vm3672, %v7884, %v7926
      %v7946 = vsel %vm3738, %v7944, %v7929
      %v7948 = vsel %vm3804, %v7946, %v7932
      %v7951 = vsel %vm3672, %v7873, %v7935
      %v7953 = vsel %vm3738, %v7951, %v7938
      %v7955 = vsel %vm3804, %v7953, %v7941
      %v7957 = vld [vmem:[%s53] sm:$0xf]
      %v7958 = vld [vmem:[%s53 + $0x4] sm:$0xf]
      %v7959 = vld [vmem:[%s53 + $0x8] sm:$0xf]
      %v7960 = vld [vmem:[%s53 + $0xc] sm:$0xf]
      %v7961 = vld [vmem:[%s53 + $0x10] sm:$0xf]
      %v7962 = vld [vmem:[%s53 + $0x14] sm:$0xf]
      %v7963 = vld [vmem:[%s53 + $0x18] sm:$0xf]
      %v7964 = vld [vmem:[%s53 + $0x1c] sm:$0xf]
      %v7965 = vld [vmem:[%s53 + $0x20] sm:$0xf]
      %v7966 = vld [vmem:[%s53 + $0x24] sm:$0xf]
      %v7967 = vld [vmem:[%s53 + $0x28] sm:$0xf]
      %v7968 = vld [vmem:[%s53 + $0x2c] sm:$0xf]
      %v7969 = vld [vmem:[%s53 + $0x30] sm:$0xf]
      %v7970 = vld [vmem:[%s53 + $0x34] sm:$0xf]
      %v7971 = vld [vmem:[%s53 + $0x38] sm:$0xf]
      %v7972 = vld [vmem:[%s53 + $0x3c] sm:$0xf]
      %v7973 = vld [vmem:[%s53 + $0x40] sm:$0xf]
      %v7974 = vld [vmem:[%s53 + $0x44] sm:$0xf]
      %v7975 = vld [vmem:[%s53 + $0x48] sm:$0xf]
      %v7976 = vld [vmem:[%s53 + $0x4c] sm:$0xf]
      %v7977 = vld [vmem:[%s53 + $0x50] sm:$0xf]
      %v7978 = vld [vmem:[%s53 + $0x54] sm:$0xf]
      %v7979 = vld [vmem:[%s53 + $0x58] sm:$0xf]
      %v7980 = vld [vmem:[%s53 + $0x5c] sm:$0xf]
      %v7981 = vld [vmem:[%s53 + $0x60] sm:$0xf]
      %v7982 = vld [vmem:[%s53 + $0x64] sm:$0xf]
      %v7983 = vld [vmem:[%s53 + $0x68] sm:$0xf]
      %v7984 = vld [vmem:[%s53 + $0x6c] sm:$0xf]
      %v7985 = vld [vmem:[%s53 + $0x70] sm:$0xf]
      %v7986 = vld [vmem:[%s53 + $0x74] sm:$0xf]
      %v7987 = vld [vmem:[%s53 + $0x78] sm:$0xf]
      %v7988 = vld [vmem:[%s53 + $0x7c] sm:$0xf]
      %v7989 = vld [vmem:[%s53 + $0x80] sm:$0xf]
      %v7990 = vld [vmem:[%s53 + $0x84] sm:$0xf]
      %v7991 = vld [vmem:[%s53 + $0x88] sm:$0xf]
      %v7992 = vld [vmem:[%s53 + $0x8c] sm:$0xf]
      %v7993 = vld [vmem:[%s55] sm:$0x1]
      %v7995 = vlaneseq
      %v7996 = vshrl.u32 %v7995, 7
      %v7997 = vsub.s32 0, %v7996
      %v7998 = vrot.slane %v7993, %v7997
      %v8036 = vunpack.c.l.b16 %v7957
      %v8037 = vunpack.c.l.b16 %v7958
      %v8038 = vunpack.c.l.b16 %v7959
      %v8039 = vunpack.c.l.b16 %v7960
      %v8040 = vunpack.c.l.b16 %v7961
      %v8041 = vunpack.c.l.b16 %v7962
      %v8042 = vunpack.c.l.b16 %v7963
      %v8043 = vunpack.c.l.b16 %v7964
      %v8044 = vunpack.c.l.b16 %v7965
      %v8045 = vunpack.c.l.b16 %v7966
      %v8046 = vunpack.c.l.b16 %v7967
      %v8047 = vunpack.c.l.b16 %v7968
      %v8048 = vunpack.c.l.b16 %v7969
      %v8049 = vunpack.c.l.b16 %v7970
      %v8050 = vunpack.c.l.b16 %v7971
      %v8051 = vunpack.c.l.b16 %v7972
      %v8052 = vunpack.c.l.b16 %v7973
      %v8053 = vunpack.c.l.b16 %v7974
      %v8054 = vunpack.c.l.b16 %v7975
      %v8055 = vunpack.c.l.b16 %v7976
      %v8056 = vunpack.c.l.b16 %v7977
      %v8057 = vunpack.c.l.b16 %v7978
      %v8058 = vunpack.c.l.b16 %v7979
      %v8059 = vunpack.c.l.b16 %v7980
      %v8060 = vunpack.c.l.b16 %v7981
      %v8061 = vunpack.c.l.b16 %v7982
      %v8062 = vunpack.c.l.b16 %v7983
      %v8063 = vunpack.c.l.b16 %v7984
      %v8064 = vunpack.c.l.b16 %v7985
      %v8065 = vunpack.c.l.b16 %v7986
      %v8066 = vunpack.c.l.b16 %v7987
      %v8067 = vunpack.c.l.b16 %v7988
      %v8068 = vunpack.c.l.b16 %v7989
      %v8069 = vunpack.c.l.b16 %v7990
      %v8070 = vunpack.c.l.b16 %v7991
      %v8071 = vunpack.c.l.b16 %v7992
      %v8072 = vpack.c.b16 %v8037, %v8036
      %v8073 = vpack.c.b16 %v8039, %v8038
      %v8074 = vpack.c.b16 %v8041, %v8040
      %v8075 = vpack.c.b16 %v8043, %v8042
      %v8076 = vpack.c.b16 %v8045, %v8044
      %v8077 = vpack.c.b16 %v8047, %v8046
      %v8078 = vpack.c.b16 %v8049, %v8048
      %v8079 = vpack.c.b16 %v8051, %v8050
      %v8080 = vpack.c.b16 %v8053, %v8052
      %v8081 = vpack.c.b16 %v8055, %v8054
      %v8082 = vpack.c.b16 %v8057, %v8056
      %v8083 = vpack.c.b16 %v8059, %v8058
      %v8084 = vpack.c.b16 %v8061, %v8060
      %v8085 = vpack.c.b16 %v8063, %v8062
      %v8086 = vpack.c.b16 %v8065, %v8064
      %v8087 = vpack.c.b16 %v8067, %v8066
      %v8088 = vpack.c.b16 %v8069, %v8068
      %v8089 = vpack.c.b16 %v8071, %v8070
      %v8109 = vsel %vm3672, %v7923, 0
      %8111 = vmatprep.subr.bf16.mxu0 0
      %8112 = vmatpush1.bf16.msra.mxu0 %v8079
      %8113 = vmatprep.subr.bf16.mxu0 0
      %8114 = vmatpush1.bf16.msra.mxu0 %v8078
      %8115 = vmatprep.subr.bf16.mxu0 0
      %8116 = vmatpush1.bf16.msra.mxu0 %v8077
      %8117 = vmatprep.subr.bf16.mxu0 0
      %8118 = vmatpush1.bf16.msra.mxu0 %v8076
      %8119 = vmatprep.subr.bf16.mxu0 0
      %8120 = vmatpush1.bf16.msra.mxu0 %v8075
      %8121 = vmatprep.subr.bf16.mxu0 0
      %8122 = vmatpush1.bf16.msra.mxu0 %v8074
      %8123 = vmatprep.subr.bf16.mxu0 0
      %8124 = vmatpush1.bf16.msra.mxu0 %v8073
      %8125 = vmatprep.subr.bf16.mxu0 0
      %8126 = vmatpush1.bf16.msra.mxu0 %v8072
      %8127 = vmatprep.subr.bf16.mxu0 0
      %8128 = vmatpush2.bf16.msra.mxu0 %v8087
      %8129 = vmatprep.subr.bf16.mxu0 0
      %8130 = vmatpush2.bf16.msra.mxu0 %v8086
      %8131 = vmatprep.subr.bf16.mxu0 0
      %8132 = vmatpush2.bf16.msra.mxu0 %v8085
      %8133 = vmatprep.subr.bf16.mxu0 0
      %8134 = vmatpush2.bf16.msra.mxu0 %v8084
      %8135 = vmatprep.subr.bf16.mxu0 0
      %8136 = vmatpush2.bf16.msra.mxu0 %v8083
      %8137 = vmatprep.subr.bf16.mxu0 0
      %8138 = vmatpush2.bf16.msra.mxu0 %v8082
      %8139 = vmatprep.subr.bf16.mxu0 0
      %8140 = vmatpush2.bf16.msra.mxu0 %v8081
      %8141 = vmatprep.subr.bf16.mxu0 0
      %8142 = vmatpush2.bf16.msra.mxu0 %v8080
      %8143 = vmatprep.mubr.bf16.mxu0 %v7955
      %8144 = vmatmul.mubr.bf16.gmra.mxu0 %v7948
      %v8145 = vpop.f32.mrf.mxu0
      %v8146 = vadd.f32 %v7998, %v8145
      %v8147 = vpop.f32.mrf.mxu0
      %v8148 = vpop.f32.mrf.mxu0
      %v8149 = vadd.f32 %v7998, %v8148
      %v8150 = vpop.f32.mrf.mxu0
      %8151 = vdwg.mxu0
      %8152 = vmatprep.subr.bf16.mxu0 0
      %8153 = vmatpush1.bf16.msra.mxu0 0
      %8154 = vmatprep.subr.bf16.mxu0 0
      %8155 = vmatpush1.bf16.msra.mxu0 0
      %8156 = vmatprep.subr.bf16.mxu0 0
      %8157 = vmatpush1.bf16.msra.mxu0 0
      %8158 = vmatprep.subr.bf16.mxu0 0
      %8159 = vmatpush1.bf16.msra.mxu0 0
      %8160 = vmatprep.subr.bf16.mxu0 0
      %8161 = vmatpush1.bf16.msra.mxu0 0
      %8162 = vmatprep.subr.bf16.mxu0 0
      %8163 = vmatpush1.bf16.msra.mxu0 0
      %8164 = vmatprep.subr.bf16.mxu0 0
      %8165 = vmatpush1.bf16.msra.mxu0 %v8089
      %8166 = vmatprep.subr.bf16.mxu0 0
      %8167 = vmatpush1.bf16.msra.mxu0 %v8088
      %8168 = vmatprep.subr.bf16.mxu0 0
      %8169 = vmatpush2.bf16.msra.mxu0 0
      %8170 = vmatprep.subr.bf16.mxu0 0
      %8171 = vmatpush2.bf16.msra.mxu0 0
      %8172 = vmatprep.subr.bf16.mxu0 0
      %8173 = vmatpush2.bf16.msra.mxu0 0
      %8174 = vmatprep.subr.bf16.mxu0 0
      %8175 = vmatpush2.bf16.msra.mxu0 0
      %8176 = vmatprep.subr.bf16.mxu0 0
      %8177 = vmatpush2.bf16.msra.mxu0 0
      %8178 = vmatprep.subr.bf16.mxu0 0
      %8179 = vmatpush2.bf16.msra.mxu0 0
      %8180 = vmatprep.subr.bf16.mxu0 0
      %8181 = vmatpush2.bf16.msra.mxu0 0
      %8182 = vmatprep.subr.bf16.mxu0 0
      %8183 = vmatpush2.bf16.msra.mxu0 0
      %8184 = vmatprep.mubr.bf16.mxu0 0
      %8185 = vmatmul.mubr.bf16.gmra.mxu0 %v8109
      %v8186 = vpop.f32.mrf.mxu0
      %v8187 = vadd.f32 %v8146, %v8186
      %v8188 = vpop.f32.mrf.mxu0
      %v8189 = vpop.f32.mrf.mxu0
      %v8190 = vadd.f32 %v8149, %v8189
      %v8191 = vpop.f32.mrf.mxu0
      %8192 = vdwg.mxu0
      %v8193 = vxor.u32 %v8187, 2147483648
      %v8194 = vxor.u32 %v8190, 2147483648
      %v8195 = vmul.f32 %v8193, 1.442695
      %v8196 = vpow.pop %v8195
      %v8197 = vmul.f32 %v8194, 1.442695
      %v8198 = vpow.pop %v8197
      %v8199 = vadd.f32 %v8196, 1.0
      %v8200 = vadd.f32 %v8198, 1.0
      %v8201 = vrcp.pop %v8199
      %v8202 = vmul.f32 1.0, %v8201
      %v8203 = vrcp.pop %v8200
      %v8204 = vmul.f32 1.0, %v8203
      %v8205 = vmul.f32 %v8187, %v8202
      %v8206 = vmul.f32 %v8190, %v8204
      %8209 = vrot.lane.b32.xlu0 %v8205, 32
      %v8210 = vpop.permute.xlu0 %8209
      %8211 = vrot.lane.b32.xlu0 %v8206, 32
      %v8212 = vpop.permute.xlu0 %8211
      %v8215 = vadd.f32 %v7526, %v8210
      %v8216 = vadd.f32 %v7527, %v8212
      %v8217 = vpack.c.bf16 %v8216, %v8215
      %8218 = vrot.lane.b32.xlu0 %v7528, 32
      %v8219 = vpop.permute.xlu0 %8218
      %8221 = vrot.lane.b32.xlu0 %v8217, 64
      %v8222 = vpop.permute.xlu0 %8221
      %v8224 = vsel %vm3738, %v6744, %v8219
      %v8226 = vsel %vm3804, %v8224, %v8222
      %v8228 = vld [vmem:[%s57] sm:$0xf]
      %v8229 = vld [vmem:[%s57 + $0x4] sm:$0xf]
      %v8230 = vld [vmem:[%s57 + $0x8] sm:$0xf]
      %v8231 = vld [vmem:[%s57 + $0xc] sm:$0xf]
      %v8232 = vld [vmem:[%s57 + $0x10] sm:$0xf]
      %v8233 = vld [vmem:[%s57 + $0x14] sm:$0xf]
      %v8234 = vld [vmem:[%s57 + $0x18] sm:$0xf]
      %v8235 = vld [vmem:[%s57 + $0x1c] sm:$0xf]
      %v8236 = vld [vmem:[%s57 + $0x20] sm:$0xf]
      %v8237 = vld [vmem:[%s57 + $0x24] sm:$0xf]
      %v8238 = vld [vmem:[%s57 + $0x28] sm:$0xf]
      %v8239 = vld [vmem:[%s57 + $0x2c] sm:$0xf]
      %v8240 = vld [vmem:[%s57 + $0x30] sm:$0xf]
      %v8241 = vld [vmem:[%s57 + $0x34] sm:$0xf]
      %v8242 = vld [vmem:[%s57 + $0x38] sm:$0xf]
      %v8243 = vld [vmem:[%s57 + $0x3c] sm:$0xf]
      %v8244 = vld [vmem:[%s59] sm:$0x1]
      %v8246 = vlaneseq
      %v8247 = vshrl.u32 %v8246, 7
      %v8248 = vsub.s32 0, %v8247
      %v8249 = vrot.slane %v8244, %v8248
      %v8267 = vunpack.c.l.b16 %v8228
      %v8268 = vunpack.c.l.b16 %v8229
      %v8269 = vunpack.c.l.b16 %v8230
      %v8270 = vunpack.c.l.b16 %v8231
      %v8271 = vunpack.c.l.b16 %v8232
      %v8272 = vunpack.c.l.b16 %v8233
      %v8273 = vunpack.c.l.b16 %v8234
      %v8274 = vunpack.c.l.b16 %v8235
      %v8275 = vunpack.c.l.b16 %v8236
      %v8276 = vunpack.c.l.b16 %v8237
      %v8277 = vunpack.c.l.b16 %v8238
      %v8278 = vunpack.c.l.b16 %v8239
      %v8279 = vunpack.c.l.b16 %v8240
      %v8280 = vunpack.c.l.b16 %v8241
      %v8281 = vunpack.c.l.b16 %v8242
      %v8282 = vunpack.c.l.b16 %v8243
      %v8283 = vpack.c.b16 %v8268, %v8267
      %v8284 = vpack.c.b16 %v8270, %v8269
      %v8285 = vpack.c.b16 %v8272, %v8271
      %v8286 = vpack.c.b16 %v8274, %v8273
      %v8287 = vpack.c.b16 %v8276, %v8275
      %v8288 = vpack.c.b16 %v8278, %v8277
      %v8289 = vpack.c.b16 %v8280, %v8279
      %v8290 = vpack.c.b16 %v8282, %v8281
      %8299 = vmatprep.subr.bf16.mxu0 0
      %8300 = vmatpush1.bf16.msra.mxu0 %v8290
      %8301 = vmatprep.subr.bf16.mxu0 0
      %8302 = vmatpush1.bf16.msra.mxu0 %v8289
      %8303 = vmatprep.subr.bf16.mxu0 0
      %8304 = vmatpush1.bf16.msra.mxu0 %v8288
      %8305 = vmatprep.subr.bf16.mxu0 0
      %8306 = vmatpush1.bf16.msra.mxu0 %v8287
      %8307 = vmatprep.subr.bf16.mxu0 0
      %8308 = vmatpush1.bf16.msra.mxu0 %v8286
      %8309 = vmatprep.subr.bf16.mxu0 0
      %8310 = vmatpush1.bf16.msra.mxu0 %v8285
      %8311 = vmatprep.subr.bf16.mxu0 0
      %8312 = vmatpush1.bf16.msra.mxu0 %v8284
      %8313 = vmatprep.subr.bf16.mxu0 0
      %8314 = vmatpush1.bf16.msra.mxu0 %v8283
      %8315 = vmatprep.subr.bf16.mxu0 0
      %8316 = vmatpush2.bf16.msra.mxu0 0
      %8317 = vmatprep.subr.bf16.mxu0 0
      %8318 = vmatpush2.bf16.msra.mxu0 0
      %8319 = vmatprep.subr.bf16.mxu0 0
      %8320 = vmatpush2.bf16.msra.mxu0 0
      %8321 = vmatprep.subr.bf16.mxu0 0
      %8322 = vmatpush2.bf16.msra.mxu0 0
      %8323 = vmatprep.subr.bf16.mxu0 0
      %8324 = vmatpush2.bf16.msra.mxu0 0
      %8325 = vmatprep.subr.bf16.mxu0 0
      %8326 = vmatpush2.bf16.msra.mxu0 0
      %8327 = vmatprep.subr.bf16.mxu0 0
      %8328 = vmatpush2.bf16.msra.mxu0 0
      %8329 = vmatprep.subr.bf16.mxu0 0
      %8330 = vmatpush2.bf16.msra.mxu0 0
      %8331 = vmatprep.mubr.bf16.mxu0 0
      %8332 = vmatmul.mubr.bf16.gmra.mxu0 %v8226
      %v8333 = vpop.f32.mrf.mxu0
      %v8334 = vadd.f32 %v8249, %v8333
      %v8335 = vpop.f32.mrf.mxu0
      %v8336 = vpop.f32.mrf.mxu0
      %v8337 = vadd.f32 %v8249, %v8336
      %v8338 = vpop.f32.mrf.mxu0
      %8339 = vdwg.mxu0
      %v8340 = vxor.u32 %v8334, 2147483648
      %v8341 = vxor.u32 %v8337, 2147483648
      %v8342 = vmul.f32 %v8340, 1.442695
      %v8343 = vpow.pop %v8342
      %v8344 = vmul.f32 %v8341, 1.442695
      %v8345 = vpow.pop %v8344
      %v8346 = vadd.f32 %v8343, 1.0
      %v8347 = vadd.f32 %v8345, 1.0
      %v8348 = vrcp.pop %v8346
      %v8349 = vmul.f32 1.0, %v8348
      %v8350 = vrcp.pop %v8347
      %v8351 = vmul.f32 1.0, %v8350
      %v8352 = vmul.f32 %v8334, %v8349
      %v8353 = vmul.f32 %v8337, %v8351
      %v8354 = vpack.c.bf16 %v8353, %v8352
      %v8356 = vshrl.u32 %v8354, 16
      %v8358 = vrot.slane %v8356, 5
      %v8359 = vshll.u32 %v8354, 16
      %v8361 = vrot.slane %v8359, 6
      %v8362 = vor.u32 %v8358, %v8361
      %v8364 = vsel %vm6760, 0, %v8362
      %v8365 = vsel %vm6775, %v8364, 0
      %v8367 = vrot.slane %v8354, 6
      %v8369 = vsel %vm6781, 0, %v8367
      %v8371 = vsel %vm6792, %v8369, 0
      %v8372 = vrot.slane %v8356, 6
      %v8373 = vrot.slane %v8359, 7
      %v8374 = vor.u32 %v8372, %v8373
      %v8376 = vsel %vm6802, 0, %v8374
      %v8377 = vsel %vm6815, %v8376, 0
      %v8378 = vrot.slane %v8356, 7
      %v8379 = vor.u32 %v8378, %v8359
      %v8381 = vsel %vm1838, 0, %v8379
      %v8382 = vsel %vm6830, %v8381, 0
      %v8383 = vrot.slane %v8359, 1
      %v8384 = vor.u32 %v8356, %v8383
      %v8386 = vsel %vm2271, %v8384, 0
      %v8387 = vsel %vm6843, %v8386, 0
      %v8388 = vrot.slane %v8356, 1
      %v8389 = vrot.slane %v8359, 2
      %v8390 = vor.u32 %v8388, %v8389
      %v8392 = vsel %vm6851, %v8390, 0
      %v8393 = vsel %vm6864, %v8392, 0
      %v8394 = vrot.slane %v8354, 2
      %v8396 = vsel %vm1230, %v8394, 0
      %v8398 = vsel %vm6877, %v8396, 0
      %v8399 = vrot.slane %v8356, 2
      %v8400 = vrot.slane %v8359, 3
      %v8401 = vor.u32 %v8399, %v8400
      %v8403 = vsel %vm6885, %v8401, 0
      %v8404 = vsel %vm6896, %v8403, 0
      %8406 = vrot.lane.b32.xlu0 %v8371, 64
      %v8407 = vpop.permute.xlu0 %8406
      %8409 = vrot.lane.b32.xlu0 %v8382, 64
      %v8410 = vpop.permute.xlu0 %8409
      %8412 = vrot.lane.b32.xlu0 %v8387, 64
      %v8413 = vpop.permute.xlu0 %8412
      %8415 = vrot.lane.b32.xlu0 %v8398, 64
      %v8416 = vpop.permute.xlu0 %8415
      %v8419 = vsel %vm3738, %v8365, %v8407
      %v8423 = vsel %vm3738, %v8377, %v8410
      %v8426 = vsel %vm3738, %v8354, %v8413
      %v8430 = vsel %vm3738, %v8393, %v8416
      %v8432 = vld [vmem:[%s7] sm:$0x3]
      %v8434 = vsel %vm3623, %v8432, 0
      %8436 = vmatprep.subr.bf16.mxu0 0
      %8437 = vmatpush1.bf16.msra.mxu0 0
      %8438 = vmatprep.subr.bf16.mxu0 0
      %8439 = vmatpush1.bf16.msra.mxu0 0
      %8440 = vmatprep.subr.bf16.mxu0 0
      %8441 = vmatpush1.bf16.msra.mxu0 0
      %8442 = vmatprep.subr.bf16.mxu0 0
      %8443 = vmatpush1.bf16.msra.mxu0 0
      %8444 = vmatprep.subr.bf16.mxu0 0
      %8445 = vmatpush1.bf16.msra.mxu0 0
      %8446 = vmatprep.subr.bf16.mxu0 0
      %8447 = vmatpush1.bf16.msra.mxu0 0
      %8448 = vmatprep.subr.bf16.mxu0 0
      %8449 = vmatpush1.bf16.msra.mxu0 0
      %8450 = vmatprep.subr.bf16.mxu0 %v8423
      %8451 = vmatpush1.bf16.msra.mxu0 %v8419
      %8452 = vmatprep.subr.bf16.mxu0 0
      %8453 = vmatpush2.bf16.msra.mxu0 0
      %8454 = vmatprep.subr.bf16.mxu0 0
      %8455 = vmatpush2.bf16.msra.mxu0 0
      %8456 = vmatprep.subr.bf16.mxu0 0
      %8457 = vmatpush2.bf16.msra.mxu0 0
      %8458 = vmatprep.subr.bf16.mxu0 0
      %8459 = vmatpush2.bf16.msra.mxu0 0
      %8460 = vmatprep.subr.bf16.mxu0 0
      %8461 = vmatpush2.bf16.msra.mxu0 0
      %8462 = vmatprep.subr.bf16.mxu0 0
      %8463 = vmatpush2.bf16.msra.mxu0 0
      %8464 = vmatprep.subr.bf16.mxu0 0
      %8465 = vmatpush2.bf16.msra.mxu0 0
      %8466 = vmatprep.subr.bf16.mxu0 0
      %8467 = vmatpush2.bf16.msra.mxu0 0
      %8468 = vmatprep.mubr.bf16.mxu0 0
      %8469 = vmatmul.mubr.bf16.gmra.mxu0 %v8434
      %v8470 = vpop.f32.mrf.mxu0
      %v8471 = vadd.f32 0.0, %v8470
      %v8472 = vpop.f32.mrf.mxu0
      %v8473 = vadd.f32 0.0, %v8472
      %v8474 = vpop.f32.mrf.mxu0
      %v8475 = vpop.f32.mrf.mxu0
      %8476 = vdwg.mxu0
      %8477 = vmatprep.subr.bf16.mxu0 0
      %8478 = vmatpush1.bf16.msra.mxu0 0
      %8479 = vmatprep.subr.bf16.mxu0 0
      %8480 = vmatpush1.bf16.msra.mxu0 0
      %8481 = vmatprep.subr.bf16.mxu0 0
      %8482 = vmatpush1.bf16.msra.mxu0 0
      %8483 = vmatprep.subr.bf16.mxu0 0
      %8484 = vmatpush1.bf16.msra.mxu0 0
      %8485 = vmatprep.subr.bf16.mxu0 0
      %8486 = vmatpush1.bf16.msra.mxu0 0
      %8487 = vmatprep.subr.bf16.mxu0 0
      %8488 = vmatpush1.bf16.msra.mxu0 0
      %8489 = vmatprep.subr.bf16.mxu0 0
      %8490 = vmatpush1.bf16.msra.mxu0 0
      %8491 = vmatprep.subr.bf16.mxu0 %v8430
      %8492 = vmatpush1.bf16.msra.mxu0 %v8426
      %8493 = vmatprep.subr.bf16.mxu0 0
      %8494 = vmatpush2.bf16.msra.mxu0 0
      %8495 = vmatprep.subr.bf16.mxu0 0
      %8496 = vmatpush2.bf16.msra.mxu0 0
      %8497 = vmatprep.subr.bf16.mxu0 0
      %8498 = vmatpush2.bf16.msra.mxu0 0
      %8499 = vmatprep.subr.bf16.mxu0 0
      %8500 = vmatpush2.bf16.msra.mxu0 0
      %8501 = vmatprep.subr.bf16.mxu0 0
      %8502 = vmatpush2.bf16.msra.mxu0 0
      %8503 = vmatprep.subr.bf16.mxu0 0
      %8504 = vmatpush2.bf16.msra.mxu0 0
      %8505 = vmatprep.subr.bf16.mxu0 0
      %8506 = vmatpush2.bf16.msra.mxu0 0
      %8507 = vmatprep.subr.bf16.mxu0 0
      %8508 = vmatpush2.bf16.msra.mxu0 0
      %8509 = vmatprep.mubr.bf16.mxu0 0
      %8510 = vmatmul.mubr.bf16.gmra.mxu0 %v8434
      %v8511 = vpop.f32.mrf.mxu0
      %v8512 = vadd.f32 0.0, %v8511
      %v8513 = vpop.f32.mrf.mxu0
      %v8514 = vadd.f32 0.0, %v8513
      %v8515 = vpop.f32.mrf.mxu0
      %v8516 = vpop.f32.mrf.mxu0
      %8517 = vdwg.mxu0
      %8518 = vmatprep.subr.bf16.mxu0 0
      %8519 = vmatpush1.bf16.msra.mxu0 0
      %8520 = vmatprep.subr.bf16.mxu0 0
      %8521 = vmatpush1.bf16.msra.mxu0 0
      %8522 = vmatprep.subr.bf16.mxu0 0
      %8523 = vmatpush1.bf16.msra.mxu0 0
      %8524 = vmatprep.subr.bf16.mxu0 0
      %8525 = vmatpush1.bf16.msra.mxu0 0
      %8526 = vmatprep.subr.bf16.mxu0 0
      %8527 = vmatpush1.bf16.msra.mxu0 0
      %8528 = vmatprep.subr.bf16.mxu0 0
      %8529 = vmatpush1.bf16.msra.mxu0 0
      %8530 = vmatprep.subr.bf16.mxu0 0
      %8531 = vmatpush1.bf16.msra.mxu0 0
      %8532 = vmatprep.subr.bf16.mxu0 0
      %8533 = vmatpush1.bf16.msra.mxu0 %v8404
      %8534 = vmatprep.subr.bf16.mxu0 0
      %8535 = vmatpush2.bf16.msra.mxu0 0
      %8536 = vmatprep.subr.bf16.mxu0 0
      %8537 = vmatpush2.bf16.msra.mxu0 0
      %8538 = vmatprep.subr.bf16.mxu0 0
      %8539 = vmatpush2.bf16.msra.mxu0 0
      %8540 = vmatprep.subr.bf16.mxu0 0
      %8541 = vmatpush2.bf16.msra.mxu0 0
      %8542 = vmatprep.subr.bf16.mxu0 0
      %8543 = vmatpush2.bf16.msra.mxu0 0
      %8544 = vmatprep.subr.bf16.mxu0 0
      %8545 = vmatpush2.bf16.msra.mxu0 0
      %8546 = vmatprep.subr.bf16.mxu0 0
      %8547 = vmatpush2.bf16.msra.mxu0 0
      %8548 = vmatprep.subr.bf16.mxu0 0
      %8549 = vmatpush2.bf16.msra.mxu0 0
      %8550 = vmatprep.mubr.bf16.mxu0 0
      %8551 = vmatmul.mubr.bf16.gmra.mxu0 %v8434
      %v8552 = vpop.f32.mrf.mxu0
      %v8553 = vadd.f32 0.0, %v8552
      %v8554 = vpop.f32.mrf.mxu0
      %v8555 = vpop.f32.mrf.mxu0
      %v8556 = vpop.f32.mrf.mxu0
      %8557 = vdwg.mxu0
      %v8558 = vpack.c.bf16 %v8471, %v8471
      %v8559 = vpack.c.bf16 %v8473, %v8473
      %v8560 = vpack.c.bf16 %v8512, %v8512
      %v8561 = vpack.c.bf16 %v8514, %v8514
      %v8562 = vpack.c.bf16 %v8553, %v8553
      %v8563 = vld [vmem:[%s61] sm:$0xf]
      %v8564 = vld [vmem:[%s61 + $0x4] sm:$0xf]
      %v8565 = vld [vmem:[%s61 + $0x8] sm:$0xf]
      %v8566 = vld [vmem:[%s61 + $0xc] sm:$0xf]
      %v8567 = vld [vmem:[%s61 + $0x10] sm:$0xf]
      %v8568 = vld [vmem:[%s61 + $0x14] sm:$0xf]
      %v8569 = vld [vmem:[%s61 + $0x18] sm:$0xf]
      %v8570 = vld [vmem:[%s61 + $0x1c] sm:$0xf]
      %v8571 = vld [vmem:[%s61 + $0x20] sm:$0xf]
      %v8572 = vld [vmem:[%s61 + $0x24] sm:$0xf]
      %v8573 = vld [vmem:[%s61 + $0x28] sm:$0xf]
      %v8574 = vld [vmem:[%s61 + $0x2c] sm:$0xf]
      %v8575 = vld [vmem:[%s61 + $0x30] sm:$0xf]
      %v8576 = vld [vmem:[%s61 + $0x34] sm:$0xf]
      %v8577 = vld [vmem:[%s61 + $0x38] sm:$0xf]
      %v8578 = vld [vmem:[%s61 + $0x3c] sm:$0xf]
      %v8579 = vld [vmem:[%s61 + $0x40] sm:$0xf]
      %v8580 = vld [vmem:[%s61 + $0x44] sm:$0xf]
      %v8581 = vld [vmem:[%s61 + $0x48] sm:$0xf]
      %v8582 = vld [vmem:[%s61 + $0x4c] sm:$0xf]
      %v8583 = vld [vmem:[%s61 + $0x50] sm:$0xf]
      %v8584 = vld [vmem:[%s61 + $0x54] sm:$0xf]
      %v8585 = vld [vmem:[%s61 + $0x58] sm:$0xf]
      %v8586 = vld [vmem:[%s61 + $0x5c] sm:$0xf]
      %v8587 = vld [vmem:[%s61 + $0x60] sm:$0xf]
      %v8588 = vld [vmem:[%s61 + $0x64] sm:$0xf]
      %v8589 = vld [vmem:[%s61 + $0x68] sm:$0xf]
      %v8590 = vld [vmem:[%s61 + $0x6c] sm:$0xf]
      %v8591 = vld [vmem:[%s61 + $0x70] sm:$0xf]
      %v8592 = vld [vmem:[%s61 + $0x74] sm:$0xf]
      %v8593 = vld [vmem:[%s61 + $0x78] sm:$0xf]
      %v8594 = vld [vmem:[%s61 + $0x7c] sm:$0xf]
      %v8595 = vld [vmem:[%s61 + $0x80] sm:$0xf]
      %v8596 = vld [vmem:[%s61 + $0x84] sm:$0xf]
      %v8597 = vld [vmem:[%s61 + $0x88] sm:$0xf]
      %v8598 = vld [vmem:[%s61 + $0x8c] sm:$0xf]
      %v8599 = vld [vmem:[%s61 + $0x90] sm:$0xf]
      %v8600 = vld [vmem:[%s61 + $0x94] sm:$0xf]
      %v8601 = vld [vmem:[%s61 + $0x98] sm:$0xf]
      %v8602 = vld [vmem:[%s61 + $0x9c] sm:$0xf]
      %v8603 = vld [vmem:[%s61 + $0xa0] sm:$0xf]
      %v8604 = vld [vmem:[%s61 + $0xa4] sm:$0xf]
      %v8605 = vld [vmem:[%s61 + $0xa8] sm:$0xf]
      %v8606 = vld [vmem:[%s61 + $0xac] sm:$0xf]
      %v8607 = vld [vmem:[%s61 + $0xb0] sm:$0xf]
      %v8608 = vld [vmem:[%s61 + $0xb4] sm:$0xf]
      %v8609 = vld [vmem:[%s61 + $0xb8] sm:$0xf]
      %v8610 = vld [vmem:[%s61 + $0xbc] sm:$0xf]
      %v8611 = vld [vmem:[%s61 + $0xc0] sm:$0xf]
      %v8612 = vld [vmem:[%s61 + $0xc4] sm:$0xf]
      %v8613 = vld [vmem:[%s61 + $0xc8] sm:$0xf]
      %v8614 = vld [vmem:[%s61 + $0xcc] sm:$0xf]
      %v8615 = vld [vmem:[%s61 + $0xd0] sm:$0xf]
      %v8616 = vld [vmem:[%s61 + $0xd4] sm:$0xf]
      %v8617 = vld [vmem:[%s61 + $0xd8] sm:$0xf]
      %v8618 = vld [vmem:[%s61 + $0xdc] sm:$0xf]
      %v8619 = vld [vmem:[%s61 + $0xe0] sm:$0xf]
      %v8620 = vld [vmem:[%s61 + $0xe4] sm:$0xf]
      %v8621 = vld [vmem:[%s61 + $0xe8] sm:$0xf]
      %v8622 = vld [vmem:[%s61 + $0xec] sm:$0xf]
      %v8623 = vld [vmem:[%s61 + $0xf0] sm:$0xf]
      %v8624 = vld [vmem:[%s61 + $0xf4] sm:$0xf]
      %v8625 = vld [vmem:[%s61 + $0xf8] sm:$0xf]
      %v8626 = vld [vmem:[%s61 + $0xfc] sm:$0xf]
      %v8627 = vld [vmem:[%s61 + $0x100] sm:$0xf]
      %v8628 = vld [vmem:[%s61 + $0x104] sm:$0xf]
      %v8629 = vld [vmem:[%s61 + $0x108] sm:$0xf]
      %v8630 = vld [vmem:[%s61 + $0x10c] sm:$0xf]
      %v8631 = vld [vmem:[%s61 + $0x110] sm:$0xf]
      %v8632 = vld [vmem:[%s61 + $0x114] sm:$0xf]
      %v8633 = vld [vmem:[%s61 + $0x118] sm:$0xf]
      %v8634 = vld [vmem:[%s61 + $0x11c] sm:$0xf]
      %v8635 = vld [vmem:[%s63] sm:$0x1]
      %v8637 = vlaneseq
      %v8638 = vshrl.u32 %v8637, 7
      %v8639 = vsub.s32 0, %v8638
      %v8640 = vrot.slane %v8635, %v8639
      %v8714 = vunpack.c.l.b16 %v8563
      %v8715 = vunpack.c.l.b16 %v8564
      %v8716 = vunpack.c.l.b16 %v8565
      %v8717 = vunpack.c.l.b16 %v8566
      %v8718 = vunpack.c.l.b16 %v8567
      %v8719 = vunpack.c.l.b16 %v8568
      %v8720 = vunpack.c.l.b16 %v8569
      %v8721 = vunpack.c.l.b16 %v8570
      %v8722 = vunpack.c.l.b16 %v8571
      %v8723 = vunpack.c.l.b16 %v8572
      %v8724 = vunpack.c.l.b16 %v8573
      %v8725 = vunpack.c.l.b16 %v8574
      %v8726 = vunpack.c.l.b16 %v8575
      %v8727 = vunpack.c.l.b16 %v8576
      %v8728 = vunpack.c.l.b16 %v8577
      %v8729 = vunpack.c.l.b16 %v8578
      %v8730 = vunpack.c.l.b16 %v8579
      %v8731 = vunpack.c.l.b16 %v8580
      %v8732 = vunpack.c.l.b16 %v8581
      %v8733 = vunpack.c.l.b16 %v8582
      %v8734 = vunpack.c.l.b16 %v8583
      %v8735 = vunpack.c.l.b16 %v8584
      %v8736 = vunpack.c.l.b16 %v8585
      %v8737 = vunpack.c.l.b16 %v8586
      %v8738 = vunpack.c.l.b16 %v8587
      %v8739 = vunpack.c.l.b16 %v8588
      %v8740 = vunpack.c.l.b16 %v8589
      %v8741 = vunpack.c.l.b16 %v8590
      %v8742 = vunpack.c.l.b16 %v8591
      %v8743 = vunpack.c.l.b16 %v8592
      %v8744 = vunpack.c.l.b16 %v8593
      %v8745 = vunpack.c.l.b16 %v8594
      %v8746 = vunpack.c.l.b16 %v8595
      %v8747 = vunpack.c.l.b16 %v8596
      %v8748 = vunpack.c.l.b16 %v8597
      %v8749 = vunpack.c.l.b16 %v8598
      %v8750 = vunpack.c.l.b16 %v8599
      %v8751 = vunpack.c.l.b16 %v8600
      %v8752 = vunpack.c.l.b16 %v8601
      %v8753 = vunpack.c.l.b16 %v8602
      %v8754 = vunpack.c.l.b16 %v8603
      %v8755 = vunpack.c.l.b16 %v8604
      %v8756 = vunpack.c.l.b16 %v8605
      %v8757 = vunpack.c.l.b16 %v8606
      %v8758 = vunpack.c.l.b16 %v8607
      %v8759 = vunpack.c.l.b16 %v8608
      %v8760 = vunpack.c.l.b16 %v8609
      %v8761 = vunpack.c.l.b16 %v8610
      %v8762 = vunpack.c.l.b16 %v8611
      %v8763 = vunpack.c.l.b16 %v8612
      %v8764 = vunpack.c.l.b16 %v8613
      %v8765 = vunpack.c.l.b16 %v8614
      %v8766 = vunpack.c.l.b16 %v8615
      %v8767 = vunpack.c.l.b16 %v8616
      %v8768 = vunpack.c.l.b16 %v8617
      %v8769 = vunpack.c.l.b16 %v8618
      %v8770 = vunpack.c.l.b16 %v8619
      %v8771 = vunpack.c.l.b16 %v8620
      %v8772 = vunpack.c.l.b16 %v8621
      %v8773 = vunpack.c.l.b16 %v8622
      %v8774 = vunpack.c.l.b16 %v8623
      %v8775 = vunpack.c.l.b16 %v8624
      %v8776 = vunpack.c.l.b16 %v8625
      %v8777 = vunpack.c.l.b16 %v8626
      %v8778 = vunpack.c.l.b16 %v8627
      %v8779 = vunpack.c.l.b16 %v8628
      %v8780 = vunpack.c.l.b16 %v8629
      %v8781 = vunpack.c.l.b16 %v8630
      %v8782 = vunpack.c.l.b16 %v8631
      %v8783 = vunpack.c.l.b16 %v8632
      %v8784 = vunpack.c.l.b16 %v8633
      %v8785 = vunpack.c.l.b16 %v8634
      %v8786 = vpack.c.b16 %v8715, %v8714
      %v8787 = vpack.c.b16 %v8717, %v8716
      %v8788 = vpack.c.b16 %v8719, %v8718
      %v8789 = vpack.c.b16 %v8721, %v8720
      %v8790 = vpack.c.b16 %v8723, %v8722
      %v8791 = vpack.c.b16 %v8725, %v8724
      %v8792 = vpack.c.b16 %v8727, %v8726
      %v8793 = vpack.c.b16 %v8729, %v8728
      %v8794 = vpack.c.b16 %v8731, %v8730
      %v8795 = vpack.c.b16 %v8733, %v8732
      %v8796 = vpack.c.b16 %v8735, %v8734
      %v8797 = vpack.c.b16 %v8737, %v8736
      %v8798 = vpack.c.b16 %v8739, %v8738
      %v8799 = vpack.c.b16 %v8741, %v8740
      %v8800 = vpack.c.b16 %v8743, %v8742
      %v8801 = vpack.c.b16 %v8745, %v8744
      %v8802 = vpack.c.b16 %v8747, %v8746
      %v8803 = vpack.c.b16 %v8749, %v8748
      %v8804 = vpack.c.b16 %v8751, %v8750
      %v8805 = vpack.c.b16 %v8753, %v8752
      %v8806 = vpack.c.b16 %v8755, %v8754
      %v8807 = vpack.c.b16 %v8757, %v8756
      %v8808 = vpack.c.b16 %v8759, %v8758
      %v8809 = vpack.c.b16 %v8761, %v8760
      %v8810 = vpack.c.b16 %v8763, %v8762
      %v8811 = vpack.c.b16 %v8765, %v8764
      %v8812 = vpack.c.b16 %v8767, %v8766
      %v8813 = vpack.c.b16 %v8769, %v8768
      %v8814 = vpack.c.b16 %v8771, %v8770
      %v8815 = vpack.c.b16 %v8773, %v8772
      %v8816 = vpack.c.b16 %v8775, %v8774
      %v8817 = vpack.c.b16 %v8777, %v8776
      %v8818 = vpack.c.b16 %v8779, %v8778
      %v8819 = vpack.c.b16 %v8781, %v8780
      %v8820 = vpack.c.b16 %v8783, %v8782
      %v8821 = vpack.c.b16 %v8785, %v8784
      %v8859 = vsel %vm3738, %v8562, 0
      %8861 = vmatprep.subr.bf16.mxu0 0
      %8862 = vmatpush1.bf16.msra.mxu0 %v8793
      %8863 = vmatprep.subr.bf16.mxu0 0
      %8864 = vmatpush1.bf16.msra.mxu0 %v8792
      %8865 = vmatprep.subr.bf16.mxu0 0
      %8866 = vmatpush1.bf16.msra.mxu0 %v8791
      %8867 = vmatprep.subr.bf16.mxu0 0
      %8868 = vmatpush1.bf16.msra.mxu0 %v8790
      %8869 = vmatprep.subr.bf16.mxu0 0
      %8870 = vmatpush1.bf16.msra.mxu0 %v8789
      %8871 = vmatprep.subr.bf16.mxu0 0
      %8872 = vmatpush1.bf16.msra.mxu0 %v8788
      %8873 = vmatprep.subr.bf16.mxu0 0
      %8874 = vmatpush1.bf16.msra.mxu0 %v8787
      %8875 = vmatprep.subr.bf16.mxu0 0
      %8876 = vmatpush1.bf16.msra.mxu0 %v8786
      %8877 = vmatprep.subr.bf16.mxu0 0
      %8878 = vmatpush2.bf16.msra.mxu0 %v8801
      %8879 = vmatprep.subr.bf16.mxu0 0
      %8880 = vmatpush2.bf16.msra.mxu0 %v8800
      %8881 = vmatprep.subr.bf16.mxu0 0
      %8882 = vmatpush2.bf16.msra.mxu0 %v8799
      %8883 = vmatprep.subr.bf16.mxu0 0
      %8884 = vmatpush2.bf16.msra.mxu0 %v8798
      %8885 = vmatprep.subr.bf16.mxu0 0
      %8886 = vmatpush2.bf16.msra.mxu0 %v8797
      %8887 = vmatprep.subr.bf16.mxu0 0
      %8888 = vmatpush2.bf16.msra.mxu0 %v8796
      %8889 = vmatprep.subr.bf16.mxu0 0
      %8890 = vmatpush2.bf16.msra.mxu0 %v8795
      %8891 = vmatprep.subr.bf16.mxu0 0
      %8892 = vmatpush2.bf16.msra.mxu0 %v8794
      %8893 = vmatprep.mubr.bf16.mxu0 %v8559
      %8894 = vmatmul.mubr.bf16.gmra.mxu0 %v8558
      %v8895 = vpop.f32.mrf.mxu0
      %v8896 = vadd.f32 %v8640, %v8895
      %v8897 = vpop.f32.mrf.mxu0
      %v8898 = vpop.f32.mrf.mxu0
      %v8899 = vpop.f32.mrf.mxu0
      %8900 = vdwg.mxu0
      %8901 = vmatprep.subr.bf16.mxu0 0
      %8902 = vmatpush1.bf16.msra.mxu0 %v8809
      %8903 = vmatprep.subr.bf16.mxu0 0
      %8904 = vmatpush1.bf16.msra.mxu0 %v8808
      %8905 = vmatprep.subr.bf16.mxu0 0
      %8906 = vmatpush1.bf16.msra.mxu0 %v8807
      %8907 = vmatprep.subr.bf16.mxu0 0
      %8908 = vmatpush1.bf16.msra.mxu0 %v8806
      %8909 = vmatprep.subr.bf16.mxu0 0
      %8910 = vmatpush1.bf16.msra.mxu0 %v8805
      %8911 = vmatprep.subr.bf16.mxu0 0
      %8912 = vmatpush1.bf16.msra.mxu0 %v8804
      %8913 = vmatprep.subr.bf16.mxu0 0
      %8914 = vmatpush1.bf16.msra.mxu0 %v8803
      %8915 = vmatprep.subr.bf16.mxu0 0
      %8916 = vmatpush1.bf16.msra.mxu0 %v8802
      %8917 = vmatprep.subr.bf16.mxu0 0
      %8918 = vmatpush2.bf16.msra.mxu0 %v8817
      %8919 = vmatprep.subr.bf16.mxu0 0
      %8920 = vmatpush2.bf16.msra.mxu0 %v8816
      %8921 = vmatprep.subr.bf16.mxu0 0
      %8922 = vmatpush2.bf16.msra.mxu0 %v8815
      %8923 = vmatprep.subr.bf16.mxu0 0
      %8924 = vmatpush2.bf16.msra.mxu0 %v8814
      %8925 = vmatprep.subr.bf16.mxu0 0
      %8926 = vmatpush2.bf16.msra.mxu0 %v8813
      %8927 = vmatprep.subr.bf16.mxu0 0
      %8928 = vmatpush2.bf16.msra.mxu0 %v8812
      %8929 = vmatprep.subr.bf16.mxu0 0
      %8930 = vmatpush2.bf16.msra.mxu0 %v8811
      %8931 = vmatprep.subr.bf16.mxu0 0
      %8932 = vmatpush2.bf16.msra.mxu0 %v8810
      %8933 = vmatprep.mubr.bf16.mxu0 %v8561
      %8934 = vmatmul.mubr.bf16.gmra.mxu0 %v8560
      %v8935 = vpop.f32.mrf.mxu0
      %v8936 = vadd.f32 %v8896, %v8935
      %v8937 = vpop.f32.mrf.mxu0
      %v8938 = vpop.f32.mrf.mxu0
      %v8939 = vpop.f32.mrf.mxu0
      %8940 = vdwg.mxu0
      %8941 = vmatprep.subr.bf16.mxu0 0
      %8942 = vmatpush1.bf16.msra.mxu0 0
      %8943 = vmatprep.subr.bf16.mxu0 0
      %8944 = vmatpush1.bf16.msra.mxu0 0
      %8945 = vmatprep.subr.bf16.mxu0 0
      %8946 = vmatpush1.bf16.msra.mxu0 0
      %8947 = vmatprep.subr.bf16.mxu0 0
      %8948 = vmatpush1.bf16.msra.mxu0 0
      %8949 = vmatprep.subr.bf16.mxu0 0
      %8950 = vmatpush1.bf16.msra.mxu0 %v8821
      %8951 = vmatprep.subr.bf16.mxu0 0
      %8952 = vmatpush1.bf16.msra.mxu0 %v8820
      %8953 = vmatprep.subr.bf16.mxu0 0
      %8954 = vmatpush1.bf16.msra.mxu0 %v8819
      %8955 = vmatprep.subr.bf16.mxu0 0
      %8956 = vmatpush1.bf16.msra.mxu0 %v8818
      %8957 = vmatprep.subr.bf16.mxu0 0
      %8958 = vmatpush2.bf16.msra.mxu0 0
      %8959 = vmatprep.subr.bf16.mxu0 0
      %8960 = vmatpush2.bf16.msra.mxu0 0
      %8961 = vmatprep.subr.bf16.mxu0 0
      %8962 = vmatpush2.bf16.msra.mxu0 0
      %8963 = vmatprep.subr.bf16.mxu0 0
      %8964 = vmatpush2.bf16.msra.mxu0 0
      %8965 = vmatprep.subr.bf16.mxu0 0
      %8966 = vmatpush2.bf16.msra.mxu0 0
      %8967 = vmatprep.subr.bf16.mxu0 0
      %8968 = vmatpush2.bf16.msra.mxu0 0
      %8969 = vmatprep.subr.bf16.mxu0 0
      %8970 = vmatpush2.bf16.msra.mxu0 0
      %8971 = vmatprep.subr.bf16.mxu0 0
      %8972 = vmatpush2.bf16.msra.mxu0 0
      %8973 = vmatprep.mubr.bf16.mxu0 0
      %8974 = vmatmul.mubr.bf16.gmra.mxu0 %v8859
      %v8975 = vpop.f32.mrf.mxu0
      %v8976 = vadd.f32 %v8936, %v8975
      %v8977 = vpop.f32.mrf.mxu0
      %v8978 = vpop.f32.mrf.mxu0
      %v8979 = vpop.f32.mrf.mxu0
      %8980 = vdwg.mxu0
      %v8981 = vxor.u32 %v8976, 2147483648
      %v8982 = vmul.f32 %v8981, 1.442695
      %v8983 = vpow.pop %v8982
      %v8984 = vadd.f32 %v8983, 1.0
      %v8985 = vrcp.pop %v8984
      %v8986 = vmul.f32 1.0, %v8985
      %v8987 = vmul.f32 %v8976, %v8986
      %v8988 = vsel %vm4533, %v8987, 0.0
      %v8989 = vrot.slane %v8988, 4
      %v8990 = vadd.f32 %v8988, %v8989
      %v8991 = vrot.slane %v8990, 2
      %v8992 = vadd.f32 %v8990, %v8991
      %v8993 = vrot.slane %v8992, 1
      %v8994 = vadd.f32 %v8992, %v8993
      %v8995 = vrcp.pop 4.0
      %v8996 = vmul.f32 %v8994, %v8995
      %v8997 = vld [vmem:[%s65] sm:$0x1]
      %v8998 = vmul.f32 %v8996, %v8997
      %vm8999 = vcmask 1040384
      %v9000 = vsel %vm8999, %v8998, 0.0
      %9001 = vadd.xlane.f32.xlu0 %v9000
      %v9002 = vpop.xlane.xlu0 %9001
      %v9003 = vld [vmem:[#allocation2] sm:$0x1]
      %v9004 = vadd.f32 %v9002, %v9003
      %v9005 = vxor.u32 %v9004, 2147483648
      %v9006 = vmul.f32 %v9005, 1.442695
      %v9007 = vpow.pop %v9006
      %v9008 = vadd.f32 %v9007, 1.0
      %v9009 = vrcp.pop %v9008
      %v9010 = vmul.f32 1.0, %v9009
      %s9012 = vtos %v9010
      %v9013 = vstv %s9012
      %9015 = vst [vmem:[%s1042] sm:$0xff] %v9013
      %p9016 = scmp.lt.s32.totalorder %s82, 1
      %s9017 = scalar_select %p9016, %s82, 1
      %s9018 = smul.addr %s9017, 8
      %s9019 = scalar_lea.vmem %s69, %s9018
      // Predicated region
      $region157: #{yolov8n_backbone_classifier.1} parent=155 // pred_check
        %p9020 = pneg %p819
      $region158: #{yolov8n_backbone_classifier.1} parent=155 // pred_check_branch
        %9022 = sbr.rel (%p9020) target = $region160
      $region159: #{yolov8n_backbone_classifier.1} parent=155 // pred_region
        _
      $region160: #{yolov8n_backbone_classifier.1} parent=155 // pred_fallthru
        _
    $region156: #{yolov8n_backbone_classifier.1} parent=5 // pred_fallthru
      _
    %p9023 = scmp.le.s32.totalorder 2, %s77
    // Predicated region
    $region161: #{yolov8n_backbone_classifier.1} parent=5 // pred_check
      %p9024 = pneg %p9023
    $region162: #{yolov8n_backbone_classifier.1} parent=5 // pred_check_branch
      %9026 = sbr.rel (%p9024) target = $region164
    $region163: #{yolov8n_backbone_classifier.1} parent=5 // pred_region
      %s9027 = ssub.s32 %s77, 2
      // Predicated region
      $region165: #{yolov8n_backbone_classifier.1} parent=163 // pred_check
        %p9028 = pneg %p825
      $region166: #{yolov8n_backbone_classifier.1} parent=163 // pred_check_branch
        %9030 = sbr.rel (%p9028) target = $region168
      $region167: #{yolov8n_backbone_classifier.1} parent=163 // pred_region
        %p9031 = scmp.lt.s32.totalorder %s83, 1
        %s9032 = scalar_select %p9031, %s83, 1
        %s9033 = smul.addr %s9032, 8
        %s9034 = scalar_lea.vmem %s69, %s9033
      $region168: #{yolov8n_backbone_classifier.1} parent=163 // pred_fallthru
        _
    $region164: #{yolov8n_backbone_classifier.1} parent=5 // pred_fallthru
      _
  $region6: #{yolov8n_backbone_classifier.1} parent=0 // loop_footer
    %s81 = sadd.s32 1, %s77
  $region7: #{yolov8n_backbone_classifier.1} parent=0 // loop_footer_branch
    %76 = sbr.rel target = $region3
  $region8: #{yolov8n_backbone_classifier.1} parent=0 // loop_exit
    _

</llo_original>
